<compile_context>
chip_gen: v7x
topology: tpu7x:2x2x1
jax: 0.10.0
libtpu: 0.0.40
codegen_flags: <defaults>
</compile_context>

<pallas_src>
import functools

import jax
import jax.numpy as jnp
from jax import lax
from jax.experimental import pallas as pl
from jax.experimental.pallas import tpu as pltpu

NEG_SLOPE = 0.1     # LeakyReLU(0.1)
EPS = 1e-5          # BatchNorm eps
LANE = 128          # TPU lane width


def _leaky(y):
    # max(y, a*y) == LeakyReLU(a) for 0 < a < 1  (one vmul + vmax, no select)
    return jnp.maximum(y, NEG_SLOPE * y)


def _round_up(x, m):
    return (x + m - 1) // m * m


def _pick_th(h, w, n):
    """Output image-rows per 3x3-conv tile: divisor of h, sublane-aligned rows."""
    for cand in (32, 16, 8, 4, 2, 1):
        if h % cand == 0 and (cand * w) % 8 == 0:
            return cand
    # Fallback: one block per image — only legal when it still tiles the flat output.
    assert n == 1 or (h * w) % 8 == 0, "unsupported spatial shape for row tiling"
    return h


# ----------------------------------------------------------------------------
# Kernel 1: fused cv1 + cv2 + Bottleneck.cv1 (all 1x1 conv + BN + LeakyReLU)
#   x: (TM, Cin_p)  w12: (Cin_p, 2*hid_p)  wm: (hid_p, hid_p)
#   outputs: y1, y2, b1  each (TM, hid_p)
# ----------------------------------------------------------------------------
def _fused_cv12_m1_kernel(x_ref, w12_ref, s12_ref, b12_ref,
                          wm_ref, sm_ref, bm_ref,
                          y1_ref, y2_ref, b1_ref, *, hid_p):
    cdt = w12_ref.dtype
    x = x_ref[...].astype(cdt)
    y12 = jnp.dot(x, w12_ref[...], preferred_element_type=jnp.float32)
    y12 = _leaky(y12 * s12_ref[...] + b12_ref[...])          # f32 epilogue
    y1 = y12[:, :hid_p]                                       # lane-aligned split
    y2 = y12[:, hid_p:]
    b1 = jnp.dot(y1.astype(cdt), wm_ref[...], preferred_element_type=jnp.float32)
    b1 = _leaky(b1 * sm_ref[...] + bm_ref[...])
    y1_ref[...] = y1.astype(y1_ref.dtype)
    y2_ref[...] = y2.astype(y2_ref.dtype)
    b1_ref[...] = b1.astype(b1_ref.dtype)


def _fused_cv12_m1(x2d, w12, s12, b12, wm, sm, bm, *, hid_p, tm, inter_dtype):
    m, cin_p = x2d.shape
    isz = jnp.dtype(inter_dtype).itemsize
    flops = 2 * m * cin_p * (2 * hid_p) + 2 * m * hid_p * hid_p
    bytes_acc = (m * cin_p * isz + 3 * m * hid_p * isz
                 + (cin_p * 2 * hid_p + hid_p * hid_p) * isz
                 + 3 * hid_p * 4 * 4)
    out_sds = jax.ShapeDtypeStruct((m, hid_p), inter_dtype)
    return pl.pallas_call(
        functools.partial(_fused_cv12_m1_kernel, hid_p=hid_p),
        out_shape=(out_sds, out_sds, out_sds),
        grid=(pl.cdiv(m, tm),),
        in_specs=[
            pl.BlockSpec((tm, cin_p), lambda i: (i, 0)),
            pl.BlockSpec((cin_p, 2 * hid_p), lambda i: (0, 0)),   # VMEM-resident
            pl.BlockSpec((1, 2 * hid_p), lambda i: (0, 0)),
            pl.BlockSpec((1, 2 * hid_p), lambda i: (0, 0)),
            pl.BlockSpec((hid_p, hid_p), lambda i: (0, 0)),
            pl.BlockSpec((1, hid_p), lambda i: (0, 0)),
            pl.BlockSpec((1, hid_p), lambda i: (0, 0)),
        ],
        out_specs=(
            pl.BlockSpec((tm, hid_p), lambda i: (i, 0)),
            pl.BlockSpec((tm, hid_p), lambda i: (i, 0)),
            pl.BlockSpec((tm, hid_p), lambda i: (i, 0)),
        ),
        compiler_params=pltpu.CompilerParams(dimension_semantics=("parallel",)),
        cost_estimate=pl.CostEstimate(flops=int(flops), transcendentals=0,
                                      bytes_accessed=int(bytes_acc)),
    )(x2d, w12, s12, b12, wm, sm, bm)


# ----------------------------------------------------------------------------
# Kernel 2: Bottleneck.cv2 (3x3, stride 1, pad 1) + BN + LeakyReLU + residual,
#           fused with cv3 (1x1 on the virtual concat [m, y2]) + BN + LeakyReLU.
#   b1p: (N, H+2, W+2, Cin_p) halo-padded image (whole image resident per n)
#   w9 : (9*Cin_p, Cin_p)   taps stacked row-major (kh*3+kw)
#   y1/y2: flattened (N*H*W, Cin_p), streamed in (th*W)-row blocks
#   o  : flattened (N*H*W, Cout_p)
# ----------------------------------------------------------------------------
def _conv3x3_cv3_kernel(b1p_ref, w9_ref, s9_ref, b9_ref, y1_ref, y2_ref,
                        w3a_ref, w3b_ref, s3_ref, b3_ref, o_ref, *, th, w_sp):
    cdt = w9_ref.dtype
    cin_p = b1p_ref.shape[-1]
    row0 = pl.multiple_of(pl.program_id(1) * th, th)
    # 3x3 conv as 9 per-tap MXU matmuls accumulated in f32.  No im2col patch is
    # materialized and no whole-slab value is loaded: each tap is a small
    # strided vld straight off the VMEM-resident padded image ref.
    acc = None
    for kh in range(3):
        for kw in range(3):
            tap = b1p_ref[pl.ds(row0 + kh, th), kw:kw + w_sp, :]   # (th, W, Cin_p)
            tap2d = tap.reshape(th * w_sp, cin_p).astype(cdt)
            k = kh * 3 + kw
            wk = w9_ref[k * cin_p:(k + 1) * cin_p, :]
            c = jnp.dot(tap2d, wk, preferred_element_type=jnp.float32)
            acc = c if acc is None else acc + c
    # Bottleneck epilogue: BN + LeakyReLU + residual (y1); stays in f32/VMEM.
    m_tile = _leaky(acc * s9_ref[...] + b9_ref[...]) + y1_ref[...].astype(jnp.float32)
    # Fused cv3 on the virtual concat [m, y2]: two matmuls, no concat, no
    # m_out HBM round trip.
    # TODO(synk): on v6e/v7x a single K=2*hid_p matmul (lane-concat m|y2) would
    # fill the 256-deep MXU better; kept as two K=hid_p dots for simplicity.
    acc3 = jnp.dot(m_tile.astype(cdt), w3a_ref[...],
                   preferred_element_type=jnp.float32)
    acc3 = acc3 + jnp.dot(y2_ref[...].astype(cdt), w3b_ref[...],
                          preferred_element_type=jnp.float32)
    o_ref[...] = _leaky(acc3 * s3_ref[...] + b3_ref[...]).astype(o_ref.dtype)


def _conv3x3_cv3(b1p, w9, s9, b9, y1_2d, y2_2d, w3a, w3b, s3, b3,
                 *, n, h, w, th, out_dtype):
    hid_p = b1p.shape[-1]
    cout_p = w3a.shape[1]
    hb = h // th
    isz = jnp.dtype(y1_2d.dtype).itemsize
    m = n * h * w
    flops = 2 * m * (9 * hid_p) * hid_p + 2 * 2 * m * hid_p * cout_p
    bytes_acc = (n * (h + 2) * (w + 2) * hid_p * isz          # padded b1 image
                 + 2 * m * hid_p * isz                        # y1, y2 streams
                 + m * cout_p * 4                             # f32 output
                 + (9 * hid_p * hid_p + 2 * hid_p * cout_p) * isz)
    # VMEM budget: double-buffered image + weights + streamed tiles + f32 acc.
    vmem_est = (2 * (h + 2) * (w + 2) * hid_p * isz
                + 2 * 9 * hid_p * hid_p * isz
                + 2 * 2 * hid_p * cout_p * isz
                + 2 * 2 * th * w * hid_p * isz
                + 2 * th * w * cout_p * 4
                + 4 * th * w * hid_p * 4)
    vmem_limit = int(min(max(2 * vmem_est, 32 * 1024 * 1024), 64 * 1024 * 1024))
    return pl.pallas_call(
        functools.partial(_conv3x3_cv3_kernel, th=th, w_sp=w),
        out_shape=jax.ShapeDtypeStruct((m, cout_p), out_dtype),
        grid=(n, hb),
        in_specs=[
            # whole padded image per batch element; block index constant across
            # the row axis so it is DMA'd once per image and reused.
            pl.BlockSpec((None, h + 2, w + 2, hid_p), lambda i, j: (i, 0, 0, 0)),
            pl.BlockSpec((9 * hid_p, hid_p), lambda i, j: (0, 0)),
            pl.BlockSpec((1, hid_p), lambda i, j: (0, 0)),
            pl.BlockSpec((1, hid_p), lambda i, j: (0, 0)),
            pl.BlockSpec((th * w, hid_p), lambda i, j: (i * hb + j, 0)),   # y1
            pl.BlockSpec((th * w, hid_p), lambda i, j: (i * hb + j, 0)),   # y2
            pl.BlockSpec((hid_p, cout_p), lambda i, j: (0, 0)),
            pl.BlockSpec((hid_p, cout_p), lambda i, j: (0, 0)),
            pl.BlockSpec((1, cout_p), lambda i, j: (0, 0)),
            pl.BlockSpec((1, cout_p), lambda i, j: (0, 0)),
        ],
        out_specs=pl.BlockSpec((th * w, cout_p), lambda i, j: (i * hb + j, 0)),
        compiler_params=pltpu.CompilerParams(
            dimension_semantics=("parallel", "parallel"),
            vmem_limit_bytes=vmem_limit),
        cost_estimate=pl.CostEstimate(flops=int(flops), transcendentals=0,
                                      bytes_accessed=int(bytes_acc)),
    )(b1p, w9, s9, b9, y1_2d, y2_2d, w3a, w3b, s3, b3)


# ----------------------------------------------------------------------------
# Parameter construction (deterministic, synthetic) and C3 forward
# ----------------------------------------------------------------------------
def bn_fold(gamma, beta, mean, var):
    scale = gamma / jnp.sqrt(var + EPS)
    bias = beta - mean * scale
    return scale.reshape(1, -1), bias.reshape(1, -1)


def make_conv_params(key, cin, cout, ksize):
    kw_, kg, kb, km, kv = jax.random.split(key, 5)
    w = 0.1 * jax.random.normal(kw_, (ksize * ksize, cin, cout), jnp.float32)
    gamma = 1.0 + 0.1 * jax.random.normal(kg, (cout,), jnp.float32)
    beta = 0.1 * jax.random.normal(kb, (cout,), jnp.float32)
    mean = 0.1 * jax.random.normal(km, (cout,), jnp.float32)
    var = jnp.abs(1.0 + 0.1 * jax.random.normal(kv, (cout,), jnp.float32))
    scale, bias = bn_fold(gamma, beta, mean, var)
    if ksize == 1:
        w = w.reshape(cin, cout)
    return {"w": w, "scale": scale, "bias": bias}


def make_c3_params(key, c_in, c_out, expansion=0.5):
    hid = int(c_out * expansion)
    ks = jax.random.split(key, 5)
    return {
        "cv1": make_conv_params(ks[0], c_in, hid, 1),
        "cv2": make_conv_params(ks[1], c_in, hid, 1),
        "cv3": make_conv_params(ks[2], 2 * hid, c_out, 1),
        "m_cv1": make_conv_params(ks[3], hid, hid, 1),   # Bottleneck.cv1 (1x1)
        "m_cv2": make_conv_params(ks[4], hid, hid, 3),   # Bottleneck.cv2 (3x3)
    }


def _pad2(a, rows, cols, val=0.0):
    return jnp.pad(a, ((0, rows - a.shape[0]), (0, cols - a.shape[1])),
                   constant_values=val)


@functools.partial(jax.jit, static_argnames=("compute_dtype",))
def c3_forward_nhwc(x_nhwc, params, compute_dtype=jnp.bfloat16):
    # TODO(synk): repeat>1 would loop the bottleneck block; repeat=1 (module default).
    n, h, w, c_in = x_nhwc.shape
    p = params
    hid = p["cv1"]["w"].shape[1]
    c_out = p["cv3"]["w"].shape[1]

    cin_p = _round_up(c_in, LANE)
    hid_p = _round_up(hid, LANE)
    cout_p = _round_up(c_out, LANE)

    # --- pack / pad parameters (zero weight padding keeps the math exact) ---
    w12 = jnp.concatenate([_pad2(p["cv1"]["w"], cin_p, hid_p),
                           _pad2(p["cv2"]["w"], cin_p, hid_p)], axis=1).astype(compute_dtype)
    s12 = jnp.concatenate([_pad2(p["cv1"]["scale"], 1, hid_p, 1.0),
                           _pad2(p["cv2"]["scale"], 1, hid_p, 1.0)], axis=1)
    b12 = jnp.concatenate([_pad2(p["cv1"]["bias"], 1, hid_p),
                           _pad2(p["cv2"]["bias"], 1, hid_p)], axis=1)
    wm = _pad2(p["m_cv1"]["w"], hid_p, hid_p).astype(compute_dtype)
    sm = _pad2(p["m_cv1"]["scale"], 1, hid_p, 1.0)
    bm = _pad2(p["m_cv1"]["bias"], 1, hid_p)
    w9 = jnp.pad(p["m_cv2"]["w"], ((0, 0), (0, hid_p - hid), (0, hid_p - hid)))
    w9 = w9.reshape(9 * hid_p, hid_p).astype(compute_dtype)
    s9 = _pad2(p["m_cv2"]["scale"], 1, hid_p, 1.0)
    b9 = _pad2(p["m_cv2"]["bias"], 1, hid_p)
    w3a = _pad2(p["cv3"]["w"][:hid], hid_p, cout_p).astype(compute_dtype)   # m branch
    w3b = _pad2(p["cv3"]["w"][hid:], hid_p, cout_p).astype(compute_dtype)   # y2 branch
    s3 = _pad2(p["cv3"]["scale"], 1, cout_p, 1.0)
    b3 = _pad2(p["cv3"]["bias"], 1, cout_p)

    # --- input: channels-last (M, Cin_p), lane-padded ---
    m = n * h * w
    x2d = x_nhwc.reshape(m, c_in)
    x2d = jnp.pad(x2d, ((0, 0), (0, cin_p - c_in))).astype(compute_dtype)

    tm = min(512, m)         # streaming row tile for the 1x1 kernel

    # kernel 1: cv1 + cv2 + Bottleneck.cv1 — one pass over x
    y1, y2, b1 = _fused_cv12_m1(x2d, w12, s12, b12, wm, sm, bm,
                                hid_p=hid_p, tm=tm, inter_dtype=compute_dtype)

    # kernel 2: Bottleneck.cv2 (3x3) + BN + LeakyReLU + residual(y1) + cv3 on
    # the virtual concat [m, y2] — neither m_out nor the concat ever hit HBM.
    # TODO(synk): the 1-pixel halo pad is still a standalone XLA op; folding it
    # into kernel 2's tile fetch (clamped element-offset reads + boundary masks)
    # would save one b1-sized HBM round trip.
    b1p = jnp.pad(b1.reshape(n, h, w, hid_p), ((0, 0), (1, 1), (1, 1), (0, 0)))
    th = _pick_th(h, w, n)
    out2d = _conv3x3_cv3(b1p, w9, s9, b9, y1, y2, w3a, w3b, s3, b3,
                         n=n, h=h, w=w, th=th, out_dtype=jnp.float32)

    return out2d[:, :c_out].reshape(n, h, w, c_out)


@functools.partial(jax.jit, static_argnames=("compute_dtype",))
def c3_forward(x_nchw, params, compute_dtype=jnp.bfloat16):
    # NCHW wrapper around the NHWC core (matches the PyTorch module interface).
    x_nhwc = jnp.transpose(x_nchw, (0, 2, 3, 1))
    out = c3_forward_nhwc(x_nhwc, params, compute_dtype=compute_dtype)
    return jnp.transpose(out, (0, 3, 1, 2))      # back to NCHW (f32)


# ----------------------------------------------------------------------------
# Pure-JAX reference (same math, via lax.conv) for a correctness check
# ----------------------------------------------------------------------------
def _ref_conv_bn_act(x_nhwc, cp, ksize):
    cin = x_nhwc.shape[-1]
    w = cp["w"].reshape(ksize, ksize, cin, -1)
    y = lax.conv_general_dilated(
        x_nhwc, w, window_strides=(1, 1), padding=[(ksize // 2,) * 2] * 2,
        dimension_numbers=("NHWC", "HWIO", "NHWC"))
    y = y * cp["scale"].reshape(1, 1, 1, -1) + cp["bias"].reshape(1, 1, 1, -1)
    return jnp.where(y >= 0, y, NEG_SLOPE * y)


def c3_reference(x_nchw, p):
    x = jnp.transpose(x_nchw, (0, 2, 3, 1))
    y1 = _ref_conv_bn_act(x, p["cv1"], 1)
    y2 = _ref_conv_bn_act(x, p["cv2"], 1)
    b1 = _ref_conv_bn_act(y1, p["m_cv1"], 1)
    b2 = _ref_conv_bn_act(b1, p["m_cv2"], 3)
    m_out = y1 + b2
    cat = jnp.concatenate([m_out, y2], axis=-1)
    out = _ref_conv_bn_act(cat, p["cv3"], 1)
    return jnp.transpose(out, (0, 3, 1, 2))


if __name__ == "__main__":
    key = jax.random.PRNGKey(0)
    kx, kp = jax.random.split(key)

    N, C_IN, H, W = 2, 4, 16, 16
    C_OUT = 4
    x = jax.random.normal(kx, (N, C_IN, H, W), jnp.float32)
    params = make_c3_params(kp, C_IN, C_OUT)

    ref = jax.block_until_ready(c3_reference(x, params))

    # default bf16 compute/intermediate path (MXU rate + half the HBM traffic)
    out_bf16 = jax.block_until_ready(c3_forward(x, params))
    assert out_bf16.shape == (N, C_OUT, H, W), out_bf16.shape
    err_bf16 = float(jnp.max(jnp.abs(out_bf16 - ref)))
    assert err_bf16 < 5e-2, err_bf16

    # f32 path: tight match against the lax.conv reference
    out_f32 = jax.block_until_ready(
        c3_forward(x, params, compute_dtype=jnp.float32))
    err_f32 = float(jnp.max(jnp.abs(out_f32 - ref)))
    assert err_f32 < 1e-3, err_f32

    print("KERNEL_OK")
</pallas_src>

<mosaic_0001>
module attributes {stable_mosaic.version = 11 : i64} {
  func.func @_fused_cv12_m1_kernel(%arg0: i32, %arg1: memref<512x128xbf16, #tpu.memory_space<vmem>>, %arg2: memref<128x256xbf16, #tpu.memory_space<vmem>>, %arg3: memref<1x256xf32, #tpu.memory_space<vmem>>, %arg4: memref<1x256xf32, #tpu.memory_space<vmem>>, %arg5: memref<128x128xbf16, #tpu.memory_space<vmem>>, %arg6: memref<1x128xf32, #tpu.memory_space<vmem>>, %arg7: memref<1x128xf32, #tpu.memory_space<vmem>>, %arg8: memref<512x128xbf16, #tpu.memory_space<vmem>>, %arg9: memref<512x128xbf16, #tpu.memory_space<vmem>>, %arg10: memref<512x128xbf16, #tpu.memory_space<vmem>>) attributes {dimension_semantics = [#tpu.dimension_semantics<parallel>], iteration_bounds = array<i64: 1>, scalar_prefetch = 0 : i64, scratch_operands = 0 : i64, tpu.core_type = #tpu.core_type<tc>, window_params = [{transform_indices = @transform_0, window_bounds = array<i64: 512, 128>}, {pipeline_mode = #tpu.pipeline_mode<synchronous>, transform_indices = @transform_1, window_bounds = array<i64: 128, 256>}, {pipeline_mode = #tpu.pipeline_mode<synchronous>, transform_indices = @transform_2, window_bounds = array<i64: 1, 256>}, {pipeline_mode = #tpu.pipeline_mode<synchronous>, transform_indices = @transform_3, window_bounds = array<i64: 1, 256>}, {pipeline_mode = #tpu.pipeline_mode<synchronous>, transform_indices = @transform_4, window_bounds = array<i64: 128, 128>}, {pipeline_mode = #tpu.pipeline_mode<synchronous>, transform_indices = @transform_5, window_bounds = array<i64: 1, 128>}, {pipeline_mode = #tpu.pipeline_mode<synchronous>, transform_indices = @transform_6, window_bounds = array<i64: 1, 128>}, {transform_indices = @transform_7, window_bounds = array<i64: 512, 128>}, {transform_indices = @transform_8, window_bounds = array<i64: 512, 128>}, {transform_indices = @transform_9, window_bounds = array<i64: 512, 128>}]} {
    %c0 = arith.constant 0 : index
    %c0_0 = arith.constant 0 : index
    %0 = vector.load %arg1[%c0, %c0_0] : memref<512x128xbf16, #tpu.memory_space<vmem>>, vector<512x128xbf16>
    %c0_1 = arith.constant 0 : index
    %c0_2 = arith.constant 0 : index
    %1 = vector.load %arg2[%c0_1, %c0_2] : memref<128x256xbf16, #tpu.memory_space<vmem>>, vector<128x256xbf16>
    %cst = arith.constant dense<0.000000e+00> : vector<512x256xf32>
    %2 = tpu.matmul %0, %1, %cst {dimension_numbers = #tpu.dot_dimension_numbers<[1], [0], [0], [1], [0, 0, 1, 1], [], []>} : vector<512x128xbf16>, vector<128x256xbf16>, vector<512x256xf32> -> vector<512x256xf32>
    %c0_3 = arith.constant 0 : index
    %c0_4 = arith.constant 0 : index
    %3 = vector.load %arg3[%c0_3, %c0_4] : memref<1x256xf32, #tpu.memory_space<vmem>>, vector<1x256xf32>
    %4 = vector.broadcast %3 : vector<1x256xf32> to vector<512x256xf32>
    %5 = arith.mulf %2, %4 : vector<512x256xf32>
    %c0_5 = arith.constant 0 : index
    %c0_6 = arith.constant 0 : index
    %6 = vector.load %arg4[%c0_5, %c0_6] : memref<1x256xf32, #tpu.memory_space<vmem>>, vector<1x256xf32>
    %7 = vector.broadcast %6 : vector<1x256xf32> to vector<512x256xf32>
    %8 = arith.addf %5, %7 : vector<512x256xf32>
    %cst_7 = arith.constant 1.000000e-01 : f32
    %9 = vector.broadcast %cst_7 : f32 to vector<512x256xf32>
    %10 = arith.mulf %9, %8 : vector<512x256xf32>
    %11 = arith.maximumf %8, %10 : vector<512x256xf32>
    %12 = vector.extract_strided_slice %11 {offsets = [0, 0], sizes = [512, 128], strides = [1, 1]} : vector<512x256xf32> to vector<512x128xf32>
    %13 = vector.extract_strided_slice %11 {offsets = [0, 128], sizes = [512, 128], strides = [1, 1]} : vector<512x256xf32> to vector<512x128xf32>
    %14 = arith.truncf %12 : vector<512x128xf32> to vector<512x128xbf16>
    %c0_8 = arith.constant 0 : index
    %c0_9 = arith.constant 0 : index
    %15 = vector.load %arg5[%c0_8, %c0_9] : memref<128x128xbf16, #tpu.memory_space<vmem>>, vector<128x128xbf16>
    %cst_10 = arith.constant dense<0.000000e+00> : vector<512x128xf32>
    %16 = tpu.matmul %14, %15, %cst_10 {dimension_numbers = #tpu.dot_dimension_numbers<[1], [0], [0], [1], [0, 0, 1, 1], [], []>} : vector<512x128xbf16>, vector<128x128xbf16>, vector<512x128xf32> -> vector<512x128xf32>
    %c0_11 = arith.constant 0 : index
    %c0_12 = arith.constant 0 : index
    %17 = vector.load %arg6[%c0_11, %c0_12] : memref<1x128xf32, #tpu.memory_space<vmem>>, vector<1x128xf32>
    %18 = vector.broadcast %17 : vector<1x128xf32> to vector<512x128xf32>
    %19 = arith.mulf %16, %18 : vector<512x128xf32>
    %c0_13 = arith.constant 0 : index
    %c0_14 = arith.constant 0 : index
    %20 = vector.load %arg7[%c0_13, %c0_14] : memref<1x128xf32, #tpu.memory_space<vmem>>, vector<1x128xf32>
    %21 = vector.broadcast %20 : vector<1x128xf32> to vector<512x128xf32>
    %22 = arith.addf %19, %21 : vector<512x128xf32>
    %cst_15 = arith.constant 1.000000e-01 : f32
    %23 = vector.broadcast %cst_15 : f32 to vector<512x128xf32>
    %24 = arith.mulf %23, %22 : vector<512x128xf32>
    %25 = arith.maximumf %22, %24 : vector<512x128xf32>
    %26 = arith.truncf %12 : vector<512x128xf32> to vector<512x128xbf16>
    %c0_16 = arith.constant 0 : index
    %c0_17 = arith.constant 0 : index
    %27 = vector.load %arg8[%c0_16, %c0_17] : memref<512x128xbf16, #tpu.memory_space<vmem>>, vector<512x128xbf16>
    tpu.vector_store %arg8[%c0_16, %c0_17], %26 {strides = array<i32>} : memref<512x128xbf16, #tpu.memory_space<vmem>>, vector<512x128xbf16>,
    %28 = arith.truncf %13 : vector<512x128xf32> to vector<512x128xbf16>
    %c0_18 = arith.constant 0 : index
    %c0_19 = arith.constant 0 : index
    %29 = vector.load %arg9[%c0_18, %c0_19] : memref<512x128xbf16, #tpu.memory_space<vmem>>, vector<512x128xbf16>
    tpu.vector_store %arg9[%c0_18, %c0_19], %28 {strides = array<i32>} : memref<512x128xbf16, #tpu.memory_space<vmem>>, vector<512x128xbf16>,
    %30 = arith.truncf %25 : vector<512x128xf32> to vector<512x128xbf16>
    %c0_20 = arith.constant 0 : index
    %c0_21 = arith.constant 0 : index
    %31 = vector.load %arg10[%c0_20, %c0_21] : memref<512x128xbf16, #tpu.memory_space<vmem>>, vector<512x128xbf16>
    tpu.vector_store %arg10[%c0_20, %c0_21], %30 {strides = array<i32>} : memref<512x128xbf16, #tpu.memory_space<vmem>>, vector<512x128xbf16>,
    return
  }
  func.func @transform_0(%arg0: i32) -> (i32, i32) {
    %c0_i32 = arith.constant 0 : i32
    %c0_i32_0 = arith.constant 0 : i32
    return %arg0, %c0_i32 : i32, i32
  }
  func.func @transform_1(%arg0: i32) -> (i32, i32) {
    %c0_i32 = arith.constant 0 : i32
    %c0_i32_0 = arith.constant 0 : i32
    %c0_i32_1 = arith.constant 0 : i32
    return %c0_i32, %c0_i32_0 : i32, i32
  }
  func.func @transform_2(%arg0: i32) -> (i32, i32) {
    %c0_i32 = arith.constant 0 : i32
    %c0_i32_0 = arith.constant 0 : i32
    %c0_i32_1 = arith.constant 0 : i32
    return %c0_i32, %c0_i32_0 : i32, i32
  }
  func.func @transform_3(%arg0: i32) -> (i32, i32) {
    %c0_i32 = arith.constant 0 : i32
    %c0_i32_0 = arith.constant 0 : i32
    %c0_i32_1 = arith.constant 0 : i32
    return %c0_i32, %c0_i32_0 : i32, i32
  }
  func.func @transform_4(%arg0: i32) -> (i32, i32) {
    %c0_i32 = arith.constant 0 : i32
    %c0_i32_0 = arith.constant 0 : i32
    %c0_i32_1 = arith.constant 0 : i32
    return %c0_i32, %c0_i32_0 : i32, i32
  }
  func.func @transform_5(%arg0: i32) -> (i32, i32) {
    %c0_i32 = arith.constant 0 : i32
    %c0_i32_0 = arith.constant 0 : i32
    %c0_i32_1 = arith.constant 0 : i32
    return %c0_i32, %c0_i32_0 : i32, i32
  }
  func.func @transform_6(%arg0: i32) -> (i32, i32) {
    %c0_i32 = arith.constant 0 : i32
    %c0_i32_0 = arith.constant 0 : i32
    %c0_i32_1 = arith.constant 0 : i32
    return %c0_i32, %c0_i32_0 : i32, i32
  }
  func.func @transform_7(%arg0: i32) -> (i32, i32) {
    %c0_i32 = arith.constant 0 : i32
    %c0_i32_0 = arith.constant 0 : i32
    return %arg0, %c0_i32 : i32, i32
  }
  func.func @transform_8(%arg0: i32) -> (i32, i32) {
    %c0_i32 = arith.constant 0 : i32
    %c0_i32_0 = arith.constant 0 : i32
    return %arg0, %c0_i32 : i32, i32
  }
  func.func @transform_9(%arg0: i32) -> (i32, i32) {
    %c0_i32 = arith.constant 0 : i32
    %c0_i32_0 = arith.constant 0 : i32
    return %arg0, %c0_i32 : i32, i32
  }
}

module attributes {stable_mosaic.version = 11 : i64} {
  func.func @_conv3x3_cv3_kernel(%arg0: i32, %arg1: i32, %arg2: memref<1x18x18x128xbf16, #tpu.memory_space<vmem>>, %arg3: memref<1152x128xbf16, #tpu.memory_space<vmem>>, %arg4: memref<1x128xf32, #tpu.memory_space<vmem>>, %arg5: memref<1x128xf32, #tpu.memory_space<vmem>>, %arg6: memref<256x128xbf16, #tpu.memory_space<vmem>>, %arg7: memref<256x128xbf16, #tpu.memory_space<vmem>>, %arg8: memref<128x128xbf16, #tpu.memory_space<vmem>>, %arg9: memref<128x128xbf16, #tpu.memory_space<vmem>>, %arg10: memref<1x128xf32, #tpu.memory_space<vmem>>, %arg11: memref<1x128xf32, #tpu.memory_space<vmem>>, %arg12: memref<256x128xf32, #tpu.memory_space<vmem>>) attributes {dimension_semantics = [#tpu.dimension_semantics<parallel>, #tpu.dimension_semantics<parallel>], iteration_bounds = array<i64: 2, 1>, scalar_prefetch = 0 : i64, scratch_operands = 0 : i64, tpu.core_type = #tpu.core_type<tc>, window_params = [{transform_indices = @transform_0, window_bounds = array<i64: 1, 18, 18, 128>}, {pipeline_mode = #tpu.pipeline_mode<synchronous>, transform_indices = @transform_1, window_bounds = array<i64: 1152, 128>}, {pipeline_mode = #tpu.pipeline_mode<synchronous>, transform_indices = @transform_2, window_bounds = array<i64: 1, 128>}, {pipeline_mode = #tpu.pipeline_mode<synchronous>, transform_indices = @transform_3, window_bounds = array<i64: 1, 128>}, {transform_indices = @transform_4, window_bounds = array<i64: 256, 128>}, {transform_indices = @transform_5, window_bounds = array<i64: 256, 128>}, {pipeline_mode = #tpu.pipeline_mode<synchronous>, transform_indices = @transform_6, window_bounds = array<i64: 128, 128>}, {pipeline_mode = #tpu.pipeline_mode<synchronous>, transform_indices = @transform_7, window_bounds = array<i64: 128, 128>}, {pipeline_mode = #tpu.pipeline_mode<synchronous>, transform_indices = @transform_8, window_bounds = array<i64: 1, 128>}, {pipeline_mode = #tpu.pipeline_mode<synchronous>, transform_indices = @transform_9, window_bounds = array<i64: 1, 128>}, {transform_indices = @transform_10, window_bounds = array<i64: 256, 128>}]} {
    %c16_i32 = arith.constant 16 : i32
    %0 = arith.muli %arg1, %c16_i32 : i32
    %1 = tpu.assume_multiple %0, 16 : i32
    %c0_i32 = arith.constant 0 : i32
    %2 = arith.addi %1, %c0_i32 : i32
    %c0 = arith.constant 0 : index
    %3 = arith.index_cast %2 : i32 to index
    %c0_0 = arith.constant 0 : index
    %c0_1 = arith.constant 0 : index
    %4 = vector.load %arg2[%c0, %3, %c0_0, %c0_1] : memref<1x18x18x128xbf16, #tpu.memory_space<vmem>>, vector<1x16x16x128xbf16>
    %5 = vector.shape_cast %4 : vector<1x16x16x128xbf16> to vector<16x16x128xbf16>
    %6 = vector.shape_cast %5 : vector<16x16x128xbf16> to vector<256x128xbf16>
    %c0_2 = arith.constant 0 : index
    %c0_3 = arith.constant 0 : index
    %7 = vector.load %arg3[%c0_2, %c0_3] : memref<1152x128xbf16, #tpu.memory_space<vmem>>, vector<128x128xbf16>
    %cst = arith.constant dense<0.000000e+00> : vector<256x128xf32>
    %8 = tpu.matmul %6, %7, %cst {dimension_numbers = #tpu.dot_dimension_numbers<[1], [0], [0], [1], [0, 0, 1, 1], [], []>} : vector<256x128xbf16>, vector<128x128xbf16>, vector<256x128xf32> -> vector<256x128xf32>
    %c0_i32_4 = arith.constant 0 : i32
    %9 = arith.addi %1, %c0_i32_4 : i32
    %c0_5 = arith.constant 0 : index
    %10 = arith.index_cast %9 : i32 to index
    %c1 = arith.constant 1 : index
    %c0_6 = arith.constant 0 : index
    %11 = vector.load %arg2[%c0_5, %10, %c1, %c0_6] : memref<1x18x18x128xbf16, #tpu.memory_space<vmem>>, vector<1x16x16x128xbf16>
    %12 = vector.shape_cast %11 : vector<1x16x16x128xbf16> to vector<16x16x128xbf16>
    %13 = vector.shape_cast %12 : vector<16x16x128xbf16> to vector<256x128xbf16>
    %c128 = arith.constant 128 : index
    %c0_7 = arith.constant 0 : index
    %14 = vector.load %arg3[%c128, %c0_7] : memref<1152x128xbf16, #tpu.memory_space<vmem>>, vector<128x128xbf16>
    %cst_8 = arith.constant dense<0.000000e+00> : vector<256x128xf32>
    %15 = tpu.matmul %13, %14, %cst_8 {dimension_numbers = #tpu.dot_dimension_numbers<[1], [0], [0], [1], [0, 0, 1, 1], [], []>} : vector<256x128xbf16>, vector<128x128xbf16>, vector<256x128xf32> -> vector<256x128xf32>
    %16 = arith.addf %8, %15 : vector<256x128xf32>
    %c0_i32_9 = arith.constant 0 : i32
    %17 = arith.addi %1, %c0_i32_9 : i32
    %c0_10 = arith.constant 0 : index
    %18 = arith.index_cast %17 : i32 to index
    %c2 = arith.constant 2 : index
    %c0_11 = arith.constant 0 : index
    %19 = vector.load %arg2[%c0_10, %18, %c2, %c0_11] : memref<1x18x18x128xbf16, #tpu.memory_space<vmem>>, vector<1x16x16x128xbf16>
    %20 = vector.shape_cast %19 : vector<1x16x16x128xbf16> to vector<16x16x128xbf16>
    %21 = vector.shape_cast %20 : vector<16x16x128xbf16> to vector<256x128xbf16>
    %c256 = arith.constant 256 : index
    %c0_12 = arith.constant 0 : index
    %22 = vector.load %arg3[%c256, %c0_12] : memref<1152x128xbf16, #tpu.memory_space<vmem>>, vector<128x128xbf16>
    %cst_13 = arith.constant dense<0.000000e+00> : vector<256x128xf32>
    %23 = tpu.matmul %21, %22, %cst_13 {dimension_numbers = #tpu.dot_dimension_numbers<[1], [0], [0], [1], [0, 0, 1, 1], [], []>} : vector<256x128xbf16>, vector<128x128xbf16>, vector<256x128xf32> -> vector<256x128xf32>
    %24 = arith.addf %16, %23 : vector<256x128xf32>
    %c1_i32 = arith.constant 1 : i32
    %25 = arith.addi %1, %c1_i32 : i32
    %c0_14 = arith.constant 0 : index
    %26 = arith.index_cast %25 : i32 to index
    %c0_15 = arith.constant 0 : index
    %c0_16 = arith.constant 0 : index
    %27 = vector.load %arg2[%c0_14, %26, %c0_15, %c0_16] : memref<1x18x18x128xbf16, #tpu.memory_space<vmem>>, vector<1x16x16x128xbf16>
    %28 = vector.shape_cast %27 : vector<1x16x16x128xbf16> to vector<16x16x128xbf16>
    %29 = vector.shape_cast %28 : vector<16x16x128xbf16> to vector<256x128xbf16>
    %c384 = arith.constant 384 : index
    %c0_17 = arith.constant 0 : index
    %30 = vector.load %arg3[%c384, %c0_17] : memref<1152x128xbf16, #tpu.memory_space<vmem>>, vector<128x128xbf16>
    %cst_18 = arith.constant dense<0.000000e+00> : vector<256x128xf32>
    %31 = tpu.matmul %29, %30, %cst_18 {dimension_numbers = #tpu.dot_dimension_numbers<[1], [0], [0], [1], [0, 0, 1, 1], [], []>} : vector<256x128xbf16>, vector<128x128xbf16>, vector<256x128xf32> -> vector<256x128xf32>
    %32 = arith.addf %24, %31 : vector<256x128xf32>
    %c1_i32_19 = arith.constant 1 : i32
    %33 = arith.addi %1, %c1_i32_19 : i32
    %c0_20 = arith.constant 0 : index
    %34 = arith.index_cast %33 : i32 to index
    %c1_21 = arith.constant 1 : index
    %c0_22 = arith.constant 0 : index
    %35 = vector.load %arg2[%c0_20, %34, %c1_21, %c0_22] : memref<1x18x18x128xbf16, #tpu.memory_space<vmem>>, vector<1x16x16x128xbf16>
    %36 = vector.shape_cast %35 : vector<1x16x16x128xbf16> to vector<16x16x128xbf16>
    %37 = vector.shape_cast %36 : vector<16x16x128xbf16> to vector<256x128xbf16>
    %c512 = arith.constant 512 : index
    %c0_23 = arith.constant 0 : index
    %38 = vector.load %arg3[%c512, %c0_23] : memref<1152x128xbf16, #tpu.memory_space<vmem>>, vector<128x128xbf16>
    %cst_24 = arith.constant dense<0.000000e+00> : vector<256x128xf32>
    %39 = tpu.matmul %37, %38, %cst_24 {dimension_numbers = #tpu.dot_dimension_numbers<[1], [0], [0], [1], [0, 0, 1, 1], [], []>} : vector<256x128xbf16>, vector<128x128xbf16>, vector<256x128xf32> -> vector<256x128xf32>
    %40 = arith.addf %32, %39 : vector<256x128xf32>
    %c1_i32_25 = arith.constant 1 : i32
    %41 = arith.addi %1, %c1_i32_25 : i32
    %c0_26 = arith.constant 0 : index
    %42 = arith.index_cast %41 : i32 to index
    %c2_27 = arith.constant 2 : index
    %c0_28 = arith.constant 0 : index
    %43 = vector.load %arg2[%c0_26, %42, %c2_27, %c0_28] : memref<1x18x18x128xbf16, #tpu.memory_space<vmem>>, vector<1x16x16x128xbf16>
    %44 = vector.shape_cast %43 : vector<1x16x16x128xbf16> to vector<16x16x128xbf16>
    %45 = vector.shape_cast %44 : vector<16x16x128xbf16> to vector<256x128xbf16>
    %c640 = arith.constant 640 : index
    %c0_29 = arith.constant 0 : index
    %46 = vector.load %arg3[%c640, %c0_29] : memref<1152x128xbf16, #tpu.memory_space<vmem>>, vector<128x128xbf16>
    %cst_30 = arith.constant dense<0.000000e+00> : vector<256x128xf32>
    %47 = tpu.matmul %45, %46, %cst_30 {dimension_numbers = #tpu.dot_dimension_numbers<[1], [0], [0], [1], [0, 0, 1, 1], [], []>} : vector<256x128xbf16>, vector<128x128xbf16>, vector<256x128xf32> -> vector<256x128xf32>
    %48 = arith.addf %40, %47 : vector<256x128xf32>
    %c2_i32 = arith.constant 2 : i32
    %49 = arith.addi %1, %c2_i32 : i32
    %c0_31 = arith.constant 0 : index
    %50 = arith.index_cast %49 : i32 to index
    %c0_32 = arith.constant 0 : index
    %c0_33 = arith.constant 0 : index
    %51 = vector.load %arg2[%c0_31, %50, %c0_32, %c0_33] : memref<1x18x18x128xbf16, #tpu.memory_space<vmem>>, vector<1x16x16x128xbf16>
    %52 = vector.shape_cast %51 : vector<1x16x16x128xbf16> to vector<16x16x128xbf16>
    %53 = vector.shape_cast %52 : vector<16x16x128xbf16> to vector<256x128xbf16>
    %c768 = arith.constant 768 : index
    %c0_34 = arith.constant 0 : index
    %54 = vector.load %arg3[%c768, %c0_34] : memref<1152x128xbf16, #tpu.memory_space<vmem>>, vector<128x128xbf16>
    %cst_35 = arith.constant dense<0.000000e+00> : vector<256x128xf32>
    %55 = tpu.matmul %53, %54, %cst_35 {dimension_numbers = #tpu.dot_dimension_numbers<[1], [0], [0], [1], [0, 0, 1, 1], [], []>} : vector<256x128xbf16>, vector<128x128xbf16>, vector<256x128xf32> -> vector<256x128xf32>
    %56 = arith.addf %48, %55 : vector<256x128xf32>
    %c2_i32_36 = arith.constant 2 : i32
    %57 = arith.addi %1, %c2_i32_36 : i32
    %c0_37 = arith.constant 0 : index
    %58 = arith.index_cast %57 : i32 to index
    %c1_38 = arith.constant 1 : index
    %c0_39 = arith.constant 0 : index
    %59 = vector.load %arg2[%c0_37, %58, %c1_38, %c0_39] : memref<1x18x18x128xbf16, #tpu.memory_space<vmem>>, vector<1x16x16x128xbf16>
    %60 = vector.shape_cast %59 : vector<1x16x16x128xbf16> to vector<16x16x128xbf16>
    %61 = vector.shape_cast %60 : vector<16x16x128xbf16> to vector<256x128xbf16>
    %c896 = arith.constant 896 : index
    %c0_40 = arith.constant 0 : index
    %62 = vector.load %arg3[%c896, %c0_40] : memref<1152x128xbf16, #tpu.memory_space<vmem>>, vector<128x128xbf16>
    %cst_41 = arith.constant dense<0.000000e+00> : vector<256x128xf32>
    %63 = tpu.matmul %61, %62, %cst_41 {dimension_numbers = #tpu.dot_dimension_numbers<[1], [0], [0], [1], [0, 0, 1, 1], [], []>} : vector<256x128xbf16>, vector<128x128xbf16>, vector<256x128xf32> -> vector<256x128xf32>
    %64 = arith.addf %56, %63 : vector<256x128xf32>
    %c2_i32_42 = arith.constant 2 : i32
    %65 = arith.addi %1, %c2_i32_42 : i32
    %c0_43 = arith.constant 0 : index
    %66 = arith.index_cast %65 : i32 to index
    %c2_44 = arith.constant 2 : index
    %c0_45 = arith.constant 0 : index
    %67 = vector.load %arg2[%c0_43, %66, %c2_44, %c0_45] : memref<1x18x18x128xbf16, #tpu.memory_space<vmem>>, vector<1x16x16x128xbf16>
    %68 = vector.shape_cast %67 : vector<1x16x16x128xbf16> to vector<16x16x128xbf16>
    %69 = vector.shape_cast %68 : vector<16x16x128xbf16> to vector<256x128xbf16>
    %c1024 = arith.constant 1024 : index
    %c0_46 = arith.constant 0 : index
    %70 = vector.load %arg3[%c1024, %c0_46] : memref<1152x128xbf16, #tpu.memory_space<vmem>>, vector<128x128xbf16>
    %cst_47 = arith.constant dense<0.000000e+00> : vector<256x128xf32>
    %71 = tpu.matmul %69, %70, %cst_47 {dimension_numbers = #tpu.dot_dimension_numbers<[1], [0], [0], [1], [0, 0, 1, 1], [], []>} : vector<256x128xbf16>, vector<128x128xbf16>, vector<256x128xf32> -> vector<256x128xf32>
    %72 = arith.addf %64, %71 : vector<256x128xf32>
    %c0_48 = arith.constant 0 : index
    %c0_49 = arith.constant 0 : index
    %73 = vector.load %arg4[%c0_48, %c0_49] : memref<1x128xf32, #tpu.memory_space<vmem>>, vector<1x128xf32>
    %74 = vector.broadcast %73 : vector<1x128xf32> to vector<256x128xf32>
    %75 = arith.mulf %72, %74 : vector<256x128xf32>
    %c0_50 = arith.constant 0 : index
    %c0_51 = arith.constant 0 : index
    %76 = vector.load %arg5[%c0_50, %c0_51] : memref<1x128xf32, #tpu.memory_space<vmem>>, vector<1x128xf32>
    %77 = vector.broadcast %76 : vector<1x128xf32> to vector<256x128xf32>
    %78 = arith.addf %75, %77 : vector<256x128xf32>
    %cst_52 = arith.constant 1.000000e-01 : f32
    %79 = vector.broadcast %cst_52 : f32 to vector<256x128xf32>
    %80 = arith.mulf %79, %78 : vector<256x128xf32>
    %81 = arith.maximumf %78, %80 : vector<256x128xf32>
    %c0_53 = arith.constant 0 : index
    %c0_54 = arith.constant 0 : index
    %82 = vector.load %arg6[%c0_53, %c0_54] : memref<256x128xbf16, #tpu.memory_space<vmem>>, vector<256x128xbf16>
    %83 = arith.extf %82 : vector<256x128xbf16> to vector<256x128xf32>
    %84 = arith.addf %81, %83 : vector<256x128xf32>
    %85 = arith.truncf %84 : vector<256x128xf32> to vector<256x128xbf16>
    %c0_55 = arith.constant 0 : index
    %c0_56 = arith.constant 0 : index
    %86 = vector.load %arg8[%c0_55, %c0_56] : memref<128x128xbf16, #tpu.memory_space<vmem>>, vector<128x128xbf16>
    %cst_57 = arith.constant dense<0.000000e+00> : vector<256x128xf32>
    %87 = tpu.matmul %85, %86, %cst_57 {dimension_numbers = #tpu.dot_dimension_numbers<[1], [0], [0], [1], [0, 0, 1, 1], [], []>} : vector<256x128xbf16>, vector<128x128xbf16>, vector<256x128xf32> -> vector<256x128xf32>
    %c0_58 = arith.constant 0 : index
    %c0_59 = arith.constant 0 : index
    %88 = vector.load %arg7[%c0_58, %c0_59] : memref<256x128xbf16, #tpu.memory_space<vmem>>, vector<256x128xbf16>
    %c0_60 = arith.constant 0 : index
    %c0_61 = arith.constant 0 : index
    %89 = vector.load %arg9[%c0_60, %c0_61] : memref<128x128xbf16, #tpu.memory_space<vmem>>, vector<128x128xbf16>
    %cst_62 = arith.constant dense<0.000000e+00> : vector<256x128xf32>
    %90 = tpu.matmul %88, %89, %cst_62 {dimension_numbers = #tpu.dot_dimension_numbers<[1], [0], [0], [1], [0, 0, 1, 1], [], []>} : vector<256x128xbf16>, vector<128x128xbf16>, vector<256x128xf32> -> vector<256x128xf32>
    %91 = arith.addf %87, %90 : vector<256x128xf32>
    %c0_63 = arith.constant 0 : index
    %c0_64 = arith.constant 0 : index
    %92 = vector.load %arg10[%c0_63, %c0_64] : memref<1x128xf32, #tpu.memory_space<vmem>>, vector<1x128xf32>
    %93 = vector.broadcast %92 : vector<1x128xf32> to vector<256x128xf32>
    %94 = arith.mulf %91, %93 : vector<256x128xf32>
    %c0_65 = arith.constant 0 : index
    %c0_66 = arith.constant 0 : index
    %95 = vector.load %arg11[%c0_65, %c0_66] : memref<1x128xf32, #tpu.memory_space<vmem>>, vector<1x128xf32>
    %96 = vector.broadcast %95 : vector<1x128xf32> to vector<256x128xf32>
    %97 = arith.addf %94, %96 : vector<256x128xf32>
    %cst_67 = arith.constant 1.000000e-01 : f32
    %98 = vector.broadcast %cst_67 : f32 to vector<256x128xf32>
    %99 = arith.mulf %98, %97 : vector<256x128xf32>
    %100 = arith.maximumf %97, %99 : vector<256x128xf32>
    %c0_68 = arith.constant 0 : index
    %c0_69 = arith.constant 0 : index
    %101 = vector.load %arg12[%c0_68, %c0_69] : memref<256x128xf32, #tpu.memory_space<vmem>>, vector<256x128xf32>
    tpu.vector_store %arg12[%c0_68, %c0_69], %100 {strides = array<i32>} : memref<256x128xf32, #tpu.memory_space<vmem>>, vector<256x128xf32>,
    return
  }
  func.func @transform_0(%arg0: i32, %arg1: i32) -> (i32, i32, i32, i32) {
    %c0_i32 = arith.constant 0 : i32
    %c0_i32_0 = arith.constant 0 : i32
    %c0_i32_1 = arith.constant 0 : i32
    %c0_i32_2 = arith.constant 0 : i32
    return %arg0, %c0_i32, %c0_i32_0, %c0_i32_1 : i32, i32, i32, i32
  }
  func.func @transform_1(%arg0: i32, %arg1: i32) -> (i32, i32) {
    %c0_i32 = arith.constant 0 : i32
    %c0_i32_0 = arith.constant 0 : i32
    %c0_i32_1 = arith.constant 0 : i32
    return %c0_i32, %c0_i32_0 : i32, i32
  }
  func.func @transform_2(%arg0: i32, %arg1: i32) -> (i32, i32) {
    %c0_i32 = arith.constant 0 : i32
    %c0_i32_0 = arith.constant 0 : i32
    %c0_i32_1 = arith.constant 0 : i32
    return %c0_i32, %c0_i32_0 : i32, i32
  }
  func.func @transform_3(%arg0: i32, %arg1: i32) -> (i32, i32) {
    %c0_i32 = arith.constant 0 : i32
    %c0_i32_0 = arith.constant 0 : i32
    %c0_i32_1 = arith.constant 0 : i32
    return %c0_i32, %c0_i32_0 : i32, i32
  }
  func.func @transform_4(%arg0: i32, %arg1: i32) -> (i32, i32) {
    %c1_i32 = arith.constant 1 : i32
    %0 = arith.muli %arg0, %c1_i32 : i32
    %1 = arith.addi %0, %arg1 : i32
    %c0_i32 = arith.constant 0 : i32
    %c0_i32_0 = arith.constant 0 : i32
    return %1, %c0_i32 : i32, i32
  }
  func.func @transform_5(%arg0: i32, %arg1: i32) -> (i32, i32) {
    %c1_i32 = arith.constant 1 : i32
    %0 = arith.muli %arg0, %c1_i32 : i32
    %1 = arith.addi %0, %arg1 : i32
    %c0_i32 = arith.constant 0 : i32
    %c0_i32_0 = arith.constant 0 : i32
    return %1, %c0_i32 : i32, i32
  }
  func.func @transform_6(%arg0: i32, %arg1: i32) -> (i32, i32) {
    %c0_i32 = arith.constant 0 : i32
    %c0_i32_0 = arith.constant 0 : i32
    %c0_i32_1 = arith.constant 0 : i32
    return %c0_i32, %c0_i32_0 : i32, i32
  }
  func.func @transform_7(%arg0: i32, %arg1: i32) -> (i32, i32) {
    %c0_i32 = arith.constant 0 : i32
    %c0_i32_0 = arith.constant 0 : i32
    %c0_i32_1 = arith.constant 0 : i32
    return %c0_i32, %c0_i32_0 : i32, i32
  }
  func.func @transform_8(%arg0: i32, %arg1: i32) -> (i32, i32) {
    %c0_i32 = arith.constant 0 : i32
    %c0_i32_0 = arith.constant 0 : i32
    %c0_i32_1 = arith.constant 0 : i32
    return %c0_i32, %c0_i32_0 : i32, i32
  }
  func.func @transform_9(%arg0: i32, %arg1: i32) -> (i32, i32) {
    %c0_i32 = arith.constant 0 : i32
    %c0_i32_0 = arith.constant 0 : i32
    %c0_i32_1 = arith.constant 0 : i32
    return %c0_i32, %c0_i32_0 : i32, i32
  }
  func.func @transform_10(%arg0: i32, %arg1: i32) -> (i32, i32) {
    %c1_i32 = arith.constant 1 : i32
    %0 = arith.muli %arg0, %c1_i32 : i32
    %1 = arith.addi %0, %arg1 : i32
    %c0_i32 = arith.constant 0 : i32
    %c0_i32_0 = arith.constant 0 : i32
    return %1, %c0_i32 : i32, i32
  }
}

</mosaic_0001>

<llo_original>
// kernel: c3_forward_nhwc.2
$region0: #{c3_forward_nhwc.2}
  #allocation0 [shape = 'u32[]', space=smem, size = 0x4, offset = 0x4, fixed_abs, tag = 'smem constant byte address 0x4 - core index']
  #allocation1 [shape = 'u32[144,128]{1,0:T(1,128)}', space=vmem, size = 0x12000, scoped, tag = 'internal scratch']
  %s0 = inlined_call_operand.vmem [shape: bf16[512,128], index: 0, kind: input, shape index: {}]
  %s1 = inlined_call_operand.vmem [shape: bf16[128,256], index: 1, kind: input, shape index: {}]
  %s2 = inlined_call_operand.vmem [shape: f32[1,256], index: 2, kind: input, shape index: {}]
  %s3 = inlined_call_operand.vmem [shape: f32[1,256], index: 3, kind: input, shape index: {}]
  %s4 = inlined_call_operand.vmem [shape: bf16[128,128], index: 4, kind: input, shape index: {}]
  %s5 = inlined_call_operand.vmem [shape: f32[1,128], index: 5, kind: input, shape index: {}]
  %s6 = inlined_call_operand.vmem [shape: f32[1,128], index: 6, kind: input, shape index: {}]
  %s7 = inlined_call_operand.vmem [shape: bf16[512,128], index: 7, kind: output, shape index: {0}]
  %s8 = inlined_call_operand.vmem [shape: bf16[512,128], index: 8, kind: output, shape index: {1}]
  %s9 = inlined_call_operand.vmem [shape: bf16[512,128], index: 9, kind: output, shape index: {2}]
  %10 = xla_tuple %s7, %s8, %s9
  %s11 = sld [smem:[#allocation0]]
  $region54: #{c3_forward_nhwc.2} parent=0
    _
  %s13 = ssub.s32 1, %s11
  %s14 = scalar_select 0, %s13, %s11
  // Predicated region
  $region2: #{c3_forward_nhwc.2} parent=0 // pred_check
    _
  $region3: #{c3_forward_nhwc.2} parent=0 // pred_check_branch
    %16 = sbr.rel (0) target = $region5
  $region4: #{c3_forward_nhwc.2} parent=0 // pred_region
    _
  $region5: #{c3_forward_nhwc.2} parent=0 // pred_fallthru
    _
  // Predicated region
  $region6: #{c3_forward_nhwc.2} parent=0 // pred_check
    _
  $region7: #{c3_forward_nhwc.2} parent=0 // pred_check_branch
    %18 = sbr.rel (0) target = $region9
  $region8: #{c3_forward_nhwc.2} parent=0 // pred_region
    _
  $region9: #{c3_forward_nhwc.2} parent=0 // pred_fallthru
    _
  // Predicated region
  $region10: #{c3_forward_nhwc.2} parent=0 // pred_check
    _
  $region11: #{c3_forward_nhwc.2} parent=0 // pred_check_branch
    %20 = sbr.rel (0) target = $region13
  $region12: #{c3_forward_nhwc.2} parent=0 // pred_region
    _
  $region13: #{c3_forward_nhwc.2} parent=0 // pred_fallthru
    _
  // Predicated region
  $region14: #{c3_forward_nhwc.2} parent=0 // pred_check
    _
  $region15: #{c3_forward_nhwc.2} parent=0 // pred_check_branch
    %22 = sbr.rel (0) target = $region17
  $region16: #{c3_forward_nhwc.2} parent=0 // pred_region
    _
  $region17: #{c3_forward_nhwc.2} parent=0 // pred_fallthru
    _
  // Predicated region
  $region18: #{c3_forward_nhwc.2} parent=0 // pred_check
    _
  $region19: #{c3_forward_nhwc.2} parent=0 // pred_check_branch
    %24 = sbr.rel (0) target = $region21
  $region20: #{c3_forward_nhwc.2} parent=0 // pred_region
    _
  $region21: #{c3_forward_nhwc.2} parent=0 // pred_fallthru
    _
  // Predicated region
  $region22: #{c3_forward_nhwc.2} parent=0 // pred_check
    _
  $region23: #{c3_forward_nhwc.2} parent=0 // pred_check_branch
    %26 = sbr.rel (0) target = $region25
  $region24: #{c3_forward_nhwc.2} parent=0 // pred_region
    _
  $region25: #{c3_forward_nhwc.2} parent=0 // pred_fallthru
    _
  // Predicated region
  $region26: #{c3_forward_nhwc.2} parent=0 // pred_check
    _
  $region27: #{c3_forward_nhwc.2} parent=0 // pred_check_branch
    %28 = sbr.rel (0) target = $region29
  $region28: #{c3_forward_nhwc.2} parent=0 // pred_region
    _
  $region29: #{c3_forward_nhwc.2} parent=0 // pred_fallthru
    _
  %v30 = vld [vmem:[%s0] sm:$0xf]
  %v31 = vld [vmem:[%s0 + $0x4] sm:$0xf]
  %v32 = vld [vmem:[%s0 + $0x8] sm:$0xf]
  %v33 = vld [vmem:[%s0 + $0xc] sm:$0xf]
  %v34 = vld [vmem:[%s0 + $0x10] sm:$0xf]
  %v35 = vld [vmem:[%s0 + $0x14] sm:$0xf]
  %v36 = vld [vmem:[%s0 + $0x18] sm:$0xf]
  %v37 = vld [vmem:[%s0 + $0x1c] sm:$0xf]
  %v38 = vld [vmem:[%s0 + $0x20] sm:$0xf]
  %v39 = vld [vmem:[%s0 + $0x24] sm:$0xf]
  %v40 = vld [vmem:[%s0 + $0x28] sm:$0xf]
  %v41 = vld [vmem:[%s0 + $0x2c] sm:$0xf]
  %v42 = vld [vmem:[%s0 + $0x30] sm:$0xf]
  %v43 = vld [vmem:[%s0 + $0x34] sm:$0xf]
  %v44 = vld [vmem:[%s0 + $0x38] sm:$0xf]
  %v45 = vld [vmem:[%s0 + $0x3c] sm:$0xf]
  %v46 = vld [vmem:[%s0 + $0x40] sm:$0xf]
  %v47 = vld [vmem:[%s0 + $0x44] sm:$0xf]
  %v48 = vld [vmem:[%s0 + $0x48] sm:$0xf]
  %v49 = vld [vmem:[%s0 + $0x4c] sm:$0xf]
  %v50 = vld [vmem:[%s0 + $0x50] sm:$0xf]
  %v51 = vld [vmem:[%s0 + $0x54] sm:$0xf]
  %v52 = vld [vmem:[%s0 + $0x58] sm:$0xf]
  %v53 = vld [vmem:[%s0 + $0x5c] sm:$0xf]
  %v54 = vld [vmem:[%s0 + $0x60] sm:$0xf]
  %v55 = vld [vmem:[%s0 + $0x64] sm:$0xf]
  %v56 = vld [vmem:[%s0 + $0x68] sm:$0xf]
  %v57 = vld [vmem:[%s0 + $0x6c] sm:$0xf]
  %v58 = vld [vmem:[%s0 + $0x70] sm:$0xf]
  %v59 = vld [vmem:[%s0 + $0x74] sm:$0xf]
  %v60 = vld [vmem:[%s0 + $0x78] sm:$0xf]
  %v61 = vld [vmem:[%s0 + $0x7c] sm:$0xf]
  %v62 = vld [vmem:[%s0 + $0x80] sm:$0xf]
  %v63 = vld [vmem:[%s0 + $0x84] sm:$0xf]
  %v64 = vld [vmem:[%s0 + $0x88] sm:$0xf]
  %v65 = vld [vmem:[%s0 + $0x8c] sm:$0xf]
  %v66 = vld [vmem:[%s0 + $0x90] sm:$0xf]
  %v67 = vld [vmem:[%s0 + $0x94] sm:$0xf]
  %v68 = vld [vmem:[%s0 + $0x98] sm:$0xf]
  %v69 = vld [vmem:[%s0 + $0x9c] sm:$0xf]
  %v70 = vld [vmem:[%s0 + $0xa0] sm:$0xf]
  %v71 = vld [vmem:[%s0 + $0xa4] sm:$0xf]
  %v72 = vld [vmem:[%s0 + $0xa8] sm:$0xf]
  %v73 = vld [vmem:[%s0 + $0xac] sm:$0xf]
  %v74 = vld [vmem:[%s0 + $0xb0] sm:$0xf]
  %v75 = vld [vmem:[%s0 + $0xb4] sm:$0xf]
  %v76 = vld [vmem:[%s0 + $0xb8] sm:$0xf]
  %v77 = vld [vmem:[%s0 + $0xbc] sm:$0xf]
  %v78 = vld [vmem:[%s0 + $0xc0] sm:$0xf]
  %v79 = vld [vmem:[%s0 + $0xc4] sm:$0xf]
  %v80 = vld [vmem:[%s0 + $0xc8] sm:$0xf]
  %v81 = vld [vmem:[%s0 + $0xcc] sm:$0xf]
  %v82 = vld [vmem:[%s0 + $0xd0] sm:$0xf]
  %v83 = vld [vmem:[%s0 + $0xd4] sm:$0xf]
  %v84 = vld [vmem:[%s0 + $0xd8] sm:$0xf]
  %v85 = vld [vmem:[%s0 + $0xdc] sm:$0xf]
  %v86 = vld [vmem:[%s0 + $0xe0] sm:$0xf]
  %v87 = vld [vmem:[%s0 + $0xe4] sm:$0xf]
  %v88 = vld [vmem:[%s0 + $0xe8] sm:$0xf]
  %v89 = vld [vmem:[%s0 + $0xec] sm:$0xf]
  %v90 = vld [vmem:[%s0 + $0xf0] sm:$0xf]
  %v91 = vld [vmem:[%s0 + $0xf4] sm:$0xf]
  %v92 = vld [vmem:[%s0 + $0xf8] sm:$0xf]
  %v93 = vld [vmem:[%s0 + $0xfc] sm:$0xf]
  %v94 = vld [vmem:[%s1] sm:$0xff]
  %v95 = vld [vmem:[%s1 + $0x8] sm:$0xff]
  %v96 = vld [vmem:[%s1 + $0x10] sm:$0xff]
  %v97 = vld [vmem:[%s1 + $0x18] sm:$0xff]
  %v98 = vld [vmem:[%s1 + $0x20] sm:$0xff]
  %v99 = vld [vmem:[%s1 + $0x28] sm:$0xff]
  %v100 = vld [vmem:[%s1 + $0x30] sm:$0xff]
  %v101 = vld [vmem:[%s1 + $0x38] sm:$0xff]
  %v102 = vld [vmem:[%s1 + $0x40] sm:$0xff]
  %v103 = vld [vmem:[%s1 + $0x48] sm:$0xff]
  %v104 = vld [vmem:[%s1 + $0x50] sm:$0xff]
  %v105 = vld [vmem:[%s1 + $0x58] sm:$0xff]
  %v106 = vld [vmem:[%s1 + $0x60] sm:$0xff]
  %v107 = vld [vmem:[%s1 + $0x68] sm:$0xff]
  %v108 = vld [vmem:[%s1 + $0x70] sm:$0xff]
  %v109 = vld [vmem:[%s1 + $0x78] sm:$0xff]
  %v174 = vunpack.c.l.b16 %v30
  %v175 = vunpack.c.l.b16 %v31
  %v176 = vunpack.c.l.b16 %v32
  %v177 = vunpack.c.l.b16 %v33
  %v178 = vunpack.c.l.b16 %v34
  %v179 = vunpack.c.l.b16 %v35
  %v180 = vunpack.c.l.b16 %v36
  %v181 = vunpack.c.l.b16 %v37
  %v182 = vunpack.c.l.b16 %v38
  %v183 = vunpack.c.l.b16 %v39
  %v184 = vunpack.c.l.b16 %v40
  %v185 = vunpack.c.l.b16 %v41
  %v186 = vunpack.c.l.b16 %v42
  %v187 = vunpack.c.l.b16 %v43
  %v188 = vunpack.c.l.b16 %v44
  %v189 = vunpack.c.l.b16 %v45
  %v190 = vunpack.c.l.b16 %v46
  %v191 = vunpack.c.l.b16 %v47
  %v192 = vunpack.c.l.b16 %v48
  %v193 = vunpack.c.l.b16 %v49
  %v194 = vunpack.c.l.b16 %v50
  %v195 = vunpack.c.l.b16 %v51
  %v196 = vunpack.c.l.b16 %v52
  %v197 = vunpack.c.l.b16 %v53
  %v198 = vunpack.c.l.b16 %v54
  %v199 = vunpack.c.l.b16 %v55
  %v200 = vunpack.c.l.b16 %v56
  %v201 = vunpack.c.l.b16 %v57
  %v202 = vunpack.c.l.b16 %v58
  %v203 = vunpack.c.l.b16 %v59
  %v204 = vunpack.c.l.b16 %v60
  %v205 = vunpack.c.l.b16 %v61
  %v206 = vunpack.c.l.b16 %v62
  %v207 = vunpack.c.l.b16 %v63
  %v208 = vunpack.c.l.b16 %v64
  %v209 = vunpack.c.l.b16 %v65
  %v210 = vunpack.c.l.b16 %v66
  %v211 = vunpack.c.l.b16 %v67
  %v212 = vunpack.c.l.b16 %v68
  %v213 = vunpack.c.l.b16 %v69
  %v214 = vunpack.c.l.b16 %v70
  %v215 = vunpack.c.l.b16 %v71
  %v216 = vunpack.c.l.b16 %v72
  %v217 = vunpack.c.l.b16 %v73
  %v218 = vunpack.c.l.b16 %v74
  %v219 = vunpack.c.l.b16 %v75
  %v220 = vunpack.c.l.b16 %v76
  %v221 = vunpack.c.l.b16 %v77
  %v222 = vunpack.c.l.b16 %v78
  %v223 = vunpack.c.l.b16 %v79
  %v224 = vunpack.c.l.b16 %v80
  %v225 = vunpack.c.l.b16 %v81
  %v226 = vunpack.c.l.b16 %v82
  %v227 = vunpack.c.l.b16 %v83
  %v228 = vunpack.c.l.b16 %v84
  %v229 = vunpack.c.l.b16 %v85
  %v230 = vunpack.c.l.b16 %v86
  %v231 = vunpack.c.l.b16 %v87
  %v232 = vunpack.c.l.b16 %v88
  %v233 = vunpack.c.l.b16 %v89
  %v234 = vunpack.c.l.b16 %v90
  %v235 = vunpack.c.l.b16 %v91
  %v236 = vunpack.c.l.b16 %v92
  %v237 = vunpack.c.l.b16 %v93
  %v238 = vpack.c.b16 %v175, %v174
  %v239 = vpack.c.b16 %v177, %v176
  %v240 = vpack.c.b16 %v179, %v178
  %v241 = vpack.c.b16 %v181, %v180
  %v242 = vpack.c.b16 %v183, %v182
  %v243 = vpack.c.b16 %v185, %v184
  %v244 = vpack.c.b16 %v187, %v186
  %v245 = vpack.c.b16 %v189, %v188
  %v246 = vpack.c.b16 %v191, %v190
  %v247 = vpack.c.b16 %v193, %v192
  %v248 = vpack.c.b16 %v195, %v194
  %v249 = vpack.c.b16 %v197, %v196
  %v250 = vpack.c.b16 %v199, %v198
  %v251 = vpack.c.b16 %v201, %v200
  %v252 = vpack.c.b16 %v203, %v202
  %v253 = vpack.c.b16 %v205, %v204
  %v254 = vpack.c.b16 %v207, %v206
  %v255 = vpack.c.b16 %v209, %v208
  %v256 = vpack.c.b16 %v211, %v210
  %v257 = vpack.c.b16 %v213, %v212
  %v258 = vpack.c.b16 %v215, %v214
  %v259 = vpack.c.b16 %v217, %v216
  %v260 = vpack.c.b16 %v219, %v218
  %v261 = vpack.c.b16 %v221, %v220
  %v262 = vpack.c.b16 %v223, %v222
  %v263 = vpack.c.b16 %v225, %v224
  %v264 = vpack.c.b16 %v227, %v226
  %v265 = vpack.c.b16 %v229, %v228
  %v266 = vpack.c.b16 %v231, %v230
  %v267 = vpack.c.b16 %v233, %v232
  %v268 = vpack.c.b16 %v235, %v234
  %v269 = vpack.c.b16 %v237, %v236
  %v318 = vunpack.c.l.b16 %v94
  %v319 = vunpack.c.h.b16 %v94
  %v320 = vunpack.c.l.b16 %v95
  %v321 = vunpack.c.h.b16 %v95
  %v322 = vunpack.c.l.b16 %v96
  %v323 = vunpack.c.h.b16 %v96
  %v324 = vunpack.c.l.b16 %v97
  %v325 = vunpack.c.h.b16 %v97
  %v326 = vunpack.c.l.b16 %v98
  %v327 = vunpack.c.h.b16 %v98
  %v328 = vunpack.c.l.b16 %v99
  %v329 = vunpack.c.h.b16 %v99
  %v330 = vunpack.c.l.b16 %v100
  %v331 = vunpack.c.h.b16 %v100
  %v332 = vunpack.c.l.b16 %v101
  %v333 = vunpack.c.h.b16 %v101
  %v334 = vunpack.c.l.b16 %v102
  %v335 = vunpack.c.h.b16 %v102
  %v336 = vunpack.c.l.b16 %v103
  %v337 = vunpack.c.h.b16 %v103
  %v338 = vunpack.c.l.b16 %v104
  %v339 = vunpack.c.h.b16 %v104
  %v340 = vunpack.c.l.b16 %v105
  %v341 = vunpack.c.h.b16 %v105
  %v342 = vunpack.c.l.b16 %v106
  %v343 = vunpack.c.h.b16 %v106
  %v344 = vunpack.c.l.b16 %v107
  %v345 = vunpack.c.h.b16 %v107
  %v346 = vunpack.c.l.b16 %v108
  %v347 = vunpack.c.h.b16 %v108
  %v348 = vunpack.c.l.b16 %v109
  %v349 = vunpack.c.h.b16 %v109
  %v350 = vpack.c.b16 %v320, %v318
  %v351 = vpack.c.b16 %v321, %v319
  %v352 = vpack.c.b16 %v324, %v322
  %v353 = vpack.c.b16 %v325, %v323
  %v354 = vpack.c.b16 %v328, %v326
  %v355 = vpack.c.b16 %v329, %v327
  %v356 = vpack.c.b16 %v332, %v330
  %v357 = vpack.c.b16 %v333, %v331
  %v358 = vpack.c.b16 %v336, %v334
  %v359 = vpack.c.b16 %v337, %v335
  %v360 = vpack.c.b16 %v340, %v338
  %v361 = vpack.c.b16 %v341, %v339
  %v362 = vpack.c.b16 %v344, %v342
  %v363 = vpack.c.b16 %v345, %v343
  %v364 = vpack.c.b16 %v348, %v346
  %v365 = vpack.c.b16 %v349, %v347
  %382 = vmatprep.subr.bf16.mxu0 %v351
  %383 = vmatpush1.bf16.msra.mxu0 %v350
  %384 = vmatprep.subr.bf16.mxu0 %v353
  %385 = vmatpush1.bf16.msra.mxu0 %v352
  %386 = vmatprep.subr.bf16.mxu0 %v355
  %387 = vmatpush1.bf16.msra.mxu0 %v354
  %388 = vmatprep.subr.bf16.mxu0 %v357
  %389 = vmatpush1.bf16.msra.mxu0 %v356
  %390 = vmatprep.subr.bf16.mxu0 %v359
  %391 = vmatpush1.bf16.msra.mxu0 %v358
  %392 = vmatprep.subr.bf16.mxu0 %v361
  %393 = vmatpush1.bf16.msra.mxu0 %v360
  %394 = vmatprep.subr.bf16.mxu0 %v363
  %395 = vmatpush1.bf16.msra.mxu0 %v362
  %396 = vmatprep.subr.bf16.mxu0 %v365
  %397 = vmatpush1.bf16.msra.mxu0 %v364
  %398 = vmatprep.subr.bf16.mxu0 0
  %399 = vmatpush1.bf16.msra.mxu0 0
  %400 = vmatprep.subr.bf16.mxu0 0
  %401 = vmatpush1.bf16.msra.mxu0 0
  %402 = vmatprep.subr.bf16.mxu0 0
  %403 = vmatpush1.bf16.msra.mxu0 0
  %404 = vmatprep.subr.bf16.mxu0 0
  %405 = vmatpush1.bf16.msra.mxu0 0
  %406 = vmatprep.subr.bf16.mxu0 0
  %407 = vmatpush1.bf16.msra.mxu0 0
  %408 = vmatprep.subr.bf16.mxu0 0
  %409 = vmatpush1.bf16.msra.mxu0 0
  %410 = vmatprep.subr.bf16.mxu0 0
  %411 = vmatpush1.bf16.msra.mxu0 0
  %412 = vmatprep.subr.bf16.mxu0 0
  %413 = vmatpush1.bf16.msra.mxu0 0
  %414 = vmatprep.mubr.bf16.mxu0 0
  %415 = vmatmul.mubr.bf16.gmra.mrb[0].mxu0 %v238
  %v416 = vpop.f32.mrb[0].mxu0
  %v417 = vadd.f32 0.0, %v416
  %v418 = vpop.f32.mrb[0].mxu0
  %v419 = vadd.f32 0.0, %v418
  %v420 = vpop.f32.mrb[0].mxu0
  %v421 = vadd.f32 0.0, %v420
  %v422 = vpop.f32.mrb[0].mxu0
  %v423 = vadd.f32 0.0, %v422
  %424 = vmatprep.mubr.bf16.mxu0 0
  %425 = vmatmul.mubr.bf16.gmra.mrb[0].mxu0 %v239
  %v426 = vpop.f32.mrb[0].mxu0
  %v427 = vadd.f32 0.0, %v426
  %v428 = vpop.f32.mrb[0].mxu0
  %v429 = vadd.f32 0.0, %v428
  %v430 = vpop.f32.mrb[0].mxu0
  %v431 = vadd.f32 0.0, %v430
  %v432 = vpop.f32.mrb[0].mxu0
  %v433 = vadd.f32 0.0, %v432
  %434 = vmatprep.mubr.bf16.mxu0 0
  %435 = vmatmul.mubr.bf16.gmra.mrb[0].mxu0 %v240
  %v436 = vpop.f32.mrb[0].mxu0
  %v437 = vadd.f32 0.0, %v436
  %v438 = vpop.f32.mrb[0].mxu0
  %v439 = vadd.f32 0.0, %v438
  %v440 = vpop.f32.mrb[0].mxu0
  %v441 = vadd.f32 0.0, %v440
  %v442 = vpop.f32.mrb[0].mxu0
  %v443 = vadd.f32 0.0, %v442
  %444 = vmatprep.mubr.bf16.mxu0 0
  %445 = vmatmul.mubr.bf16.gmra.mrb[0].mxu0 %v241
  %v446 = vpop.f32.mrb[0].mxu0
  %v447 = vadd.f32 0.0, %v446
  %v448 = vpop.f32.mrb[0].mxu0
  %v449 = vadd.f32 0.0, %v448
  %v450 = vpop.f32.mrb[0].mxu0
  %v451 = vadd.f32 0.0, %v450
  %v452 = vpop.f32.mrb[0].mxu0
  %v453 = vadd.f32 0.0, %v452
  %454 = vmatprep.mubr.bf16.mxu0 0
  %455 = vmatmul.mubr.bf16.gmra.mrb[0].mxu0 %v242
  %v456 = vpop.f32.mrb[0].mxu0
  %v457 = vadd.f32 0.0, %v456
  %v458 = vpop.f32.mrb[0].mxu0
  %v459 = vadd.f32 0.0, %v458
  %v460 = vpop.f32.mrb[0].mxu0
  %v461 = vadd.f32 0.0, %v460
  %v462 = vpop.f32.mrb[0].mxu0
  %v463 = vadd.f32 0.0, %v462
  %464 = vmatprep.mubr.bf16.mxu0 0
  %465 = vmatmul.mubr.bf16.gmra.mrb[0].mxu0 %v243
  %v466 = vpop.f32.mrb[0].mxu0
  %v467 = vadd.f32 0.0, %v466
  %v468 = vpop.f32.mrb[0].mxu0
  %v469 = vadd.f32 0.0, %v468
  %v470 = vpop.f32.mrb[0].mxu0
  %v471 = vadd.f32 0.0, %v470
  %v472 = vpop.f32.mrb[0].mxu0
  %v473 = vadd.f32 0.0, %v472
  %474 = vmatprep.mubr.bf16.mxu0 0
  %475 = vmatmul.mubr.bf16.gmra.mrb[0].mxu0 %v244
  %v476 = vpop.f32.mrb[0].mxu0
  %v477 = vadd.f32 0.0, %v476
  %v478 = vpop.f32.mrb[0].mxu0
  %v479 = vadd.f32 0.0, %v478
  %v480 = vpop.f32.mrb[0].mxu0
  %v481 = vadd.f32 0.0, %v480
  %v482 = vpop.f32.mrb[0].mxu0
  %v483 = vadd.f32 0.0, %v482
  %484 = vmatprep.mubr.bf16.mxu0 0
  %485 = vmatmul.mubr.bf16.gmra.mrb[0].mxu0 %v245
  %v486 = vpop.f32.mrb[0].mxu0
  %v487 = vadd.f32 0.0, %v486
  %v488 = vpop.f32.mrb[0].mxu0
  %v489 = vadd.f32 0.0, %v488
  %v490 = vpop.f32.mrb[0].mxu0
  %v491 = vadd.f32 0.0, %v490
  %v492 = vpop.f32.mrb[0].mxu0
  %v493 = vadd.f32 0.0, %v492
  %494 = vmatprep.mubr.bf16.mxu0 0
  %495 = vmatmul.mubr.bf16.gmra.mrb[0].mxu0 %v246
  %v496 = vpop.f32.mrb[0].mxu0
  %v497 = vadd.f32 0.0, %v496
  %v498 = vpop.f32.mrb[0].mxu0
  %v499 = vadd.f32 0.0, %v498
  %v500 = vpop.f32.mrb[0].mxu0
  %v501 = vadd.f32 0.0, %v500
  %v502 = vpop.f32.mrb[0].mxu0
  %v503 = vadd.f32 0.0, %v502
  %504 = vmatprep.mubr.bf16.mxu0 0
  %505 = vmatmul.mubr.bf16.gmra.mrb[0].mxu0 %v247
  %v506 = vpop.f32.mrb[0].mxu0
  %v507 = vadd.f32 0.0, %v506
  %v508 = vpop.f32.mrb[0].mxu0
  %v509 = vadd.f32 0.0, %v508
  %v510 = vpop.f32.mrb[0].mxu0
  %v511 = vadd.f32 0.0, %v510
  %v512 = vpop.f32.mrb[0].mxu0
  %v513 = vadd.f32 0.0, %v512
  %514 = vmatprep.mubr.bf16.mxu0 0
  %515 = vmatmul.mubr.bf16.gmra.mrb[0].mxu0 %v248
  %v516 = vpop.f32.mrb[0].mxu0
  %v517 = vadd.f32 0.0, %v516
  %v518 = vpop.f32.mrb[0].mxu0
  %v519 = vadd.f32 0.0, %v518
  %v520 = vpop.f32.mrb[0].mxu0
  %v521 = vadd.f32 0.0, %v520
  %v522 = vpop.f32.mrb[0].mxu0
  %v523 = vadd.f32 0.0, %v522
  %524 = vmatprep.mubr.bf16.mxu0 0
  %525 = vmatmul.mubr.bf16.gmra.mrb[0].mxu0 %v249
  %v526 = vpop.f32.mrb[0].mxu0
  %v527 = vadd.f32 0.0, %v526
  %v528 = vpop.f32.mrb[0].mxu0
  %v529 = vadd.f32 0.0, %v528
  %v530 = vpop.f32.mrb[0].mxu0
  %v531 = vadd.f32 0.0, %v530
  %v532 = vpop.f32.mrb[0].mxu0
  %v533 = vadd.f32 0.0, %v532
  %534 = vmatprep.mubr.bf16.mxu0 0
  %535 = vmatmul.mubr.bf16.gmra.mrb[0].mxu0 %v250
  %v536 = vpop.f32.mrb[0].mxu0
  %v537 = vadd.f32 0.0, %v536
  %v538 = vpop.f32.mrb[0].mxu0
  %v539 = vadd.f32 0.0, %v538
  %v540 = vpop.f32.mrb[0].mxu0
  %v541 = vadd.f32 0.0, %v540
  %v542 = vpop.f32.mrb[0].mxu0
  %v543 = vadd.f32 0.0, %v542
  %544 = vmatprep.mubr.bf16.mxu0 0
  %545 = vmatmul.mubr.bf16.gmra.mrb[0].mxu0 %v251
  %v546 = vpop.f32.mrb[0].mxu0
  %v547 = vadd.f32 0.0, %v546
  %v548 = vpop.f32.mrb[0].mxu0
  %v549 = vadd.f32 0.0, %v548
  %v550 = vpop.f32.mrb[0].mxu0
  %v551 = vadd.f32 0.0, %v550
  %v552 = vpop.f32.mrb[0].mxu0
  %v553 = vadd.f32 0.0, %v552
  %554 = vmatprep.mubr.bf16.mxu0 0
  %555 = vmatmul.mubr.bf16.gmra.mrb[0].mxu0 %v252
  %v556 = vpop.f32.mrb[0].mxu0
  %v557 = vadd.f32 0.0, %v556
  %v558 = vpop.f32.mrb[0].mxu0
  %v559 = vadd.f32 0.0, %v558
  %v560 = vpop.f32.mrb[0].mxu0
  %v561 = vadd.f32 0.0, %v560
  %v562 = vpop.f32.mrb[0].mxu0
  %v563 = vadd.f32 0.0, %v562
  %564 = vmatprep.mubr.bf16.mxu0 0
  %565 = vmatmul.mubr.bf16.gmra.mrb[0].mxu0 %v253
  %v566 = vpop.f32.mrb[0].mxu0
  %v567 = vadd.f32 0.0, %v566
  %v568 = vpop.f32.mrb[0].mxu0
  %v569 = vadd.f32 0.0, %v568
  %v570 = vpop.f32.mrb[0].mxu0
  %v571 = vadd.f32 0.0, %v570
  %v572 = vpop.f32.mrb[0].mxu0
  %v573 = vadd.f32 0.0, %v572
  %574 = vmatprep.mubr.bf16.mxu0 0
  %575 = vmatmul.mubr.bf16.gmra.mrb[0].mxu0 %v254
  %v576 = vpop.f32.mrb[0].mxu0
  %v577 = vadd.f32 0.0, %v576
  %v578 = vpop.f32.mrb[0].mxu0
  %v579 = vadd.f32 0.0, %v578
  %v580 = vpop.f32.mrb[0].mxu0
  %v581 = vadd.f32 0.0, %v580
  %v582 = vpop.f32.mrb[0].mxu0
  %v583 = vadd.f32 0.0, %v582
  %584 = vmatprep.mubr.bf16.mxu0 0
  %585 = vmatmul.mubr.bf16.gmra.mrb[0].mxu0 %v255
  %v586 = vpop.f32.mrb[0].mxu0
  %v587 = vadd.f32 0.0, %v586
  %v588 = vpop.f32.mrb[0].mxu0
  %v589 = vadd.f32 0.0, %v588
  %v590 = vpop.f32.mrb[0].mxu0
  %v591 = vadd.f32 0.0, %v590
  %v592 = vpop.f32.mrb[0].mxu0
  %v593 = vadd.f32 0.0, %v592
  %594 = vmatprep.mubr.bf16.mxu0 0
  %595 = vmatmul.mubr.bf16.gmra.mrb[0].mxu0 %v256
  %v596 = vpop.f32.mrb[0].mxu0
  %v597 = vadd.f32 0.0, %v596
  %v598 = vpop.f32.mrb[0].mxu0
  %v599 = vadd.f32 0.0, %v598
  %v600 = vpop.f32.mrb[0].mxu0
  %v601 = vadd.f32 0.0, %v600
  %v602 = vpop.f32.mrb[0].mxu0
  %v603 = vadd.f32 0.0, %v602
  %604 = vmatprep.mubr.bf16.mxu0 0
  %605 = vmatmul.mubr.bf16.gmra.mrb[0].mxu0 %v257
  %v606 = vpop.f32.mrb[0].mxu0
  %v607 = vadd.f32 0.0, %v606
  %v608 = vpop.f32.mrb[0].mxu0
  %v609 = vadd.f32 0.0, %v608
  %v610 = vpop.f32.mrb[0].mxu0
  %v611 = vadd.f32 0.0, %v610
  %v612 = vpop.f32.mrb[0].mxu0
  %v613 = vadd.f32 0.0, %v612
  %614 = vmatprep.mubr.bf16.mxu0 0
  %615 = vmatmul.mubr.bf16.gmra.mrb[0].mxu0 %v258
  %v616 = vpop.f32.mrb[0].mxu0
  %v617 = vadd.f32 0.0, %v616
  %v618 = vpop.f32.mrb[0].mxu0
  %v619 = vadd.f32 0.0, %v618
  %v620 = vpop.f32.mrb[0].mxu0
  %v621 = vadd.f32 0.0, %v620
  %v622 = vpop.f32.mrb[0].mxu0
  %v623 = vadd.f32 0.0, %v622
  %624 = vmatprep.mubr.bf16.mxu0 0
  %625 = vmatmul.mubr.bf16.gmra.mrb[0].mxu0 %v259
  %v626 = vpop.f32.mrb[0].mxu0
  %v627 = vadd.f32 0.0, %v626
  %v628 = vpop.f32.mrb[0].mxu0
  %v629 = vadd.f32 0.0, %v628
  %v630 = vpop.f32.mrb[0].mxu0
  %v631 = vadd.f32 0.0, %v630
  %v632 = vpop.f32.mrb[0].mxu0
  %v633 = vadd.f32 0.0, %v632
  %634 = vmatprep.mubr.bf16.mxu0 0
  %635 = vmatmul.mubr.bf16.gmra.mrb[0].mxu0 %v260
  %v636 = vpop.f32.mrb[0].mxu0
  %v637 = vadd.f32 0.0, %v636
  %v638 = vpop.f32.mrb[0].mxu0
  %v639 = vadd.f32 0.0, %v638
  %v640 = vpop.f32.mrb[0].mxu0
  %v641 = vadd.f32 0.0, %v640
  %v642 = vpop.f32.mrb[0].mxu0
  %v643 = vadd.f32 0.0, %v642
  %644 = vmatprep.mubr.bf16.mxu0 0
  %645 = vmatmul.mubr.bf16.gmra.mrb[0].mxu0 %v261
  %v646 = vpop.f32.mrb[0].mxu0
  %v647 = vadd.f32 0.0, %v646
  %v648 = vpop.f32.mrb[0].mxu0
  %v649 = vadd.f32 0.0, %v648
  %v650 = vpop.f32.mrb[0].mxu0
  %v651 = vadd.f32 0.0, %v650
  %v652 = vpop.f32.mrb[0].mxu0
  %v653 = vadd.f32 0.0, %v652
  %654 = vmatprep.mubr.bf16.mxu0 0
  %655 = vmatmul.mubr.bf16.gmra.mrb[0].mxu0 %v262
  %v656 = vpop.f32.mrb[0].mxu0
  %v657 = vadd.f32 0.0, %v656
  %v658 = vpop.f32.mrb[0].mxu0
  %v659 = vadd.f32 0.0, %v658
  %v660 = vpop.f32.mrb[0].mxu0
  %v661 = vadd.f32 0.0, %v660
  %v662 = vpop.f32.mrb[0].mxu0
  %v663 = vadd.f32 0.0, %v662
  %664 = vmatprep.mubr.bf16.mxu0 0
  %665 = vmatmul.mubr.bf16.gmra.mrb[0].mxu0 %v263
  %v666 = vpop.f32.mrb[0].mxu0
  %v667 = vadd.f32 0.0, %v666
  %v668 = vpop.f32.mrb[0].mxu0
  %v669 = vadd.f32 0.0, %v668
  %v670 = vpop.f32.mrb[0].mxu0
  %v671 = vadd.f32 0.0, %v670
  %v672 = vpop.f32.mrb[0].mxu0
  %v673 = vadd.f32 0.0, %v672
  %674 = vmatprep.mubr.bf16.mxu0 0
  %675 = vmatmul.mubr.bf16.gmra.mrb[0].mxu0 %v264
  %v676 = vpop.f32.mrb[0].mxu0
  %v677 = vadd.f32 0.0, %v676
  %v678 = vpop.f32.mrb[0].mxu0
  %v679 = vadd.f32 0.0, %v678
  %v680 = vpop.f32.mrb[0].mxu0
  %v681 = vadd.f32 0.0, %v680
  %v682 = vpop.f32.mrb[0].mxu0
  %v683 = vadd.f32 0.0, %v682
  %684 = vmatprep.mubr.bf16.mxu0 0
  %685 = vmatmul.mubr.bf16.gmra.mrb[0].mxu0 %v265
  %v686 = vpop.f32.mrb[0].mxu0
  %v687 = vadd.f32 0.0, %v686
  %v688 = vpop.f32.mrb[0].mxu0
  %v689 = vadd.f32 0.0, %v688
  %v690 = vpop.f32.mrb[0].mxu0
  %v691 = vadd.f32 0.0, %v690
  %v692 = vpop.f32.mrb[0].mxu0
  %v693 = vadd.f32 0.0, %v692
  %694 = vmatprep.mubr.bf16.mxu0 0
  %695 = vmatmul.mubr.bf16.gmra.mrb[0].mxu0 %v266
  %v696 = vpop.f32.mrb[0].mxu0
  %v697 = vadd.f32 0.0, %v696
  %v698 = vpop.f32.mrb[0].mxu0
  %v699 = vadd.f32 0.0, %v698
  %v700 = vpop.f32.mrb[0].mxu0
  %v701 = vadd.f32 0.0, %v700
  %v702 = vpop.f32.mrb[0].mxu0
  %v703 = vadd.f32 0.0, %v702
  %704 = vmatprep.mubr.bf16.mxu0 0
  %705 = vmatmul.mubr.bf16.gmra.mrb[0].mxu0 %v267
  %v706 = vpop.f32.mrb[0].mxu0
  %v707 = vadd.f32 0.0, %v706
  %v708 = vpop.f32.mrb[0].mxu0
  %v709 = vadd.f32 0.0, %v708
  %v710 = vpop.f32.mrb[0].mxu0
  %v711 = vadd.f32 0.0, %v710
  %v712 = vpop.f32.mrb[0].mxu0
  %v713 = vadd.f32 0.0, %v712
  %714 = vmatprep.mubr.bf16.mxu0 0
  %715 = vmatmul.mubr.bf16.gmra.mrb[0].mxu0 %v268
  %v716 = vpop.f32.mrb[0].mxu0
  %v717 = vadd.f32 0.0, %v716
  %v718 = vpop.f32.mrb[0].mxu0
  %v719 = vadd.f32 0.0, %v718
  %v720 = vpop.f32.mrb[0].mxu0
  %v721 = vadd.f32 0.0, %v720
  %v722 = vpop.f32.mrb[0].mxu0
  %v723 = vadd.f32 0.0, %v722
  %724 = vmatprep.mubr.bf16.mxu0 0
  %725 = vmatmul.mubr.bf16.gmra.mrb[0].mxu0 %v269
  %v726 = vpop.f32.mrb[0].mxu0
  %v727 = vadd.f32 0.0, %v726
  %v728 = vpop.f32.mrb[0].mxu0
  %v729 = vadd.f32 0.0, %v728
  %v730 = vpop.f32.mrb[0].mxu0
  %v731 = vadd.f32 0.0, %v730
  %v732 = vpop.f32.mrb[0].mxu0
  %v733 = vadd.f32 0.0, %v732
  %734 = vdwg.mxu0
  %v735 = vld [vmem:[%s2] sm:$0x3]
  %v737 = vlaneseq
  %v738 = vshrl.u32 %v737, 7
  %v739 = vsub.s32 0, %v738
  %v740 = vrot.slane %v735, %v739
  %v741 = vlaneseq
  %v742 = vshrl.u32 %v741, 7
  %v743 = vsub.s32 1, %v742
  %v744 = vrot.slane %v735, %v743
  %v747 = vmul.f32 %v417, %v740
  %v748 = vmul.f32 %v419, %v744
  %v749 = vmul.f32 %v421, %v740
  %v750 = vmul.f32 %v423, %v744
  %v751 = vmul.f32 %v427, %v740
  %v752 = vmul.f32 %v429, %v744
  %v753 = vmul.f32 %v431, %v740
  %v754 = vmul.f32 %v433, %v744
  %v755 = vmul.f32 %v437, %v740
  %v756 = vmul.f32 %v439, %v744
  %v757 = vmul.f32 %v441, %v740
  %v758 = vmul.f32 %v443, %v744
  %v759 = vmul.f32 %v447, %v740
  %v760 = vmul.f32 %v449, %v744
  %v761 = vmul.f32 %v451, %v740
  %v762 = vmul.f32 %v453, %v744
  %v763 = vmul.f32 %v457, %v740
  %v764 = vmul.f32 %v459, %v744
  %v765 = vmul.f32 %v461, %v740
  %v766 = vmul.f32 %v463, %v744
  %v767 = vmul.f32 %v467, %v740
  %v768 = vmul.f32 %v469, %v744
  %v769 = vmul.f32 %v471, %v740
  %v770 = vmul.f32 %v473, %v744
  %v771 = vmul.f32 %v477, %v740
  %v772 = vmul.f32 %v479, %v744
  %v773 = vmul.f32 %v481, %v740
  %v774 = vmul.f32 %v483, %v744
  %v775 = vmul.f32 %v487, %v740
  %v776 = vmul.f32 %v489, %v744
  %v777 = vmul.f32 %v491, %v740
  %v778 = vmul.f32 %v493, %v744
  %v779 = vmul.f32 %v497, %v740
  %v780 = vmul.f32 %v499, %v744
  %v781 = vmul.f32 %v501, %v740
  %v782 = vmul.f32 %v503, %v744
  %v783 = vmul.f32 %v507, %v740
  %v784 = vmul.f32 %v509, %v744
  %v785 = vmul.f32 %v511, %v740
  %v786 = vmul.f32 %v513, %v744
  %v787 = vmul.f32 %v517, %v740
  %v788 = vmul.f32 %v519, %v744
  %v789 = vmul.f32 %v521, %v740
  %v790 = vmul.f32 %v523, %v744
  %v791 = vmul.f32 %v527, %v740
  %v792 = vmul.f32 %v529, %v744
  %v793 = vmul.f32 %v531, %v740
  %v794 = vmul.f32 %v533, %v744
  %v795 = vmul.f32 %v537, %v740
  %v796 = vmul.f32 %v539, %v744
  %v797 = vmul.f32 %v541, %v740
  %v798 = vmul.f32 %v543, %v744
  %v799 = vmul.f32 %v547, %v740
  %v800 = vmul.f32 %v549, %v744
  %v801 = vmul.f32 %v551, %v740
  %v802 = vmul.f32 %v553, %v744
  %v803 = vmul.f32 %v557, %v740
  %v804 = vmul.f32 %v559, %v744
  %v805 = vmul.f32 %v561, %v740
  %v806 = vmul.f32 %v563, %v744
  %v807 = vmul.f32 %v567, %v740
  %v808 = vmul.f32 %v569, %v744
  %v809 = vmul.f32 %v571, %v740
  %v810 = vmul.f32 %v573, %v744
  %v811 = vmul.f32 %v577, %v740
  %v812 = vmul.f32 %v579, %v744
  %v813 = vmul.f32 %v581, %v740
  %v814 = vmul.f32 %v583, %v744
  %v815 = vmul.f32 %v587, %v740
  %v816 = vmul.f32 %v589, %v744
  %v817 = vmul.f32 %v591, %v740
  %v818 = vmul.f32 %v593, %v744
  %v819 = vmul.f32 %v597, %v740
  %v820 = vmul.f32 %v599, %v744
  %v821 = vmul.f32 %v601, %v740
  %v822 = vmul.f32 %v603, %v744
  %v823 = vmul.f32 %v607, %v740
  %v824 = vmul.f32 %v609, %v744
  %v825 = vmul.f32 %v611, %v740
  %v826 = vmul.f32 %v613, %v744
  %v827 = vmul.f32 %v617, %v740
  %v828 = vmul.f32 %v619, %v744
  %v829 = vmul.f32 %v621, %v740
  %v830 = vmul.f32 %v623, %v744
  %v831 = vmul.f32 %v627, %v740
  %v832 = vmul.f32 %v629, %v744
  %v833 = vmul.f32 %v631, %v740
  %v834 = vmul.f32 %v633, %v744
  %v835 = vmul.f32 %v637, %v740
  %v836 = vmul.f32 %v639, %v744
  %v837 = vmul.f32 %v641, %v740
  %v838 = vmul.f32 %v643, %v744
  %v839 = vmul.f32 %v647, %v740
  %v840 = vmul.f32 %v649, %v744
  %v841 = vmul.f32 %v651, %v740
  %v842 = vmul.f32 %v653, %v744
  %v843 = vmul.f32 %v657, %v740
  %v844 = vmul.f32 %v659, %v744
  %v845 = vmul.f32 %v661, %v740
  %v846 = vmul.f32 %v663, %v744
  %v847 = vmul.f32 %v667, %v740
  %v848 = vmul.f32 %v669, %v744
  %v849 = vmul.f32 %v671, %v740
  %v850 = vmul.f32 %v673, %v744
  %v851 = vmul.f32 %v677, %v740
  %v852 = vmul.f32 %v679, %v744
  %v853 = vmul.f32 %v681, %v740
  %v854 = vmul.f32 %v683, %v744
  %v855 = vmul.f32 %v687, %v740
  %v856 = vmul.f32 %v689, %v744
  %v857 = vmul.f32 %v691, %v740
  %v858 = vmul.f32 %v693, %v744
  %v859 = vmul.f32 %v697, %v740
  %v860 = vmul.f32 %v699, %v744
  %v861 = vmul.f32 %v701, %v740
  %v862 = vmul.f32 %v703, %v744
  %v863 = vmul.f32 %v707, %v740
  %v864 = vmul.f32 %v709, %v744
  %v865 = vmul.f32 %v711, %v740
  %v866 = vmul.f32 %v713, %v744
  %v867 = vmul.f32 %v717, %v740
  %v868 = vmul.f32 %v719, %v744
  %v869 = vmul.f32 %v721, %v740
  %v870 = vmul.f32 %v723, %v744
  %v871 = vmul.f32 %v727, %v740
  %v872 = vmul.f32 %v729, %v744
  %v873 = vmul.f32 %v731, %v740
  %v874 = vmul.f32 %v733, %v744
  %v875 = vld [vmem:[%s3] sm:$0x3]
  %v877 = vlaneseq
  %v878 = vshrl.u32 %v877, 7
  %v879 = vsub.s32 0, %v878
  %v880 = vrot.slane %v875, %v879
  %v881 = vlaneseq
  %v882 = vshrl.u32 %v881, 7
  %v883 = vsub.s32 1, %v882
  %v884 = vrot.slane %v875, %v883
  %v887 = vadd.f32 %v747, %v880
  %v888 = vadd.f32 %v748, %v884
  %v889 = vadd.f32 %v749, %v880
  %v890 = vadd.f32 %v750, %v884
  %v891 = vadd.f32 %v751, %v880
  %v892 = vadd.f32 %v752, %v884
  %v893 = vadd.f32 %v753, %v880
  %v894 = vadd.f32 %v754, %v884
  %v895 = vadd.f32 %v755, %v880
  %v896 = vadd.f32 %v756, %v884
  %v897 = vadd.f32 %v757, %v880
  %v898 = vadd.f32 %v758, %v884
  %v899 = vadd.f32 %v759, %v880
  %v900 = vadd.f32 %v760, %v884
  %v901 = vadd.f32 %v761, %v880
  %v902 = vadd.f32 %v762, %v884
  %v903 = vadd.f32 %v763, %v880
  %v904 = vadd.f32 %v764, %v884
  %v905 = vadd.f32 %v765, %v880
  %v906 = vadd.f32 %v766, %v884
  %v907 = vadd.f32 %v767, %v880
  %v908 = vadd.f32 %v768, %v884
  %v909 = vadd.f32 %v769, %v880
  %v910 = vadd.f32 %v770, %v884
  %v911 = vadd.f32 %v771, %v880
  %v912 = vadd.f32 %v772, %v884
  %v913 = vadd.f32 %v773, %v880
  %v914 = vadd.f32 %v774, %v884
  %v915 = vadd.f32 %v775, %v880
  %v916 = vadd.f32 %v776, %v884
  %v917 = vadd.f32 %v777, %v880
  %v918 = vadd.f32 %v778, %v884
  %v919 = vadd.f32 %v779, %v880
  %v920 = vadd.f32 %v780, %v884
  %v921 = vadd.f32 %v781, %v880
  %v922 = vadd.f32 %v782, %v884
  %v923 = vadd.f32 %v783, %v880
  %v924 = vadd.f32 %v784, %v884
  %v925 = vadd.f32 %v785, %v880
  %v926 = vadd.f32 %v786, %v884
  %v927 = vadd.f32 %v787, %v880
  %v928 = vadd.f32 %v788, %v884
  %v929 = vadd.f32 %v789, %v880
  %v930 = vadd.f32 %v790, %v884
  %v931 = vadd.f32 %v791, %v880
  %v932 = vadd.f32 %v792, %v884
  %v933 = vadd.f32 %v793, %v880
  %v934 = vadd.f32 %v794, %v884
  %v935 = vadd.f32 %v795, %v880
  %v936 = vadd.f32 %v796, %v884
  %v937 = vadd.f32 %v797, %v880
  %v938 = vadd.f32 %v798, %v884
  %v939 = vadd.f32 %v799, %v880
  %v940 = vadd.f32 %v800, %v884
  %v941 = vadd.f32 %v801, %v880
  %v942 = vadd.f32 %v802, %v884
  %v943 = vadd.f32 %v803, %v880
  %v944 = vadd.f32 %v804, %v884
  %v945 = vadd.f32 %v805, %v880
  %v946 = vadd.f32 %v806, %v884
  %v947 = vadd.f32 %v807, %v880
  %v948 = vadd.f32 %v808, %v884
  %v949 = vadd.f32 %v809, %v880
  %v950 = vadd.f32 %v810, %v884
  %v951 = vadd.f32 %v811, %v880
  %v952 = vadd.f32 %v812, %v884
  %v953 = vadd.f32 %v813, %v880
  %v954 = vadd.f32 %v814, %v884
  %v955 = vadd.f32 %v815, %v880
  %v956 = vadd.f32 %v816, %v884
  %v957 = vadd.f32 %v817, %v880
  %v958 = vadd.f32 %v818, %v884
  %v959 = vadd.f32 %v819, %v880
  %v960 = vadd.f32 %v820, %v884
  %v961 = vadd.f32 %v821, %v880
  %v962 = vadd.f32 %v822, %v884
  %v963 = vadd.f32 %v823, %v880
  %v964 = vadd.f32 %v824, %v884
  %v965 = vadd.f32 %v825, %v880
  %v966 = vadd.f32 %v826, %v884
  %v967 = vadd.f32 %v827, %v880
  %v968 = vadd.f32 %v828, %v884
  %v969 = vadd.f32 %v829, %v880
  %v970 = vadd.f32 %v830, %v884
  %v971 = vadd.f32 %v831, %v880
  %v972 = vadd.f32 %v832, %v884
  %v973 = vadd.f32 %v833, %v880
  %v974 = vadd.f32 %v834, %v884
  %v975 = vadd.f32 %v835, %v880
  %v976 = vadd.f32 %v836, %v884
  %v977 = vadd.f32 %v837, %v880
  %v978 = vadd.f32 %v838, %v884
  %v979 = vadd.f32 %v839, %v880
  %v980 = vadd.f32 %v840, %v884
  %v981 = vadd.f32 %v841, %v880
  %v982 = vadd.f32 %v842, %v884
  %v983 = vadd.f32 %v843, %v880
  %v984 = vadd.f32 %v844, %v884
  %v985 = vadd.f32 %v845, %v880
  %v986 = vadd.f32 %v846, %v884
  %v987 = vadd.f32 %v847, %v880
  %v988 = vadd.f32 %v848, %v884
  %v989 = vadd.f32 %v849, %v880
  %v990 = vadd.f32 %v850, %v884
  %v991 = vadd.f32 %v851, %v880
  %v992 = vadd.f32 %v852, %v884
  %v993 = vadd.f32 %v853, %v880
  %v994 = vadd.f32 %v854, %v884
  %v995 = vadd.f32 %v855, %v880
  %v996 = vadd.f32 %v856, %v884
  %v997 = vadd.f32 %v857, %v880
  %v998 = vadd.f32 %v858, %v884
  %v999 = vadd.f32 %v859, %v880
  %v1000 = vadd.f32 %v860, %v884
  %v1001 = vadd.f32 %v861, %v880
  %v1002 = vadd.f32 %v862, %v884
  %v1003 = vadd.f32 %v863, %v880
  %v1004 = vadd.f32 %v864, %v884
  %v1005 = vadd.f32 %v865, %v880
  %v1006 = vadd.f32 %v866, %v884
  %v1007 = vadd.f32 %v867, %v880
  %v1008 = vadd.f32 %v868, %v884
  %v1009 = vadd.f32 %v869, %v880
  %v1010 = vadd.f32 %v870, %v884
  %v1011 = vadd.f32 %v871, %v880
  %v1012 = vadd.f32 %v872, %v884
  %v1013 = vadd.f32 %v873, %v880
  %v1014 = vadd.f32 %v874, %v884
  %v1015 = vmul.f32 %v887, 0.1
  %v1016 = vmul.f32 %v888, 0.1
  %v1017 = vmul.f32 %v889, 0.1
  %v1018 = vmul.f32 %v890, 0.1
  %v1019 = vmul.f32 %v891, 0.1
  %v1020 = vmul.f32 %v892, 0.1
  %v1021 = vmul.f32 %v893, 0.1
  %v1022 = vmul.f32 %v894, 0.1
  %v1023 = vmul.f32 %v895, 0.1
  %v1024 = vmul.f32 %v896, 0.1
  %v1025 = vmul.f32 %v897, 0.1
  %v1026 = vmul.f32 %v898, 0.1
  %v1027 = vmul.f32 %v899, 0.1
  %v1028 = vmul.f32 %v900, 0.1
  %v1029 = vmul.f32 %v901, 0.1
  %v1030 = vmul.f32 %v902, 0.1
  %v1031 = vmul.f32 %v903, 0.1
  %v1032 = vmul.f32 %v904, 0.1
  %v1033 = vmul.f32 %v905, 0.1
  %v1034 = vmul.f32 %v906, 0.1
  %v1035 = vmul.f32 %v907, 0.1
  %v1036 = vmul.f32 %v908, 0.1
  %v1037 = vmul.f32 %v909, 0.1
  %v1038 = vmul.f32 %v910, 0.1
  %v1039 = vmul.f32 %v911, 0.1
  %v1040 = vmul.f32 %v912, 0.1
  %v1041 = vmul.f32 %v913, 0.1
  %v1042 = vmul.f32 %v914, 0.1
  %v1043 = vmul.f32 %v915, 0.1
  %v1044 = vmul.f32 %v916, 0.1
  %v1045 = vmul.f32 %v917, 0.1
  %v1046 = vmul.f32 %v918, 0.1
  %v1047 = vmul.f32 %v919, 0.1
  %v1048 = vmul.f32 %v920, 0.1
  %v1049 = vmul.f32 %v921, 0.1
  %v1050 = vmul.f32 %v922, 0.1
  %v1051 = vmul.f32 %v923, 0.1
  %v1052 = vmul.f32 %v924, 0.1
  %v1053 = vmul.f32 %v925, 0.1
  %v1054 = vmul.f32 %v926, 0.1
  %v1055 = vmul.f32 %v927, 0.1
  %v1056 = vmul.f32 %v928, 0.1
  %v1057 = vmul.f32 %v929, 0.1
  %v1058 = vmul.f32 %v930, 0.1
  %v1059 = vmul.f32 %v931, 0.1
  %v1060 = vmul.f32 %v932, 0.1
  %v1061 = vmul.f32 %v933, 0.1
  %v1062 = vmul.f32 %v934, 0.1
  %v1063 = vmul.f32 %v935, 0.1
  %v1064 = vmul.f32 %v936, 0.1
  %v1065 = vmul.f32 %v937, 0.1
  %v1066 = vmul.f32 %v938, 0.1
  %v1067 = vmul.f32 %v939, 0.1
  %v1068 = vmul.f32 %v940, 0.1
  %v1069 = vmul.f32 %v941, 0.1
  %v1070 = vmul.f32 %v942, 0.1
  %v1071 = vmul.f32 %v943, 0.1
  %v1072 = vmul.f32 %v944, 0.1
  %v1073 = vmul.f32 %v945, 0.1
  %v1074 = vmul.f32 %v946, 0.1
  %v1075 = vmul.f32 %v947, 0.1
  %v1076 = vmul.f32 %v948, 0.1
  %v1077 = vmul.f32 %v949, 0.1
  %v1078 = vmul.f32 %v950, 0.1
  %v1079 = vmul.f32 %v951, 0.1
  %v1080 = vmul.f32 %v952, 0.1
  %v1081 = vmul.f32 %v953, 0.1
  %v1082 = vmul.f32 %v954, 0.1
  %v1083 = vmul.f32 %v955, 0.1
  %v1084 = vmul.f32 %v956, 0.1
  %v1085 = vmul.f32 %v957, 0.1
  %v1086 = vmul.f32 %v958, 0.1
  %v1087 = vmul.f32 %v959, 0.1
  %v1088 = vmul.f32 %v960, 0.1
  %v1089 = vmul.f32 %v961, 0.1
  %v1090 = vmul.f32 %v962, 0.1
  %v1091 = vmul.f32 %v963, 0.1
  %v1092 = vmul.f32 %v964, 0.1
  %v1093 = vmul.f32 %v965, 0.1
  %v1094 = vmul.f32 %v966, 0.1
  %v1095 = vmul.f32 %v967, 0.1
  %v1096 = vmul.f32 %v968, 0.1
  %v1097 = vmul.f32 %v969, 0.1
  %v1098 = vmul.f32 %v970, 0.1
  %v1099 = vmul.f32 %v971, 0.1
  %v1100 = vmul.f32 %v972, 0.1
  %v1101 = vmul.f32 %v973, 0.1
  %v1102 = vmul.f32 %v974, 0.1
  %v1103 = vmul.f32 %v975, 0.1
  %v1104 = vmul.f32 %v976, 0.1
  %v1105 = vmul.f32 %v977, 0.1
  %v1106 = vmul.f32 %v978, 0.1
  %v1107 = vmul.f32 %v979, 0.1
  %v1108 = vmul.f32 %v980, 0.1
  %v1109 = vmul.f32 %v981, 0.1
  %v1110 = vmul.f32 %v982, 0.1
  %v1111 = vmul.f32 %v983, 0.1
  %v1112 = vmul.f32 %v984, 0.1
  %v1113 = vmul.f32 %v985, 0.1
  %v1114 = vmul.f32 %v986, 0.1
  %v1115 = vmul.f32 %v987, 0.1
  %v1116 = vmul.f32 %v988, 0.1
  %v1117 = vmul.f32 %v989, 0.1
  %v1118 = vmul.f32 %v990, 0.1
  %v1119 = vmul.f32 %v991, 0.1
  %v1120 = vmul.f32 %v992, 0.1
  %v1121 = vmul.f32 %v993, 0.1
  %v1122 = vmul.f32 %v994, 0.1
  %v1123 = vmul.f32 %v995, 0.1
  %v1124 = vmul.f32 %v996, 0.1
  %v1125 = vmul.f32 %v997, 0.1
  %v1126 = vmul.f32 %v998, 0.1
  %v1127 = vmul.f32 %v999, 0.1
  %v1128 = vmul.f32 %v1000, 0.1
  %v1129 = vmul.f32 %v1001, 0.1
  %v1130 = vmul.f32 %v1002, 0.1
  %v1131 = vmul.f32 %v1003, 0.1
  %v1132 = vmul.f32 %v1004, 0.1
  %v1133 = vmul.f32 %v1005, 0.1
  %v1134 = vmul.f32 %v1006, 0.1
  %v1135 = vmul.f32 %v1007, 0.1
  %v1136 = vmul.f32 %v1008, 0.1
  %v1137 = vmul.f32 %v1009, 0.1
  %v1138 = vmul.f32 %v1010, 0.1
  %v1139 = vmul.f32 %v1011, 0.1
  %v1140 = vmul.f32 %v1012, 0.1
  %v1141 = vmul.f32 %v1013, 0.1
  %v1142 = vmul.f32 %v1014, 0.1
  %v1143 = vmax.f32 %v887, %v1015
  %v1144 = vmax.f32 %v888, %v1016
  %v1145 = vmax.f32 %v889, %v1017
  %v1146 = vmax.f32 %v890, %v1018
  %v1147 = vmax.f32 %v891, %v1019
  %v1148 = vmax.f32 %v892, %v1020
  %v1149 = vmax.f32 %v893, %v1021
  %v1150 = vmax.f32 %v894, %v1022
  %v1151 = vmax.f32 %v895, %v1023
  %v1152 = vmax.f32 %v896, %v1024
  %v1153 = vmax.f32 %v897, %v1025
  %v1154 = vmax.f32 %v898, %v1026
  %v1155 = vmax.f32 %v899, %v1027
  %v1156 = vmax.f32 %v900, %v1028
  %v1157 = vmax.f32 %v901, %v1029
  %v1158 = vmax.f32 %v902, %v1030
  %v1159 = vmax.f32 %v903, %v1031
  %v1160 = vmax.f32 %v904, %v1032
  %v1161 = vmax.f32 %v905, %v1033
  %v1162 = vmax.f32 %v906, %v1034
  %v1163 = vmax.f32 %v907, %v1035
  %v1164 = vmax.f32 %v908, %v1036
  %v1165 = vmax.f32 %v909, %v1037
  %v1166 = vmax.f32 %v910, %v1038
  %v1167 = vmax.f32 %v911, %v1039
  %v1168 = vmax.f32 %v912, %v1040
  %v1169 = vmax.f32 %v913, %v1041
  %v1170 = vmax.f32 %v914, %v1042
  %v1171 = vmax.f32 %v915, %v1043
  %v1172 = vmax.f32 %v916, %v1044
  %v1173 = vmax.f32 %v917, %v1045
  %v1174 = vmax.f32 %v918, %v1046
  %v1175 = vmax.f32 %v919, %v1047
  %v1176 = vmax.f32 %v920, %v1048
  %v1177 = vmax.f32 %v921, %v1049
  %v1178 = vmax.f32 %v922, %v1050
  %v1179 = vmax.f32 %v923, %v1051
  %v1180 = vmax.f32 %v924, %v1052
  %v1181 = vmax.f32 %v925, %v1053
  %v1182 = vmax.f32 %v926, %v1054
  %v1183 = vmax.f32 %v927, %v1055
  %v1184 = vmax.f32 %v928, %v1056
  %v1185 = vmax.f32 %v929, %v1057
  %v1186 = vmax.f32 %v930, %v1058
  %v1187 = vmax.f32 %v931, %v1059
  %v1188 = vmax.f32 %v932, %v1060
  %v1189 = vmax.f32 %v933, %v1061
  %v1190 = vmax.f32 %v934, %v1062
  %v1191 = vmax.f32 %v935, %v1063
  %v1192 = vmax.f32 %v936, %v1064
  %v1193 = vmax.f32 %v937, %v1065
  %v1194 = vmax.f32 %v938, %v1066
  %v1195 = vmax.f32 %v939, %v1067
  %v1196 = vmax.f32 %v940, %v1068
  %v1197 = vmax.f32 %v941, %v1069
  %v1198 = vmax.f32 %v942, %v1070
  %v1199 = vmax.f32 %v943, %v1071
  %v1200 = vmax.f32 %v944, %v1072
  %v1201 = vmax.f32 %v945, %v1073
  %v1202 = vmax.f32 %v946, %v1074
  %v1203 = vmax.f32 %v947, %v1075
  %v1204 = vmax.f32 %v948, %v1076
  %v1205 = vmax.f32 %v949, %v1077
  %v1206 = vmax.f32 %v950, %v1078
  %v1207 = vmax.f32 %v951, %v1079
  %v1208 = vmax.f32 %v952, %v1080
  %v1209 = vmax.f32 %v953, %v1081
  %v1210 = vmax.f32 %v954, %v1082
  %v1211 = vmax.f32 %v955, %v1083
  %v1212 = vmax.f32 %v956, %v1084
  %v1213 = vmax.f32 %v957, %v1085
  %v1214 = vmax.f32 %v958, %v1086
  %v1215 = vmax.f32 %v959, %v1087
  %v1216 = vmax.f32 %v960, %v1088
  %v1217 = vmax.f32 %v961, %v1089
  %v1218 = vmax.f32 %v962, %v1090
  %v1219 = vmax.f32 %v963, %v1091
  %v1220 = vmax.f32 %v964, %v1092
  %v1221 = vmax.f32 %v965, %v1093
  %v1222 = vmax.f32 %v966, %v1094
  %v1223 = vmax.f32 %v967, %v1095
  %v1224 = vmax.f32 %v968, %v1096
  %v1225 = vmax.f32 %v969, %v1097
  %v1226 = vmax.f32 %v970, %v1098
  %v1227 = vmax.f32 %v971, %v1099
  %v1228 = vmax.f32 %v972, %v1100
  %v1229 = vmax.f32 %v973, %v1101
  %v1230 = vmax.f32 %v974, %v1102
  %v1231 = vmax.f32 %v975, %v1103
  %v1232 = vmax.f32 %v976, %v1104
  %v1233 = vmax.f32 %v977, %v1105
  %v1234 = vmax.f32 %v978, %v1106
  %v1235 = vmax.f32 %v979, %v1107
  %v1236 = vmax.f32 %v980, %v1108
  %v1237 = vmax.f32 %v981, %v1109
  %v1238 = vmax.f32 %v982, %v1110
  %v1239 = vmax.f32 %v983, %v1111
  %v1240 = vmax.f32 %v984, %v1112
  %v1241 = vmax.f32 %v985, %v1113
  %v1242 = vmax.f32 %v986, %v1114
  %v1243 = vmax.f32 %v987, %v1115
  %v1244 = vmax.f32 %v988, %v1116
  %v1245 = vmax.f32 %v989, %v1117
  %v1246 = vmax.f32 %v990, %v1118
  %v1247 = vmax.f32 %v991, %v1119
  %v1248 = vmax.f32 %v992, %v1120
  %v1249 = vmax.f32 %v993, %v1121
  %v1250 = vmax.f32 %v994, %v1122
  %v1251 = vmax.f32 %v995, %v1123
  %v1252 = vmax.f32 %v996, %v1124
  %v1253 = vmax.f32 %v997, %v1125
  %v1254 = vmax.f32 %v998, %v1126
  %v1255 = vmax.f32 %v999, %v1127
  %v1256 = vmax.f32 %v1000, %v1128
  %v1257 = vmax.f32 %v1001, %v1129
  %v1258 = vmax.f32 %v1002, %v1130
  %v1259 = vmax.f32 %v1003, %v1131
  %v1260 = vmax.f32 %v1004, %v1132
  %v1261 = vmax.f32 %v1005, %v1133
  %v1262 = vmax.f32 %v1006, %v1134
  %v1263 = vmax.f32 %v1007, %v1135
  %v1264 = vmax.f32 %v1008, %v1136
  %v1265 = vmax.f32 %v1009, %v1137
  %v1266 = vmax.f32 %v1010, %v1138
  %v1267 = vmax.f32 %v1011, %v1139
  %v1268 = vmax.f32 %v1012, %v1140
  %v1269 = vmax.f32 %v1013, %v1141
  %v1270 = vmax.f32 %v1014, %v1142
  %v1271 = vpack.c.bf16 %v1145, %v1143
  %v1272 = vpack.c.bf16 %v1149, %v1147
  %v1273 = vpack.c.bf16 %v1153, %v1151
  %v1274 = vpack.c.bf16 %v1157, %v1155
  %v1275 = vpack.c.bf16 %v1161, %v1159
  %v1276 = vpack.c.bf16 %v1165, %v1163
  %v1277 = vpack.c.bf16 %v1169, %v1167
  %v1278 = vpack.c.bf16 %v1173, %v1171
  %v1279 = vpack.c.bf16 %v1177, %v1175
  %v1280 = vpack.c.bf16 %v1181, %v1179
  %v1281 = vpack.c.bf16 %v1185, %v1183
  %v1282 = vpack.c.bf16 %v1189, %v1187
  %v1283 = vpack.c.bf16 %v1193, %v1191
  %v1284 = vpack.c.bf16 %v1197, %v1195
  %v1285 = vpack.c.bf16 %v1201, %v1199
  %v1286 = vpack.c.bf16 %v1205, %v1203
  %v1287 = vpack.c.bf16 %v1209, %v1207
  %v1288 = vpack.c.bf16 %v1213, %v1211
  %v1289 = vpack.c.bf16 %v1217, %v1215
  %v1290 = vpack.c.bf16 %v1221, %v1219
  %v1291 = vpack.c.bf16 %v1225, %v1223
  %v1292 = vpack.c.bf16 %v1229, %v1227
  %v1293 = vpack.c.bf16 %v1233, %v1231
  %v1294 = vpack.c.bf16 %v1237, %v1235
  %v1295 = vpack.c.bf16 %v1241, %v1239
  %v1296 = vpack.c.bf16 %v1245, %v1243
  %v1297 = vpack.c.bf16 %v1249, %v1247
  %v1298 = vpack.c.bf16 %v1253, %v1251
  %v1299 = vpack.c.bf16 %v1257, %v1255
  %v1300 = vpack.c.bf16 %v1261, %v1259
  %v1301 = vpack.c.bf16 %v1265, %v1263
  %v1302 = vpack.c.bf16 %v1269, %v1267
  %v1303 = vld [vmem:[%s4] sm:$0xf]
  %v1304 = vld [vmem:[%s4 + $0x4] sm:$0xf]
  %v1305 = vld [vmem:[%s4 + $0x8] sm:$0xf]
  %v1306 = vld [vmem:[%s4 + $0xc] sm:$0xf]
  %v1307 = vld [vmem:[%s4 + $0x10] sm:$0xf]
  %v1308 = vld [vmem:[%s4 + $0x14] sm:$0xf]
  %v1309 = vld [vmem:[%s4 + $0x18] sm:$0xf]
  %v1310 = vld [vmem:[%s4 + $0x1c] sm:$0xf]
  %v1311 = vld [vmem:[%s4 + $0x20] sm:$0xf]
  %v1312 = vld [vmem:[%s4 + $0x24] sm:$0xf]
  %v1313 = vld [vmem:[%s4 + $0x28] sm:$0xf]
  %v1314 = vld [vmem:[%s4 + $0x2c] sm:$0xf]
  %v1315 = vld [vmem:[%s4 + $0x30] sm:$0xf]
  %v1316 = vld [vmem:[%s4 + $0x34] sm:$0xf]
  %v1317 = vld [vmem:[%s4 + $0x38] sm:$0xf]
  %v1318 = vld [vmem:[%s4 + $0x3c] sm:$0xf]
  %v1335 = vunpack.c.l.b16 %v1303
  %v1336 = vunpack.c.l.b16 %v1304
  %v1337 = vunpack.c.l.b16 %v1305
  %v1338 = vunpack.c.l.b16 %v1306
  %v1339 = vunpack.c.l.b16 %v1307
  %v1340 = vunpack.c.l.b16 %v1308
  %v1341 = vunpack.c.l.b16 %v1309
  %v1342 = vunpack.c.l.b16 %v1310
  %v1343 = vunpack.c.l.b16 %v1311
  %v1344 = vunpack.c.l.b16 %v1312
  %v1345 = vunpack.c.l.b16 %v1313
  %v1346 = vunpack.c.l.b16 %v1314
  %v1347 = vunpack.c.l.b16 %v1315
  %v1348 = vunpack.c.l.b16 %v1316
  %v1349 = vunpack.c.l.b16 %v1317
  %v1350 = vunpack.c.l.b16 %v1318
  %v1351 = vpack.c.b16 %v1336, %v1335
  %v1352 = vpack.c.b16 %v1338, %v1337
  %v1353 = vpack.c.b16 %v1340, %v1339
  %v1354 = vpack.c.b16 %v1342, %v1341
  %v1355 = vpack.c.b16 %v1344, %v1343
  %v1356 = vpack.c.b16 %v1346, %v1345
  %v1357 = vpack.c.b16 %v1348, %v1347
  %v1358 = vpack.c.b16 %v1350, %v1349
  %1367 = vmatprep.subr.bf16.mxu0 0
  %1368 = vmatpush1.bf16.msra.mxu0 %v1351
  %1369 = vmatprep.subr.bf16.mxu0 0
  %1370 = vmatpush1.bf16.msra.mxu0 %v1352
  %1371 = vmatprep.subr.bf16.mxu0 0
  %1372 = vmatpush1.bf16.msra.mxu0 %v1353
  %1373 = vmatprep.subr.bf16.mxu0 0
  %1374 = vmatpush1.bf16.msra.mxu0 %v1354
  %1375 = vmatprep.subr.bf16.mxu0 0
  %1376 = vmatpush1.bf16.msra.mxu0 %v1355
  %1377 = vmatprep.subr.bf16.mxu0 0
  %1378 = vmatpush1.bf16.msra.mxu0 %v1356
  %1379 = vmatprep.subr.bf16.mxu0 0
  %1380 = vmatpush1.bf16.msra.mxu0 %v1357
  %1381 = vmatprep.subr.bf16.mxu0 0
  %1382 = vmatpush1.bf16.msra.mxu0 %v1358
  %1383 = vmatprep.subr.bf16.mxu0 0
  %1384 = vmatpush1.bf16.msra.mxu0 0
  %1385 = vmatprep.subr.bf16.mxu0 0
  %1386 = vmatpush1.bf16.msra.mxu0 0
  %1387 = vmatprep.subr.bf16.mxu0 0
  %1388 = vmatpush1.bf16.msra.mxu0 0
  %1389 = vmatprep.subr.bf16.mxu0 0
  %1390 = vmatpush1.bf16.msra.mxu0 0
  %1391 = vmatprep.subr.bf16.mxu0 0
  %1392 = vmatpush1.bf16.msra.mxu0 0
  %1393 = vmatprep.subr.bf16.mxu0 0
  %1394 = vmatpush1.bf16.msra.mxu0 0
  %1395 = vmatprep.subr.bf16.mxu0 0
  %1396 = vmatpush1.bf16.msra.mxu0 0
  %1397 = vmatprep.subr.bf16.mxu0 0
  %1398 = vmatpush1.bf16.msra.mxu0 0
  %1399 = vmatprep.mubr.bf16.mxu0 0
  %1400 = vmatmul.mubr.bf16.gmra.mrb[0].mxu0 %v1271
  %v1401 = vpop.f32.mrb[0].mxu0
  %v1402 = vadd.f32 0.0, %v1401
  %v1403 = vpop.f32.mrb[0].mxu0
  %v1404 = vpop.f32.mrb[0].mxu0
  %v1405 = vadd.f32 0.0, %v1404
  %v1406 = vpop.f32.mrb[0].mxu0
  %1407 = vmatprep.mubr.bf16.mxu0 0
  %1408 = vmatmul.mubr.bf16.gmra.mrb[0].mxu0 %v1272
  %v1409 = vpop.f32.mrb[0].mxu0
  %v1410 = vadd.f32 0.0, %v1409
  %v1411 = vpop.f32.mrb[0].mxu0
  %v1412 = vpop.f32.mrb[0].mxu0
  %v1413 = vadd.f32 0.0, %v1412
  %v1414 = vpop.f32.mrb[0].mxu0
  %1415 = vmatprep.mubr.bf16.mxu0 0
  %1416 = vmatmul.mubr.bf16.gmra.mrb[0].mxu0 %v1273
  %v1417 = vpop.f32.mrb[0].mxu0
  %v1418 = vadd.f32 0.0, %v1417
  %v1419 = vpop.f32.mrb[0].mxu0
  %v1420 = vpop.f32.mrb[0].mxu0
  %v1421 = vadd.f32 0.0, %v1420
  %v1422 = vpop.f32.mrb[0].mxu0
  %1423 = vmatprep.mubr.bf16.mxu0 0
  %1424 = vmatmul.mubr.bf16.gmra.mrb[0].mxu0 %v1274
  %v1425 = vpop.f32.mrb[0].mxu0
  %v1426 = vadd.f32 0.0, %v1425
  %v1427 = vpop.f32.mrb[0].mxu0
  %v1428 = vpop.f32.mrb[0].mxu0
  %v1429 = vadd.f32 0.0, %v1428
  %v1430 = vpop.f32.mrb[0].mxu0
  %1431 = vmatprep.mubr.bf16.mxu0 0
  %1432 = vmatmul.mubr.bf16.gmra.mrb[0].mxu0 %v1275
  %v1433 = vpop.f32.mrb[0].mxu0
  %v1434 = vadd.f32 0.0, %v1433
  %v1435 = vpop.f32.mrb[0].mxu0
  %v1436 = vpop.f32.mrb[0].mxu0
  %v1437 = vadd.f32 0.0, %v1436
  %v1438 = vpop.f32.mrb[0].mxu0
  %1439 = vmatprep.mubr.bf16.mxu0 0
  %1440 = vmatmul.mubr.bf16.gmra.mrb[0].mxu0 %v1276
  %v1441 = vpop.f32.mrb[0].mxu0
  %v1442 = vadd.f32 0.0, %v1441
  %v1443 = vpop.f32.mrb[0].mxu0
  %v1444 = vpop.f32.mrb[0].mxu0
  %v1445 = vadd.f32 0.0, %v1444
  %v1446 = vpop.f32.mrb[0].mxu0
  %1447 = vmatprep.mubr.bf16.mxu0 0
  %1448 = vmatmul.mubr.bf16.gmra.mrb[0].mxu0 %v1277
  %v1449 = vpop.f32.mrb[0].mxu0
  %v1450 = vadd.f32 0.0, %v1449
  %v1451 = vpop.f32.mrb[0].mxu0
  %v1452 = vpop.f32.mrb[0].mxu0
  %v1453 = vadd.f32 0.0, %v1452
  %v1454 = vpop.f32.mrb[0].mxu0
  %1455 = vmatprep.mubr.bf16.mxu0 0
  %1456 = vmatmul.mubr.bf16.gmra.mrb[0].mxu0 %v1278
  %v1457 = vpop.f32.mrb[0].mxu0
  %v1458 = vadd.f32 0.0, %v1457
  %v1459 = vpop.f32.mrb[0].mxu0
  %v1460 = vpop.f32.mrb[0].mxu0
  %v1461 = vadd.f32 0.0, %v1460
  %v1462 = vpop.f32.mrb[0].mxu0
  %1463 = vmatprep.mubr.bf16.mxu0 0
  %1464 = vmatmul.mubr.bf16.gmra.mrb[0].mxu0 %v1279
  %v1465 = vpop.f32.mrb[0].mxu0
  %v1466 = vadd.f32 0.0, %v1465
  %v1467 = vpop.f32.mrb[0].mxu0
  %v1468 = vpop.f32.mrb[0].mxu0
  %v1469 = vadd.f32 0.0, %v1468
  %v1470 = vpop.f32.mrb[0].mxu0
  %1471 = vmatprep.mubr.bf16.mxu0 0
  %1472 = vmatmul.mubr.bf16.gmra.mrb[0].mxu0 %v1280
  %v1473 = vpop.f32.mrb[0].mxu0
  %v1474 = vadd.f32 0.0, %v1473
  %v1475 = vpop.f32.mrb[0].mxu0
  %v1476 = vpop.f32.mrb[0].mxu0
  %v1477 = vadd.f32 0.0, %v1476
  %v1478 = vpop.f32.mrb[0].mxu0
  %1479 = vmatprep.mubr.bf16.mxu0 0
  %1480 = vmatmul.mubr.bf16.gmra.mrb[0].mxu0 %v1281
  %v1481 = vpop.f32.mrb[0].mxu0
  %v1482 = vadd.f32 0.0, %v1481
  %v1483 = vpop.f32.mrb[0].mxu0
  %v1484 = vpop.f32.mrb[0].mxu0
  %v1485 = vadd.f32 0.0, %v1484
  %v1486 = vpop.f32.mrb[0].mxu0
  %1487 = vmatprep.mubr.bf16.mxu0 0
  %1488 = vmatmul.mubr.bf16.gmra.mrb[0].mxu0 %v1282
  %v1489 = vpop.f32.mrb[0].mxu0
  %v1490 = vadd.f32 0.0, %v1489
  %v1491 = vpop.f32.mrb[0].mxu0
  %v1492 = vpop.f32.mrb[0].mxu0
  %v1493 = vadd.f32 0.0, %v1492
  %v1494 = vpop.f32.mrb[0].mxu0
  %1495 = vmatprep.mubr.bf16.mxu0 0
  %1496 = vmatmul.mubr.bf16.gmra.mrb[0].mxu0 %v1283
  %v1497 = vpop.f32.mrb[0].mxu0
  %v1498 = vadd.f32 0.0, %v1497
  %v1499 = vpop.f32.mrb[0].mxu0
  %v1500 = vpop.f32.mrb[0].mxu0
  %v1501 = vadd.f32 0.0, %v1500
  %v1502 = vpop.f32.mrb[0].mxu0
  %1503 = vmatprep.mubr.bf16.mxu0 0
  %1504 = vmatmul.mubr.bf16.gmra.mrb[0].mxu0 %v1284
  %v1505 = vpop.f32.mrb[0].mxu0
  %v1506 = vadd.f32 0.0, %v1505
  %v1507 = vpop.f32.mrb[0].mxu0
  %v1508 = vpop.f32.mrb[0].mxu0
  %v1509 = vadd.f32 0.0, %v1508
  %v1510 = vpop.f32.mrb[0].mxu0
  %1511 = vmatprep.mubr.bf16.mxu0 0
  %1512 = vmatmul.mubr.bf16.gmra.mrb[0].mxu0 %v1285
  %v1513 = vpop.f32.mrb[0].mxu0
  %v1514 = vadd.f32 0.0, %v1513
  %v1515 = vpop.f32.mrb[0].mxu0
  %v1516 = vpop.f32.mrb[0].mxu0
  %v1517 = vadd.f32 0.0, %v1516
  %v1518 = vpop.f32.mrb[0].mxu0
  %1519 = vmatprep.mubr.bf16.mxu0 0
  %1520 = vmatmul.mubr.bf16.gmra.mrb[0].mxu0 %v1286
  %v1521 = vpop.f32.mrb[0].mxu0
  %v1522 = vadd.f32 0.0, %v1521
  %v1523 = vpop.f32.mrb[0].mxu0
  %v1524 = vpop.f32.mrb[0].mxu0
  %v1525 = vadd.f32 0.0, %v1524
  %v1526 = vpop.f32.mrb[0].mxu0
  %1527 = vmatprep.mubr.bf16.mxu0 0
  %1528 = vmatmul.mubr.bf16.gmra.mrb[0].mxu0 %v1287
  %v1529 = vpop.f32.mrb[0].mxu0
  %v1530 = vadd.f32 0.0, %v1529
  %v1531 = vpop.f32.mrb[0].mxu0
  %v1532 = vpop.f32.mrb[0].mxu0
  %v1533 = vadd.f32 0.0, %v1532
  %v1534 = vpop.f32.mrb[0].mxu0
  %1535 = vmatprep.mubr.bf16.mxu0 0
  %1536 = vmatmul.mubr.bf16.gmra.mrb[0].mxu0 %v1288
  %v1537 = vpop.f32.mrb[0].mxu0
  %v1538 = vadd.f32 0.0, %v1537
  %v1539 = vpop.f32.mrb[0].mxu0
  %v1540 = vpop.f32.mrb[0].mxu0
  %v1541 = vadd.f32 0.0, %v1540
  %v1542 = vpop.f32.mrb[0].mxu0
  %1543 = vmatprep.mubr.bf16.mxu0 0
  %1544 = vmatmul.mubr.bf16.gmra.mrb[0].mxu0 %v1289
  %v1545 = vpop.f32.mrb[0].mxu0
  %v1546 = vadd.f32 0.0, %v1545
  %v1547 = vpop.f32.mrb[0].mxu0
  %v1548 = vpop.f32.mrb[0].mxu0
  %v1549 = vadd.f32 0.0, %v1548
  %v1550 = vpop.f32.mrb[0].mxu0
  %1551 = vmatprep.mubr.bf16.mxu0 0
  %1552 = vmatmul.mubr.bf16.gmra.mrb[0].mxu0 %v1290
  %v1553 = vpop.f32.mrb[0].mxu0
  %v1554 = vadd.f32 0.0, %v1553
  %v1555 = vpop.f32.mrb[0].mxu0
  %v1556 = vpop.f32.mrb[0].mxu0
  %v1557 = vadd.f32 0.0, %v1556
  %v1558 = vpop.f32.mrb[0].mxu0
  %1559 = vmatprep.mubr.bf16.mxu0 0
  %1560 = vmatmul.mubr.bf16.gmra.mrb[0].mxu0 %v1291
  %v1561 = vpop.f32.mrb[0].mxu0
  %v1562 = vadd.f32 0.0, %v1561
  %v1563 = vpop.f32.mrb[0].mxu0
  %v1564 = vpop.f32.mrb[0].mxu0
  %v1565 = vadd.f32 0.0, %v1564
  %v1566 = vpop.f32.mrb[0].mxu0
  %1567 = vmatprep.mubr.bf16.mxu0 0
  %1568 = vmatmul.mubr.bf16.gmra.mrb[0].mxu0 %v1292
  %v1569 = vpop.f32.mrb[0].mxu0
  %v1570 = vadd.f32 0.0, %v1569
  %v1571 = vpop.f32.mrb[0].mxu0
  %v1572 = vpop.f32.mrb[0].mxu0
  %v1573 = vadd.f32 0.0, %v1572
  %v1574 = vpop.f32.mrb[0].mxu0
  %1575 = vmatprep.mubr.bf16.mxu0 0
  %1576 = vmatmul.mubr.bf16.gmra.mrb[0].mxu0 %v1293
  %v1577 = vpop.f32.mrb[0].mxu0
  %v1578 = vadd.f32 0.0, %v1577
  %v1579 = vpop.f32.mrb[0].mxu0
  %v1580 = vpop.f32.mrb[0].mxu0
  %v1581 = vadd.f32 0.0, %v1580
  %v1582 = vpop.f32.mrb[0].mxu0
  %1583 = vmatprep.mubr.bf16.mxu0 0
  %1584 = vmatmul.mubr.bf16.gmra.mrb[0].mxu0 %v1294
  %v1585 = vpop.f32.mrb[0].mxu0
  %v1586 = vadd.f32 0.0, %v1585
  %v1587 = vpop.f32.mrb[0].mxu0
  %v1588 = vpop.f32.mrb[0].mxu0
  %v1589 = vadd.f32 0.0, %v1588
  %v1590 = vpop.f32.mrb[0].mxu0
  %1591 = vmatprep.mubr.bf16.mxu0 0
  %1592 = vmatmul.mubr.bf16.gmra.mrb[0].mxu0 %v1295
  %v1593 = vpop.f32.mrb[0].mxu0
  %v1594 = vadd.f32 0.0, %v1593
  %v1595 = vpop.f32.mrb[0].mxu0
  %v1596 = vpop.f32.mrb[0].mxu0
  %v1597 = vadd.f32 0.0, %v1596
  %v1598 = vpop.f32.mrb[0].mxu0
  %1599 = vmatprep.mubr.bf16.mxu0 0
  %1600 = vmatmul.mubr.bf16.gmra.mrb[0].mxu0 %v1296
  %v1601 = vpop.f32.mrb[0].mxu0
  %v1602 = vadd.f32 0.0, %v1601
  %v1603 = vpop.f32.mrb[0].mxu0
  %v1604 = vpop.f32.mrb[0].mxu0
  %v1605 = vadd.f32 0.0, %v1604
  %v1606 = vpop.f32.mrb[0].mxu0
  %1607 = vmatprep.mubr.bf16.mxu0 0
  %1608 = vmatmul.mubr.bf16.gmra.mrb[0].mxu0 %v1297
  %v1609 = vpop.f32.mrb[0].mxu0
  %v1610 = vadd.f32 0.0, %v1609
  %v1611 = vpop.f32.mrb[0].mxu0
  %v1612 = vpop.f32.mrb[0].mxu0
  %v1613 = vadd.f32 0.0, %v1612
  %v1614 = vpop.f32.mrb[0].mxu0
  %1615 = vmatprep.mubr.bf16.mxu0 0
  %1616 = vmatmul.mubr.bf16.gmra.mrb[0].mxu0 %v1298
  %v1617 = vpop.f32.mrb[0].mxu0
  %v1618 = vadd.f32 0.0, %v1617
  %v1619 = vpop.f32.mrb[0].mxu0
  %v1620 = vpop.f32.mrb[0].mxu0
  %v1621 = vadd.f32 0.0, %v1620
  %v1622 = vpop.f32.mrb[0].mxu0
  %1623 = vmatprep.mubr.bf16.mxu0 0
  %1624 = vmatmul.mubr.bf16.gmra.mrb[0].mxu0 %v1299
  %v1625 = vpop.f32.mrb[0].mxu0
  %v1626 = vadd.f32 0.0, %v1625
  %v1627 = vpop.f32.mrb[0].mxu0
  %v1628 = vpop.f32.mrb[0].mxu0
  %v1629 = vadd.f32 0.0, %v1628
  %v1630 = vpop.f32.mrb[0].mxu0
  %1631 = vmatprep.mubr.bf16.mxu0 0
  %1632 = vmatmul.mubr.bf16.gmra.mrb[0].mxu0 %v1300
  %v1633 = vpop.f32.mrb[0].mxu0
  %v1634 = vadd.f32 0.0, %v1633
  %v1635 = vpop.f32.mrb[0].mxu0
  %v1636 = vpop.f32.mrb[0].mxu0
  %v1637 = vadd.f32 0.0, %v1636
  %v1638 = vpop.f32.mrb[0].mxu0
  %1639 = vmatprep.mubr.bf16.mxu0 0
  %1640 = vmatmul.mubr.bf16.gmra.mrb[0].mxu0 %v1301
  %v1641 = vpop.f32.mrb[0].mxu0
  %v1642 = vadd.f32 0.0, %v1641
  %v1643 = vpop.f32.mrb[0].mxu0
  %v1644 = vpop.f32.mrb[0].mxu0
  %v1645 = vadd.f32 0.0, %v1644
  %v1646 = vpop.f32.mrb[0].mxu0
  %1647 = vmatprep.mubr.bf16.mxu0 0
  %1648 = vmatmul.mubr.bf16.gmra.mrb[0].mxu0 %v1302
  %v1649 = vpop.f32.mrb[0].mxu0
  %v1650 = vadd.f32 0.0, %v1649
  %v1651 = vpop.f32.mrb[0].mxu0
  %v1652 = vpop.f32.mrb[0].mxu0
  %v1653 = vadd.f32 0.0, %v1652
  %v1654 = vpop.f32.mrb[0].mxu0
  %1655 = vdwg.mxu0
  %v1656 = vld [vmem:[%s5] sm:$0x1]
  %v1658 = vlaneseq
  %v1659 = vshrl.u32 %v1658, 7
  %v1660 = vsub.s32 0, %v1659
  %v1661 = vrot.slane %v1656, %v1660
  %v1663 = vmul.f32 %v1402, %v1661
  %v1664 = vmul.f32 %v1405, %v1661
  %v1665 = vmul.f32 %v1410, %v1661
  %v1666 = vmul.f32 %v1413, %v1661
  %v1667 = vmul.f32 %v1418, %v1661
  %v1668 = vmul.f32 %v1421, %v1661
  %v1669 = vmul.f32 %v1426, %v1661
  %v1670 = vmul.f32 %v1429, %v1661
  %v1671 = vmul.f32 %v1434, %v1661
  %v1672 = vmul.f32 %v1437, %v1661
  %v1673 = vmul.f32 %v1442, %v1661
  %v1674 = vmul.f32 %v1445, %v1661
  %v1675 = vmul.f32 %v1450, %v1661
  %v1676 = vmul.f32 %v1453, %v1661
  %v1677 = vmul.f32 %v1458, %v1661
  %v1678 = vmul.f32 %v1461, %v1661
  %v1679 = vmul.f32 %v1466, %v1661
  %v1680 = vmul.f32 %v1469, %v1661
  %v1681 = vmul.f32 %v1474, %v1661
  %v1682 = vmul.f32 %v1477, %v1661
  %v1683 = vmul.f32 %v1482, %v1661
  %v1684 = vmul.f32 %v1485, %v1661
  %v1685 = vmul.f32 %v1490, %v1661
  %v1686 = vmul.f32 %v1493, %v1661
  %v1687 = vmul.f32 %v1498, %v1661
  %v1688 = vmul.f32 %v1501, %v1661
  %v1689 = vmul.f32 %v1506, %v1661
  %v1690 = vmul.f32 %v1509, %v1661
  %v1691 = vmul.f32 %v1514, %v1661
  %v1692 = vmul.f32 %v1517, %v1661
  %v1693 = vmul.f32 %v1522, %v1661
  %v1694 = vmul.f32 %v1525, %v1661
  %v1695 = vmul.f32 %v1530, %v1661
  %v1696 = vmul.f32 %v1533, %v1661
  %v1697 = vmul.f32 %v1538, %v1661
  %v1698 = vmul.f32 %v1541, %v1661
  %v1699 = vmul.f32 %v1546, %v1661
  %v1700 = vmul.f32 %v1549, %v1661
  %v1701 = vmul.f32 %v1554, %v1661
  %v1702 = vmul.f32 %v1557, %v1661
  %v1703 = vmul.f32 %v1562, %v1661
  %v1704 = vmul.f32 %v1565, %v1661
  %v1705 = vmul.f32 %v1570, %v1661
  %v1706 = vmul.f32 %v1573, %v1661
  %v1707 = vmul.f32 %v1578, %v1661
  %v1708 = vmul.f32 %v1581, %v1661
  %v1709 = vmul.f32 %v1586, %v1661
  %v1710 = vmul.f32 %v1589, %v1661
  %v1711 = vmul.f32 %v1594, %v1661
  %v1712 = vmul.f32 %v1597, %v1661
  %v1713 = vmul.f32 %v1602, %v1661
  %v1714 = vmul.f32 %v1605, %v1661
  %v1715 = vmul.f32 %v1610, %v1661
  %v1716 = vmul.f32 %v1613, %v1661
  %v1717 = vmul.f32 %v1618, %v1661
  %v1718 = vmul.f32 %v1621, %v1661
  %v1719 = vmul.f32 %v1626, %v1661
  %v1720 = vmul.f32 %v1629, %v1661
  %v1721 = vmul.f32 %v1634, %v1661
  %v1722 = vmul.f32 %v1637, %v1661
  %v1723 = vmul.f32 %v1642, %v1661
  %v1724 = vmul.f32 %v1645, %v1661
  %v1725 = vmul.f32 %v1650, %v1661
  %v1726 = vmul.f32 %v1653, %v1661
  %v1727 = vld [vmem:[%s6] sm:$0x1]
  %v1729 = vlaneseq
  %v1730 = vshrl.u32 %v1729, 7
  %v1731 = vsub.s32 0, %v1730
  %v1732 = vrot.slane %v1727, %v1731
  %v1734 = vadd.f32 %v1663, %v1732
  %v1735 = vadd.f32 %v1664, %v1732
  %v1736 = vadd.f32 %v1665, %v1732
  %v1737 = vadd.f32 %v1666, %v1732
  %v1738 = vadd.f32 %v1667, %v1732
  %v1739 = vadd.f32 %v1668, %v1732
  %v1740 = vadd.f32 %v1669, %v1732
  %v1741 = vadd.f32 %v1670, %v1732
  %v1742 = vadd.f32 %v1671, %v1732
  %v1743 = vadd.f32 %v1672, %v1732
  %v1744 = vadd.f32 %v1673, %v1732
  %v1745 = vadd.f32 %v1674, %v1732
  %v1746 = vadd.f32 %v1675, %v1732
  %v1747 = vadd.f32 %v1676, %v1732
  %v1748 = vadd.f32 %v1677, %v1732
  %v1749 = vadd.f32 %v1678, %v1732
  %v1750 = vadd.f32 %v1679, %v1732
  %v1751 = vadd.f32 %v1680, %v1732
  %v1752 = vadd.f32 %v1681, %v1732
  %v1753 = vadd.f32 %v1682, %v1732
  %v1754 = vadd.f32 %v1683, %v1732
  %v1755 = vadd.f32 %v1684, %v1732
  %v1756 = vadd.f32 %v1685, %v1732
  %v1757 = vadd.f32 %v1686, %v1732
  %v1758 = vadd.f32 %v1687, %v1732
  %v1759 = vadd.f32 %v1688, %v1732
  %v1760 = vadd.f32 %v1689, %v1732
  %v1761 = vadd.f32 %v1690, %v1732
  %v1762 = vadd.f32 %v1691, %v1732
  %v1763 = vadd.f32 %v1692, %v1732
  %v1764 = vadd.f32 %v1693, %v1732
  %v1765 = vadd.f32 %v1694, %v1732
  %v1766 = vadd.f32 %v1695, %v1732
  %v1767 = vadd.f32 %v1696, %v1732
  %v1768 = vadd.f32 %v1697, %v1732
  %v1769 = vadd.f32 %v1698, %v1732
  %v1770 = vadd.f32 %v1699, %v1732
  %v1771 = vadd.f32 %v1700, %v1732
  %v1772 = vadd.f32 %v1701, %v1732
  %v1773 = vadd.f32 %v1702, %v1732
  %v1774 = vadd.f32 %v1703, %v1732
  %v1775 = vadd.f32 %v1704, %v1732
  %v1776 = vadd.f32 %v1705, %v1732
  %v1777 = vadd.f32 %v1706, %v1732
  %v1778 = vadd.f32 %v1707, %v1732
  %v1779 = vadd.f32 %v1708, %v1732
  %v1780 = vadd.f32 %v1709, %v1732
  %v1781 = vadd.f32 %v1710, %v1732
  %v1782 = vadd.f32 %v1711, %v1732
  %v1783 = vadd.f32 %v1712, %v1732
  %v1784 = vadd.f32 %v1713, %v1732
  %v1785 = vadd.f32 %v1714, %v1732
  %v1786 = vadd.f32 %v1715, %v1732
  %v1787 = vadd.f32 %v1716, %v1732
  %v1788 = vadd.f32 %v1717, %v1732
  %v1789 = vadd.f32 %v1718, %v1732
  %v1790 = vadd.f32 %v1719, %v1732
  %v1791 = vadd.f32 %v1720, %v1732
  %v1792 = vadd.f32 %v1721, %v1732
  %v1793 = vadd.f32 %v1722, %v1732
  %v1794 = vadd.f32 %v1723, %v1732
  %v1795 = vadd.f32 %v1724, %v1732
  %v1796 = vadd.f32 %v1725, %v1732
  %v1797 = vadd.f32 %v1726, %v1732
  %v1798 = vmul.f32 %v1734, 0.1
  %v1799 = vmul.f32 %v1735, 0.1
  %v1800 = vmul.f32 %v1736, 0.1
  %v1801 = vmul.f32 %v1737, 0.1
  %v1802 = vmul.f32 %v1738, 0.1
  %v1803 = vmul.f32 %v1739, 0.1
  %v1804 = vmul.f32 %v1740, 0.1
  %v1805 = vmul.f32 %v1741, 0.1
  %v1806 = vmul.f32 %v1742, 0.1
  %v1807 = vmul.f32 %v1743, 0.1
  %v1808 = vmul.f32 %v1744, 0.1
  %v1809 = vmul.f32 %v1745, 0.1
  %v1810 = vmul.f32 %v1746, 0.1
  %v1811 = vmul.f32 %v1747, 0.1
  %v1812 = vmul.f32 %v1748, 0.1
  %v1813 = vmul.f32 %v1749, 0.1
  %v1814 = vmul.f32 %v1750, 0.1
  %v1815 = vmul.f32 %v1751, 0.1
  %v1816 = vmul.f32 %v1752, 0.1
  %v1817 = vmul.f32 %v1753, 0.1
  %v1818 = vmul.f32 %v1754, 0.1
  %v1819 = vmul.f32 %v1755, 0.1
  %v1820 = vmul.f32 %v1756, 0.1
  %v1821 = vmul.f32 %v1757, 0.1
  %v1822 = vmul.f32 %v1758, 0.1
  %v1823 = vmul.f32 %v1759, 0.1
  %v1824 = vmul.f32 %v1760, 0.1
  %v1825 = vmul.f32 %v1761, 0.1
  %v1826 = vmul.f32 %v1762, 0.1
  %v1827 = vmul.f32 %v1763, 0.1
  %v1828 = vmul.f32 %v1764, 0.1
  %v1829 = vmul.f32 %v1765, 0.1
  %v1830 = vmul.f32 %v1766, 0.1
  %v1831 = vmul.f32 %v1767, 0.1
  %v1832 = vmul.f32 %v1768, 0.1
  %v1833 = vmul.f32 %v1769, 0.1
  %v1834 = vmul.f32 %v1770, 0.1
  %v1835 = vmul.f32 %v1771, 0.1
  %v1836 = vmul.f32 %v1772, 0.1
  %v1837 = vmul.f32 %v1773, 0.1
  %v1838 = vmul.f32 %v1774, 0.1
  %v1839 = vmul.f32 %v1775, 0.1
  %v1840 = vmul.f32 %v1776, 0.1
  %v1841 = vmul.f32 %v1777, 0.1
  %v1842 = vmul.f32 %v1778, 0.1
  %v1843 = vmul.f32 %v1779, 0.1
  %v1844 = vmul.f32 %v1780, 0.1
  %v1845 = vmul.f32 %v1781, 0.1
  %v1846 = vmul.f32 %v1782, 0.1
  %v1847 = vmul.f32 %v1783, 0.1
  %v1848 = vmul.f32 %v1784, 0.1
  %v1849 = vmul.f32 %v1785, 0.1
  %v1850 = vmul.f32 %v1786, 0.1
  %v1851 = vmul.f32 %v1787, 0.1
  %v1852 = vmul.f32 %v1788, 0.1
  %v1853 = vmul.f32 %v1789, 0.1
  %v1854 = vmul.f32 %v1790, 0.1
  %v1855 = vmul.f32 %v1791, 0.1
  %v1856 = vmul.f32 %v1792, 0.1
  %v1857 = vmul.f32 %v1793, 0.1
  %v1858 = vmul.f32 %v1794, 0.1
  %v1859 = vmul.f32 %v1795, 0.1
  %v1860 = vmul.f32 %v1796, 0.1
  %v1861 = vmul.f32 %v1797, 0.1
  %v1862 = vmax.f32 %v1734, %v1798
  %v1863 = vmax.f32 %v1735, %v1799
  %v1864 = vmax.f32 %v1736, %v1800
  %v1865 = vmax.f32 %v1737, %v1801
  %v1866 = vmax.f32 %v1738, %v1802
  %v1867 = vmax.f32 %v1739, %v1803
  %v1868 = vmax.f32 %v1740, %v1804
  %v1869 = vmax.f32 %v1741, %v1805
  %v1870 = vmax.f32 %v1742, %v1806
  %v1871 = vmax.f32 %v1743, %v1807
  %v1872 = vmax.f32 %v1744, %v1808
  %v1873 = vmax.f32 %v1745, %v1809
  %v1874 = vmax.f32 %v1746, %v1810
  %v1875 = vmax.f32 %v1747, %v1811
  %v1876 = vmax.f32 %v1748, %v1812
  %v1877 = vmax.f32 %v1749, %v1813
  %v1878 = vmax.f32 %v1750, %v1814
  %v1879 = vmax.f32 %v1751, %v1815
  %v1880 = vmax.f32 %v1752, %v1816
  %v1881 = vmax.f32 %v1753, %v1817
  %v1882 = vmax.f32 %v1754, %v1818
  %v1883 = vmax.f32 %v1755, %v1819
  %v1884 = vmax.f32 %v1756, %v1820
  %v1885 = vmax.f32 %v1757, %v1821
  %v1886 = vmax.f32 %v1758, %v1822
  %v1887 = vmax.f32 %v1759, %v1823
  %v1888 = vmax.f32 %v1760, %v1824
  %v1889 = vmax.f32 %v1761, %v1825
  %v1890 = vmax.f32 %v1762, %v1826
  %v1891 = vmax.f32 %v1763, %v1827
  %v1892 = vmax.f32 %v1764, %v1828
  %v1893 = vmax.f32 %v1765, %v1829
  %v1894 = vmax.f32 %v1766, %v1830
  %v1895 = vmax.f32 %v1767, %v1831
  %v1896 = vmax.f32 %v1768, %v1832
  %v1897 = vmax.f32 %v1769, %v1833
  %v1898 = vmax.f32 %v1770, %v1834
  %v1899 = vmax.f32 %v1771, %v1835
  %v1900 = vmax.f32 %v1772, %v1836
  %v1901 = vmax.f32 %v1773, %v1837
  %v1902 = vmax.f32 %v1774, %v1838
  %v1903 = vmax.f32 %v1775, %v1839
  %v1904 = vmax.f32 %v1776, %v1840
  %v1905 = vmax.f32 %v1777, %v1841
  %v1906 = vmax.f32 %v1778, %v1842
  %v1907 = vmax.f32 %v1779, %v1843
  %v1908 = vmax.f32 %v1780, %v1844
  %v1909 = vmax.f32 %v1781, %v1845
  %v1910 = vmax.f32 %v1782, %v1846
  %v1911 = vmax.f32 %v1783, %v1847
  %v1912 = vmax.f32 %v1784, %v1848
  %v1913 = vmax.f32 %v1785, %v1849
  %v1914 = vmax.f32 %v1786, %v1850
  %v1915 = vmax.f32 %v1787, %v1851
  %v1916 = vmax.f32 %v1788, %v1852
  %v1917 = vmax.f32 %v1789, %v1853
  %v1918 = vmax.f32 %v1790, %v1854
  %v1919 = vmax.f32 %v1791, %v1855
  %v1920 = vmax.f32 %v1792, %v1856
  %v1921 = vmax.f32 %v1793, %v1857
  %v1922 = vmax.f32 %v1794, %v1858
  %v1923 = vmax.f32 %v1795, %v1859
  %v1924 = vmax.f32 %v1796, %v1860
  %v1925 = vmax.f32 %v1797, %v1861
  %v1958 = vunpack.c.l.b16 %v1271
  %v1959 = vunpack.c.h.b16 %v1271
  %v1960 = vunpack.c.l.b16 %v1272
  %v1961 = vunpack.c.h.b16 %v1272
  %v1962 = vunpack.c.l.b16 %v1273
  %v1963 = vunpack.c.h.b16 %v1273
  %v1964 = vunpack.c.l.b16 %v1274
  %v1965 = vunpack.c.h.b16 %v1274
  %v1966 = vunpack.c.l.b16 %v1275
  %v1967 = vunpack.c.h.b16 %v1275
  %v1968 = vunpack.c.l.b16 %v1276
  %v1969 = vunpack.c.h.b16 %v1276
  %v1970 = vunpack.c.l.b16 %v1277
  %v1971 = vunpack.c.h.b16 %v1277
  %v1972 = vunpack.c.l.b16 %v1278
  %v1973 = vunpack.c.h.b16 %v1278
  %v1974 = vunpack.c.l.b16 %v1279
  %v1975 = vunpack.c.h.b16 %v1279
  %v1976 = vunpack.c.l.b16 %v1280
  %v1977 = vunpack.c.h.b16 %v1280
  %v1978 = vunpack.c.l.b16 %v1281
  %v1979 = vunpack.c.h.b16 %v1281
  %v1980 = vunpack.c.l.b16 %v1282
  %v1981 = vunpack.c.h.b16 %v1282
  %v1982 = vunpack.c.l.b16 %v1283
  %v1983 = vunpack.c.h.b16 %v1283
  %v1984 = vunpack.c.l.b16 %v1284
  %v1985 = vunpack.c.h.b16 %v1284
  %v1986 = vunpack.c.l.b16 %v1285
  %v1987 = vunpack.c.h.b16 %v1285
  %v1988 = vunpack.c.l.b16 %v1286
  %v1989 = vunpack.c.h.b16 %v1286
  %v1990 = vunpack.c.l.b16 %v1287
  %v1991 = vunpack.c.h.b16 %v1287
  %v1992 = vunpack.c.l.b16 %v1288
  %v1993 = vunpack.c.h.b16 %v1288
  %v1994 = vunpack.c.l.b16 %v1289
  %v1995 = vunpack.c.h.b16 %v1289
  %v1996 = vunpack.c.l.b16 %v1290
  %v1997 = vunpack.c.h.b16 %v1290
  %v1998 = vunpack.c.l.b16 %v1291
  %v1999 = vunpack.c.h.b16 %v1291
  %v2000 = vunpack.c.l.b16 %v1292
  %v2001 = vunpack.c.h.b16 %v1292
  %v2002 = vunpack.c.l.b16 %v1293
  %v2003 = vunpack.c.h.b16 %v1293
  %v2004 = vunpack.c.l.b16 %v1294
  %v2005 = vunpack.c.h.b16 %v1294
  %v2006 = vunpack.c.l.b16 %v1295
  %v2007 = vunpack.c.h.b16 %v1295
  %v2008 = vunpack.c.l.b16 %v1296
  %v2009 = vunpack.c.h.b16 %v1296
  %v2010 = vunpack.c.l.b16 %v1297
  %v2011 = vunpack.c.h.b16 %v1297
  %v2012 = vunpack.c.l.b16 %v1298
  %v2013 = vunpack.c.h.b16 %v1298
  %v2014 = vunpack.c.l.b16 %v1299
  %v2015 = vunpack.c.h.b16 %v1299
  %v2016 = vunpack.c.l.b16 %v1300
  %v2017 = vunpack.c.h.b16 %v1300
  %v2018 = vunpack.c.l.b16 %v1301
  %v2019 = vunpack.c.h.b16 %v1301
  %v2020 = vunpack.c.l.b16 %v1302
  %v2021 = vunpack.c.h.b16 %v1302
  %v2022 = vpack.c.b16 %v1958, %v1958
  %v2023 = vpack.c.b16 %v1959, %v1959
  %v2024 = vpack.c.b16 %v1960, %v1960
  %v2025 = vpack.c.b16 %v1961, %v1961
  %v2026 = vpack.c.b16 %v1962, %v1962
  %v2027 = vpack.c.b16 %v1963, %v1963
  %v2028 = vpack.c.b16 %v1964, %v1964
  %v2029 = vpack.c.b16 %v1965, %v1965
  %v2030 = vpack.c.b16 %v1966, %v1966
  %v2031 = vpack.c.b16 %v1967, %v1967
  %v2032 = vpack.c.b16 %v1968, %v1968
  %v2033 = vpack.c.b16 %v1969, %v1969
  %v2034 = vpack.c.b16 %v1970, %v1970
  %v2035 = vpack.c.b16 %v1971, %v1971
  %v2036 = vpack.c.b16 %v1972, %v1972
  %v2037 = vpack.c.b16 %v1973, %v1973
  %v2038 = vpack.c.b16 %v1974, %v1974
  %v2039 = vpack.c.b16 %v1975, %v1975
  %v2040 = vpack.c.b16 %v1976, %v1976
  %v2041 = vpack.c.b16 %v1977, %v1977
  %v2042 = vpack.c.b16 %v1978, %v1978
  %v2043 = vpack.c.b16 %v1979, %v1979
  %v2044 = vpack.c.b16 %v1980, %v1980
  %v2045 = vpack.c.b16 %v1981, %v1981
  %v2046 = vpack.c.b16 %v1982, %v1982
  %v2047 = vpack.c.b16 %v1983, %v1983
  %v2048 = vpack.c.b16 %v1984, %v1984
  %v2049 = vpack.c.b16 %v1985, %v1985
  %v2050 = vpack.c.b16 %v1986, %v1986
  %v2051 = vpack.c.b16 %v1987, %v1987
  %v2052 = vpack.c.b16 %v1988, %v1988
  %v2053 = vpack.c.b16 %v1989, %v1989
  %v2054 = vpack.c.b16 %v1990, %v1990
  %v2055 = vpack.c.b16 %v1991, %v1991
  %v2056 = vpack.c.b16 %v1992, %v1992
  %v2057 = vpack.c.b16 %v1993, %v1993
  %v2058 = vpack.c.b16 %v1994, %v1994
  %v2059 = vpack.c.b16 %v1995, %v1995
  %v2060 = vpack.c.b16 %v1996, %v1996
  %v2061 = vpack.c.b16 %v1997, %v1997
  %v2062 = vpack.c.b16 %v1998, %v1998
  %v2063 = vpack.c.b16 %v1999, %v1999
  %v2064 = vpack.c.b16 %v2000, %v2000
  %v2065 = vpack.c.b16 %v2001, %v2001
  %v2066 = vpack.c.b16 %v2002, %v2002
  %v2067 = vpack.c.b16 %v2003, %v2003
  %v2068 = vpack.c.b16 %v2004, %v2004
  %v2069 = vpack.c.b16 %v2005, %v2005
  %v2070 = vpack.c.b16 %v2006, %v2006
  %v2071 = vpack.c.b16 %v2007, %v2007
  %v2072 = vpack.c.b16 %v2008, %v2008
  %v2073 = vpack.c.b16 %v2009, %v2009
  %v2074 = vpack.c.b16 %v2010, %v2010
  %v2075 = vpack.c.b16 %v2011, %v2011
  %v2076 = vpack.c.b16 %v2012, %v2012
  %v2077 = vpack.c.b16 %v2013, %v2013
  %v2078 = vpack.c.b16 %v2014, %v2014
  %v2079 = vpack.c.b16 %v2015, %v2015
  %v2080 = vpack.c.b16 %v2016, %v2016
  %v2081 = vpack.c.b16 %v2017, %v2017
  %v2082 = vpack.c.b16 %v2018, %v2018
  %v2083 = vpack.c.b16 %v2019, %v2019
  %v2084 = vpack.c.b16 %v2020, %v2020
  %v2085 = vpack.c.b16 %v2021, %v2021
  %2150 = vst [vmem:[%s7] sm:$0xf] %v2022
  %2151 = vst [vmem:[%s7 + $0x4] sm:$0xf] %v2023
  %2152 = vst [vmem:[%s7 + $0x8] sm:$0xf] %v2024
  %2153 = vst [vmem:[%s7 + $0xc] sm:$0xf] %v2025
  %2154 = vst [vmem:[%s7 + $0x10] sm:$0xf] %v2026
  %2155 = vst [vmem:[%s7 + $0x14] sm:$0xf] %v2027
  %2156 = vst [vmem:[%s7 + $0x18] sm:$0xf] %v2028
  %2157 = vst [vmem:[%s7 + $0x1c] sm:$0xf] %v2029
  %2158 = vst [vmem:[%s7 + $0x20] sm:$0xf] %v2030
  %2159 = vst [vmem:[%s7 + $0x24] sm:$0xf] %v2031
  %2160 = vst [vmem:[%s7 + $0x28] sm:$0xf] %v2032
  %2161 = vst [vmem:[%s7 + $0x2c] sm:$0xf] %v2033
  %2162 = vst [vmem:[%s7 + $0x30] sm:$0xf] %v2034
  %2163 = vst [vmem:[%s7 + $0x34] sm:$0xf] %v2035
  %2164 = vst [vmem:[%s7 + $0x38] sm:$0xf] %v2036
  %2165 = vst [vmem:[%s7 + $0x3c] sm:$0xf] %v2037
  %2166 = vst [vmem:[%s7 + $0x40] sm:$0xf] %v2038
  %2167 = vst [vmem:[%s7 + $0x44] sm:$0xf] %v2039
  %2168 = vst [vmem:[%s7 + $0x48] sm:$0xf] %v2040
  %2169 = vst [vmem:[%s7 + $0x4c] sm:$0xf] %v2041
  %2170 = vst [vmem:[%s7 + $0x50] sm:$0xf] %v2042
  %2171 = vst [vmem:[%s7 + $0x54] sm:$0xf] %v2043
  %2172 = vst [vmem:[%s7 + $0x58] sm:$0xf] %v2044
  %2173 = vst [vmem:[%s7 + $0x5c] sm:$0xf] %v2045
  %2174 = vst [vmem:[%s7 + $0x60] sm:$0xf] %v2046
  %2175 = vst [vmem:[%s7 + $0x64] sm:$0xf] %v2047
  %2176 = vst [vmem:[%s7 + $0x68] sm:$0xf] %v2048
  %2177 = vst [vmem:[%s7 + $0x6c] sm:$0xf] %v2049
  %2178 = vst [vmem:[%s7 + $0x70] sm:$0xf] %v2050
  %2179 = vst [vmem:[%s7 + $0x74] sm:$0xf] %v2051
  %2180 = vst [vmem:[%s7 + $0x78] sm:$0xf] %v2052
  %2181 = vst [vmem:[%s7 + $0x7c] sm:$0xf] %v2053
  %2182 = vst [vmem:[%s7 + $0x80] sm:$0xf] %v2054
  %2183 = vst [vmem:[%s7 + $0x84] sm:$0xf] %v2055
  %2184 = vst [vmem:[%s7 + $0x88] sm:$0xf] %v2056
  %2185 = vst [vmem:[%s7 + $0x8c] sm:$0xf] %v2057
  %2186 = vst [vmem:[%s7 + $0x90] sm:$0xf] %v2058
  %2187 = vst [vmem:[%s7 + $0x94] sm:$0xf] %v2059
  %2188 = vst [vmem:[%s7 + $0x98] sm:$0xf] %v2060
  %2189 = vst [vmem:[%s7 + $0x9c] sm:$0xf] %v2061
  %2190 = vst [vmem:[%s7 + $0xa0] sm:$0xf] %v2062
  %2191 = vst [vmem:[%s7 + $0xa4] sm:$0xf] %v2063
  %2192 = vst [vmem:[%s7 + $0xa8] sm:$0xf] %v2064
  %2193 = vst [vmem:[%s7 + $0xac] sm:$0xf] %v2065
  %2194 = vst [vmem:[%s7 + $0xb0] sm:$0xf] %v2066
  %2195 = vst [vmem:[%s7 + $0xb4] sm:$0xf] %v2067
  %2196 = vst [vmem:[%s7 + $0xb8] sm:$0xf] %v2068
  %2197 = vst [vmem:[%s7 + $0xbc] sm:$0xf] %v2069
  %2198 = vst [vmem:[%s7 + $0xc0] sm:$0xf] %v2070
  %2199 = vst [vmem:[%s7 + $0xc4] sm:$0xf] %v2071
  %2200 = vst [vmem:[%s7 + $0xc8] sm:$0xf] %v2072
  %2201 = vst [vmem:[%s7 + $0xcc] sm:$0xf] %v2073
  %2202 = vst [vmem:[%s7 + $0xd0] sm:$0xf] %v2074
  %2203 = vst [vmem:[%s7 + $0xd4] sm:$0xf] %v2075
  %2204 = vst [vmem:[%s7 + $0xd8] sm:$0xf] %v2076
  %2205 = vst [vmem:[%s7 + $0xdc] sm:$0xf] %v2077
  %2206 = vst [vmem:[%s7 + $0xe0] sm:$0xf] %v2078
  %2207 = vst [vmem:[%s7 + $0xe4] sm:$0xf] %v2079
  %2208 = vst [vmem:[%s7 + $0xe8] sm:$0xf] %v2080
  %2209 = vst [vmem:[%s7 + $0xec] sm:$0xf] %v2081
  %2210 = vst [vmem:[%s7 + $0xf0] sm:$0xf] %v2082
  %2211 = vst [vmem:[%s7 + $0xf4] sm:$0xf] %v2083
  %2212 = vst [vmem:[%s7 + $0xf8] sm:$0xf] %v2084
  %2213 = vst [vmem:[%s7 + $0xfc] sm:$0xf] %v2085
  %v2214 = vpack.c.bf16 %v1146, %v1144
  %v2215 = vpack.c.bf16 %v1150, %v1148
  %v2216 = vpack.c.bf16 %v1154, %v1152
  %v2217 = vpack.c.bf16 %v1158, %v1156
  %v2218 = vpack.c.bf16 %v1162, %v1160
  %v2219 = vpack.c.bf16 %v1166, %v1164
  %v2220 = vpack.c.bf16 %v1170, %v1168
  %v2221 = vpack.c.bf16 %v1174, %v1172
  %v2222 = vpack.c.bf16 %v1178, %v1176
  %v2223 = vpack.c.bf16 %v1182, %v1180
  %v2224 = vpack.c.bf16 %v1186, %v1184
  %v2225 = vpack.c.bf16 %v1190, %v1188
  %v2226 = vpack.c.bf16 %v1194, %v1192
  %v2227 = vpack.c.bf16 %v1198, %v1196
  %v2228 = vpack.c.bf16 %v1202, %v1200
  %v2229 = vpack.c.bf16 %v1206, %v1204
  %v2230 = vpack.c.bf16 %v1210, %v1208
  %v2231 = vpack.c.bf16 %v1214, %v1212
  %v2232 = vpack.c.bf16 %v1218, %v1216
  %v2233 = vpack.c.bf16 %v1222, %v1220
  %v2234 = vpack.c.bf16 %v1226, %v1224
  %v2235 = vpack.c.bf16 %v1230, %v1228
  %v2236 = vpack.c.bf16 %v1234, %v1232
  %v2237 = vpack.c.bf16 %v1238, %v1236
  %v2238 = vpack.c.bf16 %v1242, %v1240
  %v2239 = vpack.c.bf16 %v1246, %v1244
  %v2240 = vpack.c.bf16 %v1250, %v1248
  %v2241 = vpack.c.bf16 %v1254, %v1252
  %v2242 = vpack.c.bf16 %v1258, %v1256
  %v2243 = vpack.c.bf16 %v1262, %v1260
  %v2244 = vpack.c.bf16 %v1266, %v1264
  %v2245 = vpack.c.bf16 %v1270, %v1268
  %v2278 = vunpack.c.l.b16 %v2214
  %v2279 = vunpack.c.h.b16 %v2214
  %v2280 = vunpack.c.l.b16 %v2215
  %v2281 = vunpack.c.h.b16 %v2215
  %v2282 = vunpack.c.l.b16 %v2216
  %v2283 = vunpack.c.h.b16 %v2216
  %v2284 = vunpack.c.l.b16 %v2217
  %v2285 = vunpack.c.h.b16 %v2217
  %v2286 = vunpack.c.l.b16 %v2218
  %v2287 = vunpack.c.h.b16 %v2218
  %v2288 = vunpack.c.l.b16 %v2219
  %v2289 = vunpack.c.h.b16 %v2219
  %v2290 = vunpack.c.l.b16 %v2220
  %v2291 = vunpack.c.h.b16 %v2220
  %v2292 = vunpack.c.l.b16 %v2221
  %v2293 = vunpack.c.h.b16 %v2221
  %v2294 = vunpack.c.l.b16 %v2222
  %v2295 = vunpack.c.h.b16 %v2222
  %v2296 = vunpack.c.l.b16 %v2223
  %v2297 = vunpack.c.h.b16 %v2223
  %v2298 = vunpack.c.l.b16 %v2224
  %v2299 = vunpack.c.h.b16 %v2224
  %v2300 = vunpack.c.l.b16 %v2225
  %v2301 = vunpack.c.h.b16 %v2225
  %v2302 = vunpack.c.l.b16 %v2226
  %v2303 = vunpack.c.h.b16 %v2226
  %v2304 = vunpack.c.l.b16 %v2227
  %v2305 = vunpack.c.h.b16 %v2227
  %v2306 = vunpack.c.l.b16 %v2228
  %v2307 = vunpack.c.h.b16 %v2228
  %v2308 = vunpack.c.l.b16 %v2229
  %v2309 = vunpack.c.h.b16 %v2229
  %v2310 = vunpack.c.l.b16 %v2230
  %v2311 = vunpack.c.h.b16 %v2230
  %v2312 = vunpack.c.l.b16 %v2231
  %v2313 = vunpack.c.h.b16 %v2231
  %v2314 = vunpack.c.l.b16 %v2232
  %v2315 = vunpack.c.h.b16 %v2232
  %v2316 = vunpack.c.l.b16 %v2233
  %v2317 = vunpack.c.h.b16 %v2233
  %v2318 = vunpack.c.l.b16 %v2234
  %v2319 = vunpack.c.h.b16 %v2234
  %v2320 = vunpack.c.l.b16 %v2235
  %v2321 = vunpack.c.h.b16 %v2235
  %v2322 = vunpack.c.l.b16 %v2236
  %v2323 = vunpack.c.h.b16 %v2236
  %v2324 = vunpack.c.l.b16 %v2237
  %v2325 = vunpack.c.h.b16 %v2237
  %v2326 = vunpack.c.l.b16 %v2238
  %v2327 = vunpack.c.h.b16 %v2238
  %v2328 = vunpack.c.l.b16 %v2239
  %v2329 = vunpack.c.h.b16 %v2239
  %v2330 = vunpack.c.l.b16 %v2240
  %v2331 = vunpack.c.h.b16 %v2240
  %v2332 = vunpack.c.l.b16 %v2241
  %v2333 = vunpack.c.h.b16 %v2241
  %v2334 = vunpack.c.l.b16 %v2242
  %v2335 = vunpack.c.h.b16 %v2242
  %v2336 = vunpack.c.l.b16 %v2243
  %v2337 = vunpack.c.h.b16 %v2243
  %v2338 = vunpack.c.l.b16 %v2244
  %v2339 = vunpack.c.h.b16 %v2244
  %v2340 = vunpack.c.l.b16 %v2245
  %v2341 = vunpack.c.h.b16 %v2245
  %v2342 = vpack.c.b16 %v2278, %v2278
  %v2343 = vpack.c.b16 %v2279, %v2279
  %v2344 = vpack.c.b16 %v2280, %v2280
  %v2345 = vpack.c.b16 %v2281, %v2281
  %v2346 = vpack.c.b16 %v2282, %v2282
  %v2347 = vpack.c.b16 %v2283, %v2283
  %v2348 = vpack.c.b16 %v2284, %v2284
  %v2349 = vpack.c.b16 %v2285, %v2285
  %v2350 = vpack.c.b16 %v2286, %v2286
  %v2351 = vpack.c.b16 %v2287, %v2287
  %v2352 = vpack.c.b16 %v2288, %v2288
  %v2353 = vpack.c.b16 %v2289, %v2289
  %v2354 = vpack.c.b16 %v2290, %v2290
  %v2355 = vpack.c.b16 %v2291, %v2291
  %v2356 = vpack.c.b16 %v2292, %v2292
  %v2357 = vpack.c.b16 %v2293, %v2293
  %v2358 = vpack.c.b16 %v2294, %v2294
  %v2359 = vpack.c.b16 %v2295, %v2295
  %v2360 = vpack.c.b16 %v2296, %v2296
  %v2361 = vpack.c.b16 %v2297, %v2297
  %v2362 = vpack.c.b16 %v2298, %v2298
  %v2363 = vpack.c.b16 %v2299, %v2299
  %v2364 = vpack.c.b16 %v2300, %v2300
  %v2365 = vpack.c.b16 %v2301, %v2301
  %v2366 = vpack.c.b16 %v2302, %v2302
  %v2367 = vpack.c.b16 %v2303, %v2303
  %v2368 = vpack.c.b16 %v2304, %v2304
  %v2369 = vpack.c.b16 %v2305, %v2305
  %v2370 = vpack.c.b16 %v2306, %v2306
  %v2371 = vpack.c.b16 %v2307, %v2307
  %v2372 = vpack.c.b16 %v2308, %v2308
  %v2373 = vpack.c.b16 %v2309, %v2309
  %v2374 = vpack.c.b16 %v2310, %v2310
  %v2375 = vpack.c.b16 %v2311, %v2311
  %v2376 = vpack.c.b16 %v2312, %v2312
  %v2377 = vpack.c.b16 %v2313, %v2313
  %v2378 = vpack.c.b16 %v2314, %v2314
  %v2379 = vpack.c.b16 %v2315, %v2315
  %v2380 = vpack.c.b16 %v2316, %v2316
  %v2381 = vpack.c.b16 %v2317, %v2317
  %v2382 = vpack.c.b16 %v2318, %v2318
  %v2383 = vpack.c.b16 %v2319, %v2319
  %v2384 = vpack.c.b16 %v2320, %v2320
  %v2385 = vpack.c.b16 %v2321, %v2321
  %v2386 = vpack.c.b16 %v2322, %v2322
  %v2387 = vpack.c.b16 %v2323, %v2323
  %v2388 = vpack.c.b16 %v2324, %v2324
  %v2389 = vpack.c.b16 %v2325, %v2325
  %v2390 = vpack.c.b16 %v2326, %v2326
  %v2391 = vpack.c.b16 %v2327, %v2327
  %v2392 = vpack.c.b16 %v2328, %v2328
  %v2393 = vpack.c.b16 %v2329, %v2329
  %v2394 = vpack.c.b16 %v2330, %v2330
  %v2395 = vpack.c.b16 %v2331, %v2331
  %v2396 = vpack.c.b16 %v2332, %v2332
  %v2397 = vpack.c.b16 %v2333, %v2333
  %v2398 = vpack.c.b16 %v2334, %v2334
  %v2399 = vpack.c.b16 %v2335, %v2335
  %v2400 = vpack.c.b16 %v2336, %v2336
  %v2401 = vpack.c.b16 %v2337, %v2337
  %v2402 = vpack.c.b16 %v2338, %v2338
  %v2403 = vpack.c.b16 %v2339, %v2339
  %v2404 = vpack.c.b16 %v2340, %v2340
  %v2405 = vpack.c.b16 %v2341, %v2341
  %2470 = vst [vmem:[%s8] sm:$0xf] %v2342
  %2471 = vst [vmem:[%s8 + $0x4] sm:$0xf] %v2343
  %2472 = vst [vmem:[%s8 + $0x8] sm:$0xf] %v2344
  %2473 = vst [vmem:[%s8 + $0xc] sm:$0xf] %v2345
  %2474 = vst [vmem:[%s8 + $0x10] sm:$0xf] %v2346
  %2475 = vst [vmem:[%s8 + $0x14] sm:$0xf] %v2347
  %2476 = vst [vmem:[%s8 + $0x18] sm:$0xf] %v2348
  %2477 = vst [vmem:[%s8 + $0x1c] sm:$0xf] %v2349
  %2478 = vst [vmem:[%s8 + $0x20] sm:$0xf] %v2350
  %2479 = vst [vmem:[%s8 + $0x24] sm:$0xf] %v2351
  %2480 = vst [vmem:[%s8 + $0x28] sm:$0xf] %v2352
  %2481 = vst [vmem:[%s8 + $0x2c] sm:$0xf] %v2353
  %2482 = vst [vmem:[%s8 + $0x30] sm:$0xf] %v2354
  %2483 = vst [vmem:[%s8 + $0x34] sm:$0xf] %v2355
  %2484 = vst [vmem:[%s8 + $0x38] sm:$0xf] %v2356
  %2485 = vst [vmem:[%s8 + $0x3c] sm:$0xf] %v2357
  %2486 = vst [vmem:[%s8 + $0x40] sm:$0xf] %v2358
  %2487 = vst [vmem:[%s8 + $0x44] sm:$0xf] %v2359
  %2488 = vst [vmem:[%s8 + $0x48] sm:$0xf] %v2360
  %2489 = vst [vmem:[%s8 + $0x4c] sm:$0xf] %v2361
  %2490 = vst [vmem:[%s8 + $0x50] sm:$0xf] %v2362
  %2491 = vst [vmem:[%s8 + $0x54] sm:$0xf] %v2363
  %2492 = vst [vmem:[%s8 + $0x58] sm:$0xf] %v2364
  %2493 = vst [vmem:[%s8 + $0x5c] sm:$0xf] %v2365
  %2494 = vst [vmem:[%s8 + $0x60] sm:$0xf] %v2366
  %2495 = vst [vmem:[%s8 + $0x64] sm:$0xf] %v2367
  %2496 = vst [vmem:[%s8 + $0x68] sm:$0xf] %v2368
  %2497 = vst [vmem:[%s8 + $0x6c] sm:$0xf] %v2369
  %2498 = vst [vmem:[%s8 + $0x70] sm:$0xf] %v2370
  %2499 = vst [vmem:[%s8 + $0x74] sm:$0xf] %v2371
  %2500 = vst [vmem:[%s8 + $0x78] sm:$0xf] %v2372
  %2501 = vst [vmem:[%s8 + $0x7c] sm:$0xf] %v2373
  %2502 = vst [vmem:[%s8 + $0x80] sm:$0xf] %v2374
  %2503 = vst [vmem:[%s8 + $0x84] sm:$0xf] %v2375
  %2504 = vst [vmem:[%s8 + $0x88] sm:$0xf] %v2376
  %2505 = vst [vmem:[%s8 + $0x8c] sm:$0xf] %v2377
  %2506 = vst [vmem:[%s8 + $0x90] sm:$0xf] %v2378
  %2507 = vst [vmem:[%s8 + $0x94] sm:$0xf] %v2379
  %2508 = vst [vmem:[%s8 + $0x98] sm:$0xf] %v2380
  %2509 = vst [vmem:[%s8 + $0x9c] sm:$0xf] %v2381
  %2510 = vst [vmem:[%s8 + $0xa0] sm:$0xf] %v2382
  %2511 = vst [vmem:[%s8 + $0xa4] sm:$0xf] %v2383
  %2512 = vst [vmem:[%s8 + $0xa8] sm:$0xf] %v2384
  %2513 = vst [vmem:[%s8 + $0xac] sm:$0xf] %v2385
  %2514 = vst [vmem:[%s8 + $0xb0] sm:$0xf] %v2386
  %2515 = vst [vmem:[%s8 + $0xb4] sm:$0xf] %v2387
  %2516 = vst [vmem:[%s8 + $0xb8] sm:$0xf] %v2388
  %2517 = vst [vmem:[%s8 + $0xbc] sm:$0xf] %v2389
  %2518 = vst [vmem:[%s8 + $0xc0] sm:$0xf] %v2390
  %2519 = vst [vmem:[%s8 + $0xc4] sm:$0xf] %v2391
  %2520 = vst [vmem:[%s8 + $0xc8] sm:$0xf] %v2392
  %2521 = vst [vmem:[%s8 + $0xcc] sm:$0xf] %v2393
  %2522 = vst [vmem:[%s8 + $0xd0] sm:$0xf] %v2394
  %2523 = vst [vmem:[%s8 + $0xd4] sm:$0xf] %v2395
  %2524 = vst [vmem:[%s8 + $0xd8] sm:$0xf] %v2396
  %2525 = vst [vmem:[%s8 + $0xdc] sm:$0xf] %v2397
  %2526 = vst [vmem:[%s8 + $0xe0] sm:$0xf] %v2398
  %2527 = vst [vmem:[%s8 + $0xe4] sm:$0xf] %v2399
  %2528 = vst [vmem:[%s8 + $0xe8] sm:$0xf] %v2400
  %2529 = vst [vmem:[%s8 + $0xec] sm:$0xf] %v2401
  %2530 = vst [vmem:[%s8 + $0xf0] sm:$0xf] %v2402
  %2531 = vst [vmem:[%s8 + $0xf4] sm:$0xf] %v2403
  %2532 = vst [vmem:[%s8 + $0xf8] sm:$0xf] %v2404
  %2533 = vst [vmem:[%s8 + $0xfc] sm:$0xf] %v2405
  %v2534 = vpack.c.bf16 %v1863, %v1862
  %v2535 = vpack.c.bf16 %v1865, %v1864
  %v2536 = vpack.c.bf16 %v1867, %v1866
  %v2537 = vpack.c.bf16 %v1869, %v1868
  %v2538 = vpack.c.bf16 %v1871, %v1870
  %v2539 = vpack.c.bf16 %v1873, %v1872
  %v2540 = vpack.c.bf16 %v1875, %v1874
  %v2541 = vpack.c.bf16 %v1877, %v1876
  %v2542 = vpack.c.bf16 %v1879, %v1878
  %v2543 = vpack.c.bf16 %v1881, %v1880
  %v2544 = vpack.c.bf16 %v1883, %v1882
  %v2545 = vpack.c.bf16 %v1885, %v1884
  %v2546 = vpack.c.bf16 %v1887, %v1886
  %v2547 = vpack.c.bf16 %v1889, %v1888
  %v2548 = vpack.c.bf16 %v1891, %v1890
  %v2549 = vpack.c.bf16 %v1893, %v1892
  %v2550 = vpack.c.bf16 %v1895, %v1894
  %v2551 = vpack.c.bf16 %v1897, %v1896
  %v2552 = vpack.c.bf16 %v1899, %v1898
  %v2553 = vpack.c.bf16 %v1901, %v1900
  %v2554 = vpack.c.bf16 %v1903, %v1902
  %v2555 = vpack.c.bf16 %v1905, %v1904
  %v2556 = vpack.c.bf16 %v1907, %v1906
  %v2557 = vpack.c.bf16 %v1909, %v1908
  %v2558 = vpack.c.bf16 %v1911, %v1910
  %v2559 = vpack.c.bf16 %v1913, %v1912
  %v2560 = vpack.c.bf16 %v1915, %v1914
  %v2561 = vpack.c.bf16 %v1917, %v1916
  %v2562 = vpack.c.bf16 %v1919, %v1918
  %v2563 = vpack.c.bf16 %v1921, %v1920
  %v2564 = vpack.c.bf16 %v1923, %v1922
  %v2565 = vpack.c.bf16 %v1925, %v1924
  %v2598 = vunpack.c.l.b16 %v2534
  %v2599 = vunpack.c.h.b16 %v2534
  %v2600 = vunpack.c.l.b16 %v2535
  %v2601 = vunpack.c.h.b16 %v2535
  %v2602 = vunpack.c.l.b16 %v2536
  %v2603 = vunpack.c.h.b16 %v2536
  %v2604 = vunpack.c.l.b16 %v2537
  %v2605 = vunpack.c.h.b16 %v2537
  %v2606 = vunpack.c.l.b16 %v2538
  %v2607 = vunpack.c.h.b16 %v2538
  %v2608 = vunpack.c.l.b16 %v2539
  %v2609 = vunpack.c.h.b16 %v2539
  %v2610 = vunpack.c.l.b16 %v2540
  %v2611 = vunpack.c.h.b16 %v2540
  %v2612 = vunpack.c.l.b16 %v2541
  %v2613 = vunpack.c.h.b16 %v2541
  %v2614 = vunpack.c.l.b16 %v2542
  %v2615 = vunpack.c.h.b16 %v2542
  %v2616 = vunpack.c.l.b16 %v2543
  %v2617 = vunpack.c.h.b16 %v2543
  %v2618 = vunpack.c.l.b16 %v2544
  %v2619 = vunpack.c.h.b16 %v2544
  %v2620 = vunpack.c.l.b16 %v2545
  %v2621 = vunpack.c.h.b16 %v2545
  %v2622 = vunpack.c.l.b16 %v2546
  %v2623 = vunpack.c.h.b16 %v2546
  %v2624 = vunpack.c.l.b16 %v2547
  %v2625 = vunpack.c.h.b16 %v2547
  %v2626 = vunpack.c.l.b16 %v2548
  %v2627 = vunpack.c.h.b16 %v2548
  %v2628 = vunpack.c.l.b16 %v2549
  %v2629 = vunpack.c.h.b16 %v2549
  %v2630 = vunpack.c.l.b16 %v2550
  %v2631 = vunpack.c.h.b16 %v2550
  %v2632 = vunpack.c.l.b16 %v2551
  %v2633 = vunpack.c.h.b16 %v2551
  %v2634 = vunpack.c.l.b16 %v2552
  %v2635 = vunpack.c.h.b16 %v2552
  %v2636 = vunpack.c.l.b16 %v2553
  %v2637 = vunpack.c.h.b16 %v2553
  %v2638 = vunpack.c.l.b16 %v2554
  %v2639 = vunpack.c.h.b16 %v2554
  %v2640 = vunpack.c.l.b16 %v2555
  %v2641 = vunpack.c.h.b16 %v2555
  %v2642 = vunpack.c.l.b16 %v2556
  %v2643 = vunpack.c.h.b16 %v2556
  %v2644 = vunpack.c.l.b16 %v2557
  %v2645 = vunpack.c.h.b16 %v2557
  %v2646 = vunpack.c.l.b16 %v2558
  %v2647 = vunpack.c.h.b16 %v2558
  %v2648 = vunpack.c.l.b16 %v2559
  %v2649 = vunpack.c.h.b16 %v2559
  %v2650 = vunpack.c.l.b16 %v2560
  %v2651 = vunpack.c.h.b16 %v2560
  %v2652 = vunpack.c.l.b16 %v2561
  %v2653 = vunpack.c.h.b16 %v2561
  %v2654 = vunpack.c.l.b16 %v2562
  %v2655 = vunpack.c.h.b16 %v2562
  %v2656 = vunpack.c.l.b16 %v2563
  %v2657 = vunpack.c.h.b16 %v2563
  %v2658 = vunpack.c.l.b16 %v2564
  %v2659 = vunpack.c.h.b16 %v2564
  %v2660 = vunpack.c.l.b16 %v2565
  %v2661 = vunpack.c.h.b16 %v2565
  %v2662 = vpack.c.b16 %v2598, %v2598
  %v2663 = vpack.c.b16 %v2599, %v2599
  %v2664 = vpack.c.b16 %v2600, %v2600
  %v2665 = vpack.c.b16 %v2601, %v2601
  %v2666 = vpack.c.b16 %v2602, %v2602
  %v2667 = vpack.c.b16 %v2603, %v2603
  %v2668 = vpack.c.b16 %v2604, %v2604
  %v2669 = vpack.c.b16 %v2605, %v2605
  %v2670 = vpack.c.b16 %v2606, %v2606
  %v2671 = vpack.c.b16 %v2607, %v2607
  %v2672 = vpack.c.b16 %v2608, %v2608
  %v2673 = vpack.c.b16 %v2609, %v2609
  %v2674 = vpack.c.b16 %v2610, %v2610
  %v2675 = vpack.c.b16 %v2611, %v2611
  %v2676 = vpack.c.b16 %v2612, %v2612
  %v2677 = vpack.c.b16 %v2613, %v2613
  %v2678 = vpack.c.b16 %v2614, %v2614
  %v2679 = vpack.c.b16 %v2615, %v2615
  %v2680 = vpack.c.b16 %v2616, %v2616
  %v2681 = vpack.c.b16 %v2617, %v2617
  %v2682 = vpack.c.b16 %v2618, %v2618
  %v2683 = vpack.c.b16 %v2619, %v2619
  %v2684 = vpack.c.b16 %v2620, %v2620
  %v2685 = vpack.c.b16 %v2621, %v2621
  %v2686 = vpack.c.b16 %v2622, %v2622
  %v2687 = vpack.c.b16 %v2623, %v2623
  %v2688 = vpack.c.b16 %v2624, %v2624
  %v2689 = vpack.c.b16 %v2625, %v2625
  %v2690 = vpack.c.b16 %v2626, %v2626
  %v2691 = vpack.c.b16 %v2627, %v2627
  %v2692 = vpack.c.b16 %v2628, %v2628
  %v2693 = vpack.c.b16 %v2629, %v2629
  %v2694 = vpack.c.b16 %v2630, %v2630
  %v2695 = vpack.c.b16 %v2631, %v2631
  %v2696 = vpack.c.b16 %v2632, %v2632
  %v2697 = vpack.c.b16 %v2633, %v2633
  %v2698 = vpack.c.b16 %v2634, %v2634
  %v2699 = vpack.c.b16 %v2635, %v2635
  %v2700 = vpack.c.b16 %v2636, %v2636
  %v2701 = vpack.c.b16 %v2637, %v2637
  %v2702 = vpack.c.b16 %v2638, %v2638
  %v2703 = vpack.c.b16 %v2639, %v2639
  %v2704 = vpack.c.b16 %v2640, %v2640
  %v2705 = vpack.c.b16 %v2641, %v2641
  %v2706 = vpack.c.b16 %v2642, %v2642
  %v2707 = vpack.c.b16 %v2643, %v2643
  %v2708 = vpack.c.b16 %v2644, %v2644
  %v2709 = vpack.c.b16 %v2645, %v2645
  %v2710 = vpack.c.b16 %v2646, %v2646
  %v2711 = vpack.c.b16 %v2647, %v2647
  %v2712 = vpack.c.b16 %v2648, %v2648
  %v2713 = vpack.c.b16 %v2649, %v2649
  %v2714 = vpack.c.b16 %v2650, %v2650
  %v2715 = vpack.c.b16 %v2651, %v2651
  %v2716 = vpack.c.b16 %v2652, %v2652
  %v2717 = vpack.c.b16 %v2653, %v2653
  %v2718 = vpack.c.b16 %v2654, %v2654
  %v2719 = vpack.c.b16 %v2655, %v2655
  %v2720 = vpack.c.b16 %v2656, %v2656
  %v2721 = vpack.c.b16 %v2657, %v2657
  %v2722 = vpack.c.b16 %v2658, %v2658
  %v2723 = vpack.c.b16 %v2659, %v2659
  %v2724 = vpack.c.b16 %v2660, %v2660
  %v2725 = vpack.c.b16 %v2661, %v2661
  %2790 = vst [vmem:[%s9] sm:$0xf] %v2662
  %2791 = vst [vmem:[%s9 + $0x4] sm:$0xf] %v2663
  %2792 = vst [vmem:[%s9 + $0x8] sm:$0xf] %v2664
  %2793 = vst [vmem:[%s9 + $0xc] sm:$0xf] %v2665
  %2794 = vst [vmem:[%s9 + $0x10] sm:$0xf] %v2666
  %2795 = vst [vmem:[%s9 + $0x14] sm:$0xf] %v2667
  %2796 = vst [vmem:[%s9 + $0x18] sm:$0xf] %v2668
  %2797 = vst [vmem:[%s9 + $0x1c] sm:$0xf] %v2669
  %2798 = vst [vmem:[%s9 + $0x20] sm:$0xf] %v2670
  %2799 = vst [vmem:[%s9 + $0x24] sm:$0xf] %v2671
  %2800 = vst [vmem:[%s9 + $0x28] sm:$0xf] %v2672
  %2801 = vst [vmem:[%s9 + $0x2c] sm:$0xf] %v2673
  %2802 = vst [vmem:[%s9 + $0x30] sm:$0xf] %v2674
  %2803 = vst [vmem:[%s9 + $0x34] sm:$0xf] %v2675
  %2804 = vst [vmem:[%s9 + $0x38] sm:$0xf] %v2676
  %2805 = vst [vmem:[%s9 + $0x3c] sm:$0xf] %v2677
  %2806 = vst [vmem:[%s9 + $0x40] sm:$0xf] %v2678
  %2807 = vst [vmem:[%s9 + $0x44] sm:$0xf] %v2679
  %2808 = vst [vmem:[%s9 + $0x48] sm:$0xf] %v2680
  %2809 = vst [vmem:[%s9 + $0x4c] sm:$0xf] %v2681
  %2810 = vst [vmem:[%s9 + $0x50] sm:$0xf] %v2682
  %2811 = vst [vmem:[%s9 + $0x54] sm:$0xf] %v2683
  %2812 = vst [vmem:[%s9 + $0x58] sm:$0xf] %v2684
  %2813 = vst [vmem:[%s9 + $0x5c] sm:$0xf] %v2685
  %2814 = vst [vmem:[%s9 + $0x60] sm:$0xf] %v2686
  %2815 = vst [vmem:[%s9 + $0x64] sm:$0xf] %v2687
  %2816 = vst [vmem:[%s9 + $0x68] sm:$0xf] %v2688
  %2817 = vst [vmem:[%s9 + $0x6c] sm:$0xf] %v2689
  %2818 = vst [vmem:[%s9 + $0x70] sm:$0xf] %v2690
  %2819 = vst [vmem:[%s9 + $0x74] sm:$0xf] %v2691
  %2820 = vst [vmem:[%s9 + $0x78] sm:$0xf] %v2692
  %2821 = vst [vmem:[%s9 + $0x7c] sm:$0xf] %v2693
  %2822 = vst [vmem:[%s9 + $0x80] sm:$0xf] %v2694
  %2823 = vst [vmem:[%s9 + $0x84] sm:$0xf] %v2695
  %2824 = vst [vmem:[%s9 + $0x88] sm:$0xf] %v2696
  %2825 = vst [vmem:[%s9 + $0x8c] sm:$0xf] %v2697
  %2826 = vst [vmem:[%s9 + $0x90] sm:$0xf] %v2698
  %2827 = vst [vmem:[%s9 + $0x94] sm:$0xf] %v2699
  %2828 = vst [vmem:[%s9 + $0x98] sm:$0xf] %v2700
  %2829 = vst [vmem:[%s9 + $0x9c] sm:$0xf] %v2701
  %2830 = vst [vmem:[%s9 + $0xa0] sm:$0xf] %v2702
  %2831 = vst [vmem:[%s9 + $0xa4] sm:$0xf] %v2703
  %2832 = vst [vmem:[%s9 + $0xa8] sm:$0xf] %v2704
  %2833 = vst [vmem:[%s9 + $0xac] sm:$0xf] %v2705
  %2834 = vst [vmem:[%s9 + $0xb0] sm:$0xf] %v2706
  %2835 = vst [vmem:[%s9 + $0xb4] sm:$0xf] %v2707
  %2836 = vst [vmem:[%s9 + $0xb8] sm:$0xf] %v2708
  %2837 = vst [vmem:[%s9 + $0xbc] sm:$0xf] %v2709
  %2838 = vst [vmem:[%s9 + $0xc0] sm:$0xf] %v2710
  %2839 = vst [vmem:[%s9 + $0xc4] sm:$0xf] %v2711
  %2840 = vst [vmem:[%s9 + $0xc8] sm:$0xf] %v2712
  %2841 = vst [vmem:[%s9 + $0xcc] sm:$0xf] %v2713
  %2842 = vst [vmem:[%s9 + $0xd0] sm:$0xf] %v2714
  %2843 = vst [vmem:[%s9 + $0xd4] sm:$0xf] %v2715
  %2844 = vst [vmem:[%s9 + $0xd8] sm:$0xf] %v2716
  %2845 = vst [vmem:[%s9 + $0xdc] sm:$0xf] %v2717
  %2846 = vst [vmem:[%s9 + $0xe0] sm:$0xf] %v2718
  %2847 = vst [vmem:[%s9 + $0xe4] sm:$0xf] %v2719
  %2848 = vst [vmem:[%s9 + $0xe8] sm:$0xf] %v2720
  %2849 = vst [vmem:[%s9 + $0xec] sm:$0xf] %v2721
  %2850 = vst [vmem:[%s9 + $0xf0] sm:$0xf] %v2722
  %2851 = vst [vmem:[%s9 + $0xf4] sm:$0xf] %v2723
  %2852 = vst [vmem:[%s9 + $0xf8] sm:$0xf] %v2724
  %2853 = vst [vmem:[%s9 + $0xfc] sm:$0xf] %v2725
  // Predicated region
  $region30: #{c3_forward_nhwc.2} parent=0 // pred_check
    _
  $region31: #{c3_forward_nhwc.2} parent=0 // pred_check_branch
    %2855 = sbr.rel (0) target = $region33
  $region32: #{c3_forward_nhwc.2} parent=0 // pred_region
    _
  $region33: #{c3_forward_nhwc.2} parent=0 // pred_fallthru
    _
  // Predicated region
  $region34: #{c3_forward_nhwc.2} parent=0 // pred_check
    _
  $region35: #{c3_forward_nhwc.2} parent=0 // pred_check_branch
    %2857 = sbr.rel (0) target = $region37
  $region36: #{c3_forward_nhwc.2} parent=0 // pred_region
    _
  $region37: #{c3_forward_nhwc.2} parent=0 // pred_fallthru
    _
  // Predicated region
  $region38: #{c3_forward_nhwc.2} parent=0 // pred_check
    _
  $region39: #{c3_forward_nhwc.2} parent=0 // pred_check_branch
    %2859 = sbr.rel (0) target = $region41
  $region40: #{c3_forward_nhwc.2} parent=0 // pred_region
    _
  $region41: #{c3_forward_nhwc.2} parent=0 // pred_fallthru
    _
  // Predicated region
  $region42: #{c3_forward_nhwc.2} parent=0 // pred_check
    _
  $region43: #{c3_forward_nhwc.2} parent=0 // pred_check_branch
    %2861 = sbr.rel (0) target = $region45
  $region44: #{c3_forward_nhwc.2} parent=0 // pred_region
    _
  $region45: #{c3_forward_nhwc.2} parent=0 // pred_fallthru
    _
  // Predicated region
  $region46: #{c3_forward_nhwc.2} parent=0 // pred_check
    _
  $region47: #{c3_forward_nhwc.2} parent=0 // pred_check_branch
    %2863 = sbr.rel (0) target = $region49
  $region48: #{c3_forward_nhwc.2} parent=0 // pred_region
    _
  $region49: #{c3_forward_nhwc.2} parent=0 // pred_fallthru
    _
  // Predicated region
  $region50: #{c3_forward_nhwc.2} parent=0 // pred_check
    _
  $region51: #{c3_forward_nhwc.2} parent=0 // pred_check_branch
    %2865 = sbr.rel (0) target = $region53
  $region52: #{c3_forward_nhwc.2} parent=0 // pred_region
    _
  $region53: #{c3_forward_nhwc.2} parent=0 // pred_fallthru
    _

// kernel: c3_forward_nhwc.3
$region0: #{c3_forward_nhwc.3}
  #allocation0 [shape = 'u32[]', space=smem, size = 0x4, offset = 0x4, fixed_abs, tag = 'smem constant byte address 0x4 - core index']
  #allocation1 [shape = 'u32[144,128]{1,0:T(1,128)}', space=vmem, size = 0x12000, scoped, tag = 'internal scratch']
  %s0 = inlined_call_operand.vmem [shape: bf16[2,18,18,128], index: 0, kind: input, shape index: {}]
  %s1 = inlined_call_operand.vmem [shape: bf16[1152,128], index: 1, kind: input, shape index: {}]
  %s2 = inlined_call_operand.vmem [shape: f32[1,128], index: 2, kind: input, shape index: {}]
  %s3 = inlined_call_operand.vmem [shape: f32[1,128], index: 3, kind: input, shape index: {}]
  %s4 = inlined_call_operand.vmem [shape: bf16[512,128], index: 4, kind: input, shape index: {}]
  %s5 = inlined_call_operand.vmem [shape: bf16[512,128], index: 5, kind: input, shape index: {}]
  %s6 = inlined_call_operand.vmem [shape: bf16[128,128], index: 6, kind: input, shape index: {}]
  %s7 = inlined_call_operand.vmem [shape: bf16[128,128], index: 7, kind: input, shape index: {}]
  %s8 = inlined_call_operand.vmem [shape: f32[1,128], index: 8, kind: input, shape index: {}]
  %s9 = inlined_call_operand.vmem [shape: f32[1,128], index: 9, kind: input, shape index: {}]
  %s10 = inlined_call_operand.vmem [shape: f32[512,128], index: 10, kind: output, shape index: {}]
  %s11 = sld [smem:[#allocation0]]
  $region73: #{c3_forward_nhwc.3} parent=0
    _
  %s13 = ssub.s32 1, %s11
  %s14 = scalar_select 0, %s13, %s11
  loop: start=0, step=1, limit=4
  $region2: #{c3_forward_nhwc.3} parent=0 // loop_pre_header
    _
  $region3: #{c3_forward_nhwc.3} parent=0 // loop_header
    %s16 = sphi 0, %s20
    %p17 = scmp.ge.s32.totalorder %s16, 4
    %s23 = sphi 0, %s35
    %s24 = sphi 0, %s31
    %s25 = sphi 0, %s23
    %s26 = sphi 0, %s24
    %s27 = sphi 0, %s25
    %s28 = sphi 0, %s26
    %s38 = sphi 0, %s40
    %s41 = sphi 0, %s38
    %s42 = sphi 0, %s41
    %s58 = sphi 0, %s42
    %s62 = sphi 0, %s62
    %s64 = sphi 0, %s62
    %s65 = sphi 0, %s64
    %s79 = sphi 0, %s65
    %s83 = sphi 0, %s83
    %s85 = sphi 0, %s83
    %s86 = sphi 0, %s85
    %s100 = sphi 0, %s86
    %s104 = sphi 0, %s104
    %s106 = sphi 0, %s104
    %s107 = sphi 0, %s106
    %s121 = sphi 0, %s107
    %s129 = sphi 0, %s131
    %s132 = sphi 0, %s129
    %s133 = sphi 0, %s132
    %s149 = sphi 0, %s133
    %s157 = sphi 0, %s159
    %s160 = sphi 0, %s157
    %s161 = sphi 0, %s160
    %s177 = sphi 0, %s161
    %s181 = sphi 0, %s181
    %s183 = sphi 0, %s181
    %s184 = sphi 0, %s183
    %s198 = sphi 0, %s184
    %s202 = sphi 0, %s202
    %s204 = sphi 0, %s202
    %s205 = sphi 0, %s204
    %s219 = sphi 0, %s205
    %s223 = sphi 0, %s223
    %s225 = sphi 0, %s223
    %s226 = sphi 0, %s225
    %s240 = sphi 0, %s226
    %s244 = sphi 0, %s244
    %s246 = sphi 0, %s244
    %s247 = sphi 0, %s246
    %s261 = sphi 0, %s247
    %s269 = sphi 0, %s271
    %s272 = sphi 0, %s269
    %s273 = sphi 0, %s272
    %s289 = sphi 0, %s273
  $region4: #{c3_forward_nhwc.3} parent=0 // loop_header_branch
    %19 = sbr.rel (%p17) target = $region8
  $region5: #{c3_forward_nhwc.3} parent=0 // loop_body
    %s21 = ssub.s32 %s16, 1
    %s22 = ssub.s32 %s16, 2
    %s29 = sadd.s32 1, %s24
    %p30 = scmp.ge.s32.totalorder %s29, 1
    %s31 = scalar_select %p30, 0, %s29
    %s32 = sadd.s32 1, %s23
    %s33 = scalar_select %p30, %s32, %s23
    %p34 = scmp.ge.s32.totalorder %s33, 2
    %s35 = scalar_select %p34, 0, %s33
    %s36 = ssub.s32 %s23, %s35
    %p37 = scmp.eq.s32.totalorder %s36, 0
    %s39 = sadd.s32 %s38, 1
    %s40 = scalar_select %p37, %s38, %s39
    %p43 = pneg %p37
    %p44 = scmp.eq.s32.totalorder %s16, 1
    %p45 = por %p43, %p44
    %p46 = scmp.ne.s32.totalorder %s38, %s41
    %p47 = scmp.eq.s32.totalorder %s16, 0
    %p48 = por %p46, %p47
    %p49 = scmp.ne.s32.totalorder %s38, %s41
    %p50 = scmp.eq.s32.totalorder %s21, 1
    %p51 = por %p49, %p50
    %p52 = scmp.ne.s32.totalorder %s41, %s42
    %p53 = scmp.eq.s32.totalorder %s21, 0
    %p54 = por %p52, %p53
    %p55 = scmp.ne.s32.totalorder %s41, %s42
    %p56 = scmp.eq.s32.totalorder %s22, 1
    %p57 = por %p55, %p56
    %p59 = scmp.ne.s32.totalorder %s42, %s58
    %p60 = scmp.eq.s32.totalorder %s22, 0
    %p61 = por %p59, %p60
    %s63 = sadd.s32 %s62, 1
    %p66 = scmp.eq.s32.totalorder %s16, 1
    %p67 = scmp.ne.s32.totalorder %s62, %s64
    %p68 = scmp.eq.s32.totalorder %s16, 0
    %p69 = por %p67, %p68
    %p70 = scmp.ne.s32.totalorder %s62, %s64
    %p71 = scmp.eq.s32.totalorder %s21, 1
    %p72 = por %p70, %p71
    %p73 = scmp.ne.s32.totalorder %s64, %s65
    %p74 = scmp.eq.s32.totalorder %s21, 0
    %p75 = por %p73, %p74
    %p76 = scmp.ne.s32.totalorder %s64, %s65
    %p77 = scmp.eq.s32.totalorder %s22, 1
    %p78 = por %p76, %p77
    %p80 = scmp.ne.s32.totalorder %s65, %s79
    %p81 = scmp.eq.s32.totalorder %s22, 0
    %p82 = por %p80, %p81
    %s84 = sadd.s32 %s83, 1
    %p87 = scmp.eq.s32.totalorder %s16, 1
    %p88 = scmp.ne.s32.totalorder %s83, %s85
    %p89 = scmp.eq.s32.totalorder %s16, 0
    %p90 = por %p88, %p89
    %p91 = scmp.ne.s32.totalorder %s83, %s85
    %p92 = scmp.eq.s32.totalorder %s21, 1
    %p93 = por %p91, %p92
    %p94 = scmp.ne.s32.totalorder %s85, %s86
    %p95 = scmp.eq.s32.totalorder %s21, 0
    %p96 = por %p94, %p95
    %p97 = scmp.ne.s32.totalorder %s85, %s86
    %p98 = scmp.eq.s32.totalorder %s22, 1
    %p99 = por %p97, %p98
    %p101 = scmp.ne.s32.totalorder %s86, %s100
    %p102 = scmp.eq.s32.totalorder %s22, 0
    %p103 = por %p101, %p102
    %s105 = sadd.s32 %s104, 1
    %p108 = scmp.eq.s32.totalorder %s16, 1
    %p109 = scmp.ne.s32.totalorder %s104, %s106
    %p110 = scmp.eq.s32.totalorder %s16, 0
    %p111 = por %p109, %p110
    %p112 = scmp.ne.s32.totalorder %s104, %s106
    %p113 = scmp.eq.s32.totalorder %s21, 1
    %p114 = por %p112, %p113
    %p115 = scmp.ne.s32.totalorder %s106, %s107
    %p116 = scmp.eq.s32.totalorder %s21, 0
    %p117 = por %p115, %p116
    %p118 = scmp.ne.s32.totalorder %s106, %s107
    %p119 = scmp.eq.s32.totalorder %s22, 1
    %p120 = por %p118, %p119
    %p122 = scmp.ne.s32.totalorder %s107, %s121
    %p123 = scmp.eq.s32.totalorder %s22, 0
    %p124 = por %p122, %p123
    %s125 = sadd.s32 %s23, %s24
    %s126 = sadd.s32 %s35, %s31
    %s127 = ssub.s32 %s125, %s126
    %p128 = scmp.eq.s32.totalorder %s127, 0
    %s130 = sadd.s32 %s129, 1
    %s131 = scalar_select %p128, %s129, %s130
    %p134 = pneg %p128
    %p135 = scmp.eq.s32.totalorder %s16, 1
    %p136 = por %p134, %p135
    %p137 = scmp.ne.s32.totalorder %s129, %s132
    %p138 = scmp.eq.s32.totalorder %s16, 0
    %p139 = por %p137, %p138
    %p140 = scmp.ne.s32.totalorder %s129, %s132
    %p141 = scmp.eq.s32.totalorder %s21, 1
    %p142 = por %p140, %p141
    %p143 = scmp.ne.s32.totalorder %s132, %s133
    %p144 = scmp.eq.s32.totalorder %s21, 0
    %p145 = por %p143, %p144
    %p146 = scmp.ne.s32.totalorder %s132, %s133
    %p147 = scmp.eq.s32.totalorder %s22, 1
    %p148 = por %p146, %p147
    %p150 = scmp.ne.s32.totalorder %s133, %s149
    %p151 = scmp.eq.s32.totalorder %s22, 0
    %p152 = por %p150, %p151
    %s153 = sadd.s32 %s23, %s24
    %s154 = sadd.s32 %s35, %s31
    %s155 = ssub.s32 %s153, %s154
    %p156 = scmp.eq.s32.totalorder %s155, 0
    %s158 = sadd.s32 %s157, 1
    %s159 = scalar_select %p156, %s157, %s158
    %p162 = pneg %p156
    %p163 = scmp.eq.s32.totalorder %s16, 1
    %p164 = por %p162, %p163
    %p165 = scmp.ne.s32.totalorder %s157, %s160
    %p166 = scmp.eq.s32.totalorder %s16, 0
    %p167 = por %p165, %p166
    %p168 = scmp.ne.s32.totalorder %s157, %s160
    %p169 = scmp.eq.s32.totalorder %s21, 1
    %p170 = por %p168, %p169
    %p171 = scmp.ne.s32.totalorder %s160, %s161
    %p172 = scmp.eq.s32.totalorder %s21, 0
    %p173 = por %p171, %p172
    %p174 = scmp.ne.s32.totalorder %s160, %s161
    %p175 = scmp.eq.s32.totalorder %s22, 1
    %p176 = por %p174, %p175
    %p178 = scmp.ne.s32.totalorder %s161, %s177
    %p179 = scmp.eq.s32.totalorder %s22, 0
    %p180 = por %p178, %p179
    %s182 = sadd.s32 %s181, 1
    %p185 = scmp.eq.s32.totalorder %s16, 1
    %p186 = scmp.ne.s32.totalorder %s181, %s183
    %p187 = scmp.eq.s32.totalorder %s16, 0
    %p188 = por %p186, %p187
    %p189 = scmp.ne.s32.totalorder %s181, %s183
    %p190 = scmp.eq.s32.totalorder %s21, 1
    %p191 = por %p189, %p190
    %p192 = scmp.ne.s32.totalorder %s183, %s184
    %p193 = scmp.eq.s32.totalorder %s21, 0
    %p194 = por %p192, %p193
    %p195 = scmp.ne.s32.totalorder %s183, %s184
    %p196 = scmp.eq.s32.totalorder %s22, 1
    %p197 = por %p195, %p196
    %p199 = scmp.ne.s32.totalorder %s184, %s198
    %p200 = scmp.eq.s32.totalorder %s22, 0
    %p201 = por %p199, %p200
    %s203 = sadd.s32 %s202, 1
    %p206 = scmp.eq.s32.totalorder %s16, 1
    %p207 = scmp.ne.s32.totalorder %s202, %s204
    %p208 = scmp.eq.s32.totalorder %s16, 0
    %p209 = por %p207, %p208
    %p210 = scmp.ne.s32.totalorder %s202, %s204
    %p211 = scmp.eq.s32.totalorder %s21, 1
    %p212 = por %p210, %p211
    %p213 = scmp.ne.s32.totalorder %s204, %s205
    %p214 = scmp.eq.s32.totalorder %s21, 0
    %p215 = por %p213, %p214
    %p216 = scmp.ne.s32.totalorder %s204, %s205
    %p217 = scmp.eq.s32.totalorder %s22, 1
    %p218 = por %p216, %p217
    %p220 = scmp.ne.s32.totalorder %s205, %s219
    %p221 = scmp.eq.s32.totalorder %s22, 0
    %p222 = por %p220, %p221
    %s224 = sadd.s32 %s223, 1
    %p227 = scmp.eq.s32.totalorder %s16, 1
    %p228 = scmp.ne.s32.totalorder %s223, %s225
    %p229 = scmp.eq.s32.totalorder %s16, 0
    %p230 = por %p228, %p229
    %p231 = scmp.ne.s32.totalorder %s223, %s225
    %p232 = scmp.eq.s32.totalorder %s21, 1
    %p233 = por %p231, %p232
    %p234 = scmp.ne.s32.totalorder %s225, %s226
    %p235 = scmp.eq.s32.totalorder %s21, 0
    %p236 = por %p234, %p235
    %p237 = scmp.ne.s32.totalorder %s225, %s226
    %p238 = scmp.eq.s32.totalorder %s22, 1
    %p239 = por %p237, %p238
    %p241 = scmp.ne.s32.totalorder %s226, %s240
    %p242 = scmp.eq.s32.totalorder %s22, 0
    %p243 = por %p241, %p242
    %s245 = sadd.s32 %s244, 1
    %p248 = scmp.eq.s32.totalorder %s16, 1
    %p249 = scmp.ne.s32.totalorder %s244, %s246
    %p250 = scmp.eq.s32.totalorder %s16, 0
    %p251 = por %p249, %p250
    %p252 = scmp.ne.s32.totalorder %s244, %s246
    %p253 = scmp.eq.s32.totalorder %s21, 1
    %p254 = por %p252, %p253
    %p255 = scmp.ne.s32.totalorder %s246, %s247
    %p256 = scmp.eq.s32.totalorder %s21, 0
    %p257 = por %p255, %p256
    %p258 = scmp.ne.s32.totalorder %s246, %s247
    %p259 = scmp.eq.s32.totalorder %s22, 1
    %p260 = por %p258, %p259
    %p262 = scmp.ne.s32.totalorder %s247, %s261
    %p263 = scmp.eq.s32.totalorder %s22, 0
    %p264 = por %p262, %p263
    %s265 = sadd.s32 %s23, %s24
    %s266 = sadd.s32 %s35, %s31
    %s267 = ssub.s32 %s265, %s266
    %p268 = scmp.eq.s32.totalorder %s267, 0
    %s270 = sadd.s32 %s269, 1
    %s271 = scalar_select %p268, %s269, %s270
    %p274 = pneg %p268
    %p275 = scmp.eq.s32.totalorder %s16, 1
    %p276 = por %p274, %p275
    %p277 = scmp.ne.s32.totalorder %s269, %s272
    %p278 = scmp.eq.s32.totalorder %s16, 0
    %p279 = por %p277, %p278
    %p280 = scmp.ne.s32.totalorder %s269, %s272
    %p281 = scmp.eq.s32.totalorder %s21, 1
    %p282 = por %p280, %p281
    %p283 = scmp.ne.s32.totalorder %s272, %s273
    %p284 = scmp.eq.s32.totalorder %s21, 0
    %p285 = por %p283, %p284
    %p286 = scmp.ne.s32.totalorder %s272, %s273
    %p287 = scmp.eq.s32.totalorder %s22, 1
    %p288 = por %p286, %p287
    %p290 = scmp.ne.s32.totalorder %s273, %s289
    %p291 = scmp.eq.s32.totalorder %s22, 0
    %p292 = por %p290, %p291
    %p293 = scmp.le.s32.totalorder 1, %s16
    %p294 = scmp.lt.s32.totalorder %s16, 3
    %p295 = pnand %p293, %p294
    %p296 = pneg %p295
    // Predicated region
    $region9: #{c3_forward_nhwc.3} parent=5 // pred_check
      _
    $region10: #{c3_forward_nhwc.3} parent=5 // pred_check_branch
      %298 = sbr.rel (%p295) target = $region12
    $region11: #{c3_forward_nhwc.3} parent=5 // pred_region
      %s299 = ssub.s32 %s16, 1
      // Predicated region
      $region13: #{c3_forward_nhwc.3} parent=11 // pred_check
        %p300 = pneg %p75
      $region14: #{c3_forward_nhwc.3} parent=11 // pred_check_branch
        %302 = sbr.rel (%p300) target = $region16
      $region15: #{c3_forward_nhwc.3} parent=11 // pred_region
        _
      $region16: #{c3_forward_nhwc.3} parent=11 // pred_fallthru
        _
      // Predicated region
      $region17: #{c3_forward_nhwc.3} parent=11 // pred_check
        %p303 = pneg %p96
      $region18: #{c3_forward_nhwc.3} parent=11 // pred_check_branch
        %305 = sbr.rel (%p303) target = $region20
      $region19: #{c3_forward_nhwc.3} parent=11 // pred_region
        _
      $region20: #{c3_forward_nhwc.3} parent=11 // pred_fallthru
        _
      // Predicated region
      $region21: #{c3_forward_nhwc.3} parent=11 // pred_check
        %p306 = pneg %p117
      $region22: #{c3_forward_nhwc.3} parent=11 // pred_check_branch
        %308 = sbr.rel (%p306) target = $region24
      $region23: #{c3_forward_nhwc.3} parent=11 // pred_region
        _
      $region24: #{c3_forward_nhwc.3} parent=11 // pred_fallthru
        _
      // Predicated region
      $region25: #{c3_forward_nhwc.3} parent=11 // pred_check
        %p309 = pneg %p194
      $region26: #{c3_forward_nhwc.3} parent=11 // pred_check_branch
        %311 = sbr.rel (%p309) target = $region28
      $region27: #{c3_forward_nhwc.3} parent=11 // pred_region
        _
      $region28: #{c3_forward_nhwc.3} parent=11 // pred_fallthru
        _
      // Predicated region
      $region29: #{c3_forward_nhwc.3} parent=11 // pred_check
        %p312 = pneg %p215
      $region30: #{c3_forward_nhwc.3} parent=11 // pred_check_branch
        %314 = sbr.rel (%p312) target = $region32
      $region31: #{c3_forward_nhwc.3} parent=11 // pred_region
        _
      $region32: #{c3_forward_nhwc.3} parent=11 // pred_fallthru
        _
      // Predicated region
      $region33: #{c3_forward_nhwc.3} parent=11 // pred_check
        %p315 = pneg %p236
      $region34: #{c3_forward_nhwc.3} parent=11 // pred_check_branch
        %317 = sbr.rel (%p315) target = $region36
      $region35: #{c3_forward_nhwc.3} parent=11 // pred_region
        _
      $region36: #{c3_forward_nhwc.3} parent=11 // pred_fallthru
        _
      // Predicated region
      $region37: #{c3_forward_nhwc.3} parent=11 // pred_check
        %p318 = pneg %p257
      $region38: #{c3_forward_nhwc.3} parent=11 // pred_check_branch
        %320 = sbr.rel (%p318) target = $region40
      $region39: #{c3_forward_nhwc.3} parent=11 // pred_region
        _
      $region40: #{c3_forward_nhwc.3} parent=11 // pred_fallthru
        _
    $region12: #{c3_forward_nhwc.3} parent=5 // pred_fallthru
      _
    %p321 = scmp.lt.s32.totalorder %s16, 2
    // Predicated region
    $region41: #{c3_forward_nhwc.3} parent=5 // pred_check
      %p322 = pneg %p321
    $region42: #{c3_forward_nhwc.3} parent=5 // pred_check_branch
      %324 = sbr.rel (%p322) target = $region44
    $region43: #{c3_forward_nhwc.3} parent=5 // pred_region
      // Predicated region
      $region45: #{c3_forward_nhwc.3} parent=43 // pred_check
        %p325 = pneg %p48
      $region46: #{c3_forward_nhwc.3} parent=43 // pred_check_branch
        %327 = sbr.rel (%p325) target = $region48
      $region47: #{c3_forward_nhwc.3} parent=43 // pred_region
        %p328 = scmp.lt.s32.totalorder %s23, 1
        %s329 = scalar_select %p328, %s23, 1
        %s330 = smul.addr %s329, 54
        %s331 = smul.addr %s330, 4
        %s332 = scalar_lea.vmem %s0, %s331
      $region48: #{c3_forward_nhwc.3} parent=43 // pred_fallthru
        _
      // Predicated region
      $region49: #{c3_forward_nhwc.3} parent=43 // pred_check
        %p333 = pneg %p139
      $region50: #{c3_forward_nhwc.3} parent=43 // pred_check_branch
        %335 = sbr.rel (%p333) target = $region52
      $region51: #{c3_forward_nhwc.3} parent=43 // pred_region
        %s336 = sadd.s32 %s23, %s24
        %s337 = smul.u32 32, %s336
        %p338 = scmp.lt.s32.totalorder %s337, 63
        %s339 = scalar_select %p338, %s337, 63
        %s340 = smul.addr %s339, 4
        %s341 = scalar_lea.vmem %s4, %s340
        %s342 = sadd.s32 %s23, %s24
        %s343 = smul.u32 32, %s342
      $region52: #{c3_forward_nhwc.3} parent=43 // pred_fallthru
        _
      // Predicated region
      $region53: #{c3_forward_nhwc.3} parent=43 // pred_check
        %p344 = pneg %p167
      $region54: #{c3_forward_nhwc.3} parent=43 // pred_check_branch
        %346 = sbr.rel (%p344) target = $region56
      $region55: #{c3_forward_nhwc.3} parent=43 // pred_region
        %s347 = sadd.s32 %s23, %s24
        %s348 = smul.u32 32, %s347
        %p349 = scmp.lt.s32.totalorder %s348, 63
        %s350 = scalar_select %p349, %s348, 63
        %s351 = smul.addr %s350, 4
        %s352 = scalar_lea.vmem %s5, %s351
        %s353 = sadd.s32 %s23, %s24
        %s354 = smul.u32 32, %s353
      $region56: #{c3_forward_nhwc.3} parent=43 // pred_fallthru
        _
    $region44: #{c3_forward_nhwc.3} parent=5 // pred_fallthru
      _
    %p355 = scmp.le.s32.totalorder 1, %s16
    %p356 = scmp.lt.s32.totalorder %s16, 3
    %p357 = pnand %p355, %p356
    %p358 = pneg %p357
    // Predicated region
    $region57: #{c3_forward_nhwc.3} parent=5 // pred_check
      _
    $region58: #{c3_forward_nhwc.3} parent=5 // pred_check_branch
      %360 = sbr.rel (%p357) target = $region60
    $region59: #{c3_forward_nhwc.3} parent=5 // pred_region
      %s361 = ssub.s32 %s16, 1
      %p362 = scmp.lt.s32.totalorder %s25, 1
      %s363 = scalar_select %p362, %s25, 1
      %s364 = smul.addr %s363, 54
      %s365 = smul.addr %s364, 4
      %s366 = scalar_lea.vmem %s0, %s365
      %p367 = pneg %p54
      %p368 = pneg %p51
      %p369 = pneg %p75
      %p370 = pneg %p72
      %p371 = pneg %p96
      %p372 = pneg %p93
      %p373 = pneg %p117
      %p374 = pneg %p114
      %s375 = sadd.s32 %s25, %s26
      %s376 = smul.u32 32, %s375
      %p377 = scmp.lt.s32.totalorder %s376, 63
      %s378 = scalar_select %p377, %s376, 63
      %s379 = smul.addr %s378, 4
      %s380 = scalar_lea.vmem %s4, %s379
      %p381 = pneg %p145
      %p382 = pneg %p142
      %s383 = sadd.s32 %s25, %s26
      %s384 = smul.u32 32, %s383
      %p385 = scmp.lt.s32.totalorder %s384, 63
      %s386 = scalar_select %p385, %s384, 63
      %s387 = smul.addr %s386, 4
      %s388 = scalar_lea.vmem %s5, %s387
      %p389 = pneg %p173
      %p390 = pneg %p170
      %p391 = pneg %p194
      %p392 = pneg %p191
      %p393 = pneg %p215
      %p394 = pneg %p212
      %p395 = pneg %p236
      %p396 = pneg %p233
      %p397 = pneg %p257
      %p398 = pneg %p254
      %p399 = pneg %p285
      %p400 = pneg %p282
      %s401 = sadd.s32 %s25, %s26
      %s402 = smul.u32 32, %s401
      %p403 = scmp.lt.s32.totalorder %s402, 63
      %s404 = scalar_select %p403, %s402, 63
      %s405 = smul.addr %s404, 8
      %s406 = scalar_lea.vmem %s10, %s405
      %p407 = scmp.lt.s32.totalorder %s25, 1
      %s408 = scalar_select %p407, %s25, 1
      %s409 = smul.addr %s408, 54
      %s410 = smul.addr %s409, 4
      %s411 = scalar_lea.vmem %s0, %s410
      %s412 = sadd.s32 %s25, %s26
      %s413 = smul.u32 32, %s412
      %p414 = scmp.lt.s32.totalorder %s413, 63
      %s415 = scalar_select %p414, %s413, 63
      %s416 = smul.addr %s415, 4
      %s417 = scalar_lea.vmem %s4, %s416
      %s418 = sadd.s32 %s25, %s26
      %s419 = smul.u32 32, %s418
      %s420 = sadd.s32 %s25, %s26
      %s421 = smul.u32 32, %s420
      %p422 = scmp.lt.s32.totalorder %s421, 63
      %s423 = scalar_select %p422, %s421, 63
      %s424 = smul.addr %s423, 4
      %s425 = scalar_lea.vmem %s5, %s424
      %s426 = sadd.s32 %s25, %s26
      %s427 = smul.u32 32, %s426
      %s428 = sadd.s32 %s25, %s26
      %s429 = smul.u32 32, %s428
      %p430 = scmp.lt.s32.totalorder %s429, 63
      %s431 = scalar_select %p430, %s429, 63
      %s432 = smul.addr %s431, 8
      %s433 = scalar_lea.vmem %s10, %s432
      %s434 = sadd.s32 %s25, %s26
      %s435 = smul.u32 32, %s434
      %s437 = smul.u32 %s26, 16
      %s438 = smul.u32 %s437, 3
      %s439 = smul.addr %s438, 4
      %s440 = scalar_lea.vmem %s411, %s439
      %v441 = vld [vmem:[%s440] sm:$0xf]
      %v442 = vld [vmem:[%s440 + $0x4] sm:$0xf]
      %v443 = vld [vmem:[%s440 + $0xc] sm:$0xf]
      %v444 = vld [vmem:[%s440 + $0x10] sm:$0xf]
      %v445 = vld [vmem:[%s440 + $0x18] sm:$0xf]
      %v446 = vld [vmem:[%s440 + $0x1c] sm:$0xf]
      %v447 = vld [vmem:[%s440 + $0x24] sm:$0xf]
      %v448 = vld [vmem:[%s440 + $0x28] sm:$0xf]
      %v449 = vld [vmem:[%s440 + $0x30] sm:$0xf]
      %v450 = vld [vmem:[%s440 + $0x34] sm:$0xf]
      %v451 = vld [vmem:[%s440 + $0x3c] sm:$0xf]
      %v452 = vld [vmem:[%s440 + $0x40] sm:$0xf]
      %v453 = vld [vmem:[%s440 + $0x48] sm:$0xf]
      %v454 = vld [vmem:[%s440 + $0x4c] sm:$0xf]
      %v455 = vld [vmem:[%s440 + $0x54] sm:$0xf]
      %v456 = vld [vmem:[%s440 + $0x58] sm:$0xf]
      %v457 = vld [vmem:[%s440 + $0x60] sm:$0xf]
      %v458 = vld [vmem:[%s440 + $0x64] sm:$0xf]
      %v459 = vld [vmem:[%s440 + $0x6c] sm:$0xf]
      %v460 = vld [vmem:[%s440 + $0x70] sm:$0xf]
      %v461 = vld [vmem:[%s440 + $0x78] sm:$0xf]
      %v462 = vld [vmem:[%s440 + $0x7c] sm:$0xf]
      %v463 = vld [vmem:[%s440 + $0x84] sm:$0xf]
      %v464 = vld [vmem:[%s440 + $0x88] sm:$0xf]
      %v465 = vld [vmem:[%s440 + $0x90] sm:$0xf]
      %v466 = vld [vmem:[%s440 + $0x94] sm:$0xf]
      %v467 = vld [vmem:[%s440 + $0x9c] sm:$0xf]
      %v468 = vld [vmem:[%s440 + $0xa0] sm:$0xf]
      %v469 = vld [vmem:[%s440 + $0xa8] sm:$0xf]
      %v470 = vld [vmem:[%s440 + $0xac] sm:$0xf]
      %v471 = vld [vmem:[%s440 + $0xb4] sm:$0xf]
      %v472 = vld [vmem:[%s440 + $0xb8] sm:$0xf]
      %v473 = vld [vmem:[%s1] sm:$0xf]
      %v474 = vld [vmem:[%s1 + $0x4] sm:$0xf]
      %v475 = vld [vmem:[%s1 + $0x8] sm:$0xf]
      %v476 = vld [vmem:[%s1 + $0xc] sm:$0xf]
      %v477 = vld [vmem:[%s1 + $0x10] sm:$0xf]
      %v478 = vld [vmem:[%s1 + $0x14] sm:$0xf]
      %v479 = vld [vmem:[%s1 + $0x18] sm:$0xf]
      %v480 = vld [vmem:[%s1 + $0x1c] sm:$0xf]
      %v481 = vld [vmem:[%s1 + $0x20] sm:$0xf]
      %v482 = vld [vmem:[%s1 + $0x24] sm:$0xf]
      %v483 = vld [vmem:[%s1 + $0x28] sm:$0xf]
      %v484 = vld [vmem:[%s1 + $0x2c] sm:$0xf]
      %v485 = vld [vmem:[%s1 + $0x30] sm:$0xf]
      %v486 = vld [vmem:[%s1 + $0x34] sm:$0xf]
      %v487 = vld [vmem:[%s1 + $0x38] sm:$0xf]
      %v488 = vld [vmem:[%s1 + $0x3c] sm:$0xf]
      %v489 = vld [vmem:[%s440 + $0x8] sm:$0x1]
      %v490 = vld [vmem:[%s440 + $0x14] sm:$0x1]
      %v491 = vld [vmem:[%s440 + $0x20] sm:$0x1]
      %v492 = vld [vmem:[%s440 + $0x2c] sm:$0x1]
      %v493 = vld [vmem:[%s440 + $0x38] sm:$0x1]
      %v494 = vld [vmem:[%s440 + $0x44] sm:$0x1]
      %v495 = vld [vmem:[%s440 + $0x50] sm:$0x1]
      %v496 = vld [vmem:[%s440 + $0x5c] sm:$0x1]
      %v497 = vld [vmem:[%s440 + $0x68] sm:$0x1]
      %v498 = vld [vmem:[%s440 + $0x74] sm:$0x1]
      %v499 = vld [vmem:[%s440 + $0x80] sm:$0x1]
      %v500 = vld [vmem:[%s440 + $0x8c] sm:$0x1]
      %v501 = vld [vmem:[%s440 + $0x98] sm:$0x1]
      %v502 = vld [vmem:[%s440 + $0xa4] sm:$0x1]
      %v503 = vld [vmem:[%s440 + $0xb0] sm:$0x1]
      %v504 = vld [vmem:[%s440 + $0xbc] sm:$0x1]
      %vm505 = vsmask.f32 3328
      %vm506 = vsmask.f32 7440
      %vm507 = vmor %vm505, %vm506
      %v509 = vshrl.u32 %v441, 16
      %v511 = vrot.slane %v509, 4
      %v512 = vshll.u32 %v441, 16
      %v514 = vrot.slane %v512, 5
      %v515 = vor.u32 %v511, %v514
      %v516 = vrot.slane %v515, 4
      %v518 = vshll.u32 %v442, 16
      %v520 = vrot.slane %v518, 5
      %v521 = vsel %vm507, %v516, %v520
      %v522 = vshrl.u32 %v442, 16
      %v524 = vrot.slane %v522, 4
      %v525 = vor.u32 %v524, %v520
      %v526 = vrot.slane %v525, 4
      %v528 = vshll.u32 %v489, 16
      %v530 = vrot.slane %v528, 5
      %v531 = vsel %vm507, %v526, %v530
      %v533 = vshrl.u32 %v443, 16
      %v535 = vrot.slane %v533, 4
      %v536 = vshll.u32 %v443, 16
      %v538 = vrot.slane %v536, 5
      %v539 = vor.u32 %v535, %v538
      %v540 = vrot.slane %v539, 4
      %v542 = vshll.u32 %v444, 16
      %v544 = vrot.slane %v542, 5
      %v545 = vsel %vm507, %v540, %v544
      %v546 = vshrl.u32 %v444, 16
      %v548 = vrot.slane %v546, 4
      %v549 = vor.u32 %v548, %v544
      %v550 = vrot.slane %v549, 4
      %v552 = vshll.u32 %v490, 16
      %v554 = vrot.slane %v552, 5
      %v555 = vsel %vm507, %v550, %v554
      %v557 = vshrl.u32 %v445, 16
      %v559 = vrot.slane %v557, 4
      %v560 = vshll.u32 %v445, 16
      %v562 = vrot.slane %v560, 5
      %v563 = vor.u32 %v559, %v562
      %v564 = vrot.slane %v563, 4
      %v566 = vshll.u32 %v446, 16
      %v568 = vrot.slane %v566, 5
      %v569 = vsel %vm507, %v564, %v568
      %v570 = vshrl.u32 %v446, 16
      %v572 = vrot.slane %v570, 4
      %v573 = vor.u32 %v572, %v568
      %v574 = vrot.slane %v573, 4
      %v576 = vshll.u32 %v491, 16
      %v578 = vrot.slane %v576, 5
      %v579 = vsel %vm507, %v574, %v578
      %v581 = vshrl.u32 %v447, 16
      %v583 = vrot.slane %v581, 4
      %v584 = vshll.u32 %v447, 16
      %v586 = vrot.slane %v584, 5
      %v587 = vor.u32 %v583, %v586
      %v588 = vrot.slane %v587, 4
      %v590 = vshll.u32 %v448, 16
      %v592 = vrot.slane %v590, 5
      %v593 = vsel %vm507, %v588, %v592
      %v594 = vshrl.u32 %v448, 16
      %v596 = vrot.slane %v594, 4
      %v597 = vor.u32 %v596, %v592
      %v598 = vrot.slane %v597, 4
      %v600 = vshll.u32 %v492, 16
      %v602 = vrot.slane %v600, 5
      %v603 = vsel %vm507, %v598, %v602
      %v605 = vshrl.u32 %v449, 16
      %v607 = vrot.slane %v605, 4
      %v608 = vshll.u32 %v449, 16
      %v610 = vrot.slane %v608, 5
      %v611 = vor.u32 %v607, %v610
      %v612 = vrot.slane %v611, 4
      %v614 = vshll.u32 %v450, 16
      %v616 = vrot.slane %v614, 5
      %v617 = vsel %vm507, %v612, %v616
      %v618 = vshrl.u32 %v450, 16
      %v620 = vrot.slane %v618, 4
      %v621 = vor.u32 %v620, %v616
      %v622 = vrot.slane %v621, 4
      %v624 = vshll.u32 %v493, 16
      %v626 = vrot.slane %v624, 5
      %v627 = vsel %vm507, %v622, %v626
      %v629 = vshrl.u32 %v451, 16
      %v631 = vrot.slane %v629, 4
      %v632 = vshll.u32 %v451, 16
      %v634 = vrot.slane %v632, 5
      %v635 = vor.u32 %v631, %v634
      %v636 = vrot.slane %v635, 4
      %v638 = vshll.u32 %v452, 16
      %v640 = vrot.slane %v638, 5
      %v641 = vsel %vm507, %v636, %v640
      %v642 = vshrl.u32 %v452, 16
      %v644 = vrot.slane %v642, 4
      %v645 = vor.u32 %v644, %v640
      %v646 = vrot.slane %v645, 4
      %v648 = vshll.u32 %v494, 16
      %v650 = vrot.slane %v648, 5
      %v651 = vsel %vm507, %v646, %v650
      %v653 = vshrl.u32 %v453, 16
      %v655 = vrot.slane %v653, 4
      %v656 = vshll.u32 %v453, 16
      %v658 = vrot.slane %v656, 5
      %v659 = vor.u32 %v655, %v658
      %v660 = vrot.slane %v659, 4
      %v662 = vshll.u32 %v454, 16
      %v664 = vrot.slane %v662, 5
      %v665 = vsel %vm507, %v660, %v664
      %v666 = vshrl.u32 %v454, 16
      %v668 = vrot.slane %v666, 4
      %v669 = vor.u32 %v668, %v664
      %v670 = vrot.slane %v669, 4
      %v672 = vshll.u32 %v495, 16
      %v674 = vrot.slane %v672, 5
      %v675 = vsel %vm507, %v670, %v674
      %v677 = vshrl.u32 %v455, 16
      %v679 = vrot.slane %v677, 4
      %v680 = vshll.u32 %v455, 16
      %v682 = vrot.slane %v680, 5
      %v683 = vor.u32 %v679, %v682
      %v684 = vrot.slane %v683, 4
      %v686 = vshll.u32 %v456, 16
      %v688 = vrot.slane %v686, 5
      %v689 = vsel %vm507, %v684, %v688
      %v690 = vshrl.u32 %v456, 16
      %v692 = vrot.slane %v690, 4
      %v693 = vor.u32 %v692, %v688
      %v694 = vrot.slane %v693, 4
      %v696 = vshll.u32 %v496, 16
      %v698 = vrot.slane %v696, 5
      %v699 = vsel %vm507, %v694, %v698
      %v701 = vshrl.u32 %v457, 16
      %v703 = vrot.slane %v701, 4
      %v704 = vshll.u32 %v457, 16
      %v706 = vrot.slane %v704, 5
      %v707 = vor.u32 %v703, %v706
      %v708 = vrot.slane %v707, 4
      %v710 = vshll.u32 %v458, 16
      %v712 = vrot.slane %v710, 5
      %v713 = vsel %vm507, %v708, %v712
      %v714 = vshrl.u32 %v458, 16
      %v716 = vrot.slane %v714, 4
      %v717 = vor.u32 %v716, %v712
      %v718 = vrot.slane %v717, 4
      %v720 = vshll.u32 %v497, 16
      %v722 = vrot.slane %v720, 5
      %v723 = vsel %vm507, %v718, %v722
      %v725 = vshrl.u32 %v459, 16
      %v727 = vrot.slane %v725, 4
      %v728 = vshll.u32 %v459, 16
      %v730 = vrot.slane %v728, 5
      %v731 = vor.u32 %v727, %v730
      %v732 = vrot.slane %v731, 4
      %v734 = vshll.u32 %v460, 16
      %v736 = vrot.slane %v734, 5
      %v737 = vsel %vm507, %v732, %v736
      %v738 = vshrl.u32 %v460, 16
      %v740 = vrot.slane %v738, 4
      %v741 = vor.u32 %v740, %v736
      %v742 = vrot.slane %v741, 4
      %v744 = vshll.u32 %v498, 16
      %v746 = vrot.slane %v744, 5
      %v747 = vsel %vm507, %v742, %v746
      %v749 = vshrl.u32 %v461, 16
      %v751 = vrot.slane %v749, 4
      %v752 = vshll.u32 %v461, 16
      %v754 = vrot.slane %v752, 5
      %v755 = vor.u32 %v751, %v754
      %v756 = vrot.slane %v755, 4
      %v758 = vshll.u32 %v462, 16
      %v760 = vrot.slane %v758, 5
      %v761 = vsel %vm507, %v756, %v760
      %v762 = vshrl.u32 %v462, 16
      %v764 = vrot.slane %v762, 4
      %v765 = vor.u32 %v764, %v760
      %v766 = vrot.slane %v765, 4
      %v768 = vshll.u32 %v499, 16
      %v770 = vrot.slane %v768, 5
      %v771 = vsel %vm507, %v766, %v770
      %v773 = vshrl.u32 %v463, 16
      %v775 = vrot.slane %v773, 4
      %v776 = vshll.u32 %v463, 16
      %v778 = vrot.slane %v776, 5
      %v779 = vor.u32 %v775, %v778
      %v780 = vrot.slane %v779, 4
      %v782 = vshll.u32 %v464, 16
      %v784 = vrot.slane %v782, 5
      %v785 = vsel %vm507, %v780, %v784
      %v786 = vshrl.u32 %v464, 16
      %v788 = vrot.slane %v786, 4
      %v789 = vor.u32 %v788, %v784
      %v790 = vrot.slane %v789, 4
      %v792 = vshll.u32 %v500, 16
      %v794 = vrot.slane %v792, 5
      %v795 = vsel %vm507, %v790, %v794
      %v797 = vshrl.u32 %v465, 16
      %v799 = vrot.slane %v797, 4
      %v800 = vshll.u32 %v465, 16
      %v802 = vrot.slane %v800, 5
      %v803 = vor.u32 %v799, %v802
      %v804 = vrot.slane %v803, 4
      %v806 = vshll.u32 %v466, 16
      %v808 = vrot.slane %v806, 5
      %v809 = vsel %vm507, %v804, %v808
      %v810 = vshrl.u32 %v466, 16
      %v812 = vrot.slane %v810, 4
      %v813 = vor.u32 %v812, %v808
      %v814 = vrot.slane %v813, 4
      %v816 = vshll.u32 %v501, 16
      %v818 = vrot.slane %v816, 5
      %v819 = vsel %vm507, %v814, %v818
      %v821 = vshrl.u32 %v467, 16
      %v823 = vrot.slane %v821, 4
      %v824 = vshll.u32 %v467, 16
      %v826 = vrot.slane %v824, 5
      %v827 = vor.u32 %v823, %v826
      %v828 = vrot.slane %v827, 4
      %v830 = vshll.u32 %v468, 16
      %v832 = vrot.slane %v830, 5
      %v833 = vsel %vm507, %v828, %v832
      %v834 = vshrl.u32 %v468, 16
      %v836 = vrot.slane %v834, 4
      %v837 = vor.u32 %v836, %v832
      %v838 = vrot.slane %v837, 4
      %v840 = vshll.u32 %v502, 16
      %v842 = vrot.slane %v840, 5
      %v843 = vsel %vm507, %v838, %v842
      %v845 = vshrl.u32 %v469, 16
      %v847 = vrot.slane %v845, 4
      %v848 = vshll.u32 %v469, 16
      %v850 = vrot.slane %v848, 5
      %v851 = vor.u32 %v847, %v850
      %v852 = vrot.slane %v851, 4
      %v854 = vshll.u32 %v470, 16
      %v856 = vrot.slane %v854, 5
      %v857 = vsel %vm507, %v852, %v856
      %v858 = vshrl.u32 %v470, 16
      %v860 = vrot.slane %v858, 4
      %v861 = vor.u32 %v860, %v856
      %v862 = vrot.slane %v861, 4
      %v864 = vshll.u32 %v503, 16
      %v866 = vrot.slane %v864, 5
      %v867 = vsel %vm507, %v862, %v866
      %v869 = vshrl.u32 %v471, 16
      %v871 = vrot.slane %v869, 4
      %v872 = vshll.u32 %v471, 16
      %v874 = vrot.slane %v872, 5
      %v875 = vor.u32 %v871, %v874
      %v876 = vrot.slane %v875, 4
      %v878 = vshll.u32 %v472, 16
      %v880 = vrot.slane %v878, 5
      %v881 = vsel %vm507, %v876, %v880
      %v882 = vshrl.u32 %v472, 16
      %v884 = vrot.slane %v882, 4
      %v885 = vor.u32 %v884, %v880
      %v886 = vrot.slane %v885, 4
      %v888 = vshll.u32 %v504, 16
      %v890 = vrot.slane %v888, 5
      %v891 = vsel %vm507, %v886, %v890
      %v892 = vld [vmem:[%s1 + $0x40] sm:$0xf]
      %v893 = vld [vmem:[%s1 + $0x44] sm:$0xf]
      %v894 = vld [vmem:[%s1 + $0x48] sm:$0xf]
      %v895 = vld [vmem:[%s1 + $0x4c] sm:$0xf]
      %v896 = vld [vmem:[%s1 + $0x50] sm:$0xf]
      %v897 = vld [vmem:[%s1 + $0x54] sm:$0xf]
      %v898 = vld [vmem:[%s1 + $0x58] sm:$0xf]
      %v899 = vld [vmem:[%s1 + $0x5c] sm:$0xf]
      %v900 = vld [vmem:[%s1 + $0x60] sm:$0xf]
      %v901 = vld [vmem:[%s1 + $0x64] sm:$0xf]
      %v902 = vld [vmem:[%s1 + $0x68] sm:$0xf]
      %v903 = vld [vmem:[%s1 + $0x6c] sm:$0xf]
      %v904 = vld [vmem:[%s1 + $0x70] sm:$0xf]
      %v905 = vld [vmem:[%s1 + $0x74] sm:$0xf]
      %v906 = vld [vmem:[%s1 + $0x78] sm:$0xf]
      %v907 = vld [vmem:[%s1 + $0x7c] sm:$0xf]
      %v908 = vunpack.c.l.b16 %v521
      %v909 = vunpack.c.l.b16 %v531
      %v910 = vunpack.c.l.b16 %v545
      %v911 = vunpack.c.l.b16 %v555
      %v912 = vunpack.c.l.b16 %v569
      %v913 = vunpack.c.l.b16 %v579
      %v914 = vunpack.c.l.b16 %v593
      %v915 = vunpack.c.l.b16 %v603
      %v916 = vunpack.c.l.b16 %v617
      %v917 = vunpack.c.l.b16 %v627
      %v918 = vunpack.c.l.b16 %v641
      %v919 = vunpack.c.l.b16 %v651
      %v920 = vunpack.c.l.b16 %v665
      %v921 = vunpack.c.l.b16 %v675
      %v922 = vunpack.c.l.b16 %v689
      %v923 = vunpack.c.l.b16 %v699
      %v924 = vunpack.c.l.b16 %v713
      %v925 = vunpack.c.l.b16 %v723
      %v926 = vunpack.c.l.b16 %v737
      %v927 = vunpack.c.l.b16 %v747
      %v928 = vunpack.c.l.b16 %v761
      %v929 = vunpack.c.l.b16 %v771
      %v930 = vunpack.c.l.b16 %v785
      %v931 = vunpack.c.l.b16 %v795
      %v932 = vunpack.c.l.b16 %v809
      %v933 = vunpack.c.l.b16 %v819
      %v934 = vunpack.c.l.b16 %v833
      %v935 = vunpack.c.l.b16 %v843
      %v936 = vunpack.c.l.b16 %v857
      %v937 = vunpack.c.l.b16 %v867
      %v938 = vunpack.c.l.b16 %v881
      %v939 = vunpack.c.l.b16 %v891
      %v940 = vpack.c.b16 %v909, %v908
      %v941 = vpack.c.b16 %v911, %v910
      %v942 = vpack.c.b16 %v913, %v912
      %v943 = vpack.c.b16 %v915, %v914
      %v944 = vpack.c.b16 %v917, %v916
      %v945 = vpack.c.b16 %v919, %v918
      %v946 = vpack.c.b16 %v921, %v920
      %v947 = vpack.c.b16 %v923, %v922
      %v948 = vpack.c.b16 %v925, %v924
      %v949 = vpack.c.b16 %v927, %v926
      %v950 = vpack.c.b16 %v929, %v928
      %v951 = vpack.c.b16 %v931, %v930
      %v952 = vpack.c.b16 %v933, %v932
      %v953 = vpack.c.b16 %v935, %v934
      %v954 = vpack.c.b16 %v937, %v936
      %v955 = vpack.c.b16 %v939, %v938
      %v988 = vunpack.c.l.b16 %v892
      %v989 = vunpack.c.l.b16 %v893
      %v990 = vunpack.c.l.b16 %v894
      %v991 = vunpack.c.l.b16 %v895
      %v992 = vunpack.c.l.b16 %v896
      %v993 = vunpack.c.l.b16 %v897
      %v994 = vunpack.c.l.b16 %v898
      %v995 = vunpack.c.l.b16 %v899
      %v996 = vunpack.c.l.b16 %v900
      %v997 = vunpack.c.l.b16 %v901
      %v998 = vunpack.c.l.b16 %v902
      %v999 = vunpack.c.l.b16 %v903
      %v1000 = vunpack.c.l.b16 %v904
      %v1001 = vunpack.c.l.b16 %v905
      %v1002 = vunpack.c.l.b16 %v906
      %v1003 = vunpack.c.l.b16 %v907
      %v1004 = vpack.c.b16 %v989, %v988
      %v1005 = vpack.c.b16 %v991, %v990
      %v1006 = vpack.c.b16 %v993, %v992
      %v1007 = vpack.c.b16 %v995, %v994
      %v1008 = vpack.c.b16 %v997, %v996
      %v1009 = vpack.c.b16 %v999, %v998
      %v1010 = vpack.c.b16 %v1001, %v1000
      %v1011 = vpack.c.b16 %v1003, %v1002
      %1020 = vmatprep.subr.bf16.mxu0 0
      %1021 = vmatpush1.bf16.msra.mxu0 %v1004
      %1022 = vmatprep.subr.bf16.mxu0 0
      %1023 = vmatpush1.bf16.msra.mxu0 %v1005
      %1024 = vmatprep.subr.bf16.mxu0 0
      %1025 = vmatpush1.bf16.msra.mxu0 %v1006
      %1026 = vmatprep.subr.bf16.mxu0 0
      %1027 = vmatpush1.bf16.msra.mxu0 %v1007
      %1028 = vmatprep.subr.bf16.mxu0 0
      %1029 = vmatpush1.bf16.msra.mxu0 %v1008
      %1030 = vmatprep.subr.bf16.mxu0 0
      %1031 = vmatpush1.bf16.msra.mxu0 %v1009
      %1032 = vmatprep.subr.bf16.mxu0 0
      %1033 = vmatpush1.bf16.msra.mxu0 %v1010
      %1034 = vmatprep.subr.bf16.mxu0 0
      %1035 = vmatpush1.bf16.msra.mxu0 %v1011
      %1036 = vmatprep.subr.bf16.mxu0 0
      %1037 = vmatpush1.bf16.msra.mxu0 0
      %1038 = vmatprep.subr.bf16.mxu0 0
      %1039 = vmatpush1.bf16.msra.mxu0 0
      %1040 = vmatprep.subr.bf16.mxu0 0
      %1041 = vmatpush1.bf16.msra.mxu0 0
      %1042 = vmatprep.subr.bf16.mxu0 0
      %1043 = vmatpush1.bf16.msra.mxu0 0
      %1044 = vmatprep.subr.bf16.mxu0 0
      %1045 = vmatpush1.bf16.msra.mxu0 0
      %1046 = vmatprep.subr.bf16.mxu0 0
      %1047 = vmatpush1.bf16.msra.mxu0 0
      %1048 = vmatprep.subr.bf16.mxu0 0
      %1049 = vmatpush1.bf16.msra.mxu0 0
      %1050 = vmatprep.subr.bf16.mxu0 0
      %1051 = vmatpush1.bf16.msra.mxu0 0
      %1052 = vmatprep.mubr.bf16.mxu0 0
      %1053 = vmatmul.mubr.bf16.gmra.mrb[0].mxu0 %v940
      %v1054 = vpop.f32.mrb[0].mxu0
      %v1055 = vadd.f32 0.0, %v1054
      %v1056 = vpop.f32.mrb[0].mxu0
      %v1057 = vpop.f32.mrb[0].mxu0
      %v1058 = vadd.f32 0.0, %v1057
      %v1059 = vpop.f32.mrb[0].mxu0
      %1060 = vmatprep.mubr.bf16.mxu0 0
      %1061 = vmatmul.mubr.bf16.gmra.mrb[0].mxu0 %v941
      %v1062 = vpop.f32.mrb[0].mxu0
      %v1063 = vadd.f32 0.0, %v1062
      %v1064 = vpop.f32.mrb[0].mxu0
      %v1065 = vpop.f32.mrb[0].mxu0
      %v1066 = vadd.f32 0.0, %v1065
      %v1067 = vpop.f32.mrb[0].mxu0
      %1068 = vmatprep.mubr.bf16.mxu0 0
      %1069 = vmatmul.mubr.bf16.gmra.mrb[0].mxu0 %v942
      %v1070 = vpop.f32.mrb[0].mxu0
      %v1071 = vadd.f32 0.0, %v1070
      %v1072 = vpop.f32.mrb[0].mxu0
      %v1073 = vpop.f32.mrb[0].mxu0
      %v1074 = vadd.f32 0.0, %v1073
      %v1075 = vpop.f32.mrb[0].mxu0
      %1076 = vmatprep.mubr.bf16.mxu0 0
      %1077 = vmatmul.mubr.bf16.gmra.mrb[0].mxu0 %v943
      %v1078 = vpop.f32.mrb[0].mxu0
      %v1079 = vadd.f32 0.0, %v1078
      %v1080 = vpop.f32.mrb[0].mxu0
      %v1081 = vpop.f32.mrb[0].mxu0
      %v1082 = vadd.f32 0.0, %v1081
      %v1083 = vpop.f32.mrb[0].mxu0
      %1084 = vmatprep.mubr.bf16.mxu0 0
      %1085 = vmatmul.mubr.bf16.gmra.mrb[0].mxu0 %v944
      %v1086 = vpop.f32.mrb[0].mxu0
      %v1087 = vadd.f32 0.0, %v1086
      %v1088 = vpop.f32.mrb[0].mxu0
      %v1089 = vpop.f32.mrb[0].mxu0
      %v1090 = vadd.f32 0.0, %v1089
      %v1091 = vpop.f32.mrb[0].mxu0
      %1092 = vmatprep.mubr.bf16.mxu0 0
      %1093 = vmatmul.mubr.bf16.gmra.mrb[0].mxu0 %v945
      %v1094 = vpop.f32.mrb[0].mxu0
      %v1095 = vadd.f32 0.0, %v1094
      %v1096 = vpop.f32.mrb[0].mxu0
      %v1097 = vpop.f32.mrb[0].mxu0
      %v1098 = vadd.f32 0.0, %v1097
      %v1099 = vpop.f32.mrb[0].mxu0
      %1100 = vmatprep.mubr.bf16.mxu0 0
      %1101 = vmatmul.mubr.bf16.gmra.mrb[0].mxu0 %v946
      %v1102 = vpop.f32.mrb[0].mxu0
      %v1103 = vadd.f32 0.0, %v1102
      %v1104 = vpop.f32.mrb[0].mxu0
      %v1105 = vpop.f32.mrb[0].mxu0
      %v1106 = vadd.f32 0.0, %v1105
      %v1107 = vpop.f32.mrb[0].mxu0
      %1108 = vmatprep.mubr.bf16.mxu0 0
      %1109 = vmatmul.mubr.bf16.gmra.mrb[0].mxu0 %v947
      %v1110 = vpop.f32.mrb[0].mxu0
      %v1111 = vadd.f32 0.0, %v1110
      %v1112 = vpop.f32.mrb[0].mxu0
      %v1113 = vpop.f32.mrb[0].mxu0
      %v1114 = vadd.f32 0.0, %v1113
      %v1115 = vpop.f32.mrb[0].mxu0
      %1116 = vmatprep.mubr.bf16.mxu0 0
      %1117 = vmatmul.mubr.bf16.gmra.mrb[0].mxu0 %v948
      %v1118 = vpop.f32.mrb[0].mxu0
      %v1119 = vadd.f32 0.0, %v1118
      %v1120 = vpop.f32.mrb[0].mxu0
      %v1121 = vpop.f32.mrb[0].mxu0
      %v1122 = vadd.f32 0.0, %v1121
      %v1123 = vpop.f32.mrb[0].mxu0
      %1124 = vmatprep.mubr.bf16.mxu0 0
      %1125 = vmatmul.mubr.bf16.gmra.mrb[0].mxu0 %v949
      %v1126 = vpop.f32.mrb[0].mxu0
      %v1127 = vadd.f32 0.0, %v1126
      %v1128 = vpop.f32.mrb[0].mxu0
      %v1129 = vpop.f32.mrb[0].mxu0
      %v1130 = vadd.f32 0.0, %v1129
      %v1131 = vpop.f32.mrb[0].mxu0
      %1132 = vmatprep.mubr.bf16.mxu0 0
      %1133 = vmatmul.mubr.bf16.gmra.mrb[0].mxu0 %v950
      %v1134 = vpop.f32.mrb[0].mxu0
      %v1135 = vadd.f32 0.0, %v1134
      %v1136 = vpop.f32.mrb[0].mxu0
      %v1137 = vpop.f32.mrb[0].mxu0
      %v1138 = vadd.f32 0.0, %v1137
      %v1139 = vpop.f32.mrb[0].mxu0
      %1140 = vmatprep.mubr.bf16.mxu0 0
      %1141 = vmatmul.mubr.bf16.gmra.mrb[0].mxu0 %v951
      %v1142 = vpop.f32.mrb[0].mxu0
      %v1143 = vadd.f32 0.0, %v1142
      %v1144 = vpop.f32.mrb[0].mxu0
      %v1145 = vpop.f32.mrb[0].mxu0
      %v1146 = vadd.f32 0.0, %v1145
      %v1147 = vpop.f32.mrb[0].mxu0
      %1148 = vmatprep.mubr.bf16.mxu0 0
      %1149 = vmatmul.mubr.bf16.gmra.mrb[0].mxu0 %v952
      %v1150 = vpop.f32.mrb[0].mxu0
      %v1151 = vadd.f32 0.0, %v1150
      %v1152 = vpop.f32.mrb[0].mxu0
      %v1153 = vpop.f32.mrb[0].mxu0
      %v1154 = vadd.f32 0.0, %v1153
      %v1155 = vpop.f32.mrb[0].mxu0
      %1156 = vmatprep.mubr.bf16.mxu0 0
      %1157 = vmatmul.mubr.bf16.gmra.mrb[0].mxu0 %v953
      %v1158 = vpop.f32.mrb[0].mxu0
      %v1159 = vadd.f32 0.0, %v1158
      %v1160 = vpop.f32.mrb[0].mxu0
      %v1161 = vpop.f32.mrb[0].mxu0
      %v1162 = vadd.f32 0.0, %v1161
      %v1163 = vpop.f32.mrb[0].mxu0
      %1164 = vmatprep.mubr.bf16.mxu0 0
      %1165 = vmatmul.mubr.bf16.gmra.mrb[0].mxu0 %v954
      %v1166 = vpop.f32.mrb[0].mxu0
      %v1167 = vadd.f32 0.0, %v1166
      %v1168 = vpop.f32.mrb[0].mxu0
      %v1169 = vpop.f32.mrb[0].mxu0
      %v1170 = vadd.f32 0.0, %v1169
      %v1171 = vpop.f32.mrb[0].mxu0
      %1172 = vmatprep.mubr.bf16.mxu0 0
      %1173 = vmatmul.mubr.bf16.gmra.mrb[0].mxu0 %v955
      %v1174 = vpop.f32.mrb[0].mxu0
      %v1175 = vadd.f32 0.0, %v1174
      %v1176 = vpop.f32.mrb[0].mxu0
      %v1177 = vpop.f32.mrb[0].mxu0
      %v1178 = vadd.f32 0.0, %v1177
      %v1179 = vpop.f32.mrb[0].mxu0
      %1180 = vdwg.mxu0
      %v1213 = vunpack.c.l.b16 %v441
      %v1214 = vunpack.c.l.b16 %v442
      %v1215 = vunpack.c.l.b16 %v443
      %v1216 = vunpack.c.l.b16 %v444
      %v1217 = vunpack.c.l.b16 %v445
      %v1218 = vunpack.c.l.b16 %v446
      %v1219 = vunpack.c.l.b16 %v447
      %v1220 = vunpack.c.l.b16 %v448
      %v1221 = vunpack.c.l.b16 %v449
      %v1222 = vunpack.c.l.b16 %v450
      %v1223 = vunpack.c.l.b16 %v451
      %v1224 = vunpack.c.l.b16 %v452
      %v1225 = vunpack.c.l.b16 %v453
      %v1226 = vunpack.c.l.b16 %v454
      %v1227 = vunpack.c.l.b16 %v455
      %v1228 = vunpack.c.l.b16 %v456
      %v1229 = vunpack.c.l.b16 %v457
      %v1230 = vunpack.c.l.b16 %v458
      %v1231 = vunpack.c.l.b16 %v459
      %v1232 = vunpack.c.l.b16 %v460
      %v1233 = vunpack.c.l.b16 %v461
      %v1234 = vunpack.c.l.b16 %v462
      %v1235 = vunpack.c.l.b16 %v463
      %v1236 = vunpack.c.l.b16 %v464
      %v1237 = vunpack.c.l.b16 %v465
      %v1238 = vunpack.c.l.b16 %v466
      %v1239 = vunpack.c.l.b16 %v467
      %v1240 = vunpack.c.l.b16 %v468
      %v1241 = vunpack.c.l.b16 %v469
      %v1242 = vunpack.c.l.b16 %v470
      %v1243 = vunpack.c.l.b16 %v471
      %v1244 = vunpack.c.l.b16 %v472
      %v1245 = vpack.c.b16 %v1214, %v1213
      %v1246 = vpack.c.b16 %v1216, %v1215
      %v1247 = vpack.c.b16 %v1218, %v1217
      %v1248 = vpack.c.b16 %v1220, %v1219
      %v1249 = vpack.c.b16 %v1222, %v1221
      %v1250 = vpack.c.b16 %v1224, %v1223
      %v1251 = vpack.c.b16 %v1226, %v1225
      %v1252 = vpack.c.b16 %v1228, %v1227
      %v1253 = vpack.c.b16 %v1230, %v1229
      %v1254 = vpack.c.b16 %v1232, %v1231
      %v1255 = vpack.c.b16 %v1234, %v1233
      %v1256 = vpack.c.b16 %v1236, %v1235
      %v1257 = vpack.c.b16 %v1238, %v1237
      %v1258 = vpack.c.b16 %v1240, %v1239
      %v1259 = vpack.c.b16 %v1242, %v1241
      %v1260 = vpack.c.b16 %v1244, %v1243
      %v1293 = vunpack.c.l.b16 %v473
      %v1294 = vunpack.c.l.b16 %v474
      %v1295 = vunpack.c.l.b16 %v475
      %v1296 = vunpack.c.l.b16 %v476
      %v1297 = vunpack.c.l.b16 %v477
      %v1298 = vunpack.c.l.b16 %v478
      %v1299 = vunpack.c.l.b16 %v479
      %v1300 = vunpack.c.l.b16 %v480
      %v1301 = vunpack.c.l.b16 %v481
      %v1302 = vunpack.c.l.b16 %v482
      %v1303 = vunpack.c.l.b16 %v483
      %v1304 = vunpack.c.l.b16 %v484
      %v1305 = vunpack.c.l.b16 %v485
      %v1306 = vunpack.c.l.b16 %v486
      %v1307 = vunpack.c.l.b16 %v487
      %v1308 = vunpack.c.l.b16 %v488
      %v1309 = vpack.c.b16 %v1294, %v1293
      %v1310 = vpack.c.b16 %v1296, %v1295
      %v1311 = vpack.c.b16 %v1298, %v1297
      %v1312 = vpack.c.b16 %v1300, %v1299
      %v1313 = vpack.c.b16 %v1302, %v1301
      %v1314 = vpack.c.b16 %v1304, %v1303
      %v1315 = vpack.c.b16 %v1306, %v1305
      %v1316 = vpack.c.b16 %v1308, %v1307
      %1325 = vmatprep.subr.bf16.mxu0 0
      %1326 = vmatpush1.bf16.msra.mxu0 %v1309
      %1327 = vmatprep.subr.bf16.mxu0 0
      %1328 = vmatpush1.bf16.msra.mxu0 %v1310
      %1329 = vmatprep.subr.bf16.mxu0 0
      %1330 = vmatpush1.bf16.msra.mxu0 %v1311
      %1331 = vmatprep.subr.bf16.mxu0 0
      %1332 = vmatpush1.bf16.msra.mxu0 %v1312
      %1333 = vmatprep.subr.bf16.mxu0 0
      %1334 = vmatpush1.bf16.msra.mxu0 %v1313
      %1335 = vmatprep.subr.bf16.mxu0 0
      %1336 = vmatpush1.bf16.msra.mxu0 %v1314
      %1337 = vmatprep.subr.bf16.mxu0 0
      %1338 = vmatpush1.bf16.msra.mxu0 %v1315
      %1339 = vmatprep.subr.bf16.mxu0 0
      %1340 = vmatpush1.bf16.msra.mxu0 %v1316
      %1341 = vmatprep.subr.bf16.mxu0 0
      %1342 = vmatpush1.bf16.msra.mxu0 0
      %1343 = vmatprep.subr.bf16.mxu0 0
      %1344 = vmatpush1.bf16.msra.mxu0 0
      %1345 = vmatprep.subr.bf16.mxu0 0
      %1346 = vmatpush1.bf16.msra.mxu0 0
      %1347 = vmatprep.subr.bf16.mxu0 0
      %1348 = vmatpush1.bf16.msra.mxu0 0
      %1349 = vmatprep.subr.bf16.mxu0 0
      %1350 = vmatpush1.bf16.msra.mxu0 0
      %1351 = vmatprep.subr.bf16.mxu0 0
      %1352 = vmatpush1.bf16.msra.mxu0 0
      %1353 = vmatprep.subr.bf16.mxu0 0
      %1354 = vmatpush1.bf16.msra.mxu0 0
      %1355 = vmatprep.subr.bf16.mxu0 0
      %1356 = vmatpush1.bf16.msra.mxu0 0
      %1357 = vmatprep.mubr.bf16.mxu0 0
      %1358 = vmatmul.mubr.bf16.gmra.mrb[0].mxu0 %v1245
      %v1359 = vpop.f32.mrb[0].mxu0
      %v1360 = vadd.f32 %v1055, %v1359
      %v1361 = vpop.f32.mrb[0].mxu0
      %v1362 = vpop.f32.mrb[0].mxu0
      %v1363 = vadd.f32 %v1058, %v1362
      %v1364 = vpop.f32.mrb[0].mxu0
      %1365 = vmatprep.mubr.bf16.mxu0 0
      %1366 = vmatmul.mubr.bf16.gmra.mrb[0].mxu0 %v1246
      %v1367 = vpop.f32.mrb[0].mxu0
      %v1368 = vadd.f32 %v1063, %v1367
      %v1369 = vpop.f32.mrb[0].mxu0
      %v1370 = vpop.f32.mrb[0].mxu0
      %v1371 = vadd.f32 %v1066, %v1370
      %v1372 = vpop.f32.mrb[0].mxu0
      %1373 = vmatprep.mubr.bf16.mxu0 0
      %1374 = vmatmul.mubr.bf16.gmra.mrb[0].mxu0 %v1247
      %v1375 = vpop.f32.mrb[0].mxu0
      %v1376 = vadd.f32 %v1071, %v1375
      %v1377 = vpop.f32.mrb[0].mxu0
      %v1378 = vpop.f32.mrb[0].mxu0
      %v1379 = vadd.f32 %v1074, %v1378
      %v1380 = vpop.f32.mrb[0].mxu0
      %1381 = vmatprep.mubr.bf16.mxu0 0
      %1382 = vmatmul.mubr.bf16.gmra.mrb[0].mxu0 %v1248
      %v1383 = vpop.f32.mrb[0].mxu0
      %v1384 = vadd.f32 %v1079, %v1383
      %v1385 = vpop.f32.mrb[0].mxu0
      %v1386 = vpop.f32.mrb[0].mxu0
      %v1387 = vadd.f32 %v1082, %v1386
      %v1388 = vpop.f32.mrb[0].mxu0
      %1389 = vmatprep.mubr.bf16.mxu0 0
      %1390 = vmatmul.mubr.bf16.gmra.mrb[0].mxu0 %v1249
      %v1391 = vpop.f32.mrb[0].mxu0
      %v1392 = vadd.f32 %v1087, %v1391
      %v1393 = vpop.f32.mrb[0].mxu0
      %v1394 = vpop.f32.mrb[0].mxu0
      %v1395 = vadd.f32 %v1090, %v1394
      %v1396 = vpop.f32.mrb[0].mxu0
      %1397 = vmatprep.mubr.bf16.mxu0 0
      %1398 = vmatmul.mubr.bf16.gmra.mrb[0].mxu0 %v1250
      %v1399 = vpop.f32.mrb[0].mxu0
      %v1400 = vadd.f32 %v1095, %v1399
      %v1401 = vpop.f32.mrb[0].mxu0
      %v1402 = vpop.f32.mrb[0].mxu0
      %v1403 = vadd.f32 %v1098, %v1402
      %v1404 = vpop.f32.mrb[0].mxu0
      %1405 = vmatprep.mubr.bf16.mxu0 0
      %1406 = vmatmul.mubr.bf16.gmra.mrb[0].mxu0 %v1251
      %v1407 = vpop.f32.mrb[0].mxu0
      %v1408 = vadd.f32 %v1103, %v1407
      %v1409 = vpop.f32.mrb[0].mxu0
      %v1410 = vpop.f32.mrb[0].mxu0
      %v1411 = vadd.f32 %v1106, %v1410
      %v1412 = vpop.f32.mrb[0].mxu0
      %1413 = vmatprep.mubr.bf16.mxu0 0
      %1414 = vmatmul.mubr.bf16.gmra.mrb[0].mxu0 %v1252
      %v1415 = vpop.f32.mrb[0].mxu0
      %v1416 = vadd.f32 %v1111, %v1415
      %v1417 = vpop.f32.mrb[0].mxu0
      %v1418 = vpop.f32.mrb[0].mxu0
      %v1419 = vadd.f32 %v1114, %v1418
      %v1420 = vpop.f32.mrb[0].mxu0
      %1421 = vmatprep.mubr.bf16.mxu0 0
      %1422 = vmatmul.mubr.bf16.gmra.mrb[0].mxu0 %v1253
      %v1423 = vpop.f32.mrb[0].mxu0
      %v1424 = vadd.f32 %v1119, %v1423
      %v1425 = vpop.f32.mrb[0].mxu0
      %v1426 = vpop.f32.mrb[0].mxu0
      %v1427 = vadd.f32 %v1122, %v1426
      %v1428 = vpop.f32.mrb[0].mxu0
      %1429 = vmatprep.mubr.bf16.mxu0 0
      %1430 = vmatmul.mubr.bf16.gmra.mrb[0].mxu0 %v1254
      %v1431 = vpop.f32.mrb[0].mxu0
      %v1432 = vadd.f32 %v1127, %v1431
      %v1433 = vpop.f32.mrb[0].mxu0
      %v1434 = vpop.f32.mrb[0].mxu0
      %v1435 = vadd.f32 %v1130, %v1434
      %v1436 = vpop.f32.mrb[0].mxu0
      %1437 = vmatprep.mubr.bf16.mxu0 0
      %1438 = vmatmul.mubr.bf16.gmra.mrb[0].mxu0 %v1255
      %v1439 = vpop.f32.mrb[0].mxu0
      %v1440 = vadd.f32 %v1135, %v1439
      %v1441 = vpop.f32.mrb[0].mxu0
      %v1442 = vpop.f32.mrb[0].mxu0
      %v1443 = vadd.f32 %v1138, %v1442
      %v1444 = vpop.f32.mrb[0].mxu0
      %1445 = vmatprep.mubr.bf16.mxu0 0
      %1446 = vmatmul.mubr.bf16.gmra.mrb[0].mxu0 %v1256
      %v1447 = vpop.f32.mrb[0].mxu0
      %v1448 = vadd.f32 %v1143, %v1447
      %v1449 = vpop.f32.mrb[0].mxu0
      %v1450 = vpop.f32.mrb[0].mxu0
      %v1451 = vadd.f32 %v1146, %v1450
      %v1452 = vpop.f32.mrb[0].mxu0
      %1453 = vmatprep.mubr.bf16.mxu0 0
      %1454 = vmatmul.mubr.bf16.gmra.mrb[0].mxu0 %v1257
      %v1455 = vpop.f32.mrb[0].mxu0
      %v1456 = vadd.f32 %v1151, %v1455
      %v1457 = vpop.f32.mrb[0].mxu0
      %v1458 = vpop.f32.mrb[0].mxu0
      %v1459 = vadd.f32 %v1154, %v1458
      %v1460 = vpop.f32.mrb[0].mxu0
      %1461 = vmatprep.mubr.bf16.mxu0 0
      %1462 = vmatmul.mubr.bf16.gmra.mrb[0].mxu0 %v1258
      %v1463 = vpop.f32.mrb[0].mxu0
      %v1464 = vadd.f32 %v1159, %v1463
      %v1465 = vpop.f32.mrb[0].mxu0
      %v1466 = vpop.f32.mrb[0].mxu0
      %v1467 = vadd.f32 %v1162, %v1466
      %v1468 = vpop.f32.mrb[0].mxu0
      %1469 = vmatprep.mubr.bf16.mxu0 0
      %1470 = vmatmul.mubr.bf16.gmra.mrb[0].mxu0 %v1259
      %v1471 = vpop.f32.mrb[0].mxu0
      %v1472 = vadd.f32 %v1167, %v1471
      %v1473 = vpop.f32.mrb[0].mxu0
      %v1474 = vpop.f32.mrb[0].mxu0
      %v1475 = vadd.f32 %v1170, %v1474
      %v1476 = vpop.f32.mrb[0].mxu0
      %1477 = vmatprep.mubr.bf16.mxu0 0
      %1478 = vmatmul.mubr.bf16.gmra.mrb[0].mxu0 %v1260
      %v1479 = vpop.f32.mrb[0].mxu0
      %v1480 = vadd.f32 %v1175, %v1479
      %v1481 = vpop.f32.mrb[0].mxu0
      %v1482 = vpop.f32.mrb[0].mxu0
      %v1483 = vadd.f32 %v1178, %v1482
      %v1484 = vpop.f32.mrb[0].mxu0
      %1485 = vdwg.mxu0
      %v1486 = vld [vmem:[%s440] sm:$0xe]
      %v1487 = vld [vmem:[%s440 + $0xc] sm:$0xe]
      %v1488 = vld [vmem:[%s440 + $0x18] sm:$0xe]
      %v1489 = vld [vmem:[%s440 + $0x24] sm:$0xe]
      %v1490 = vld [vmem:[%s440 + $0x30] sm:$0xe]
      %v1491 = vld [vmem:[%s440 + $0x3c] sm:$0xe]
      %v1492 = vld [vmem:[%s440 + $0x48] sm:$0xe]
      %v1493 = vld [vmem:[%s440 + $0x54] sm:$0xe]
      %v1494 = vld [vmem:[%s440 + $0x60] sm:$0xe]
      %v1495 = vld [vmem:[%s440 + $0x6c] sm:$0xe]
      %v1496 = vld [vmem:[%s440 + $0x78] sm:$0xe]
      %v1497 = vld [vmem:[%s440 + $0x84] sm:$0xe]
      %v1498 = vld [vmem:[%s440 + $0x90] sm:$0xe]
      %v1499 = vld [vmem:[%s440 + $0x9c] sm:$0xe]
      %v1500 = vld [vmem:[%s440 + $0xa8] sm:$0xe]
      %v1501 = vld [vmem:[%s440 + $0xb4] sm:$0xe]
      %vm1534 = vcmask 1042432
      %vm1535 = vcmask 1046532
      %vm1536 = vmor %vm1534, %vm1535
      %v1537 = vrot.slane %v1486, 5
      %v1538 = vrot.slane %v1537, 4
      %v1539 = vrot.slane %v442, 5
      %v1540 = vsel %vm1536, %v1538, %v1539
      %v1541 = vrot.slane %v1539, 4
      %v1542 = vrot.slane %v489, 5
      %v1543 = vsel %vm1536, %v1541, %v1542
      %v1544 = vrot.slane %v1487, 5
      %v1545 = vrot.slane %v1544, 4
      %v1546 = vrot.slane %v444, 5
      %v1547 = vsel %vm1536, %v1545, %v1546
      %v1548 = vrot.slane %v1546, 4
      %v1549 = vrot.slane %v490, 5
      %v1550 = vsel %vm1536, %v1548, %v1549
      %v1551 = vrot.slane %v1488, 5
      %v1552 = vrot.slane %v1551, 4
      %v1553 = vrot.slane %v446, 5
      %v1554 = vsel %vm1536, %v1552, %v1553
      %v1555 = vrot.slane %v1553, 4
      %v1556 = vrot.slane %v491, 5
      %v1557 = vsel %vm1536, %v1555, %v1556
      %v1558 = vrot.slane %v1489, 5
      %v1559 = vrot.slane %v1558, 4
      %v1560 = vrot.slane %v448, 5
      %v1561 = vsel %vm1536, %v1559, %v1560
      %v1562 = vrot.slane %v1560, 4
      %v1563 = vrot.slane %v492, 5
      %v1564 = vsel %vm1536, %v1562, %v1563
      %v1565 = vrot.slane %v1490, 5
      %v1566 = vrot.slane %v1565, 4
      %v1567 = vrot.slane %v450, 5
      %v1568 = vsel %vm1536, %v1566, %v1567
      %v1569 = vrot.slane %v1567, 4
      %v1570 = vrot.slane %v493, 5
      %v1571 = vsel %vm1536, %v1569, %v1570
      %v1572 = vrot.slane %v1491, 5
      %v1573 = vrot.slane %v1572, 4
      %v1574 = vrot.slane %v452, 5
      %v1575 = vsel %vm1536, %v1573, %v1574
      %v1576 = vrot.slane %v1574, 4
      %v1577 = vrot.slane %v494, 5
      %v1578 = vsel %vm1536, %v1576, %v1577
      %v1579 = vrot.slane %v1492, 5
      %v1580 = vrot.slane %v1579, 4
      %v1581 = vrot.slane %v454, 5
      %v1582 = vsel %vm1536, %v1580, %v1581
      %v1583 = vrot.slane %v1581, 4
      %v1584 = vrot.slane %v495, 5
      %v1585 = vsel %vm1536, %v1583, %v1584
      %v1586 = vrot.slane %v1493, 5
      %v1587 = vrot.slane %v1586, 4
      %v1588 = vrot.slane %v456, 5
      %v1589 = vsel %vm1536, %v1587, %v1588
      %v1590 = vrot.slane %v1588, 4
      %v1591 = vrot.slane %v496, 5
      %v1592 = vsel %vm1536, %v1590, %v1591
      %v1593 = vrot.slane %v1494, 5
      %v1594 = vrot.slane %v1593, 4
      %v1595 = vrot.slane %v458, 5
      %v1596 = vsel %vm1536, %v1594, %v1595
      %v1597 = vrot.slane %v1595, 4
      %v1598 = vrot.slane %v497, 5
      %v1599 = vsel %vm1536, %v1597, %v1598
      %v1600 = vrot.slane %v1495, 5
      %v1601 = vrot.slane %v1600, 4
      %v1602 = vrot.slane %v460, 5
      %v1603 = vsel %vm1536, %v1601, %v1602
      %v1604 = vrot.slane %v1602, 4
      %v1605 = vrot.slane %v498, 5
      %v1606 = vsel %vm1536, %v1604, %v1605
      %v1607 = vrot.slane %v1496, 5
      %v1608 = vrot.slane %v1607, 4
      %v1609 = vrot.slane %v462, 5
      %v1610 = vsel %vm1536, %v1608, %v1609
      %v1611 = vrot.slane %v1609, 4
      %v1612 = vrot.slane %v499, 5
      %v1613 = vsel %vm1536, %v1611, %v1612
      %v1614 = vrot.slane %v1497, 5
      %v1615 = vrot.slane %v1614, 4
      %v1616 = vrot.slane %v464, 5
      %v1617 = vsel %vm1536, %v1615, %v1616
      %v1618 = vrot.slane %v1616, 4
      %v1619 = vrot.slane %v500, 5
      %v1620 = vsel %vm1536, %v1618, %v1619
      %v1621 = vrot.slane %v1498, 5
      %v1622 = vrot.slane %v1621, 4
      %v1623 = vrot.slane %v466, 5
      %v1624 = vsel %vm1536, %v1622, %v1623
      %v1625 = vrot.slane %v1623, 4
      %v1626 = vrot.slane %v501, 5
      %v1627 = vsel %vm1536, %v1625, %v1626
      %v1628 = vrot.slane %v1499, 5
      %v1629 = vrot.slane %v1628, 4
      %v1630 = vrot.slane %v468, 5
      %v1631 = vsel %vm1536, %v1629, %v1630
      %v1632 = vrot.slane %v1630, 4
      %v1633 = vrot.slane %v502, 5
      %v1634 = vsel %vm1536, %v1632, %v1633
      %v1635 = vrot.slane %v1500, 5
      %v1636 = vrot.slane %v1635, 4
      %v1637 = vrot.slane %v470, 5
      %v1638 = vsel %vm1536, %v1636, %v1637
      %v1639 = vrot.slane %v1637, 4
      %v1640 = vrot.slane %v503, 5
      %v1641 = vsel %vm1536, %v1639, %v1640
      %v1642 = vrot.slane %v1501, 5
      %v1643 = vrot.slane %v1642, 4
      %v1644 = vrot.slane %v472, 5
      %v1645 = vsel %vm1536, %v1643, %v1644
      %v1646 = vrot.slane %v1644, 4
      %v1647 = vrot.slane %v504, 5
      %v1648 = vsel %vm1536, %v1646, %v1647
      %v1649 = vld [vmem:[%s1 + $0x80] sm:$0xf]
      %v1650 = vld [vmem:[%s1 + $0x84] sm:$0xf]
      %v1651 = vld [vmem:[%s1 + $0x88] sm:$0xf]
      %v1652 = vld [vmem:[%s1 + $0x8c] sm:$0xf]
      %v1653 = vld [vmem:[%s1 + $0x90] sm:$0xf]
      %v1654 = vld [vmem:[%s1 + $0x94] sm:$0xf]
      %v1655 = vld [vmem:[%s1 + $0x98] sm:$0xf]
      %v1656 = vld [vmem:[%s1 + $0x9c] sm:$0xf]
      %v1657 = vld [vmem:[%s1 + $0xa0] sm:$0xf]
      %v1658 = vld [vmem:[%s1 + $0xa4] sm:$0xf]
      %v1659 = vld [vmem:[%s1 + $0xa8] sm:$0xf]
      %v1660 = vld [vmem:[%s1 + $0xac] sm:$0xf]
      %v1661 = vld [vmem:[%s1 + $0xb0] sm:$0xf]
      %v1662 = vld [vmem:[%s1 + $0xb4] sm:$0xf]
      %v1663 = vld [vmem:[%s1 + $0xb8] sm:$0xf]
      %v1664 = vld [vmem:[%s1 + $0xbc] sm:$0xf]
      %v1665 = vunpack.c.l.b16 %v1540
      %v1666 = vunpack.c.l.b16 %v1543
      %v1667 = vunpack.c.l.b16 %v1547
      %v1668 = vunpack.c.l.b16 %v1550
      %v1669 = vunpack.c.l.b16 %v1554
      %v1670 = vunpack.c.l.b16 %v1557
      %v1671 = vunpack.c.l.b16 %v1561
      %v1672 = vunpack.c.l.b16 %v1564
      %v1673 = vunpack.c.l.b16 %v1568
      %v1674 = vunpack.c.l.b16 %v1571
      %v1675 = vunpack.c.l.b16 %v1575
      %v1676 = vunpack.c.l.b16 %v1578
      %v1677 = vunpack.c.l.b16 %v1582
      %v1678 = vunpack.c.l.b16 %v1585
      %v1679 = vunpack.c.l.b16 %v1589
      %v1680 = vunpack.c.l.b16 %v1592
      %v1681 = vunpack.c.l.b16 %v1596
      %v1682 = vunpack.c.l.b16 %v1599
      %v1683 = vunpack.c.l.b16 %v1603
      %v1684 = vunpack.c.l.b16 %v1606
      %v1685 = vunpack.c.l.b16 %v1610
      %v1686 = vunpack.c.l.b16 %v1613
      %v1687 = vunpack.c.l.b16 %v1617
      %v1688 = vunpack.c.l.b16 %v1620
      %v1689 = vunpack.c.l.b16 %v1624
      %v1690 = vunpack.c.l.b16 %v1627
      %v1691 = vunpack.c.l.b16 %v1631
      %v1692 = vunpack.c.l.b16 %v1634
      %v1693 = vunpack.c.l.b16 %v1638
      %v1694 = vunpack.c.l.b16 %v1641
      %v1695 = vunpack.c.l.b16 %v1645
      %v1696 = vunpack.c.l.b16 %v1648
      %v1697 = vpack.c.b16 %v1666, %v1665
      %v1698 = vpack.c.b16 %v1668, %v1667
      %v1699 = vpack.c.b16 %v1670, %v1669
      %v1700 = vpack.c.b16 %v1672, %v1671
      %v1701 = vpack.c.b16 %v1674, %v1673
      %v1702 = vpack.c.b16 %v1676, %v1675
      %v1703 = vpack.c.b16 %v1678, %v1677
      %v1704 = vpack.c.b16 %v1680, %v1679
      %v1705 = vpack.c.b16 %v1682, %v1681
      %v1706 = vpack.c.b16 %v1684, %v1683
      %v1707 = vpack.c.b16 %v1686, %v1685
      %v1708 = vpack.c.b16 %v1688, %v1687
      %v1709 = vpack.c.b16 %v1690, %v1689
      %v1710 = vpack.c.b16 %v1692, %v1691
      %v1711 = vpack.c.b16 %v1694, %v1693
      %v1712 = vpack.c.b16 %v1696, %v1695
      %v1745 = vunpack.c.l.b16 %v1649
      %v1746 = vunpack.c.l.b16 %v1650
      %v1747 = vunpack.c.l.b16 %v1651
      %v1748 = vunpack.c.l.b16 %v1652
      %v1749 = vunpack.c.l.b16 %v1653
      %v1750 = vunpack.c.l.b16 %v1654
      %v1751 = vunpack.c.l.b16 %v1655
      %v1752 = vunpack.c.l.b16 %v1656
      %v1753 = vunpack.c.l.b16 %v1657
      %v1754 = vunpack.c.l.b16 %v1658
      %v1755 = vunpack.c.l.b16 %v1659
      %v1756 = vunpack.c.l.b16 %v1660
      %v1757 = vunpack.c.l.b16 %v1661
      %v1758 = vunpack.c.l.b16 %v1662
      %v1759 = vunpack.c.l.b16 %v1663
      %v1760 = vunpack.c.l.b16 %v1664
      %v1761 = vpack.c.b16 %v1746, %v1745
      %v1762 = vpack.c.b16 %v1748, %v1747
      %v1763 = vpack.c.b16 %v1750, %v1749
      %v1764 = vpack.c.b16 %v1752, %v1751
      %v1765 = vpack.c.b16 %v1754, %v1753
      %v1766 = vpack.c.b16 %v1756, %v1755
      %v1767 = vpack.c.b16 %v1758, %v1757
      %v1768 = vpack.c.b16 %v1760, %v1759
      %1777 = vmatprep.subr.bf16.mxu0 0
      %1778 = vmatpush1.bf16.msra.mxu0 %v1761
      %1779 = vmatprep.subr.bf16.mxu0 0
      %1780 = vmatpush1.bf16.msra.mxu0 %v1762
      %1781 = vmatprep.subr.bf16.mxu0 0
      %1782 = vmatpush1.bf16.msra.mxu0 %v1763
      %1783 = vmatprep.subr.bf16.mxu0 0
      %1784 = vmatpush1.bf16.msra.mxu0 %v1764
      %1785 = vmatprep.subr.bf16.mxu0 0
      %1786 = vmatpush1.bf16.msra.mxu0 %v1765
      %1787 = vmatprep.subr.bf16.mxu0 0
      %1788 = vmatpush1.bf16.msra.mxu0 %v1766
      %1789 = vmatprep.subr.bf16.mxu0 0
      %1790 = vmatpush1.bf16.msra.mxu0 %v1767
      %1791 = vmatprep.subr.bf16.mxu0 0
      %1792 = vmatpush1.bf16.msra.mxu0 %v1768
      %1793 = vmatprep.subr.bf16.mxu0 0
      %1794 = vmatpush1.bf16.msra.mxu0 0
      %1795 = vmatprep.subr.bf16.mxu0 0
      %1796 = vmatpush1.bf16.msra.mxu0 0
      %1797 = vmatprep.subr.bf16.mxu0 0
      %1798 = vmatpush1.bf16.msra.mxu0 0
      %1799 = vmatprep.subr.bf16.mxu0 0
      %1800 = vmatpush1.bf16.msra.mxu0 0
      %1801 = vmatprep.subr.bf16.mxu0 0
      %1802 = vmatpush1.bf16.msra.mxu0 0
      %1803 = vmatprep.subr.bf16.mxu0 0
      %1804 = vmatpush1.bf16.msra.mxu0 0
      %1805 = vmatprep.subr.bf16.mxu0 0
      %1806 = vmatpush1.bf16.msra.mxu0 0
      %1807 = vmatprep.subr.bf16.mxu0 0
      %1808 = vmatpush1.bf16.msra.mxu0 0
      %1809 = vmatprep.mubr.bf16.mxu0 0
      %1810 = vmatmul.mubr.bf16.gmra.mrb[0].mxu0 %v1697
      %v1811 = vpop.f32.mrb[0].mxu0
      %v1812 = vadd.f32 0.0, %v1811
      %v1813 = vpop.f32.mrb[0].mxu0
      %v1814 = vpop.f32.mrb[0].mxu0
      %v1815 = vadd.f32 0.0, %v1814
      %v1816 = vpop.f32.mrb[0].mxu0
      %1817 = vmatprep.mubr.bf16.mxu0 0
      %1818 = vmatmul.mubr.bf16.gmra.mrb[0].mxu0 %v1698
      %v1819 = vpop.f32.mrb[0].mxu0
      %v1820 = vadd.f32 0.0, %v1819
      %v1821 = vpop.f32.mrb[0].mxu0
      %v1822 = vpop.f32.mrb[0].mxu0
      %v1823 = vadd.f32 0.0, %v1822
      %v1824 = vpop.f32.mrb[0].mxu0
      %1825 = vmatprep.mubr.bf16.mxu0 0
      %1826 = vmatmul.mubr.bf16.gmra.mrb[0].mxu0 %v1699
      %v1827 = vpop.f32.mrb[0].mxu0
      %v1828 = vadd.f32 0.0, %v1827
      %v1829 = vpop.f32.mrb[0].mxu0
      %v1830 = vpop.f32.mrb[0].mxu0
      %v1831 = vadd.f32 0.0, %v1830
      %v1832 = vpop.f32.mrb[0].mxu0
      %1833 = vmatprep.mubr.bf16.mxu0 0
      %1834 = vmatmul.mubr.bf16.gmra.mrb[0].mxu0 %v1700
      %v1835 = vpop.f32.mrb[0].mxu0
      %v1836 = vadd.f32 0.0, %v1835
      %v1837 = vpop.f32.mrb[0].mxu0
      %v1838 = vpop.f32.mrb[0].mxu0
      %v1839 = vadd.f32 0.0, %v1838
      %v1840 = vpop.f32.mrb[0].mxu0
      %1841 = vmatprep.mubr.bf16.mxu0 0
      %1842 = vmatmul.mubr.bf16.gmra.mrb[0].mxu0 %v1701
      %v1843 = vpop.f32.mrb[0].mxu0
      %v1844 = vadd.f32 0.0, %v1843
      %v1845 = vpop.f32.mrb[0].mxu0
      %v1846 = vpop.f32.mrb[0].mxu0
      %v1847 = vadd.f32 0.0, %v1846
      %v1848 = vpop.f32.mrb[0].mxu0
      %1849 = vmatprep.mubr.bf16.mxu0 0
      %1850 = vmatmul.mubr.bf16.gmra.mrb[0].mxu0 %v1702
      %v1851 = vpop.f32.mrb[0].mxu0
      %v1852 = vadd.f32 0.0, %v1851
      %v1853 = vpop.f32.mrb[0].mxu0
      %v1854 = vpop.f32.mrb[0].mxu0
      %v1855 = vadd.f32 0.0, %v1854
      %v1856 = vpop.f32.mrb[0].mxu0
      %1857 = vmatprep.mubr.bf16.mxu0 0
      %1858 = vmatmul.mubr.bf16.gmra.mrb[0].mxu0 %v1703
      %v1859 = vpop.f32.mrb[0].mxu0
      %v1860 = vadd.f32 0.0, %v1859
      %v1861 = vpop.f32.mrb[0].mxu0
      %v1862 = vpop.f32.mrb[0].mxu0
      %v1863 = vadd.f32 0.0, %v1862
      %v1864 = vpop.f32.mrb[0].mxu0
      %1865 = vmatprep.mubr.bf16.mxu0 0
      %1866 = vmatmul.mubr.bf16.gmra.mrb[0].mxu0 %v1704
      %v1867 = vpop.f32.mrb[0].mxu0
      %v1868 = vadd.f32 0.0, %v1867
      %v1869 = vpop.f32.mrb[0].mxu0
      %v1870 = vpop.f32.mrb[0].mxu0
      %v1871 = vadd.f32 0.0, %v1870
      %v1872 = vpop.f32.mrb[0].mxu0
      %1873 = vmatprep.mubr.bf16.mxu0 0
      %1874 = vmatmul.mubr.bf16.gmra.mrb[0].mxu0 %v1705
      %v1875 = vpop.f32.mrb[0].mxu0
      %v1876 = vadd.f32 0.0, %v1875
      %v1877 = vpop.f32.mrb[0].mxu0
      %v1878 = vpop.f32.mrb[0].mxu0
      %v1879 = vadd.f32 0.0, %v1878
      %v1880 = vpop.f32.mrb[0].mxu0
      %1881 = vmatprep.mubr.bf16.mxu0 0
      %1882 = vmatmul.mubr.bf16.gmra.mrb[0].mxu0 %v1706
      %v1883 = vpop.f32.mrb[0].mxu0
      %v1884 = vadd.f32 0.0, %v1883
      %v1885 = vpop.f32.mrb[0].mxu0
      %v1886 = vpop.f32.mrb[0].mxu0
      %v1887 = vadd.f32 0.0, %v1886
      %v1888 = vpop.f32.mrb[0].mxu0
      %1889 = vmatprep.mubr.bf16.mxu0 0
      %1890 = vmatmul.mubr.bf16.gmra.mrb[0].mxu0 %v1707
      %v1891 = vpop.f32.mrb[0].mxu0
      %v1892 = vadd.f32 0.0, %v1891
      %v1893 = vpop.f32.mrb[0].mxu0
      %v1894 = vpop.f32.mrb[0].mxu0
      %v1895 = vadd.f32 0.0, %v1894
      %v1896 = vpop.f32.mrb[0].mxu0
      %1897 = vmatprep.mubr.bf16.mxu0 0
      %1898 = vmatmul.mubr.bf16.gmra.mrb[0].mxu0 %v1708
      %v1899 = vpop.f32.mrb[0].mxu0
      %v1900 = vadd.f32 0.0, %v1899
      %v1901 = vpop.f32.mrb[0].mxu0
      %v1902 = vpop.f32.mrb[0].mxu0
      %v1903 = vadd.f32 0.0, %v1902
      %v1904 = vpop.f32.mrb[0].mxu0
      %1905 = vmatprep.mubr.bf16.mxu0 0
      %1906 = vmatmul.mubr.bf16.gmra.mrb[0].mxu0 %v1709
      %v1907 = vpop.f32.mrb[0].mxu0
      %v1908 = vadd.f32 0.0, %v1907
      %v1909 = vpop.f32.mrb[0].mxu0
      %v1910 = vpop.f32.mrb[0].mxu0
      %v1911 = vadd.f32 0.0, %v1910
      %v1912 = vpop.f32.mrb[0].mxu0
      %1913 = vmatprep.mubr.bf16.mxu0 0
      %1914 = vmatmul.mubr.bf16.gmra.mrb[0].mxu0 %v1710
      %v1915 = vpop.f32.mrb[0].mxu0
      %v1916 = vadd.f32 0.0, %v1915
      %v1917 = vpop.f32.mrb[0].mxu0
      %v1918 = vpop.f32.mrb[0].mxu0
      %v1919 = vadd.f32 0.0, %v1918
      %v1920 = vpop.f32.mrb[0].mxu0
      %1921 = vmatprep.mubr.bf16.mxu0 0
      %1922 = vmatmul.mubr.bf16.gmra.mrb[0].mxu0 %v1711
      %v1923 = vpop.f32.mrb[0].mxu0
      %v1924 = vadd.f32 0.0, %v1923
      %v1925 = vpop.f32.mrb[0].mxu0
      %v1926 = vpop.f32.mrb[0].mxu0
      %v1927 = vadd.f32 0.0, %v1926
      %v1928 = vpop.f32.mrb[0].mxu0
      %1929 = vmatprep.mubr.bf16.mxu0 0
      %1930 = vmatmul.mubr.bf16.gmra.mrb[0].mxu0 %v1712
      %v1931 = vpop.f32.mrb[0].mxu0
      %v1932 = vadd.f32 0.0, %v1931
      %v1933 = vpop.f32.mrb[0].mxu0
      %v1934 = vpop.f32.mrb[0].mxu0
      %v1935 = vadd.f32 0.0, %v1934
      %v1936 = vpop.f32.mrb[0].mxu0
      %1937 = vdwg.mxu0
      %v1938 = vadd.f32 %v1360, %v1812
      %v1939 = vadd.f32 %v1363, %v1815
      %v1940 = vadd.f32 %v1368, %v1820
      %v1941 = vadd.f32 %v1371, %v1823
      %v1942 = vadd.f32 %v1376, %v1828
      %v1943 = vadd.f32 %v1379, %v1831
      %v1944 = vadd.f32 %v1384, %v1836
      %v1945 = vadd.f32 %v1387, %v1839
      %v1946 = vadd.f32 %v1392, %v1844
      %v1947 = vadd.f32 %v1395, %v1847
      %v1948 = vadd.f32 %v1400, %v1852
      %v1949 = vadd.f32 %v1403, %v1855
      %v1950 = vadd.f32 %v1408, %v1860
      %v1951 = vadd.f32 %v1411, %v1863
      %v1952 = vadd.f32 %v1416, %v1868
      %v1953 = vadd.f32 %v1419, %v1871
      %v1954 = vadd.f32 %v1424, %v1876
      %v1955 = vadd.f32 %v1427, %v1879
      %v1956 = vadd.f32 %v1432, %v1884
      %v1957 = vadd.f32 %v1435, %v1887
      %v1958 = vadd.f32 %v1440, %v1892
      %v1959 = vadd.f32 %v1443, %v1895
      %v1960 = vadd.f32 %v1448, %v1900
      %v1961 = vadd.f32 %v1451, %v1903
      %v1962 = vadd.f32 %v1456, %v1908
      %v1963 = vadd.f32 %v1459, %v1911
      %v1964 = vadd.f32 %v1464, %v1916
      %v1965 = vadd.f32 %v1467, %v1919
      %v1966 = vadd.f32 %v1472, %v1924
      %v1967 = vadd.f32 %v1475, %v1927
      %v1968 = vadd.f32 %v1480, %v1932
      %v1969 = vadd.f32 %v1483, %v1935
      %s1970 = sadd.s32 %s437, 1
      %s1971 = smul.u32 %s1970, 3
      %s1972 = smul.addr %s1971, 4
      %s1973 = scalar_lea.vmem %s411, %s1972
      %v1974 = vld [vmem:[%s1973] sm:$0xf]
      %v1975 = vld [vmem:[%s1973 + $0x4] sm:$0xf]
      %v1976 = vld [vmem:[%s1973 + $0xc] sm:$0xf]
      %v1977 = vld [vmem:[%s1973 + $0x10] sm:$0xf]
      %v1978 = vld [vmem:[%s1973 + $0x18] sm:$0xf]
      %v1979 = vld [vmem:[%s1973 + $0x1c] sm:$0xf]
      %v1980 = vld [vmem:[%s1973 + $0x24] sm:$0xf]
      %v1981 = vld [vmem:[%s1973 + $0x28] sm:$0xf]
      %v1982 = vld [vmem:[%s1973 + $0x30] sm:$0xf]
      %v1983 = vld [vmem:[%s1973 + $0x34] sm:$0xf]
      %v1984 = vld [vmem:[%s1973 + $0x3c] sm:$0xf]
      %v1985 = vld [vmem:[%s1973 + $0x40] sm:$0xf]
      %v1986 = vld [vmem:[%s1973 + $0x48] sm:$0xf]
      %v1987 = vld [vmem:[%s1973 + $0x4c] sm:$0xf]
      %v1988 = vld [vmem:[%s1973 + $0x54] sm:$0xf]
      %v1989 = vld [vmem:[%s1973 + $0x58] sm:$0xf]
      %v1990 = vld [vmem:[%s1973 + $0x60] sm:$0xf]
      %v1991 = vld [vmem:[%s1973 + $0x64] sm:$0xf]
      %v1992 = vld [vmem:[%s1973 + $0x6c] sm:$0xf]
      %v1993 = vld [vmem:[%s1973 + $0x70] sm:$0xf]
      %v1994 = vld [vmem:[%s1973 + $0x78] sm:$0xf]
      %v1995 = vld [vmem:[%s1973 + $0x7c] sm:$0xf]
      %v1996 = vld [vmem:[%s1973 + $0x84] sm:$0xf]
      %v1997 = vld [vmem:[%s1973 + $0x88] sm:$0xf]
      %v1998 = vld [vmem:[%s1973 + $0x90] sm:$0xf]
      %v1999 = vld [vmem:[%s1973 + $0x94] sm:$0xf]
      %v2000 = vld [vmem:[%s1973 + $0x9c] sm:$0xf]
      %v2001 = vld [vmem:[%s1973 + $0xa0] sm:$0xf]
      %v2002 = vld [vmem:[%s1973 + $0xa8] sm:$0xf]
      %v2003 = vld [vmem:[%s1973 + $0xac] sm:$0xf]
      %v2004 = vld [vmem:[%s1973 + $0xb4] sm:$0xf]
      %v2005 = vld [vmem:[%s1973 + $0xb8] sm:$0xf]
      %v2006 = vld [vmem:[%s1 + $0xc0] sm:$0xf]
      %v2007 = vld [vmem:[%s1 + $0xc4] sm:$0xf]
      %v2008 = vld [vmem:[%s1 + $0xc8] sm:$0xf]
      %v2009 = vld [vmem:[%s1 + $0xcc] sm:$0xf]
      %v2010 = vld [vmem:[%s1 + $0xd0] sm:$0xf]
      %v2011 = vld [vmem:[%s1 + $0xd4] sm:$0xf]
      %v2012 = vld [vmem:[%s1 + $0xd8] sm:$0xf]
      %v2013 = vld [vmem:[%s1 + $0xdc] sm:$0xf]
      %v2014 = vld [vmem:[%s1 + $0xe0] sm:$0xf]
      %v2015 = vld [vmem:[%s1 + $0xe4] sm:$0xf]
      %v2016 = vld [vmem:[%s1 + $0xe8] sm:$0xf]
      %v2017 = vld [vmem:[%s1 + $0xec] sm:$0xf]
      %v2018 = vld [vmem:[%s1 + $0xf0] sm:$0xf]
      %v2019 = vld [vmem:[%s1 + $0xf4] sm:$0xf]
      %v2020 = vld [vmem:[%s1 + $0xf8] sm:$0xf]
      %v2021 = vld [vmem:[%s1 + $0xfc] sm:$0xf]
      %v2054 = vunpack.c.l.b16 %v1974
      %v2055 = vunpack.c.l.b16 %v1975
      %v2056 = vunpack.c.l.b16 %v1976
      %v2057 = vunpack.c.l.b16 %v1977
      %v2058 = vunpack.c.l.b16 %v1978
      %v2059 = vunpack.c.l.b16 %v1979
      %v2060 = vunpack.c.l.b16 %v1980
      %v2061 = vunpack.c.l.b16 %v1981
      %v2062 = vunpack.c.l.b16 %v1982
      %v2063 = vunpack.c.l.b16 %v1983
      %v2064 = vunpack.c.l.b16 %v1984
      %v2065 = vunpack.c.l.b16 %v1985
      %v2066 = vunpack.c.l.b16 %v1986
      %v2067 = vunpack.c.l.b16 %v1987
      %v2068 = vunpack.c.l.b16 %v1988
      %v2069 = vunpack.c.l.b16 %v1989
      %v2070 = vunpack.c.l.b16 %v1990
      %v2071 = vunpack.c.l.b16 %v1991
      %v2072 = vunpack.c.l.b16 %v1992
      %v2073 = vunpack.c.l.b16 %v1993
      %v2074 = vunpack.c.l.b16 %v1994
      %v2075 = vunpack.c.l.b16 %v1995
      %v2076 = vunpack.c.l.b16 %v1996
      %v2077 = vunpack.c.l.b16 %v1997
      %v2078 = vunpack.c.l.b16 %v1998
      %v2079 = vunpack.c.l.b16 %v1999
      %v2080 = vunpack.c.l.b16 %v2000
      %v2081 = vunpack.c.l.b16 %v2001
      %v2082 = vunpack.c.l.b16 %v2002
      %v2083 = vunpack.c.l.b16 %v2003
      %v2084 = vunpack.c.l.b16 %v2004
      %v2085 = vunpack.c.l.b16 %v2005
      %v2086 = vpack.c.b16 %v2055, %v2054
      %v2087 = vpack.c.b16 %v2057, %v2056
      %v2088 = vpack.c.b16 %v2059, %v2058
      %v2089 = vpack.c.b16 %v2061, %v2060
      %v2090 = vpack.c.b16 %v2063, %v2062
      %v2091 = vpack.c.b16 %v2065, %v2064
      %v2092 = vpack.c.b16 %v2067, %v2066
      %v2093 = vpack.c.b16 %v2069, %v2068
      %v2094 = vpack.c.b16 %v2071, %v2070
      %v2095 = vpack.c.b16 %v2073, %v2072
      %v2096 = vpack.c.b16 %v2075, %v2074
      %v2097 = vpack.c.b16 %v2077, %v2076
      %v2098 = vpack.c.b16 %v2079, %v2078
      %v2099 = vpack.c.b16 %v2081, %v2080
      %v2100 = vpack.c.b16 %v2083, %v2082
      %v2101 = vpack.c.b16 %v2085, %v2084
      %v2134 = vunpack.c.l.b16 %v2006
      %v2135 = vunpack.c.l.b16 %v2007
      %v2136 = vunpack.c.l.b16 %v2008
      %v2137 = vunpack.c.l.b16 %v2009
      %v2138 = vunpack.c.l.b16 %v2010
      %v2139 = vunpack.c.l.b16 %v2011
      %v2140 = vunpack.c.l.b16 %v2012
      %v2141 = vunpack.c.l.b16 %v2013
      %v2142 = vunpack.c.l.b16 %v2014
      %v2143 = vunpack.c.l.b16 %v2015
      %v2144 = vunpack.c.l.b16 %v2016
      %v2145 = vunpack.c.l.b16 %v2017
      %v2146 = vunpack.c.l.b16 %v2018
      %v2147 = vunpack.c.l.b16 %v2019
      %v2148 = vunpack.c.l.b16 %v2020
      %v2149 = vunpack.c.l.b16 %v2021
      %v2150 = vpack.c.b16 %v2135, %v2134
      %v2151 = vpack.c.b16 %v2137, %v2136
      %v2152 = vpack.c.b16 %v2139, %v2138
      %v2153 = vpack.c.b16 %v2141, %v2140
      %v2154 = vpack.c.b16 %v2143, %v2142
      %v2155 = vpack.c.b16 %v2145, %v2144
      %v2156 = vpack.c.b16 %v2147, %v2146
      %v2157 = vpack.c.b16 %v2149, %v2148
      %2166 = vmatprep.subr.bf16.mxu0 0
      %2167 = vmatpush1.bf16.msra.mxu0 %v2150
      %2168 = vmatprep.subr.bf16.mxu0 0
      %2169 = vmatpush1.bf16.msra.mxu0 %v2151
      %2170 = vmatprep.subr.bf16.mxu0 0
      %2171 = vmatpush1.bf16.msra.mxu0 %v2152
      %2172 = vmatprep.subr.bf16.mxu0 0
      %2173 = vmatpush1.bf16.msra.mxu0 %v2153
      %2174 = vmatprep.subr.bf16.mxu0 0
      %2175 = vmatpush1.bf16.msra.mxu0 %v2154
      %2176 = vmatprep.subr.bf16.mxu0 0
      %2177 = vmatpush1.bf16.msra.mxu0 %v2155
      %2178 = vmatprep.subr.bf16.mxu0 0
      %2179 = vmatpush1.bf16.msra.mxu0 %v2156
      %2180 = vmatprep.subr.bf16.mxu0 0
      %2181 = vmatpush1.bf16.msra.mxu0 %v2157
      %2182 = vmatprep.subr.bf16.mxu0 0
      %2183 = vmatpush1.bf16.msra.mxu0 0
      %2184 = vmatprep.subr.bf16.mxu0 0
      %2185 = vmatpush1.bf16.msra.mxu0 0
      %2186 = vmatprep.subr.bf16.mxu0 0
      %2187 = vmatpush1.bf16.msra.mxu0 0
      %2188 = vmatprep.subr.bf16.mxu0 0
      %2189 = vmatpush1.bf16.msra.mxu0 0
      %2190 = vmatprep.subr.bf16.mxu0 0
      %2191 = vmatpush1.bf16.msra.mxu0 0
      %2192 = vmatprep.subr.bf16.mxu0 0
      %2193 = vmatpush1.bf16.msra.mxu0 0
      %2194 = vmatprep.subr.bf16.mxu0 0
      %2195 = vmatpush1.bf16.msra.mxu0 0
      %2196 = vmatprep.subr.bf16.mxu0 0
      %2197 = vmatpush1.bf16.msra.mxu0 0
      %2198 = vmatprep.mubr.bf16.mxu0 0
      %2199 = vmatmul.mubr.bf16.gmra.mrb[0].mxu0 %v2086
      %v2200 = vpop.f32.mrb[0].mxu0
      %v2201 = vadd.f32 0.0, %v2200
      %v2202 = vpop.f32.mrb[0].mxu0
      %v2203 = vpop.f32.mrb[0].mxu0
      %v2204 = vadd.f32 0.0, %v2203
      %v2205 = vpop.f32.mrb[0].mxu0
      %2206 = vmatprep.mubr.bf16.mxu0 0
      %2207 = vmatmul.mubr.bf16.gmra.mrb[0].mxu0 %v2087
      %v2208 = vpop.f32.mrb[0].mxu0
      %v2209 = vadd.f32 0.0, %v2208
      %v2210 = vpop.f32.mrb[0].mxu0
      %v2211 = vpop.f32.mrb[0].mxu0
      %v2212 = vadd.f32 0.0, %v2211
      %v2213 = vpop.f32.mrb[0].mxu0
      %2214 = vmatprep.mubr.bf16.mxu0 0
      %2215 = vmatmul.mubr.bf16.gmra.mrb[0].mxu0 %v2088
      %v2216 = vpop.f32.mrb[0].mxu0
      %v2217 = vadd.f32 0.0, %v2216
      %v2218 = vpop.f32.mrb[0].mxu0
      %v2219 = vpop.f32.mrb[0].mxu0
      %v2220 = vadd.f32 0.0, %v2219
      %v2221 = vpop.f32.mrb[0].mxu0
      %2222 = vmatprep.mubr.bf16.mxu0 0
      %2223 = vmatmul.mubr.bf16.gmra.mrb[0].mxu0 %v2089
      %v2224 = vpop.f32.mrb[0].mxu0
      %v2225 = vadd.f32 0.0, %v2224
      %v2226 = vpop.f32.mrb[0].mxu0
      %v2227 = vpop.f32.mrb[0].mxu0
      %v2228 = vadd.f32 0.0, %v2227
      %v2229 = vpop.f32.mrb[0].mxu0
      %2230 = vmatprep.mubr.bf16.mxu0 0
      %2231 = vmatmul.mubr.bf16.gmra.mrb[0].mxu0 %v2090
      %v2232 = vpop.f32.mrb[0].mxu0
      %v2233 = vadd.f32 0.0, %v2232
      %v2234 = vpop.f32.mrb[0].mxu0
      %v2235 = vpop.f32.mrb[0].mxu0
      %v2236 = vadd.f32 0.0, %v2235
      %v2237 = vpop.f32.mrb[0].mxu0
      %2238 = vmatprep.mubr.bf16.mxu0 0
      %2239 = vmatmul.mubr.bf16.gmra.mrb[0].mxu0 %v2091
      %v2240 = vpop.f32.mrb[0].mxu0
      %v2241 = vadd.f32 0.0, %v2240
      %v2242 = vpop.f32.mrb[0].mxu0
      %v2243 = vpop.f32.mrb[0].mxu0
      %v2244 = vadd.f32 0.0, %v2243
      %v2245 = vpop.f32.mrb[0].mxu0
      %2246 = vmatprep.mubr.bf16.mxu0 0
      %2247 = vmatmul.mubr.bf16.gmra.mrb[0].mxu0 %v2092
      %v2248 = vpop.f32.mrb[0].mxu0
      %v2249 = vadd.f32 0.0, %v2248
      %v2250 = vpop.f32.mrb[0].mxu0
      %v2251 = vpop.f32.mrb[0].mxu0
      %v2252 = vadd.f32 0.0, %v2251
      %v2253 = vpop.f32.mrb[0].mxu0
      %2254 = vmatprep.mubr.bf16.mxu0 0
      %2255 = vmatmul.mubr.bf16.gmra.mrb[0].mxu0 %v2093
      %v2256 = vpop.f32.mrb[0].mxu0
      %v2257 = vadd.f32 0.0, %v2256
      %v2258 = vpop.f32.mrb[0].mxu0
      %v2259 = vpop.f32.mrb[0].mxu0
      %v2260 = vadd.f32 0.0, %v2259
      %v2261 = vpop.f32.mrb[0].mxu0
      %2262 = vmatprep.mubr.bf16.mxu0 0
      %2263 = vmatmul.mubr.bf16.gmra.mrb[0].mxu0 %v2094
      %v2264 = vpop.f32.mrb[0].mxu0
      %v2265 = vadd.f32 0.0, %v2264
      %v2266 = vpop.f32.mrb[0].mxu0
      %v2267 = vpop.f32.mrb[0].mxu0
      %v2268 = vadd.f32 0.0, %v2267
      %v2269 = vpop.f32.mrb[0].mxu0
      %2270 = vmatprep.mubr.bf16.mxu0 0
      %2271 = vmatmul.mubr.bf16.gmra.mrb[0].mxu0 %v2095
      %v2272 = vpop.f32.mrb[0].mxu0
      %v2273 = vadd.f32 0.0, %v2272
      %v2274 = vpop.f32.mrb[0].mxu0
      %v2275 = vpop.f32.mrb[0].mxu0
      %v2276 = vadd.f32 0.0, %v2275
      %v2277 = vpop.f32.mrb[0].mxu0
      %2278 = vmatprep.mubr.bf16.mxu0 0
      %2279 = vmatmul.mubr.bf16.gmra.mrb[0].mxu0 %v2096
      %v2280 = vpop.f32.mrb[0].mxu0
      %v2281 = vadd.f32 0.0, %v2280
      %v2282 = vpop.f32.mrb[0].mxu0
      %v2283 = vpop.f32.mrb[0].mxu0
      %v2284 = vadd.f32 0.0, %v2283
      %v2285 = vpop.f32.mrb[0].mxu0
      %2286 = vmatprep.mubr.bf16.mxu0 0
      %2287 = vmatmul.mubr.bf16.gmra.mrb[0].mxu0 %v2097
      %v2288 = vpop.f32.mrb[0].mxu0
      %v2289 = vadd.f32 0.0, %v2288
      %v2290 = vpop.f32.mrb[0].mxu0
      %v2291 = vpop.f32.mrb[0].mxu0
      %v2292 = vadd.f32 0.0, %v2291
      %v2293 = vpop.f32.mrb[0].mxu0
      %2294 = vmatprep.mubr.bf16.mxu0 0
      %2295 = vmatmul.mubr.bf16.gmra.mrb[0].mxu0 %v2098
      %v2296 = vpop.f32.mrb[0].mxu0
      %v2297 = vadd.f32 0.0, %v2296
      %v2298 = vpop.f32.mrb[0].mxu0
      %v2299 = vpop.f32.mrb[0].mxu0
      %v2300 = vadd.f32 0.0, %v2299
      %v2301 = vpop.f32.mrb[0].mxu0
      %2302 = vmatprep.mubr.bf16.mxu0 0
      %2303 = vmatmul.mubr.bf16.gmra.mrb[0].mxu0 %v2099
      %v2304 = vpop.f32.mrb[0].mxu0
      %v2305 = vadd.f32 0.0, %v2304
      %v2306 = vpop.f32.mrb[0].mxu0
      %v2307 = vpop.f32.mrb[0].mxu0
      %v2308 = vadd.f32 0.0, %v2307
      %v2309 = vpop.f32.mrb[0].mxu0
      %2310 = vmatprep.mubr.bf16.mxu0 0
      %2311 = vmatmul.mubr.bf16.gmra.mrb[0].mxu0 %v2100
      %v2312 = vpop.f32.mrb[0].mxu0
      %v2313 = vadd.f32 0.0, %v2312
      %v2314 = vpop.f32.mrb[0].mxu0
      %v2315 = vpop.f32.mrb[0].mxu0
      %v2316 = vadd.f32 0.0, %v2315
      %v2317 = vpop.f32.mrb[0].mxu0
      %2318 = vmatprep.mubr.bf16.mxu0 0
      %2319 = vmatmul.mubr.bf16.gmra.mrb[0].mxu0 %v2101
      %v2320 = vpop.f32.mrb[0].mxu0
      %v2321 = vadd.f32 0.0, %v2320
      %v2322 = vpop.f32.mrb[0].mxu0
      %v2323 = vpop.f32.mrb[0].mxu0
      %v2324 = vadd.f32 0.0, %v2323
      %v2325 = vpop.f32.mrb[0].mxu0
      %2326 = vdwg.mxu0
      %v2327 = vadd.f32 %v1938, %v2201
      %v2328 = vadd.f32 %v1939, %v2204
      %v2329 = vadd.f32 %v1940, %v2209
      %v2330 = vadd.f32 %v1941, %v2212
      %v2331 = vadd.f32 %v1942, %v2217
      %v2332 = vadd.f32 %v1943, %v2220
      %v2333 = vadd.f32 %v1944, %v2225
      %v2334 = vadd.f32 %v1945, %v2228
      %v2335 = vadd.f32 %v1946, %v2233
      %v2336 = vadd.f32 %v1947, %v2236
      %v2337 = vadd.f32 %v1948, %v2241
      %v2338 = vadd.f32 %v1949, %v2244
      %v2339 = vadd.f32 %v1950, %v2249
      %v2340 = vadd.f32 %v1951, %v2252
      %v2341 = vadd.f32 %v1952, %v2257
      %v2342 = vadd.f32 %v1953, %v2260
      %v2343 = vadd.f32 %v1954, %v2265
      %v2344 = vadd.f32 %v1955, %v2268
      %v2345 = vadd.f32 %v1956, %v2273
      %v2346 = vadd.f32 %v1957, %v2276
      %v2347 = vadd.f32 %v1958, %v2281
      %v2348 = vadd.f32 %v1959, %v2284
      %v2349 = vadd.f32 %v1960, %v2289
      %v2350 = vadd.f32 %v1961, %v2292
      %v2351 = vadd.f32 %v1962, %v2297
      %v2352 = vadd.f32 %v1963, %v2300
      %v2353 = vadd.f32 %v1964, %v2305
      %v2354 = vadd.f32 %v1965, %v2308
      %v2355 = vadd.f32 %v1966, %v2313
      %v2356 = vadd.f32 %v1967, %v2316
      %v2357 = vadd.f32 %v1968, %v2321
      %v2358 = vadd.f32 %v1969, %v2324
      %v2359 = vld [vmem:[%s1973] sm:$0xf]
      %v2360 = vld [vmem:[%s1973 + $0x4] sm:$0xf]
      %v2361 = vld [vmem:[%s1973 + $0x8] sm:$0x1]
      %v2362 = vld [vmem:[%s1973 + $0xc] sm:$0xf]
      %v2363 = vld [vmem:[%s1973 + $0x10] sm:$0xf]
      %v2364 = vld [vmem:[%s1973 + $0x14] sm:$0x1]
      %v2365 = vld [vmem:[%s1973 + $0x18] sm:$0xf]
      %v2366 = vld [vmem:[%s1973 + $0x1c] sm:$0xf]
      %v2367 = vld [vmem:[%s1973 + $0x20] sm:$0x1]
      %v2368 = vld [vmem:[%s1973 + $0x24] sm:$0xf]
      %v2369 = vld [vmem:[%s1973 + $0x28] sm:$0xf]
      %v2370 = vld [vmem:[%s1973 + $0x2c] sm:$0x1]
      %v2371 = vld [vmem:[%s1973 + $0x30] sm:$0xf]
      %v2372 = vld [vmem:[%s1973 + $0x34] sm:$0xf]
      %v2373 = vld [vmem:[%s1973 + $0x38] sm:$0x1]
      %v2374 = vld [vmem:[%s1973 + $0x3c] sm:$0xf]
      %v2375 = vld [vmem:[%s1973 + $0x40] sm:$0xf]
      %v2376 = vld [vmem:[%s1973 + $0x44] sm:$0x1]
      %v2377 = vld [vmem:[%s1973 + $0x48] sm:$0xf]
      %v2378 = vld [vmem:[%s1973 + $0x4c] sm:$0xf]
      %v2379 = vld [vmem:[%s1973 + $0x50] sm:$0x1]
      %v2380 = vld [vmem:[%s1973 + $0x54] sm:$0xf]
      %v2381 = vld [vmem:[%s1973 + $0x58] sm:$0xf]
      %v2382 = vld [vmem:[%s1973 + $0x5c] sm:$0x1]
      %v2383 = vld [vmem:[%s1973 + $0x60] sm:$0xf]
      %v2384 = vld [vmem:[%s1973 + $0x64] sm:$0xf]
      %v2385 = vld [vmem:[%s1973 + $0x68] sm:$0x1]
      %v2386 = vld [vmem:[%s1973 + $0x6c] sm:$0xf]
      %v2387 = vld [vmem:[%s1973 + $0x70] sm:$0xf]
      %v2388 = vld [vmem:[%s1973 + $0x74] sm:$0x1]
      %v2389 = vld [vmem:[%s1973 + $0x78] sm:$0xf]
      %v2390 = vld [vmem:[%s1973 + $0x7c] sm:$0xf]
      %v2391 = vld [vmem:[%s1973 + $0x80] sm:$0x1]
      %v2392 = vld [vmem:[%s1973 + $0x84] sm:$0xf]
      %v2393 = vld [vmem:[%s1973 + $0x88] sm:$0xf]
      %v2394 = vld [vmem:[%s1973 + $0x8c] sm:$0x1]
      %v2395 = vld [vmem:[%s1973 + $0x90] sm:$0xf]
      %v2396 = vld [vmem:[%s1973 + $0x94] sm:$0xf]
      %v2397 = vld [vmem:[%s1973 + $0x98] sm:$0x1]
      %v2398 = vld [vmem:[%s1973 + $0x9c] sm:$0xf]
      %v2399 = vld [vmem:[%s1973 + $0xa0] sm:$0xf]
      %v2400 = vld [vmem:[%s1973 + $0xa4] sm:$0x1]
      %v2401 = vld [vmem:[%s1973 + $0xa8] sm:$0xf]
      %v2402 = vld [vmem:[%s1973 + $0xac] sm:$0xf]
      %v2403 = vld [vmem:[%s1973 + $0xb0] sm:$0x1]
      %v2404 = vld [vmem:[%s1973 + $0xb4] sm:$0xf]
      %v2405 = vld [vmem:[%s1973 + $0xb8] sm:$0xf]
      %v2406 = vld [vmem:[%s1973 + $0xbc] sm:$0x1]
      %v2408 = vshrl.u32 %v2359, 16
      %v2410 = vrot.slane %v2408, 4
      %v2411 = vshll.u32 %v2359, 16
      %v2413 = vrot.slane %v2411, 5
      %v2414 = vor.u32 %v2410, %v2413
      %v2415 = vrot.slane %v2414, 4
      %v2417 = vshll.u32 %v2360, 16
      %v2419 = vrot.slane %v2417, 5
      %v2420 = vsel %vm507, %v2415, %v2419
      %v2421 = vshrl.u32 %v2360, 16
      %v2423 = vrot.slane %v2421, 4
      %v2424 = vor.u32 %v2423, %v2419
      %v2425 = vrot.slane %v2424, 4
      %v2427 = vshll.u32 %v2361, 16
      %v2429 = vrot.slane %v2427, 5
      %v2430 = vsel %vm507, %v2425, %v2429
      %v2432 = vshrl.u32 %v2362, 16
      %v2434 = vrot.slane %v2432, 4
      %v2435 = vshll.u32 %v2362, 16
      %v2437 = vrot.slane %v2435, 5
      %v2438 = vor.u32 %v2434, %v2437
      %v2439 = vrot.slane %v2438, 4
      %v2441 = vshll.u32 %v2363, 16
      %v2443 = vrot.slane %v2441, 5
      %v2444 = vsel %vm507, %v2439, %v2443
      %v2445 = vshrl.u32 %v2363, 16
      %v2447 = vrot.slane %v2445, 4
      %v2448 = vor.u32 %v2447, %v2443
      %v2449 = vrot.slane %v2448, 4
      %v2451 = vshll.u32 %v2364, 16
      %v2453 = vrot.slane %v2451, 5
      %v2454 = vsel %vm507, %v2449, %v2453
      %v2456 = vshrl.u32 %v2365, 16
      %v2458 = vrot.slane %v2456, 4
      %v2459 = vshll.u32 %v2365, 16
      %v2461 = vrot.slane %v2459, 5
      %v2462 = vor.u32 %v2458, %v2461
      %v2463 = vrot.slane %v2462, 4
      %v2465 = vshll.u32 %v2366, 16
      %v2467 = vrot.slane %v2465, 5
      %v2468 = vsel %vm507, %v2463, %v2467
      %v2469 = vshrl.u32 %v2366, 16
      %v2471 = vrot.slane %v2469, 4
      %v2472 = vor.u32 %v2471, %v2467
      %v2473 = vrot.slane %v2472, 4
      %v2475 = vshll.u32 %v2367, 16
      %v2477 = vrot.slane %v2475, 5
      %v2478 = vsel %vm507, %v2473, %v2477
      %v2480 = vshrl.u32 %v2368, 16
      %v2482 = vrot.slane %v2480, 4
      %v2483 = vshll.u32 %v2368, 16
      %v2485 = vrot.slane %v2483, 5
      %v2486 = vor.u32 %v2482, %v2485
      %v2487 = vrot.slane %v2486, 4
      %v2489 = vshll.u32 %v2369, 16
      %v2491 = vrot.slane %v2489, 5
      %v2492 = vsel %vm507, %v2487, %v2491
      %v2493 = vshrl.u32 %v2369, 16
      %v2495 = vrot.slane %v2493, 4
      %v2496 = vor.u32 %v2495, %v2491
      %v2497 = vrot.slane %v2496, 4
      %v2499 = vshll.u32 %v2370, 16
      %v2501 = vrot.slane %v2499, 5
      %v2502 = vsel %vm507, %v2497, %v2501
      %v2504 = vshrl.u32 %v2371, 16
      %v2506 = vrot.slane %v2504, 4
      %v2507 = vshll.u32 %v2371, 16
      %v2509 = vrot.slane %v2507, 5
      %v2510 = vor.u32 %v2506, %v2509
      %v2511 = vrot.slane %v2510, 4
      %v2513 = vshll.u32 %v2372, 16
      %v2515 = vrot.slane %v2513, 5
      %v2516 = vsel %vm507, %v2511, %v2515
      %v2517 = vshrl.u32 %v2372, 16
      %v2519 = vrot.slane %v2517, 4
      %v2520 = vor.u32 %v2519, %v2515
      %v2521 = vrot.slane %v2520, 4
      %v2523 = vshll.u32 %v2373, 16
      %v2525 = vrot.slane %v2523, 5
      %v2526 = vsel %vm507, %v2521, %v2525
      %v2528 = vshrl.u32 %v2374, 16
      %v2530 = vrot.slane %v2528, 4
      %v2531 = vshll.u32 %v2374, 16
      %v2533 = vrot.slane %v2531, 5
      %v2534 = vor.u32 %v2530, %v2533
      %v2535 = vrot.slane %v2534, 4
      %v2537 = vshll.u32 %v2375, 16
      %v2539 = vrot.slane %v2537, 5
      %v2540 = vsel %vm507, %v2535, %v2539
      %v2541 = vshrl.u32 %v2375, 16
      %v2543 = vrot.slane %v2541, 4
      %v2544 = vor.u32 %v2543, %v2539
      %v2545 = vrot.slane %v2544, 4
      %v2547 = vshll.u32 %v2376, 16
      %v2549 = vrot.slane %v2547, 5
      %v2550 = vsel %vm507, %v2545, %v2549
      %v2552 = vshrl.u32 %v2377, 16
      %v2554 = vrot.slane %v2552, 4
      %v2555 = vshll.u32 %v2377, 16
      %v2557 = vrot.slane %v2555, 5
      %v2558 = vor.u32 %v2554, %v2557
      %v2559 = vrot.slane %v2558, 4
      %v2561 = vshll.u32 %v2378, 16
      %v2563 = vrot.slane %v2561, 5
      %v2564 = vsel %vm507, %v2559, %v2563
      %v2565 = vshrl.u32 %v2378, 16
      %v2567 = vrot.slane %v2565, 4
      %v2568 = vor.u32 %v2567, %v2563
      %v2569 = vrot.slane %v2568, 4
      %v2571 = vshll.u32 %v2379, 16
      %v2573 = vrot.slane %v2571, 5
      %v2574 = vsel %vm507, %v2569, %v2573
      %v2576 = vshrl.u32 %v2380, 16
      %v2578 = vrot.slane %v2576, 4
      %v2579 = vshll.u32 %v2380, 16
      %v2581 = vrot.slane %v2579, 5
      %v2582 = vor.u32 %v2578, %v2581
      %v2583 = vrot.slane %v2582, 4
      %v2585 = vshll.u32 %v2381, 16
      %v2587 = vrot.slane %v2585, 5
      %v2588 = vsel %vm507, %v2583, %v2587
      %v2589 = vshrl.u32 %v2381, 16
      %v2591 = vrot.slane %v2589, 4
      %v2592 = vor.u32 %v2591, %v2587
      %v2593 = vrot.slane %v2592, 4
      %v2595 = vshll.u32 %v2382, 16
      %v2597 = vrot.slane %v2595, 5
      %v2598 = vsel %vm507, %v2593, %v2597
      %v2600 = vshrl.u32 %v2383, 16
      %v2602 = vrot.slane %v2600, 4
      %v2603 = vshll.u32 %v2383, 16
      %v2605 = vrot.slane %v2603, 5
      %v2606 = vor.u32 %v2602, %v2605
      %v2607 = vrot.slane %v2606, 4
      %v2609 = vshll.u32 %v2384, 16
      %v2611 = vrot.slane %v2609, 5
      %v2612 = vsel %vm507, %v2607, %v2611
      %v2613 = vshrl.u32 %v2384, 16
      %v2615 = vrot.slane %v2613, 4
      %v2616 = vor.u32 %v2615, %v2611
      %v2617 = vrot.slane %v2616, 4
      %v2619 = vshll.u32 %v2385, 16
      %v2621 = vrot.slane %v2619, 5
      %v2622 = vsel %vm507, %v2617, %v2621
      %v2624 = vshrl.u32 %v2386, 16
      %v2626 = vrot.slane %v2624, 4
      %v2627 = vshll.u32 %v2386, 16
      %v2629 = vrot.slane %v2627, 5
      %v2630 = vor.u32 %v2626, %v2629
      %v2631 = vrot.slane %v2630, 4
      %v2633 = vshll.u32 %v2387, 16
      %v2635 = vrot.slane %v2633, 5
      %v2636 = vsel %vm507, %v2631, %v2635
      %v2637 = vshrl.u32 %v2387, 16
      %v2639 = vrot.slane %v2637, 4
      %v2640 = vor.u32 %v2639, %v2635
      %v2641 = vrot.slane %v2640, 4
      %v2643 = vshll.u32 %v2388, 16
      %v2645 = vrot.slane %v2643, 5
      %v2646 = vsel %vm507, %v2641, %v2645
      %v2648 = vshrl.u32 %v2389, 16
      %v2650 = vrot.slane %v2648, 4
      %v2651 = vshll.u32 %v2389, 16
      %v2653 = vrot.slane %v2651, 5
      %v2654 = vor.u32 %v2650, %v2653
      %v2655 = vrot.slane %v2654, 4
      %v2657 = vshll.u32 %v2390, 16
      %v2659 = vrot.slane %v2657, 5
      %v2660 = vsel %vm507, %v2655, %v2659
      %v2661 = vshrl.u32 %v2390, 16
      %v2663 = vrot.slane %v2661, 4
      %v2664 = vor.u32 %v2663, %v2659
      %v2665 = vrot.slane %v2664, 4
      %v2667 = vshll.u32 %v2391, 16
      %v2669 = vrot.slane %v2667, 5
      %v2670 = vsel %vm507, %v2665, %v2669
      %v2672 = vshrl.u32 %v2392, 16
      %v2674 = vrot.slane %v2672, 4
      %v2675 = vshll.u32 %v2392, 16
      %v2677 = vrot.slane %v2675, 5
      %v2678 = vor.u32 %v2674, %v2677
      %v2679 = vrot.slane %v2678, 4
      %v2681 = vshll.u32 %v2393, 16
      %v2683 = vrot.slane %v2681, 5
      %v2684 = vsel %vm507, %v2679, %v2683
      %v2685 = vshrl.u32 %v2393, 16
      %v2687 = vrot.slane %v2685, 4
      %v2688 = vor.u32 %v2687, %v2683
      %v2689 = vrot.slane %v2688, 4
      %v2691 = vshll.u32 %v2394, 16
      %v2693 = vrot.slane %v2691, 5
      %v2694 = vsel %vm507, %v2689, %v2693
      %v2696 = vshrl.u32 %v2395, 16
      %v2698 = vrot.slane %v2696, 4
      %v2699 = vshll.u32 %v2395, 16
      %v2701 = vrot.slane %v2699, 5
      %v2702 = vor.u32 %v2698, %v2701
      %v2703 = vrot.slane %v2702, 4
      %v2705 = vshll.u32 %v2396, 16
      %v2707 = vrot.slane %v2705, 5
      %v2708 = vsel %vm507, %v2703, %v2707
      %v2709 = vshrl.u32 %v2396, 16
      %v2711 = vrot.slane %v2709, 4
      %v2712 = vor.u32 %v2711, %v2707
      %v2713 = vrot.slane %v2712, 4
      %v2715 = vshll.u32 %v2397, 16
      %v2717 = vrot.slane %v2715, 5
      %v2718 = vsel %vm507, %v2713, %v2717
      %v2720 = vshrl.u32 %v2398, 16
      %v2722 = vrot.slane %v2720, 4
      %v2723 = vshll.u32 %v2398, 16
      %v2725 = vrot.slane %v2723, 5
      %v2726 = vor.u32 %v2722, %v2725
      %v2727 = vrot.slane %v2726, 4
      %v2729 = vshll.u32 %v2399, 16
      %v2731 = vrot.slane %v2729, 5
      %v2732 = vsel %vm507, %v2727, %v2731
      %v2733 = vshrl.u32 %v2399, 16
      %v2735 = vrot.slane %v2733, 4
      %v2736 = vor.u32 %v2735, %v2731
      %v2737 = vrot.slane %v2736, 4
      %v2739 = vshll.u32 %v2400, 16
      %v2741 = vrot.slane %v2739, 5
      %v2742 = vsel %vm507, %v2737, %v2741
      %v2744 = vshrl.u32 %v2401, 16
      %v2746 = vrot.slane %v2744, 4
      %v2747 = vshll.u32 %v2401, 16
      %v2749 = vrot.slane %v2747, 5
      %v2750 = vor.u32 %v2746, %v2749
      %v2751 = vrot.slane %v2750, 4
      %v2753 = vshll.u32 %v2402, 16
      %v2755 = vrot.slane %v2753, 5
      %v2756 = vsel %vm507, %v2751, %v2755
      %v2757 = vshrl.u32 %v2402, 16
      %v2759 = vrot.slane %v2757, 4
      %v2760 = vor.u32 %v2759, %v2755
      %v2761 = vrot.slane %v2760, 4
      %v2763 = vshll.u32 %v2403, 16
      %v2765 = vrot.slane %v2763, 5
      %v2766 = vsel %vm507, %v2761, %v2765
      %v2768 = vshrl.u32 %v2404, 16
      %v2770 = vrot.slane %v2768, 4
      %v2771 = vshll.u32 %v2404, 16
      %v2773 = vrot.slane %v2771, 5
      %v2774 = vor.u32 %v2770, %v2773
      %v2775 = vrot.slane %v2774, 4
      %v2777 = vshll.u32 %v2405, 16
      %v2779 = vrot.slane %v2777, 5
      %v2780 = vsel %vm507, %v2775, %v2779
      %v2781 = vshrl.u32 %v2405, 16
      %v2783 = vrot.slane %v2781, 4
      %v2784 = vor.u32 %v2783, %v2779
      %v2785 = vrot.slane %v2784, 4
      %v2787 = vshll.u32 %v2406, 16
      %v2789 = vrot.slane %v2787, 5
      %v2790 = vsel %vm507, %v2785, %v2789
      %v2791 = vld [vmem:[%s1 + $0x100] sm:$0xf]
      %v2792 = vld [vmem:[%s1 + $0x104] sm:$0xf]
      %v2793 = vld [vmem:[%s1 + $0x108] sm:$0xf]
      %v2794 = vld [vmem:[%s1 + $0x10c] sm:$0xf]
      %v2795 = vld [vmem:[%s1 + $0x110] sm:$0xf]
      %v2796 = vld [vmem:[%s1 + $0x114] sm:$0xf]
      %v2797 = vld [vmem:[%s1 + $0x118] sm:$0xf]
      %v2798 = vld [vmem:[%s1 + $0x11c] sm:$0xf]
      %v2799 = vld [vmem:[%s1 + $0x120] sm:$0xf]
      %v2800 = vld [vmem:[%s1 + $0x124] sm:$0xf]
      %v2801 = vld [vmem:[%s1 + $0x128] sm:$0xf]
      %v2802 = vld [vmem:[%s1 + $0x12c] sm:$0xf]
      %v2803 = vld [vmem:[%s1 + $0x130] sm:$0xf]
      %v2804 = vld [vmem:[%s1 + $0x134] sm:$0xf]
      %v2805 = vld [vmem:[%s1 + $0x138] sm:$0xf]
      %v2806 = vld [vmem:[%s1 + $0x13c] sm:$0xf]
      %v2807 = vunpack.c.l.b16 %v2420
      %v2808 = vunpack.c.l.b16 %v2430
      %v2809 = vunpack.c.l.b16 %v2444
      %v2810 = vunpack.c.l.b16 %v2454
      %v2811 = vunpack.c.l.b16 %v2468
      %v2812 = vunpack.c.l.b16 %v2478
      %v2813 = vunpack.c.l.b16 %v2492
      %v2814 = vunpack.c.l.b16 %v2502
      %v2815 = vunpack.c.l.b16 %v2516
      %v2816 = vunpack.c.l.b16 %v2526
      %v2817 = vunpack.c.l.b16 %v2540
      %v2818 = vunpack.c.l.b16 %v2550
      %v2819 = vunpack.c.l.b16 %v2564
      %v2820 = vunpack.c.l.b16 %v2574
      %v2821 = vunpack.c.l.b16 %v2588
      %v2822 = vunpack.c.l.b16 %v2598
      %v2823 = vunpack.c.l.b16 %v2612
      %v2824 = vunpack.c.l.b16 %v2622
      %v2825 = vunpack.c.l.b16 %v2636
      %v2826 = vunpack.c.l.b16 %v2646
      %v2827 = vunpack.c.l.b16 %v2660
      %v2828 = vunpack.c.l.b16 %v2670
      %v2829 = vunpack.c.l.b16 %v2684
      %v2830 = vunpack.c.l.b16 %v2694
      %v2831 = vunpack.c.l.b16 %v2708
      %v2832 = vunpack.c.l.b16 %v2718
      %v2833 = vunpack.c.l.b16 %v2732
      %v2834 = vunpack.c.l.b16 %v2742
      %v2835 = vunpack.c.l.b16 %v2756
      %v2836 = vunpack.c.l.b16 %v2766
      %v2837 = vunpack.c.l.b16 %v2780
      %v2838 = vunpack.c.l.b16 %v2790
      %v2839 = vpack.c.b16 %v2808, %v2807
      %v2840 = vpack.c.b16 %v2810, %v2809
      %v2841 = vpack.c.b16 %v2812, %v2811
      %v2842 = vpack.c.b16 %v2814, %v2813
      %v2843 = vpack.c.b16 %v2816, %v2815
      %v2844 = vpack.c.b16 %v2818, %v2817
      %v2845 = vpack.c.b16 %v2820, %v2819
      %v2846 = vpack.c.b16 %v2822, %v2821
      %v2847 = vpack.c.b16 %v2824, %v2823
      %v2848 = vpack.c.b16 %v2826, %v2825
      %v2849 = vpack.c.b16 %v2828, %v2827
      %v2850 = vpack.c.b16 %v2830, %v2829
      %v2851 = vpack.c.b16 %v2832, %v2831
      %v2852 = vpack.c.b16 %v2834, %v2833
      %v2853 = vpack.c.b16 %v2836, %v2835
      %v2854 = vpack.c.b16 %v2838, %v2837
      %v2887 = vunpack.c.l.b16 %v2791
      %v2888 = vunpack.c.l.b16 %v2792
      %v2889 = vunpack.c.l.b16 %v2793
      %v2890 = vunpack.c.l.b16 %v2794
      %v2891 = vunpack.c.l.b16 %v2795
      %v2892 = vunpack.c.l.b16 %v2796
      %v2893 = vunpack.c.l.b16 %v2797
      %v2894 = vunpack.c.l.b16 %v2798
      %v2895 = vunpack.c.l.b16 %v2799
      %v2896 = vunpack.c.l.b16 %v2800
      %v2897 = vunpack.c.l.b16 %v2801
      %v2898 = vunpack.c.l.b16 %v2802
      %v2899 = vunpack.c.l.b16 %v2803
      %v2900 = vunpack.c.l.b16 %v2804
      %v2901 = vunpack.c.l.b16 %v2805
      %v2902 = vunpack.c.l.b16 %v2806
      %v2903 = vpack.c.b16 %v2888, %v2887
      %v2904 = vpack.c.b16 %v2890, %v2889
      %v2905 = vpack.c.b16 %v2892, %v2891
      %v2906 = vpack.c.b16 %v2894, %v2893
      %v2907 = vpack.c.b16 %v2896, %v2895
      %v2908 = vpack.c.b16 %v2898, %v2897
      %v2909 = vpack.c.b16 %v2900, %v2899
      %v2910 = vpack.c.b16 %v2902, %v2901
      %2919 = vmatprep.subr.bf16.mxu0 0
      %2920 = vmatpush1.bf16.msra.mxu0 %v2903
      %2921 = vmatprep.subr.bf16.mxu0 0
      %2922 = vmatpush1.bf16.msra.mxu0 %v2904
      %2923 = vmatprep.subr.bf16.mxu0 0
      %2924 = vmatpush1.bf16.msra.mxu0 %v2905
      %2925 = vmatprep.subr.bf16.mxu0 0
      %2926 = vmatpush1.bf16.msra.mxu0 %v2906
      %2927 = vmatprep.subr.bf16.mxu0 0
      %2928 = vmatpush1.bf16.msra.mxu0 %v2907
      %2929 = vmatprep.subr.bf16.mxu0 0
      %2930 = vmatpush1.bf16.msra.mxu0 %v2908
      %2931 = vmatprep.subr.bf16.mxu0 0
      %2932 = vmatpush1.bf16.msra.mxu0 %v2909
      %2933 = vmatprep.subr.bf16.mxu0 0
      %2934 = vmatpush1.bf16.msra.mxu0 %v2910
      %2935 = vmatprep.subr.bf16.mxu0 0
      %2936 = vmatpush1.bf16.msra.mxu0 0
      %2937 = vmatprep.subr.bf16.mxu0 0
      %2938 = vmatpush1.bf16.msra.mxu0 0
      %2939 = vmatprep.subr.bf16.mxu0 0
      %2940 = vmatpush1.bf16.msra.mxu0 0
      %2941 = vmatprep.subr.bf16.mxu0 0
      %2942 = vmatpush1.bf16.msra.mxu0 0
      %2943 = vmatprep.subr.bf16.mxu0 0
      %2944 = vmatpush1.bf16.msra.mxu0 0
      %2945 = vmatprep.subr.bf16.mxu0 0
      %2946 = vmatpush1.bf16.msra.mxu0 0
      %2947 = vmatprep.subr.bf16.mxu0 0
      %2948 = vmatpush1.bf16.msra.mxu0 0
      %2949 = vmatprep.subr.bf16.mxu0 0
      %2950 = vmatpush1.bf16.msra.mxu0 0
      %2951 = vmatprep.mubr.bf16.mxu0 0
      %2952 = vmatmul.mubr.bf16.gmra.mrb[0].mxu0 %v2839
      %v2953 = vpop.f32.mrb[0].mxu0
      %v2954 = vadd.f32 0.0, %v2953
      %v2955 = vpop.f32.mrb[0].mxu0
      %v2956 = vpop.f32.mrb[0].mxu0
      %v2957 = vadd.f32 0.0, %v2956
      %v2958 = vpop.f32.mrb[0].mxu0
      %2959 = vmatprep.mubr.bf16.mxu0 0
      %2960 = vmatmul.mubr.bf16.gmra.mrb[0].mxu0 %v2840
      %v2961 = vpop.f32.mrb[0].mxu0
      %v2962 = vadd.f32 0.0, %v2961
      %v2963 = vpop.f32.mrb[0].mxu0
      %v2964 = vpop.f32.mrb[0].mxu0
      %v2965 = vadd.f32 0.0, %v2964
      %v2966 = vpop.f32.mrb[0].mxu0
      %2967 = vmatprep.mubr.bf16.mxu0 0
      %2968 = vmatmul.mubr.bf16.gmra.mrb[0].mxu0 %v2841
      %v2969 = vpop.f32.mrb[0].mxu0
      %v2970 = vadd.f32 0.0, %v2969
      %v2971 = vpop.f32.mrb[0].mxu0
      %v2972 = vpop.f32.mrb[0].mxu0
      %v2973 = vadd.f32 0.0, %v2972
      %v2974 = vpop.f32.mrb[0].mxu0
      %2975 = vmatprep.mubr.bf16.mxu0 0
      %2976 = vmatmul.mubr.bf16.gmra.mrb[0].mxu0 %v2842
      %v2977 = vpop.f32.mrb[0].mxu0
      %v2978 = vadd.f32 0.0, %v2977
      %v2979 = vpop.f32.mrb[0].mxu0
      %v2980 = vpop.f32.mrb[0].mxu0
      %v2981 = vadd.f32 0.0, %v2980
      %v2982 = vpop.f32.mrb[0].mxu0
      %2983 = vmatprep.mubr.bf16.mxu0 0
      %2984 = vmatmul.mubr.bf16.gmra.mrb[0].mxu0 %v2843
      %v2985 = vpop.f32.mrb[0].mxu0
      %v2986 = vadd.f32 0.0, %v2985
      %v2987 = vpop.f32.mrb[0].mxu0
      %v2988 = vpop.f32.mrb[0].mxu0
      %v2989 = vadd.f32 0.0, %v2988
      %v2990 = vpop.f32.mrb[0].mxu0
      %2991 = vmatprep.mubr.bf16.mxu0 0
      %2992 = vmatmul.mubr.bf16.gmra.mrb[0].mxu0 %v2844
      %v2993 = vpop.f32.mrb[0].mxu0
      %v2994 = vadd.f32 0.0, %v2993
      %v2995 = vpop.f32.mrb[0].mxu0
      %v2996 = vpop.f32.mrb[0].mxu0
      %v2997 = vadd.f32 0.0, %v2996
      %v2998 = vpop.f32.mrb[0].mxu0
      %2999 = vmatprep.mubr.bf16.mxu0 0
      %3000 = vmatmul.mubr.bf16.gmra.mrb[0].mxu0 %v2845
      %v3001 = vpop.f32.mrb[0].mxu0
      %v3002 = vadd.f32 0.0, %v3001
      %v3003 = vpop.f32.mrb[0].mxu0
      %v3004 = vpop.f32.mrb[0].mxu0
      %v3005 = vadd.f32 0.0, %v3004
      %v3006 = vpop.f32.mrb[0].mxu0
      %3007 = vmatprep.mubr.bf16.mxu0 0
      %3008 = vmatmul.mubr.bf16.gmra.mrb[0].mxu0 %v2846
      %v3009 = vpop.f32.mrb[0].mxu0
      %v3010 = vadd.f32 0.0, %v3009
      %v3011 = vpop.f32.mrb[0].mxu0
      %v3012 = vpop.f32.mrb[0].mxu0
      %v3013 = vadd.f32 0.0, %v3012
      %v3014 = vpop.f32.mrb[0].mxu0
      %3015 = vmatprep.mubr.bf16.mxu0 0
      %3016 = vmatmul.mubr.bf16.gmra.mrb[0].mxu0 %v2847
      %v3017 = vpop.f32.mrb[0].mxu0
      %v3018 = vadd.f32 0.0, %v3017
      %v3019 = vpop.f32.mrb[0].mxu0
      %v3020 = vpop.f32.mrb[0].mxu0
      %v3021 = vadd.f32 0.0, %v3020
      %v3022 = vpop.f32.mrb[0].mxu0
      %3023 = vmatprep.mubr.bf16.mxu0 0
      %3024 = vmatmul.mubr.bf16.gmra.mrb[0].mxu0 %v2848
      %v3025 = vpop.f32.mrb[0].mxu0
      %v3026 = vadd.f32 0.0, %v3025
      %v3027 = vpop.f32.mrb[0].mxu0
      %v3028 = vpop.f32.mrb[0].mxu0
      %v3029 = vadd.f32 0.0, %v3028
      %v3030 = vpop.f32.mrb[0].mxu0
      %3031 = vmatprep.mubr.bf16.mxu0 0
      %3032 = vmatmul.mubr.bf16.gmra.mrb[0].mxu0 %v2849
      %v3033 = vpop.f32.mrb[0].mxu0
      %v3034 = vadd.f32 0.0, %v3033
      %v3035 = vpop.f32.mrb[0].mxu0
      %v3036 = vpop.f32.mrb[0].mxu0
      %v3037 = vadd.f32 0.0, %v3036
      %v3038 = vpop.f32.mrb[0].mxu0
      %3039 = vmatprep.mubr.bf16.mxu0 0
      %3040 = vmatmul.mubr.bf16.gmra.mrb[0].mxu0 %v2850
      %v3041 = vpop.f32.mrb[0].mxu0
      %v3042 = vadd.f32 0.0, %v3041
      %v3043 = vpop.f32.mrb[0].mxu0
      %v3044 = vpop.f32.mrb[0].mxu0
      %v3045 = vadd.f32 0.0, %v3044
      %v3046 = vpop.f32.mrb[0].mxu0
      %3047 = vmatprep.mubr.bf16.mxu0 0
      %3048 = vmatmul.mubr.bf16.gmra.mrb[0].mxu0 %v2851
      %v3049 = vpop.f32.mrb[0].mxu0
      %v3050 = vadd.f32 0.0, %v3049
      %v3051 = vpop.f32.mrb[0].mxu0
      %v3052 = vpop.f32.mrb[0].mxu0
      %v3053 = vadd.f32 0.0, %v3052
      %v3054 = vpop.f32.mrb[0].mxu0
      %3055 = vmatprep.mubr.bf16.mxu0 0
      %3056 = vmatmul.mubr.bf16.gmra.mrb[0].mxu0 %v2852
      %v3057 = vpop.f32.mrb[0].mxu0
      %v3058 = vadd.f32 0.0, %v3057
      %v3059 = vpop.f32.mrb[0].mxu0
      %v3060 = vpop.f32.mrb[0].mxu0
      %v3061 = vadd.f32 0.0, %v3060
      %v3062 = vpop.f32.mrb[0].mxu0
      %3063 = vmatprep.mubr.bf16.mxu0 0
      %3064 = vmatmul.mubr.bf16.gmra.mrb[0].mxu0 %v2853
      %v3065 = vpop.f32.mrb[0].mxu0
      %v3066 = vadd.f32 0.0, %v3065
      %v3067 = vpop.f32.mrb[0].mxu0
      %v3068 = vpop.f32.mrb[0].mxu0
      %v3069 = vadd.f32 0.0, %v3068
      %v3070 = vpop.f32.mrb[0].mxu0
      %3071 = vmatprep.mubr.bf16.mxu0 0
      %3072 = vmatmul.mubr.bf16.gmra.mrb[0].mxu0 %v2854
      %v3073 = vpop.f32.mrb[0].mxu0
      %v3074 = vadd.f32 0.0, %v3073
      %v3075 = vpop.f32.mrb[0].mxu0
      %v3076 = vpop.f32.mrb[0].mxu0
      %v3077 = vadd.f32 0.0, %v3076
      %v3078 = vpop.f32.mrb[0].mxu0
      %3079 = vdwg.mxu0
      %v3080 = vadd.f32 %v2327, %v2954
      %v3081 = vadd.f32 %v2328, %v2957
      %v3082 = vadd.f32 %v2329, %v2962
      %v3083 = vadd.f32 %v2330, %v2965
      %v3084 = vadd.f32 %v2331, %v2970
      %v3085 = vadd.f32 %v2332, %v2973
      %v3086 = vadd.f32 %v2333, %v2978
      %v3087 = vadd.f32 %v2334, %v2981
      %v3088 = vadd.f32 %v2335, %v2986
      %v3089 = vadd.f32 %v2336, %v2989
      %v3090 = vadd.f32 %v2337, %v2994
      %v3091 = vadd.f32 %v2338, %v2997
      %v3092 = vadd.f32 %v2339, %v3002
      %v3093 = vadd.f32 %v2340, %v3005
      %v3094 = vadd.f32 %v2341, %v3010
      %v3095 = vadd.f32 %v2342, %v3013
      %v3096 = vadd.f32 %v2343, %v3018
      %v3097 = vadd.f32 %v2344, %v3021
      %v3098 = vadd.f32 %v2345, %v3026
      %v3099 = vadd.f32 %v2346, %v3029
      %v3100 = vadd.f32 %v2347, %v3034
      %v3101 = vadd.f32 %v2348, %v3037
      %v3102 = vadd.f32 %v2349, %v3042
      %v3103 = vadd.f32 %v2350, %v3045
      %v3104 = vadd.f32 %v2351, %v3050
      %v3105 = vadd.f32 %v2352, %v3053
      %v3106 = vadd.f32 %v2353, %v3058
      %v3107 = vadd.f32 %v2354, %v3061
      %v3108 = vadd.f32 %v2355, %v3066
      %v3109 = vadd.f32 %v2356, %v3069
      %v3110 = vadd.f32 %v2357, %v3074
      %v3111 = vadd.f32 %v2358, %v3077
      %v3112 = vld [vmem:[%s1973] sm:$0xe]
      %v3113 = vld [vmem:[%s1973 + $0xc] sm:$0xe]
      %v3114 = vld [vmem:[%s1973 + $0x18] sm:$0xe]
      %v3115 = vld [vmem:[%s1973 + $0x24] sm:$0xe]
      %v3116 = vld [vmem:[%s1973 + $0x30] sm:$0xe]
      %v3117 = vld [vmem:[%s1973 + $0x3c] sm:$0xe]
      %v3118 = vld [vmem:[%s1973 + $0x48] sm:$0xe]
      %v3119 = vld [vmem:[%s1973 + $0x54] sm:$0xe]
      %v3120 = vld [vmem:[%s1973 + $0x60] sm:$0xe]
      %v3121 = vld [vmem:[%s1973 + $0x6c] sm:$0xe]
      %v3122 = vld [vmem:[%s1973 + $0x78] sm:$0xe]
      %v3123 = vld [vmem:[%s1973 + $0x84] sm:$0xe]
      %v3124 = vld [vmem:[%s1973 + $0x90] sm:$0xe]
      %v3125 = vld [vmem:[%s1973 + $0x9c] sm:$0xe]
      %v3126 = vld [vmem:[%s1973 + $0xa8] sm:$0xe]
      %v3127 = vld [vmem:[%s1973 + $0xb4] sm:$0xe]
      %v3176 = vrot.slane %v3112, 5
      %v3177 = vrot.slane %v3176, 4
      %v3178 = vrot.slane %v2360, 5
      %v3179 = vsel %vm1536, %v3177, %v3178
      %v3180 = vrot.slane %v3178, 4
      %v3181 = vrot.slane %v2361, 5
      %v3182 = vsel %vm1536, %v3180, %v3181
      %v3183 = vrot.slane %v3113, 5
      %v3184 = vrot.slane %v3183, 4
      %v3185 = vrot.slane %v2363, 5
      %v3186 = vsel %vm1536, %v3184, %v3185
      %v3187 = vrot.slane %v3185, 4
      %v3188 = vrot.slane %v2364, 5
      %v3189 = vsel %vm1536, %v3187, %v3188
      %v3190 = vrot.slane %v3114, 5
      %v3191 = vrot.slane %v3190, 4
      %v3192 = vrot.slane %v2366, 5
      %v3193 = vsel %vm1536, %v3191, %v3192
      %v3194 = vrot.slane %v3192, 4
      %v3195 = vrot.slane %v2367, 5
      %v3196 = vsel %vm1536, %v3194, %v3195
      %v3197 = vrot.slane %v3115, 5
      %v3198 = vrot.slane %v3197, 4
      %v3199 = vrot.slane %v2369, 5
      %v3200 = vsel %vm1536, %v3198, %v3199
      %v3201 = vrot.slane %v3199, 4
      %v3202 = vrot.slane %v2370, 5
      %v3203 = vsel %vm1536, %v3201, %v3202
      %v3204 = vrot.slane %v3116, 5
      %v3205 = vrot.slane %v3204, 4
      %v3206 = vrot.slane %v2372, 5
      %v3207 = vsel %vm1536, %v3205, %v3206
      %v3208 = vrot.slane %v3206, 4
      %v3209 = vrot.slane %v2373, 5
      %v3210 = vsel %vm1536, %v3208, %v3209
      %v3211 = vrot.slane %v3117, 5
      %v3212 = vrot.slane %v3211, 4
      %v3213 = vrot.slane %v2375, 5
      %v3214 = vsel %vm1536, %v3212, %v3213
      %v3215 = vrot.slane %v3213, 4
      %v3216 = vrot.slane %v2376, 5
      %v3217 = vsel %vm1536, %v3215, %v3216
      %v3218 = vrot.slane %v3118, 5
      %v3219 = vrot.slane %v3218, 4
      %v3220 = vrot.slane %v2378, 5
      %v3221 = vsel %vm1536, %v3219, %v3220
      %v3222 = vrot.slane %v3220, 4
      %v3223 = vrot.slane %v2379, 5
      %v3224 = vsel %vm1536, %v3222, %v3223
      %v3225 = vrot.slane %v3119, 5
      %v3226 = vrot.slane %v3225, 4
      %v3227 = vrot.slane %v2381, 5
      %v3228 = vsel %vm1536, %v3226, %v3227
      %v3229 = vrot.slane %v3227, 4
      %v3230 = vrot.slane %v2382, 5
      %v3231 = vsel %vm1536, %v3229, %v3230
      %v3232 = vrot.slane %v3120, 5
      %v3233 = vrot.slane %v3232, 4
      %v3234 = vrot.slane %v2384, 5
      %v3235 = vsel %vm1536, %v3233, %v3234
      %v3236 = vrot.slane %v3234, 4
      %v3237 = vrot.slane %v2385, 5
      %v3238 = vsel %vm1536, %v3236, %v3237
      %v3239 = vrot.slane %v3121, 5
      %v3240 = vrot.slane %v3239, 4
      %v3241 = vrot.slane %v2387, 5
      %v3242 = vsel %vm1536, %v3240, %v3241
      %v3243 = vrot.slane %v3241, 4
      %v3244 = vrot.slane %v2388, 5
      %v3245 = vsel %vm1536, %v3243, %v3244
      %v3246 = vrot.slane %v3122, 5
      %v3247 = vrot.slane %v3246, 4
      %v3248 = vrot.slane %v2390, 5
      %v3249 = vsel %vm1536, %v3247, %v3248
      %v3250 = vrot.slane %v3248, 4
      %v3251 = vrot.slane %v2391, 5
      %v3252 = vsel %vm1536, %v3250, %v3251
      %v3253 = vrot.slane %v3123, 5
      %v3254 = vrot.slane %v3253, 4
      %v3255 = vrot.slane %v2393, 5
      %v3256 = vsel %vm1536, %v3254, %v3255
      %v3257 = vrot.slane %v3255, 4
      %v3258 = vrot.slane %v2394, 5
      %v3259 = vsel %vm1536, %v3257, %v3258
      %v3260 = vrot.slane %v3124, 5
      %v3261 = vrot.slane %v3260, 4
      %v3262 = vrot.slane %v2396, 5
      %v3263 = vsel %vm1536, %v3261, %v3262
      %v3264 = vrot.slane %v3262, 4
      %v3265 = vrot.slane %v2397, 5
      %v3266 = vsel %vm1536, %v3264, %v3265
      %v3267 = vrot.slane %v3125, 5
      %v3268 = vrot.slane %v3267, 4
      %v3269 = vrot.slane %v2399, 5
      %v3270 = vsel %vm1536, %v3268, %v3269
      %v3271 = vrot.slane %v3269, 4
      %v3272 = vrot.slane %v2400, 5
      %v3273 = vsel %vm1536, %v3271, %v3272
      %v3274 = vrot.slane %v3126, 5
      %v3275 = vrot.slane %v3274, 4
      %v3276 = vrot.slane %v2402, 5
      %v3277 = vsel %vm1536, %v3275, %v3276
      %v3278 = vrot.slane %v3276, 4
      %v3279 = vrot.slane %v2403, 5
      %v3280 = vsel %vm1536, %v3278, %v3279
      %v3281 = vrot.slane %v3127, 5
      %v3282 = vrot.slane %v3281, 4
      %v3283 = vrot.slane %v2405, 5
      %v3284 = vsel %vm1536, %v3282, %v3283
      %v3285 = vrot.slane %v3283, 4
      %v3286 = vrot.slane %v2406, 5
      %v3287 = vsel %vm1536, %v3285, %v3286
      %v3288 = vld [vmem:[%s1 + $0x140] sm:$0xf]
      %v3289 = vld [vmem:[%s1 + $0x144] sm:$0xf]
      %v3290 = vld [vmem:[%s1 + $0x148] sm:$0xf]
      %v3291 = vld [vmem:[%s1 + $0x14c] sm:$0xf]
      %v3292 = vld [vmem:[%s1 + $0x150] sm:$0xf]
      %v3293 = vld [vmem:[%s1 + $0x154] sm:$0xf]
      %v3294 = vld [vmem:[%s1 + $0x158] sm:$0xf]
      %v3295 = vld [vmem:[%s1 + $0x15c] sm:$0xf]
      %v3296 = vld [vmem:[%s1 + $0x160] sm:$0xf]
      %v3297 = vld [vmem:[%s1 + $0x164] sm:$0xf]
      %v3298 = vld [vmem:[%s1 + $0x168] sm:$0xf]
      %v3299 = vld [vmem:[%s1 + $0x16c] sm:$0xf]
      %v3300 = vld [vmem:[%s1 + $0x170] sm:$0xf]
      %v3301 = vld [vmem:[%s1 + $0x174] sm:$0xf]
      %v3302 = vld [vmem:[%s1 + $0x178] sm:$0xf]
      %v3303 = vld [vmem:[%s1 + $0x17c] sm:$0xf]
      %v3304 = vunpack.c.l.b16 %v3179
      %v3305 = vunpack.c.l.b16 %v3182
      %v3306 = vunpack.c.l.b16 %v3186
      %v3307 = vunpack.c.l.b16 %v3189
      %v3308 = vunpack.c.l.b16 %v3193
      %v3309 = vunpack.c.l.b16 %v3196
      %v3310 = vunpack.c.l.b16 %v3200
      %v3311 = vunpack.c.l.b16 %v3203
      %v3312 = vunpack.c.l.b16 %v3207
      %v3313 = vunpack.c.l.b16 %v3210
      %v3314 = vunpack.c.l.b16 %v3214
      %v3315 = vunpack.c.l.b16 %v3217
      %v3316 = vunpack.c.l.b16 %v3221
      %v3317 = vunpack.c.l.b16 %v3224
      %v3318 = vunpack.c.l.b16 %v3228
      %v3319 = vunpack.c.l.b16 %v3231
      %v3320 = vunpack.c.l.b16 %v3235
      %v3321 = vunpack.c.l.b16 %v3238
      %v3322 = vunpack.c.l.b16 %v3242
      %v3323 = vunpack.c.l.b16 %v3245
      %v3324 = vunpack.c.l.b16 %v3249
      %v3325 = vunpack.c.l.b16 %v3252
      %v3326 = vunpack.c.l.b16 %v3256
      %v3327 = vunpack.c.l.b16 %v3259
      %v3328 = vunpack.c.l.b16 %v3263
      %v3329 = vunpack.c.l.b16 %v3266
      %v3330 = vunpack.c.l.b16 %v3270
      %v3331 = vunpack.c.l.b16 %v3273
      %v3332 = vunpack.c.l.b16 %v3277
      %v3333 = vunpack.c.l.b16 %v3280
      %v3334 = vunpack.c.l.b16 %v3284
      %v3335 = vunpack.c.l.b16 %v3287
      %v3336 = vpack.c.b16 %v3305, %v3304
      %v3337 = vpack.c.b16 %v3307, %v3306
      %v3338 = vpack.c.b16 %v3309, %v3308
      %v3339 = vpack.c.b16 %v3311, %v3310
      %v3340 = vpack.c.b16 %v3313, %v3312
      %v3341 = vpack.c.b16 %v3315, %v3314
      %v3342 = vpack.c.b16 %v3317, %v3316
      %v3343 = vpack.c.b16 %v3319, %v3318
      %v3344 = vpack.c.b16 %v3321, %v3320
      %v3345 = vpack.c.b16 %v3323, %v3322
      %v3346 = vpack.c.b16 %v3325, %v3324
      %v3347 = vpack.c.b16 %v3327, %v3326
      %v3348 = vpack.c.b16 %v3329, %v3328
      %v3349 = vpack.c.b16 %v3331, %v3330
      %v3350 = vpack.c.b16 %v3333, %v3332
      %v3351 = vpack.c.b16 %v3335, %v3334
      %v3384 = vunpack.c.l.b16 %v3288
      %v3385 = vunpack.c.l.b16 %v3289
      %v3386 = vunpack.c.l.b16 %v3290
      %v3387 = vunpack.c.l.b16 %v3291
      %v3388 = vunpack.c.l.b16 %v3292
      %v3389 = vunpack.c.l.b16 %v3293
      %v3390 = vunpack.c.l.b16 %v3294
      %v3391 = vunpack.c.l.b16 %v3295
      %v3392 = vunpack.c.l.b16 %v3296
      %v3393 = vunpack.c.l.b16 %v3297
      %v3394 = vunpack.c.l.b16 %v3298
      %v3395 = vunpack.c.l.b16 %v3299
      %v3396 = vunpack.c.l.b16 %v3300
      %v3397 = vunpack.c.l.b16 %v3301
      %v3398 = vunpack.c.l.b16 %v3302
      %v3399 = vunpack.c.l.b16 %v3303
      %v3400 = vpack.c.b16 %v3385, %v3384
      %v3401 = vpack.c.b16 %v3387, %v3386
      %v3402 = vpack.c.b16 %v3389, %v3388
      %v3403 = vpack.c.b16 %v3391, %v3390
      %v3404 = vpack.c.b16 %v3393, %v3392
      %v3405 = vpack.c.b16 %v3395, %v3394
      %v3406 = vpack.c.b16 %v3397, %v3396
      %v3407 = vpack.c.b16 %v3399, %v3398
      %3416 = vmatprep.subr.bf16.mxu0 0
      %3417 = vmatpush1.bf16.msra.mxu0 %v3400
      %3418 = vmatprep.subr.bf16.mxu0 0
      %3419 = vmatpush1.bf16.msra.mxu0 %v3401
      %3420 = vmatprep.subr.bf16.mxu0 0
      %3421 = vmatpush1.bf16.msra.mxu0 %v3402
      %3422 = vmatprep.subr.bf16.mxu0 0
      %3423 = vmatpush1.bf16.msra.mxu0 %v3403
      %3424 = vmatprep.subr.bf16.mxu0 0
      %3425 = vmatpush1.bf16.msra.mxu0 %v3404
      %3426 = vmatprep.subr.bf16.mxu0 0
      %3427 = vmatpush1.bf16.msra.mxu0 %v3405
      %3428 = vmatprep.subr.bf16.mxu0 0
      %3429 = vmatpush1.bf16.msra.mxu0 %v3406
      %3430 = vmatprep.subr.bf16.mxu0 0
      %3431 = vmatpush1.bf16.msra.mxu0 %v3407
      %3432 = vmatprep.subr.bf16.mxu0 0
      %3433 = vmatpush1.bf16.msra.mxu0 0
      %3434 = vmatprep.subr.bf16.mxu0 0
      %3435 = vmatpush1.bf16.msra.mxu0 0
      %3436 = vmatprep.subr.bf16.mxu0 0
      %3437 = vmatpush1.bf16.msra.mxu0 0
      %3438 = vmatprep.subr.bf16.mxu0 0
      %3439 = vmatpush1.bf16.msra.mxu0 0
      %3440 = vmatprep.subr.bf16.mxu0 0
      %3441 = vmatpush1.bf16.msra.mxu0 0
      %3442 = vmatprep.subr.bf16.mxu0 0
      %3443 = vmatpush1.bf16.msra.mxu0 0
      %3444 = vmatprep.subr.bf16.mxu0 0
      %3445 = vmatpush1.bf16.msra.mxu0 0
      %3446 = vmatprep.subr.bf16.mxu0 0
      %3447 = vmatpush1.bf16.msra.mxu0 0
      %3448 = vmatprep.mubr.bf16.mxu0 0
      %3449 = vmatmul.mubr.bf16.gmra.mrb[0].mxu0 %v3336
      %v3450 = vpop.f32.mrb[0].mxu0
      %v3451 = vadd.f32 0.0, %v3450
      %v3452 = vpop.f32.mrb[0].mxu0
      %v3453 = vpop.f32.mrb[0].mxu0
      %v3454 = vadd.f32 0.0, %v3453
      %v3455 = vpop.f32.mrb[0].mxu0
      %3456 = vmatprep.mubr.bf16.mxu0 0
      %3457 = vmatmul.mubr.bf16.gmra.mrb[0].mxu0 %v3337
      %v3458 = vpop.f32.mrb[0].mxu0
      %v3459 = vadd.f32 0.0, %v3458
      %v3460 = vpop.f32.mrb[0].mxu0
      %v3461 = vpop.f32.mrb[0].mxu0
      %v3462 = vadd.f32 0.0, %v3461
      %v3463 = vpop.f32.mrb[0].mxu0
      %3464 = vmatprep.mubr.bf16.mxu0 0
      %3465 = vmatmul.mubr.bf16.gmra.mrb[0].mxu0 %v3338
      %v3466 = vpop.f32.mrb[0].mxu0
      %v3467 = vadd.f32 0.0, %v3466
      %v3468 = vpop.f32.mrb[0].mxu0
      %v3469 = vpop.f32.mrb[0].mxu0
      %v3470 = vadd.f32 0.0, %v3469
      %v3471 = vpop.f32.mrb[0].mxu0
      %3472 = vmatprep.mubr.bf16.mxu0 0
      %3473 = vmatmul.mubr.bf16.gmra.mrb[0].mxu0 %v3339
      %v3474 = vpop.f32.mrb[0].mxu0
      %v3475 = vadd.f32 0.0, %v3474
      %v3476 = vpop.f32.mrb[0].mxu0
      %v3477 = vpop.f32.mrb[0].mxu0
      %v3478 = vadd.f32 0.0, %v3477
      %v3479 = vpop.f32.mrb[0].mxu0
      %3480 = vmatprep.mubr.bf16.mxu0 0
      %3481 = vmatmul.mubr.bf16.gmra.mrb[0].mxu0 %v3340
      %v3482 = vpop.f32.mrb[0].mxu0
      %v3483 = vadd.f32 0.0, %v3482
      %v3484 = vpop.f32.mrb[0].mxu0
      %v3485 = vpop.f32.mrb[0].mxu0
      %v3486 = vadd.f32 0.0, %v3485
      %v3487 = vpop.f32.mrb[0].mxu0
      %3488 = vmatprep.mubr.bf16.mxu0 0
      %3489 = vmatmul.mubr.bf16.gmra.mrb[0].mxu0 %v3341
      %v3490 = vpop.f32.mrb[0].mxu0
      %v3491 = vadd.f32 0.0, %v3490
      %v3492 = vpop.f32.mrb[0].mxu0
      %v3493 = vpop.f32.mrb[0].mxu0
      %v3494 = vadd.f32 0.0, %v3493
      %v3495 = vpop.f32.mrb[0].mxu0
      %3496 = vmatprep.mubr.bf16.mxu0 0
      %3497 = vmatmul.mubr.bf16.gmra.mrb[0].mxu0 %v3342
      %v3498 = vpop.f32.mrb[0].mxu0
      %v3499 = vadd.f32 0.0, %v3498
      %v3500 = vpop.f32.mrb[0].mxu0
      %v3501 = vpop.f32.mrb[0].mxu0
      %v3502 = vadd.f32 0.0, %v3501
      %v3503 = vpop.f32.mrb[0].mxu0
      %3504 = vmatprep.mubr.bf16.mxu0 0
      %3505 = vmatmul.mubr.bf16.gmra.mrb[0].mxu0 %v3343
      %v3506 = vpop.f32.mrb[0].mxu0
      %v3507 = vadd.f32 0.0, %v3506
      %v3508 = vpop.f32.mrb[0].mxu0
      %v3509 = vpop.f32.mrb[0].mxu0
      %v3510 = vadd.f32 0.0, %v3509
      %v3511 = vpop.f32.mrb[0].mxu0
      %3512 = vmatprep.mubr.bf16.mxu0 0
      %3513 = vmatmul.mubr.bf16.gmra.mrb[0].mxu0 %v3344
      %v3514 = vpop.f32.mrb[0].mxu0
      %v3515 = vadd.f32 0.0, %v3514
      %v3516 = vpop.f32.mrb[0].mxu0
      %v3517 = vpop.f32.mrb[0].mxu0
      %v3518 = vadd.f32 0.0, %v3517
      %v3519 = vpop.f32.mrb[0].mxu0
      %3520 = vmatprep.mubr.bf16.mxu0 0
      %3521 = vmatmul.mubr.bf16.gmra.mrb[0].mxu0 %v3345
      %v3522 = vpop.f32.mrb[0].mxu0
      %v3523 = vadd.f32 0.0, %v3522
      %v3524 = vpop.f32.mrb[0].mxu0
      %v3525 = vpop.f32.mrb[0].mxu0
      %v3526 = vadd.f32 0.0, %v3525
      %v3527 = vpop.f32.mrb[0].mxu0
      %3528 = vmatprep.mubr.bf16.mxu0 0
      %3529 = vmatmul.mubr.bf16.gmra.mrb[0].mxu0 %v3346
      %v3530 = vpop.f32.mrb[0].mxu0
      %v3531 = vadd.f32 0.0, %v3530
      %v3532 = vpop.f32.mrb[0].mxu0
      %v3533 = vpop.f32.mrb[0].mxu0
      %v3534 = vadd.f32 0.0, %v3533
      %v3535 = vpop.f32.mrb[0].mxu0
      %3536 = vmatprep.mubr.bf16.mxu0 0
      %3537 = vmatmul.mubr.bf16.gmra.mrb[0].mxu0 %v3347
      %v3538 = vpop.f32.mrb[0].mxu0
      %v3539 = vadd.f32 0.0, %v3538
      %v3540 = vpop.f32.mrb[0].mxu0
      %v3541 = vpop.f32.mrb[0].mxu0
      %v3542 = vadd.f32 0.0, %v3541
      %v3543 = vpop.f32.mrb[0].mxu0
      %3544 = vmatprep.mubr.bf16.mxu0 0
      %3545 = vmatmul.mubr.bf16.gmra.mrb[0].mxu0 %v3348
      %v3546 = vpop.f32.mrb[0].mxu0
      %v3547 = vadd.f32 0.0, %v3546
      %v3548 = vpop.f32.mrb[0].mxu0
      %v3549 = vpop.f32.mrb[0].mxu0
      %v3550 = vadd.f32 0.0, %v3549
      %v3551 = vpop.f32.mrb[0].mxu0
      %3552 = vmatprep.mubr.bf16.mxu0 0
      %3553 = vmatmul.mubr.bf16.gmra.mrb[0].mxu0 %v3349
      %v3554 = vpop.f32.mrb[0].mxu0
      %v3555 = vadd.f32 0.0, %v3554
      %v3556 = vpop.f32.mrb[0].mxu0
      %v3557 = vpop.f32.mrb[0].mxu0
      %v3558 = vadd.f32 0.0, %v3557
      %v3559 = vpop.f32.mrb[0].mxu0
      %3560 = vmatprep.mubr.bf16.mxu0 0
      %3561 = vmatmul.mubr.bf16.gmra.mrb[0].mxu0 %v3350
      %v3562 = vpop.f32.mrb[0].mxu0
      %v3563 = vadd.f32 0.0, %v3562
      %v3564 = vpop.f32.mrb[0].mxu0
      %v3565 = vpop.f32.mrb[0].mxu0
      %v3566 = vadd.f32 0.0, %v3565
      %v3567 = vpop.f32.mrb[0].mxu0
      %3568 = vmatprep.mubr.bf16.mxu0 0
      %3569 = vmatmul.mubr.bf16.gmra.mrb[0].mxu0 %v3351
      %v3570 = vpop.f32.mrb[0].mxu0
      %v3571 = vadd.f32 0.0, %v3570
      %v3572 = vpop.f32.mrb[0].mxu0
      %v3573 = vpop.f32.mrb[0].mxu0
      %v3574 = vadd.f32 0.0, %v3573
      %v3575 = vpop.f32.mrb[0].mxu0
      %3576 = vdwg.mxu0
      %v3577 = vadd.f32 %v3080, %v3451
      %v3578 = vadd.f32 %v3081, %v3454
      %v3579 = vadd.f32 %v3082, %v3459
      %v3580 = vadd.f32 %v3083, %v3462
      %v3581 = vadd.f32 %v3084, %v3467
      %v3582 = vadd.f32 %v3085, %v3470
      %v3583 = vadd.f32 %v3086, %v3475
      %v3584 = vadd.f32 %v3087, %v3478
      %v3585 = vadd.f32 %v3088, %v3483
      %v3586 = vadd.f32 %v3089, %v3486
      %v3587 = vadd.f32 %v3090, %v3491
      %v3588 = vadd.f32 %v3091, %v3494
      %v3589 = vadd.f32 %v3092, %v3499
      %v3590 = vadd.f32 %v3093, %v3502
      %v3591 = vadd.f32 %v3094, %v3507
      %v3592 = vadd.f32 %v3095, %v3510
      %v3593 = vadd.f32 %v3096, %v3515
      %v3594 = vadd.f32 %v3097, %v3518
      %v3595 = vadd.f32 %v3098, %v3523
      %v3596 = vadd.f32 %v3099, %v3526
      %v3597 = vadd.f32 %v3100, %v3531
      %v3598 = vadd.f32 %v3101, %v3534
      %v3599 = vadd.f32 %v3102, %v3539
      %v3600 = vadd.f32 %v3103, %v3542
      %v3601 = vadd.f32 %v3104, %v3547
      %v3602 = vadd.f32 %v3105, %v3550
      %v3603 = vadd.f32 %v3106, %v3555
      %v3604 = vadd.f32 %v3107, %v3558
      %v3605 = vadd.f32 %v3108, %v3563
      %v3606 = vadd.f32 %v3109, %v3566
      %v3607 = vadd.f32 %v3110, %v3571
      %v3608 = vadd.f32 %v3111, %v3574
      %s3609 = sadd.s32 %s437, 2
      %s3610 = smul.u32 %s3609, 3
      %s3611 = smul.addr %s3610, 4
      %s3612 = scalar_lea.vmem %s411, %s3611
      %v3613 = vld [vmem:[%s3612] sm:$0xf]
      %v3614 = vld [vmem:[%s3612 + $0x4] sm:$0xf]
      %v3615 = vld [vmem:[%s3612 + $0xc] sm:$0xf]
      %v3616 = vld [vmem:[%s3612 + $0x10] sm:$0xf]
      %v3617 = vld [vmem:[%s3612 + $0x18] sm:$0xf]
      %v3618 = vld [vmem:[%s3612 + $0x1c] sm:$0xf]
      %v3619 = vld [vmem:[%s3612 + $0x24] sm:$0xf]
      %v3620 = vld [vmem:[%s3612 + $0x28] sm:$0xf]
      %v3621 = vld [vmem:[%s3612 + $0x30] sm:$0xf]
      %v3622 = vld [vmem:[%s3612 + $0x34] sm:$0xf]
      %v3623 = vld [vmem:[%s3612 + $0x3c] sm:$0xf]
      %v3624 = vld [vmem:[%s3612 + $0x40] sm:$0xf]
      %v3625 = vld [vmem:[%s3612 + $0x48] sm:$0xf]
      %v3626 = vld [vmem:[%s3612 + $0x4c] sm:$0xf]
      %v3627 = vld [vmem:[%s3612 + $0x54] sm:$0xf]
      %v3628 = vld [vmem:[%s3612 + $0x58] sm:$0xf]
      %v3629 = vld [vmem:[%s3612 + $0x60] sm:$0xf]
      %v3630 = vld [vmem:[%s3612 + $0x64] sm:$0xf]
      %v3631 = vld [vmem:[%s3612 + $0x6c] sm:$0xf]
      %v3632 = vld [vmem:[%s3612 + $0x70] sm:$0xf]
      %v3633 = vld [vmem:[%s3612 + $0x78] sm:$0xf]
      %v3634 = vld [vmem:[%s3612 + $0x7c] sm:$0xf]
      %v3635 = vld [vmem:[%s3612 + $0x84] sm:$0xf]
      %v3636 = vld [vmem:[%s3612 + $0x88] sm:$0xf]
      %v3637 = vld [vmem:[%s3612 + $0x90] sm:$0xf]
      %v3638 = vld [vmem:[%s3612 + $0x94] sm:$0xf]
      %v3639 = vld [vmem:[%s3612 + $0x9c] sm:$0xf]
      %v3640 = vld [vmem:[%s3612 + $0xa0] sm:$0xf]
      %v3641 = vld [vmem:[%s3612 + $0xa8] sm:$0xf]
      %v3642 = vld [vmem:[%s3612 + $0xac] sm:$0xf]
      %v3643 = vld [vmem:[%s3612 + $0xb4] sm:$0xf]
      %v3644 = vld [vmem:[%s3612 + $0xb8] sm:$0xf]
      %v3645 = vld [vmem:[%s1 + $0x180] sm:$0xf]
      %v3646 = vld [vmem:[%s1 + $0x184] sm:$0xf]
      %v3647 = vld [vmem:[%s1 + $0x188] sm:$0xf]
      %v3648 = vld [vmem:[%s1 + $0x18c] sm:$0xf]
      %v3649 = vld [vmem:[%s1 + $0x190] sm:$0xf]
      %v3650 = vld [vmem:[%s1 + $0x194] sm:$0xf]
      %v3651 = vld [vmem:[%s1 + $0x198] sm:$0xf]
      %v3652 = vld [vmem:[%s1 + $0x19c] sm:$0xf]
      %v3653 = vld [vmem:[%s1 + $0x1a0] sm:$0xf]
      %v3654 = vld [vmem:[%s1 + $0x1a4] sm:$0xf]
      %v3655 = vld [vmem:[%s1 + $0x1a8] sm:$0xf]
      %v3656 = vld [vmem:[%s1 + $0x1ac] sm:$0xf]
      %v3657 = vld [vmem:[%s1 + $0x1b0] sm:$0xf]
      %v3658 = vld [vmem:[%s1 + $0x1b4] sm:$0xf]
      %v3659 = vld [vmem:[%s1 + $0x1b8] sm:$0xf]
      %v3660 = vld [vmem:[%s1 + $0x1bc] sm:$0xf]
      %v3693 = vunpack.c.l.b16 %v3613
      %v3694 = vunpack.c.l.b16 %v3614
      %v3695 = vunpack.c.l.b16 %v3615
      %v3696 = vunpack.c.l.b16 %v3616
      %v3697 = vunpack.c.l.b16 %v3617
      %v3698 = vunpack.c.l.b16 %v3618
      %v3699 = vunpack.c.l.b16 %v3619
      %v3700 = vunpack.c.l.b16 %v3620
      %v3701 = vunpack.c.l.b16 %v3621
      %v3702 = vunpack.c.l.b16 %v3622
      %v3703 = vunpack.c.l.b16 %v3623
      %v3704 = vunpack.c.l.b16 %v3624
      %v3705 = vunpack.c.l.b16 %v3625
      %v3706 = vunpack.c.l.b16 %v3626
      %v3707 = vunpack.c.l.b16 %v3627
      %v3708 = vunpack.c.l.b16 %v3628
      %v3709 = vunpack.c.l.b16 %v3629
      %v3710 = vunpack.c.l.b16 %v3630
      %v3711 = vunpack.c.l.b16 %v3631
      %v3712 = vunpack.c.l.b16 %v3632
      %v3713 = vunpack.c.l.b16 %v3633
      %v3714 = vunpack.c.l.b16 %v3634
      %v3715 = vunpack.c.l.b16 %v3635
      %v3716 = vunpack.c.l.b16 %v3636
      %v3717 = vunpack.c.l.b16 %v3637
      %v3718 = vunpack.c.l.b16 %v3638
      %v3719 = vunpack.c.l.b16 %v3639
      %v3720 = vunpack.c.l.b16 %v3640
      %v3721 = vunpack.c.l.b16 %v3641
      %v3722 = vunpack.c.l.b16 %v3642
      %v3723 = vunpack.c.l.b16 %v3643
      %v3724 = vunpack.c.l.b16 %v3644
      %v3725 = vpack.c.b16 %v3694, %v3693
      %v3726 = vpack.c.b16 %v3696, %v3695
      %v3727 = vpack.c.b16 %v3698, %v3697
      %v3728 = vpack.c.b16 %v3700, %v3699
      %v3729 = vpack.c.b16 %v3702, %v3701
      %v3730 = vpack.c.b16 %v3704, %v3703
      %v3731 = vpack.c.b16 %v3706, %v3705
      %v3732 = vpack.c.b16 %v3708, %v3707
      %v3733 = vpack.c.b16 %v3710, %v3709
      %v3734 = vpack.c.b16 %v3712, %v3711
      %v3735 = vpack.c.b16 %v3714, %v3713
      %v3736 = vpack.c.b16 %v3716, %v3715
      %v3737 = vpack.c.b16 %v3718, %v3717
      %v3738 = vpack.c.b16 %v3720, %v3719
      %v3739 = vpack.c.b16 %v3722, %v3721
      %v3740 = vpack.c.b16 %v3724, %v3723
      %v3773 = vunpack.c.l.b16 %v3645
      %v3774 = vunpack.c.l.b16 %v3646
      %v3775 = vunpack.c.l.b16 %v3647
      %v3776 = vunpack.c.l.b16 %v3648
      %v3777 = vunpack.c.l.b16 %v3649
      %v3778 = vunpack.c.l.b16 %v3650
      %v3779 = vunpack.c.l.b16 %v3651
      %v3780 = vunpack.c.l.b16 %v3652
      %v3781 = vunpack.c.l.b16 %v3653
      %v3782 = vunpack.c.l.b16 %v3654
      %v3783 = vunpack.c.l.b16 %v3655
      %v3784 = vunpack.c.l.b16 %v3656
      %v3785 = vunpack.c.l.b16 %v3657
      %v3786 = vunpack.c.l.b16 %v3658
      %v3787 = vunpack.c.l.b16 %v3659
      %v3788 = vunpack.c.l.b16 %v3660
      %v3789 = vpack.c.b16 %v3774, %v3773
      %v3790 = vpack.c.b16 %v3776, %v3775
      %v3791 = vpack.c.b16 %v3778, %v3777
      %v3792 = vpack.c.b16 %v3780, %v3779
      %v3793 = vpack.c.b16 %v3782, %v3781
      %v3794 = vpack.c.b16 %v3784, %v3783
      %v3795 = vpack.c.b16 %v3786, %v3785
      %v3796 = vpack.c.b16 %v3788, %v3787
      %3805 = vmatprep.subr.bf16.mxu0 0
      %3806 = vmatpush1.bf16.msra.mxu0 %v3789
      %3807 = vmatprep.subr.bf16.mxu0 0
      %3808 = vmatpush1.bf16.msra.mxu0 %v3790
      %3809 = vmatprep.subr.bf16.mxu0 0
      %3810 = vmatpush1.bf16.msra.mxu0 %v3791
      %3811 = vmatprep.subr.bf16.mxu0 0
      %3812 = vmatpush1.bf16.msra.mxu0 %v3792
      %3813 = vmatprep.subr.bf16.mxu0 0
      %3814 = vmatpush1.bf16.msra.mxu0 %v3793
      %3815 = vmatprep.subr.bf16.mxu0 0
      %3816 = vmatpush1.bf16.msra.mxu0 %v3794
      %3817 = vmatprep.subr.bf16.mxu0 0
      %3818 = vmatpush1.bf16.msra.mxu0 %v3795
      %3819 = vmatprep.subr.bf16.mxu0 0
      %3820 = vmatpush1.bf16.msra.mxu0 %v3796
      %3821 = vmatprep.subr.bf16.mxu0 0
      %3822 = vmatpush1.bf16.msra.mxu0 0
      %3823 = vmatprep.subr.bf16.mxu0 0
      %3824 = vmatpush1.bf16.msra.mxu0 0
      %3825 = vmatprep.subr.bf16.mxu0 0
      %3826 = vmatpush1.bf16.msra.mxu0 0
      %3827 = vmatprep.subr.bf16.mxu0 0
      %3828 = vmatpush1.bf16.msra.mxu0 0
      %3829 = vmatprep.subr.bf16.mxu0 0
      %3830 = vmatpush1.bf16.msra.mxu0 0
      %3831 = vmatprep.subr.bf16.mxu0 0
      %3832 = vmatpush1.bf16.msra.mxu0 0
      %3833 = vmatprep.subr.bf16.mxu0 0
      %3834 = vmatpush1.bf16.msra.mxu0 0
      %3835 = vmatprep.subr.bf16.mxu0 0
      %3836 = vmatpush1.bf16.msra.mxu0 0
      %3837 = vmatprep.mubr.bf16.mxu0 0
      %3838 = vmatmul.mubr.bf16.gmra.mrb[0].mxu0 %v3725
      %v3839 = vpop.f32.mrb[0].mxu0
      %v3840 = vadd.f32 0.0, %v3839
      %v3841 = vpop.f32.mrb[0].mxu0
      %v3842 = vpop.f32.mrb[0].mxu0
      %v3843 = vadd.f32 0.0, %v3842
      %v3844 = vpop.f32.mrb[0].mxu0
      %3845 = vmatprep.mubr.bf16.mxu0 0
      %3846 = vmatmul.mubr.bf16.gmra.mrb[0].mxu0 %v3726
      %v3847 = vpop.f32.mrb[0].mxu0
      %v3848 = vadd.f32 0.0, %v3847
      %v3849 = vpop.f32.mrb[0].mxu0
      %v3850 = vpop.f32.mrb[0].mxu0
      %v3851 = vadd.f32 0.0, %v3850
      %v3852 = vpop.f32.mrb[0].mxu0
      %3853 = vmatprep.mubr.bf16.mxu0 0
      %3854 = vmatmul.mubr.bf16.gmra.mrb[0].mxu0 %v3727
      %v3855 = vpop.f32.mrb[0].mxu0
      %v3856 = vadd.f32 0.0, %v3855
      %v3857 = vpop.f32.mrb[0].mxu0
      %v3858 = vpop.f32.mrb[0].mxu0
      %v3859 = vadd.f32 0.0, %v3858
      %v3860 = vpop.f32.mrb[0].mxu0
      %3861 = vmatprep.mubr.bf16.mxu0 0
      %3862 = vmatmul.mubr.bf16.gmra.mrb[0].mxu0 %v3728
      %v3863 = vpop.f32.mrb[0].mxu0
      %v3864 = vadd.f32 0.0, %v3863
      %v3865 = vpop.f32.mrb[0].mxu0
      %v3866 = vpop.f32.mrb[0].mxu0
      %v3867 = vadd.f32 0.0, %v3866
      %v3868 = vpop.f32.mrb[0].mxu0
      %3869 = vmatprep.mubr.bf16.mxu0 0
      %3870 = vmatmul.mubr.bf16.gmra.mrb[0].mxu0 %v3729
      %v3871 = vpop.f32.mrb[0].mxu0
      %v3872 = vadd.f32 0.0, %v3871
      %v3873 = vpop.f32.mrb[0].mxu0
      %v3874 = vpop.f32.mrb[0].mxu0
      %v3875 = vadd.f32 0.0, %v3874
      %v3876 = vpop.f32.mrb[0].mxu0
      %3877 = vmatprep.mubr.bf16.mxu0 0
      %3878 = vmatmul.mubr.bf16.gmra.mrb[0].mxu0 %v3730
      %v3879 = vpop.f32.mrb[0].mxu0
      %v3880 = vadd.f32 0.0, %v3879
      %v3881 = vpop.f32.mrb[0].mxu0
      %v3882 = vpop.f32.mrb[0].mxu0
      %v3883 = vadd.f32 0.0, %v3882
      %v3884 = vpop.f32.mrb[0].mxu0
      %3885 = vmatprep.mubr.bf16.mxu0 0
      %3886 = vmatmul.mubr.bf16.gmra.mrb[0].mxu0 %v3731
      %v3887 = vpop.f32.mrb[0].mxu0
      %v3888 = vadd.f32 0.0, %v3887
      %v3889 = vpop.f32.mrb[0].mxu0
      %v3890 = vpop.f32.mrb[0].mxu0
      %v3891 = vadd.f32 0.0, %v3890
      %v3892 = vpop.f32.mrb[0].mxu0
      %3893 = vmatprep.mubr.bf16.mxu0 0
      %3894 = vmatmul.mubr.bf16.gmra.mrb[0].mxu0 %v3732
      %v3895 = vpop.f32.mrb[0].mxu0
      %v3896 = vadd.f32 0.0, %v3895
      %v3897 = vpop.f32.mrb[0].mxu0
      %v3898 = vpop.f32.mrb[0].mxu0
      %v3899 = vadd.f32 0.0, %v3898
      %v3900 = vpop.f32.mrb[0].mxu0
      %3901 = vmatprep.mubr.bf16.mxu0 0
      %3902 = vmatmul.mubr.bf16.gmra.mrb[0].mxu0 %v3733
      %v3903 = vpop.f32.mrb[0].mxu0
      %v3904 = vadd.f32 0.0, %v3903
      %v3905 = vpop.f32.mrb[0].mxu0
      %v3906 = vpop.f32.mrb[0].mxu0
      %v3907 = vadd.f32 0.0, %v3906
      %v3908 = vpop.f32.mrb[0].mxu0
      %3909 = vmatprep.mubr.bf16.mxu0 0
      %3910 = vmatmul.mubr.bf16.gmra.mrb[0].mxu0 %v3734
      %v3911 = vpop.f32.mrb[0].mxu0
      %v3912 = vadd.f32 0.0, %v3911
      %v3913 = vpop.f32.mrb[0].mxu0
      %v3914 = vpop.f32.mrb[0].mxu0
      %v3915 = vadd.f32 0.0, %v3914
      %v3916 = vpop.f32.mrb[0].mxu0
      %3917 = vmatprep.mubr.bf16.mxu0 0
      %3918 = vmatmul.mubr.bf16.gmra.mrb[0].mxu0 %v3735
      %v3919 = vpop.f32.mrb[0].mxu0
      %v3920 = vadd.f32 0.0, %v3919
      %v3921 = vpop.f32.mrb[0].mxu0
      %v3922 = vpop.f32.mrb[0].mxu0
      %v3923 = vadd.f32 0.0, %v3922
      %v3924 = vpop.f32.mrb[0].mxu0
      %3925 = vmatprep.mubr.bf16.mxu0 0
      %3926 = vmatmul.mubr.bf16.gmra.mrb[0].mxu0 %v3736
      %v3927 = vpop.f32.mrb[0].mxu0
      %v3928 = vadd.f32 0.0, %v3927
      %v3929 = vpop.f32.mrb[0].mxu0
      %v3930 = vpop.f32.mrb[0].mxu0
      %v3931 = vadd.f32 0.0, %v3930
      %v3932 = vpop.f32.mrb[0].mxu0
      %3933 = vmatprep.mubr.bf16.mxu0 0
      %3934 = vmatmul.mubr.bf16.gmra.mrb[0].mxu0 %v3737
      %v3935 = vpop.f32.mrb[0].mxu0
      %v3936 = vadd.f32 0.0, %v3935
      %v3937 = vpop.f32.mrb[0].mxu0
      %v3938 = vpop.f32.mrb[0].mxu0
      %v3939 = vadd.f32 0.0, %v3938
      %v3940 = vpop.f32.mrb[0].mxu0
      %3941 = vmatprep.mubr.bf16.mxu0 0
      %3942 = vmatmul.mubr.bf16.gmra.mrb[0].mxu0 %v3738
      %v3943 = vpop.f32.mrb[0].mxu0
      %v3944 = vadd.f32 0.0, %v3943
      %v3945 = vpop.f32.mrb[0].mxu0
      %v3946 = vpop.f32.mrb[0].mxu0
      %v3947 = vadd.f32 0.0, %v3946
      %v3948 = vpop.f32.mrb[0].mxu0
      %3949 = vmatprep.mubr.bf16.mxu0 0
      %3950 = vmatmul.mubr.bf16.gmra.mrb[0].mxu0 %v3739
      %v3951 = vpop.f32.mrb[0].mxu0
      %v3952 = vadd.f32 0.0, %v3951
      %v3953 = vpop.f32.mrb[0].mxu0
      %v3954 = vpop.f32.mrb[0].mxu0
      %v3955 = vadd.f32 0.0, %v3954
      %v3956 = vpop.f32.mrb[0].mxu0
      %3957 = vmatprep.mubr.bf16.mxu0 0
      %3958 = vmatmul.mubr.bf16.gmra.mrb[0].mxu0 %v3740
      %v3959 = vpop.f32.mrb[0].mxu0
      %v3960 = vadd.f32 0.0, %v3959
      %v3961 = vpop.f32.mrb[0].mxu0
      %v3962 = vpop.f32.mrb[0].mxu0
      %v3963 = vadd.f32 0.0, %v3962
      %v3964 = vpop.f32.mrb[0].mxu0
      %3965 = vdwg.mxu0
      %v3966 = vadd.f32 %v3577, %v3840
      %v3967 = vadd.f32 %v3578, %v3843
      %v3968 = vadd.f32 %v3579, %v3848
      %v3969 = vadd.f32 %v3580, %v3851
      %v3970 = vadd.f32 %v3581, %v3856
      %v3971 = vadd.f32 %v3582, %v3859
      %v3972 = vadd.f32 %v3583, %v3864
      %v3973 = vadd.f32 %v3584, %v3867
      %v3974 = vadd.f32 %v3585, %v3872
      %v3975 = vadd.f32 %v3586, %v3875
      %v3976 = vadd.f32 %v3587, %v3880
      %v3977 = vadd.f32 %v3588, %v3883
      %v3978 = vadd.f32 %v3589, %v3888
      %v3979 = vadd.f32 %v3590, %v3891
      %v3980 = vadd.f32 %v3591, %v3896
      %v3981 = vadd.f32 %v3592, %v3899
      %v3982 = vadd.f32 %v3593, %v3904
      %v3983 = vadd.f32 %v3594, %v3907
      %v3984 = vadd.f32 %v3595, %v3912
      %v3985 = vadd.f32 %v3596, %v3915
      %v3986 = vadd.f32 %v3597, %v3920
      %v3987 = vadd.f32 %v3598, %v3923
      %v3988 = vadd.f32 %v3599, %v3928
      %v3989 = vadd.f32 %v3600, %v3931
      %v3990 = vadd.f32 %v3601, %v3936
      %v3991 = vadd.f32 %v3602, %v3939
      %v3992 = vadd.f32 %v3603, %v3944
      %v3993 = vadd.f32 %v3604, %v3947
      %v3994 = vadd.f32 %v3605, %v3952
      %v3995 = vadd.f32 %v3606, %v3955
      %v3996 = vadd.f32 %v3607, %v3960
      %v3997 = vadd.f32 %v3608, %v3963
      %v3998 = vld [vmem:[%s3612] sm:$0xf]
      %v3999 = vld [vmem:[%s3612 + $0x4] sm:$0xf]
      %v4000 = vld [vmem:[%s3612 + $0x8] sm:$0x1]
      %v4001 = vld [vmem:[%s3612 + $0xc] sm:$0xf]
      %v4002 = vld [vmem:[%s3612 + $0x10] sm:$0xf]
      %v4003 = vld [vmem:[%s3612 + $0x14] sm:$0x1]
      %v4004 = vld [vmem:[%s3612 + $0x18] sm:$0xf]
      %v4005 = vld [vmem:[%s3612 + $0x1c] sm:$0xf]
      %v4006 = vld [vmem:[%s3612 + $0x20] sm:$0x1]
      %v4007 = vld [vmem:[%s3612 + $0x24] sm:$0xf]
      %v4008 = vld [vmem:[%s3612 + $0x28] sm:$0xf]
      %v4009 = vld [vmem:[%s3612 + $0x2c] sm:$0x1]
      %v4010 = vld [vmem:[%s3612 + $0x30] sm:$0xf]
      %v4011 = vld [vmem:[%s3612 + $0x34] sm:$0xf]
      %v4012 = vld [vmem:[%s3612 + $0x38] sm:$0x1]
      %v4013 = vld [vmem:[%s3612 + $0x3c] sm:$0xf]
      %v4014 = vld [vmem:[%s3612 + $0x40] sm:$0xf]
      %v4015 = vld [vmem:[%s3612 + $0x44] sm:$0x1]
      %v4016 = vld [vmem:[%s3612 + $0x48] sm:$0xf]
      %v4017 = vld [vmem:[%s3612 + $0x4c] sm:$0xf]
      %v4018 = vld [vmem:[%s3612 + $0x50] sm:$0x1]
      %v4019 = vld [vmem:[%s3612 + $0x54] sm:$0xf]
      %v4020 = vld [vmem:[%s3612 + $0x58] sm:$0xf]
      %v4021 = vld [vmem:[%s3612 + $0x5c] sm:$0x1]
      %v4022 = vld [vmem:[%s3612 + $0x60] sm:$0xf]
      %v4023 = vld [vmem:[%s3612 + $0x64] sm:$0xf]
      %v4024 = vld [vmem:[%s3612 + $0x68] sm:$0x1]
      %v4025 = vld [vmem:[%s3612 + $0x6c] sm:$0xf]
      %v4026 = vld [vmem:[%s3612 + $0x70] sm:$0xf]
      %v4027 = vld [vmem:[%s3612 + $0x74] sm:$0x1]
      %v4028 = vld [vmem:[%s3612 + $0x78] sm:$0xf]
      %v4029 = vld [vmem:[%s3612 + $0x7c] sm:$0xf]
      %v4030 = vld [vmem:[%s3612 + $0x80] sm:$0x1]
      %v4031 = vld [vmem:[%s3612 + $0x84] sm:$0xf]
      %v4032 = vld [vmem:[%s3612 + $0x88] sm:$0xf]
      %v4033 = vld [vmem:[%s3612 + $0x8c] sm:$0x1]
      %v4034 = vld [vmem:[%s3612 + $0x90] sm:$0xf]
      %v4035 = vld [vmem:[%s3612 + $0x94] sm:$0xf]
      %v4036 = vld [vmem:[%s3612 + $0x98] sm:$0x1]
      %v4037 = vld [vmem:[%s3612 + $0x9c] sm:$0xf]
      %v4038 = vld [vmem:[%s3612 + $0xa0] sm:$0xf]
      %v4039 = vld [vmem:[%s3612 + $0xa4] sm:$0x1]
      %v4040 = vld [vmem:[%s3612 + $0xa8] sm:$0xf]
      %v4041 = vld [vmem:[%s3612 + $0xac] sm:$0xf]
      %v4042 = vld [vmem:[%s3612 + $0xb0] sm:$0x1]
      %v4043 = vld [vmem:[%s3612 + $0xb4] sm:$0xf]
      %v4044 = vld [vmem:[%s3612 + $0xb8] sm:$0xf]
      %v4045 = vld [vmem:[%s3612 + $0xbc] sm:$0x1]
      %v4047 = vshrl.u32 %v3998, 16
      %v4049 = vrot.slane %v4047, 4
      %v4050 = vshll.u32 %v3998, 16
      %v4052 = vrot.slane %v4050, 5
      %v4053 = vor.u32 %v4049, %v4052
      %v4054 = vrot.slane %v4053, 4
      %v4056 = vshll.u32 %v3999, 16
      %v4058 = vrot.slane %v4056, 5
      %v4059 = vsel %vm507, %v4054, %v4058
      %v4060 = vshrl.u32 %v3999, 16
      %v4062 = vrot.slane %v4060, 4
      %v4063 = vor.u32 %v4062, %v4058
      %v4064 = vrot.slane %v4063, 4
      %v4066 = vshll.u32 %v4000, 16
      %v4068 = vrot.slane %v4066, 5
      %v4069 = vsel %vm507, %v4064, %v4068
      %v4071 = vshrl.u32 %v4001, 16
      %v4073 = vrot.slane %v4071, 4
      %v4074 = vshll.u32 %v4001, 16
      %v4076 = vrot.slane %v4074, 5
      %v4077 = vor.u32 %v4073, %v4076
      %v4078 = vrot.slane %v4077, 4
      %v4080 = vshll.u32 %v4002, 16
      %v4082 = vrot.slane %v4080, 5
      %v4083 = vsel %vm507, %v4078, %v4082
      %v4084 = vshrl.u32 %v4002, 16
      %v4086 = vrot.slane %v4084, 4
      %v4087 = vor.u32 %v4086, %v4082
      %v4088 = vrot.slane %v4087, 4
      %v4090 = vshll.u32 %v4003, 16
      %v4092 = vrot.slane %v4090, 5
      %v4093 = vsel %vm507, %v4088, %v4092
      %v4095 = vshrl.u32 %v4004, 16
      %v4097 = vrot.slane %v4095, 4
      %v4098 = vshll.u32 %v4004, 16
      %v4100 = vrot.slane %v4098, 5
      %v4101 = vor.u32 %v4097, %v4100
      %v4102 = vrot.slane %v4101, 4
      %v4104 = vshll.u32 %v4005, 16
      %v4106 = vrot.slane %v4104, 5
      %v4107 = vsel %vm507, %v4102, %v4106
      %v4108 = vshrl.u32 %v4005, 16
      %v4110 = vrot.slane %v4108, 4
      %v4111 = vor.u32 %v4110, %v4106
      %v4112 = vrot.slane %v4111, 4
      %v4114 = vshll.u32 %v4006, 16
      %v4116 = vrot.slane %v4114, 5
      %v4117 = vsel %vm507, %v4112, %v4116
      %v4119 = vshrl.u32 %v4007, 16
      %v4121 = vrot.slane %v4119, 4
      %v4122 = vshll.u32 %v4007, 16
      %v4124 = vrot.slane %v4122, 5
      %v4125 = vor.u32 %v4121, %v4124
      %v4126 = vrot.slane %v4125, 4
      %v4128 = vshll.u32 %v4008, 16
      %v4130 = vrot.slane %v4128, 5
      %v4131 = vsel %vm507, %v4126, %v4130
      %v4132 = vshrl.u32 %v4008, 16
      %v4134 = vrot.slane %v4132, 4
      %v4135 = vor.u32 %v4134, %v4130
      %v4136 = vrot.slane %v4135, 4
      %v4138 = vshll.u32 %v4009, 16
      %v4140 = vrot.slane %v4138, 5
      %v4141 = vsel %vm507, %v4136, %v4140
      %v4143 = vshrl.u32 %v4010, 16
      %v4145 = vrot.slane %v4143, 4
      %v4146 = vshll.u32 %v4010, 16
      %v4148 = vrot.slane %v4146, 5
      %v4149 = vor.u32 %v4145, %v4148
      %v4150 = vrot.slane %v4149, 4
      %v4152 = vshll.u32 %v4011, 16
      %v4154 = vrot.slane %v4152, 5
      %v4155 = vsel %vm507, %v4150, %v4154
      %v4156 = vshrl.u32 %v4011, 16
      %v4158 = vrot.slane %v4156, 4
      %v4159 = vor.u32 %v4158, %v4154
      %v4160 = vrot.slane %v4159, 4
      %v4162 = vshll.u32 %v4012, 16
      %v4164 = vrot.slane %v4162, 5
      %v4165 = vsel %vm507, %v4160, %v4164
      %v4167 = vshrl.u32 %v4013, 16
      %v4169 = vrot.slane %v4167, 4
      %v4170 = vshll.u32 %v4013, 16
      %v4172 = vrot.slane %v4170, 5
      %v4173 = vor.u32 %v4169, %v4172
      %v4174 = vrot.slane %v4173, 4
      %v4176 = vshll.u32 %v4014, 16
      %v4178 = vrot.slane %v4176, 5
      %v4179 = vsel %vm507, %v4174, %v4178
      %v4180 = vshrl.u32 %v4014, 16
      %v4182 = vrot.slane %v4180, 4
      %v4183 = vor.u32 %v4182, %v4178
      %v4184 = vrot.slane %v4183, 4
      %v4186 = vshll.u32 %v4015, 16
      %v4188 = vrot.slane %v4186, 5
      %v4189 = vsel %vm507, %v4184, %v4188
      %v4191 = vshrl.u32 %v4016, 16
      %v4193 = vrot.slane %v4191, 4
      %v4194 = vshll.u32 %v4016, 16
      %v4196 = vrot.slane %v4194, 5
      %v4197 = vor.u32 %v4193, %v4196
      %v4198 = vrot.slane %v4197, 4
      %v4200 = vshll.u32 %v4017, 16
      %v4202 = vrot.slane %v4200, 5
      %v4203 = vsel %vm507, %v4198, %v4202
      %v4204 = vshrl.u32 %v4017, 16
      %v4206 = vrot.slane %v4204, 4
      %v4207 = vor.u32 %v4206, %v4202
      %v4208 = vrot.slane %v4207, 4
      %v4210 = vshll.u32 %v4018, 16
      %v4212 = vrot.slane %v4210, 5
      %v4213 = vsel %vm507, %v4208, %v4212
      %v4215 = vshrl.u32 %v4019, 16
      %v4217 = vrot.slane %v4215, 4
      %v4218 = vshll.u32 %v4019, 16
      %v4220 = vrot.slane %v4218, 5
      %v4221 = vor.u32 %v4217, %v4220
      %v4222 = vrot.slane %v4221, 4
      %v4224 = vshll.u32 %v4020, 16
      %v4226 = vrot.slane %v4224, 5
      %v4227 = vsel %vm507, %v4222, %v4226
      %v4228 = vshrl.u32 %v4020, 16
      %v4230 = vrot.slane %v4228, 4
      %v4231 = vor.u32 %v4230, %v4226
      %v4232 = vrot.slane %v4231, 4
      %v4234 = vshll.u32 %v4021, 16
      %v4236 = vrot.slane %v4234, 5
      %v4237 = vsel %vm507, %v4232, %v4236
      %v4239 = vshrl.u32 %v4022, 16
      %v4241 = vrot.slane %v4239, 4
      %v4242 = vshll.u32 %v4022, 16
      %v4244 = vrot.slane %v4242, 5
      %v4245 = vor.u32 %v4241, %v4244
      %v4246 = vrot.slane %v4245, 4
      %v4248 = vshll.u32 %v4023, 16
      %v4250 = vrot.slane %v4248, 5
      %v4251 = vsel %vm507, %v4246, %v4250
      %v4252 = vshrl.u32 %v4023, 16
      %v4254 = vrot.slane %v4252, 4
      %v4255 = vor.u32 %v4254, %v4250
      %v4256 = vrot.slane %v4255, 4
      %v4258 = vshll.u32 %v4024, 16
      %v4260 = vrot.slane %v4258, 5
      %v4261 = vsel %vm507, %v4256, %v4260
      %v4263 = vshrl.u32 %v4025, 16
      %v4265 = vrot.slane %v4263, 4
      %v4266 = vshll.u32 %v4025, 16
      %v4268 = vrot.slane %v4266, 5
      %v4269 = vor.u32 %v4265, %v4268
      %v4270 = vrot.slane %v4269, 4
      %v4272 = vshll.u32 %v4026, 16
      %v4274 = vrot.slane %v4272, 5
      %v4275 = vsel %vm507, %v4270, %v4274
      %v4276 = vshrl.u32 %v4026, 16
      %v4278 = vrot.slane %v4276, 4
      %v4279 = vor.u32 %v4278, %v4274
      %v4280 = vrot.slane %v4279, 4
      %v4282 = vshll.u32 %v4027, 16
      %v4284 = vrot.slane %v4282, 5
      %v4285 = vsel %vm507, %v4280, %v4284
      %v4287 = vshrl.u32 %v4028, 16
      %v4289 = vrot.slane %v4287, 4
      %v4290 = vshll.u32 %v4028, 16
      %v4292 = vrot.slane %v4290, 5
      %v4293 = vor.u32 %v4289, %v4292
      %v4294 = vrot.slane %v4293, 4
      %v4296 = vshll.u32 %v4029, 16
      %v4298 = vrot.slane %v4296, 5
      %v4299 = vsel %vm507, %v4294, %v4298
      %v4300 = vshrl.u32 %v4029, 16
      %v4302 = vrot.slane %v4300, 4
      %v4303 = vor.u32 %v4302, %v4298
      %v4304 = vrot.slane %v4303, 4
      %v4306 = vshll.u32 %v4030, 16
      %v4308 = vrot.slane %v4306, 5
      %v4309 = vsel %vm507, %v4304, %v4308
      %v4311 = vshrl.u32 %v4031, 16
      %v4313 = vrot.slane %v4311, 4
      %v4314 = vshll.u32 %v4031, 16
      %v4316 = vrot.slane %v4314, 5
      %v4317 = vor.u32 %v4313, %v4316
      %v4318 = vrot.slane %v4317, 4
      %v4320 = vshll.u32 %v4032, 16
      %v4322 = vrot.slane %v4320, 5
      %v4323 = vsel %vm507, %v4318, %v4322
      %v4324 = vshrl.u32 %v4032, 16
      %v4326 = vrot.slane %v4324, 4
      %v4327 = vor.u32 %v4326, %v4322
      %v4328 = vrot.slane %v4327, 4
      %v4330 = vshll.u32 %v4033, 16
      %v4332 = vrot.slane %v4330, 5
      %v4333 = vsel %vm507, %v4328, %v4332
      %v4335 = vshrl.u32 %v4034, 16
      %v4337 = vrot.slane %v4335, 4
      %v4338 = vshll.u32 %v4034, 16
      %v4340 = vrot.slane %v4338, 5
      %v4341 = vor.u32 %v4337, %v4340
      %v4342 = vrot.slane %v4341, 4
      %v4344 = vshll.u32 %v4035, 16
      %v4346 = vrot.slane %v4344, 5
      %v4347 = vsel %vm507, %v4342, %v4346
      %v4348 = vshrl.u32 %v4035, 16
      %v4350 = vrot.slane %v4348, 4
      %v4351 = vor.u32 %v4350, %v4346
      %v4352 = vrot.slane %v4351, 4
      %v4354 = vshll.u32 %v4036, 16
      %v4356 = vrot.slane %v4354, 5
      %v4357 = vsel %vm507, %v4352, %v4356
      %v4359 = vshrl.u32 %v4037, 16
      %v4361 = vrot.slane %v4359, 4
      %v4362 = vshll.u32 %v4037, 16
      %v4364 = vrot.slane %v4362, 5
      %v4365 = vor.u32 %v4361, %v4364
      %v4366 = vrot.slane %v4365, 4
      %v4368 = vshll.u32 %v4038, 16
      %v4370 = vrot.slane %v4368, 5
      %v4371 = vsel %vm507, %v4366, %v4370
      %v4372 = vshrl.u32 %v4038, 16
      %v4374 = vrot.slane %v4372, 4
      %v4375 = vor.u32 %v4374, %v4370
      %v4376 = vrot.slane %v4375, 4
      %v4378 = vshll.u32 %v4039, 16
      %v4380 = vrot.slane %v4378, 5
      %v4381 = vsel %vm507, %v4376, %v4380
      %v4383 = vshrl.u32 %v4040, 16
      %v4385 = vrot.slane %v4383, 4
      %v4386 = vshll.u32 %v4040, 16
      %v4388 = vrot.slane %v4386, 5
      %v4389 = vor.u32 %v4385, %v4388
      %v4390 = vrot.slane %v4389, 4
      %v4392 = vshll.u32 %v4041, 16
      %v4394 = vrot.slane %v4392, 5
      %v4395 = vsel %vm507, %v4390, %v4394
      %v4396 = vshrl.u32 %v4041, 16
      %v4398 = vrot.slane %v4396, 4
      %v4399 = vor.u32 %v4398, %v4394
      %v4400 = vrot.slane %v4399, 4
      %v4402 = vshll.u32 %v4042, 16
      %v4404 = vrot.slane %v4402, 5
      %v4405 = vsel %vm507, %v4400, %v4404
      %v4407 = vshrl.u32 %v4043, 16
      %v4409 = vrot.slane %v4407, 4
      %v4410 = vshll.u32 %v4043, 16
      %v4412 = vrot.slane %v4410, 5
      %v4413 = vor.u32 %v4409, %v4412
      %v4414 = vrot.slane %v4413, 4
      %v4416 = vshll.u32 %v4044, 16
      %v4418 = vrot.slane %v4416, 5
      %v4419 = vsel %vm507, %v4414, %v4418
      %v4420 = vshrl.u32 %v4044, 16
      %v4422 = vrot.slane %v4420, 4
      %v4423 = vor.u32 %v4422, %v4418
      %v4424 = vrot.slane %v4423, 4
      %v4426 = vshll.u32 %v4045, 16
      %v4428 = vrot.slane %v4426, 5
      %v4429 = vsel %vm507, %v4424, %v4428
      %v4430 = vld [vmem:[%s1 + $0x1c0] sm:$0xf]
      %v4431 = vld [vmem:[%s1 + $0x1c4] sm:$0xf]
      %v4432 = vld [vmem:[%s1 + $0x1c8] sm:$0xf]
      %v4433 = vld [vmem:[%s1 + $0x1cc] sm:$0xf]
      %v4434 = vld [vmem:[%s1 + $0x1d0] sm:$0xf]
      %v4435 = vld [vmem:[%s1 + $0x1d4] sm:$0xf]
      %v4436 = vld [vmem:[%s1 + $0x1d8] sm:$0xf]
      %v4437 = vld [vmem:[%s1 + $0x1dc] sm:$0xf]
      %v4438 = vld [vmem:[%s1 + $0x1e0] sm:$0xf]
      %v4439 = vld [vmem:[%s1 + $0x1e4] sm:$0xf]
      %v4440 = vld [vmem:[%s1 + $0x1e8] sm:$0xf]
      %v4441 = vld [vmem:[%s1 + $0x1ec] sm:$0xf]
      %v4442 = vld [vmem:[%s1 + $0x1f0] sm:$0xf]
      %v4443 = vld [vmem:[%s1 + $0x1f4] sm:$0xf]
      %v4444 = vld [vmem:[%s1 + $0x1f8] sm:$0xf]
      %v4445 = vld [vmem:[%s1 + $0x1fc] sm:$0xf]
      %v4446 = vunpack.c.l.b16 %v4059
      %v4447 = vunpack.c.l.b16 %v4069
      %v4448 = vunpack.c.l.b16 %v4083
      %v4449 = vunpack.c.l.b16 %v4093
      %v4450 = vunpack.c.l.b16 %v4107
      %v4451 = vunpack.c.l.b16 %v4117
      %v4452 = vunpack.c.l.b16 %v4131
      %v4453 = vunpack.c.l.b16 %v4141
      %v4454 = vunpack.c.l.b16 %v4155
      %v4455 = vunpack.c.l.b16 %v4165
      %v4456 = vunpack.c.l.b16 %v4179
      %v4457 = vunpack.c.l.b16 %v4189
      %v4458 = vunpack.c.l.b16 %v4203
      %v4459 = vunpack.c.l.b16 %v4213
      %v4460 = vunpack.c.l.b16 %v4227
      %v4461 = vunpack.c.l.b16 %v4237
      %v4462 = vunpack.c.l.b16 %v4251
      %v4463 = vunpack.c.l.b16 %v4261
      %v4464 = vunpack.c.l.b16 %v4275
      %v4465 = vunpack.c.l.b16 %v4285
      %v4466 = vunpack.c.l.b16 %v4299
      %v4467 = vunpack.c.l.b16 %v4309
      %v4468 = vunpack.c.l.b16 %v4323
      %v4469 = vunpack.c.l.b16 %v4333
      %v4470 = vunpack.c.l.b16 %v4347
      %v4471 = vunpack.c.l.b16 %v4357
      %v4472 = vunpack.c.l.b16 %v4371
      %v4473 = vunpack.c.l.b16 %v4381
      %v4474 = vunpack.c.l.b16 %v4395
      %v4475 = vunpack.c.l.b16 %v4405
      %v4476 = vunpack.c.l.b16 %v4419
      %v4477 = vunpack.c.l.b16 %v4429
      %v4478 = vpack.c.b16 %v4447, %v4446
      %v4479 = vpack.c.b16 %v4449, %v4448
      %v4480 = vpack.c.b16 %v4451, %v4450
      %v4481 = vpack.c.b16 %v4453, %v4452
      %v4482 = vpack.c.b16 %v4455, %v4454
      %v4483 = vpack.c.b16 %v4457, %v4456
      %v4484 = vpack.c.b16 %v4459, %v4458
      %v4485 = vpack.c.b16 %v4461, %v4460
      %v4486 = vpack.c.b16 %v4463, %v4462
      %v4487 = vpack.c.b16 %v4465, %v4464
      %v4488 = vpack.c.b16 %v4467, %v4466
      %v4489 = vpack.c.b16 %v4469, %v4468
      %v4490 = vpack.c.b16 %v4471, %v4470
      %v4491 = vpack.c.b16 %v4473, %v4472
      %v4492 = vpack.c.b16 %v4475, %v4474
      %v4493 = vpack.c.b16 %v4477, %v4476
      %v4526 = vunpack.c.l.b16 %v4430
      %v4527 = vunpack.c.l.b16 %v4431
      %v4528 = vunpack.c.l.b16 %v4432
      %v4529 = vunpack.c.l.b16 %v4433
      %v4530 = vunpack.c.l.b16 %v4434
      %v4531 = vunpack.c.l.b16 %v4435
      %v4532 = vunpack.c.l.b16 %v4436
      %v4533 = vunpack.c.l.b16 %v4437
      %v4534 = vunpack.c.l.b16 %v4438
      %v4535 = vunpack.c.l.b16 %v4439
      %v4536 = vunpack.c.l.b16 %v4440
      %v4537 = vunpack.c.l.b16 %v4441
      %v4538 = vunpack.c.l.b16 %v4442
      %v4539 = vunpack.c.l.b16 %v4443
      %v4540 = vunpack.c.l.b16 %v4444
      %v4541 = vunpack.c.l.b16 %v4445
      %v4542 = vpack.c.b16 %v4527, %v4526
      %v4543 = vpack.c.b16 %v4529, %v4528
      %v4544 = vpack.c.b16 %v4531, %v4530
      %v4545 = vpack.c.b16 %v4533, %v4532
      %v4546 = vpack.c.b16 %v4535, %v4534
      %v4547 = vpack.c.b16 %v4537, %v4536
      %v4548 = vpack.c.b16 %v4539, %v4538
      %v4549 = vpack.c.b16 %v4541, %v4540
      %4558 = vmatprep.subr.bf16.mxu0 0
      %4559 = vmatpush1.bf16.msra.mxu0 %v4542
      %4560 = vmatprep.subr.bf16.mxu0 0
      %4561 = vmatpush1.bf16.msra.mxu0 %v4543
      %4562 = vmatprep.subr.bf16.mxu0 0
      %4563 = vmatpush1.bf16.msra.mxu0 %v4544
      %4564 = vmatprep.subr.bf16.mxu0 0
      %4565 = vmatpush1.bf16.msra.mxu0 %v4545
      %4566 = vmatprep.subr.bf16.mxu0 0
      %4567 = vmatpush1.bf16.msra.mxu0 %v4546
      %4568 = vmatprep.subr.bf16.mxu0 0
      %4569 = vmatpush1.bf16.msra.mxu0 %v4547
      %4570 = vmatprep.subr.bf16.mxu0 0
      %4571 = vmatpush1.bf16.msra.mxu0 %v4548
      %4572 = vmatprep.subr.bf16.mxu0 0
      %4573 = vmatpush1.bf16.msra.mxu0 %v4549
      %4574 = vmatprep.subr.bf16.mxu0 0
      %4575 = vmatpush1.bf16.msra.mxu0 0
      %4576 = vmatprep.subr.bf16.mxu0 0
      %4577 = vmatpush1.bf16.msra.mxu0 0
      %4578 = vmatprep.subr.bf16.mxu0 0
      %4579 = vmatpush1.bf16.msra.mxu0 0
      %4580 = vmatprep.subr.bf16.mxu0 0
      %4581 = vmatpush1.bf16.msra.mxu0 0
      %4582 = vmatprep.subr.bf16.mxu0 0
      %4583 = vmatpush1.bf16.msra.mxu0 0
      %4584 = vmatprep.subr.bf16.mxu0 0
      %4585 = vmatpush1.bf16.msra.mxu0 0
      %4586 = vmatprep.subr.bf16.mxu0 0
      %4587 = vmatpush1.bf16.msra.mxu0 0
      %4588 = vmatprep.subr.bf16.mxu0 0
      %4589 = vmatpush1.bf16.msra.mxu0 0
      %4590 = vmatprep.mubr.bf16.mxu0 0
      %4591 = vmatmul.mubr.bf16.gmra.mrb[0].mxu0 %v4478
      %v4592 = vpop.f32.mrb[0].mxu0
      %v4593 = vadd.f32 0.0, %v4592
      %v4594 = vpop.f32.mrb[0].mxu0
      %v4595 = vpop.f32.mrb[0].mxu0
      %v4596 = vadd.f32 0.0, %v4595
      %v4597 = vpop.f32.mrb[0].mxu0
      %4598 = vmatprep.mubr.bf16.mxu0 0
      %4599 = vmatmul.mubr.bf16.gmra.mrb[0].mxu0 %v4479
      %v4600 = vpop.f32.mrb[0].mxu0
      %v4601 = vadd.f32 0.0, %v4600
      %v4602 = vpop.f32.mrb[0].mxu0
      %v4603 = vpop.f32.mrb[0].mxu0
      %v4604 = vadd.f32 0.0, %v4603
      %v4605 = vpop.f32.mrb[0].mxu0
      %4606 = vmatprep.mubr.bf16.mxu0 0
      %4607 = vmatmul.mubr.bf16.gmra.mrb[0].mxu0 %v4480
      %v4608 = vpop.f32.mrb[0].mxu0
      %v4609 = vadd.f32 0.0, %v4608
      %v4610 = vpop.f32.mrb[0].mxu0
      %v4611 = vpop.f32.mrb[0].mxu0
      %v4612 = vadd.f32 0.0, %v4611
      %v4613 = vpop.f32.mrb[0].mxu0
      %4614 = vmatprep.mubr.bf16.mxu0 0
      %4615 = vmatmul.mubr.bf16.gmra.mrb[0].mxu0 %v4481
      %v4616 = vpop.f32.mrb[0].mxu0
      %v4617 = vadd.f32 0.0, %v4616
      %v4618 = vpop.f32.mrb[0].mxu0
      %v4619 = vpop.f32.mrb[0].mxu0
      %v4620 = vadd.f32 0.0, %v4619
      %v4621 = vpop.f32.mrb[0].mxu0
      %4622 = vmatprep.mubr.bf16.mxu0 0
      %4623 = vmatmul.mubr.bf16.gmra.mrb[0].mxu0 %v4482
      %v4624 = vpop.f32.mrb[0].mxu0
      %v4625 = vadd.f32 0.0, %v4624
      %v4626 = vpop.f32.mrb[0].mxu0
      %v4627 = vpop.f32.mrb[0].mxu0
      %v4628 = vadd.f32 0.0, %v4627
      %v4629 = vpop.f32.mrb[0].mxu0
      %4630 = vmatprep.mubr.bf16.mxu0 0
      %4631 = vmatmul.mubr.bf16.gmra.mrb[0].mxu0 %v4483
      %v4632 = vpop.f32.mrb[0].mxu0
      %v4633 = vadd.f32 0.0, %v4632
      %v4634 = vpop.f32.mrb[0].mxu0
      %v4635 = vpop.f32.mrb[0].mxu0
      %v4636 = vadd.f32 0.0, %v4635
      %v4637 = vpop.f32.mrb[0].mxu0
      %4638 = vmatprep.mubr.bf16.mxu0 0
      %4639 = vmatmul.mubr.bf16.gmra.mrb[0].mxu0 %v4484
      %v4640 = vpop.f32.mrb[0].mxu0
      %v4641 = vadd.f32 0.0, %v4640
      %v4642 = vpop.f32.mrb[0].mxu0
      %v4643 = vpop.f32.mrb[0].mxu0
      %v4644 = vadd.f32 0.0, %v4643
      %v4645 = vpop.f32.mrb[0].mxu0
      %4646 = vmatprep.mubr.bf16.mxu0 0
      %4647 = vmatmul.mubr.bf16.gmra.mrb[0].mxu0 %v4485
      %v4648 = vpop.f32.mrb[0].mxu0
      %v4649 = vadd.f32 0.0, %v4648
      %v4650 = vpop.f32.mrb[0].mxu0
      %v4651 = vpop.f32.mrb[0].mxu0
      %v4652 = vadd.f32 0.0, %v4651
      %v4653 = vpop.f32.mrb[0].mxu0
      %4654 = vmatprep.mubr.bf16.mxu0 0
      %4655 = vmatmul.mubr.bf16.gmra.mrb[0].mxu0 %v4486
      %v4656 = vpop.f32.mrb[0].mxu0
      %v4657 = vadd.f32 0.0, %v4656
      %v4658 = vpop.f32.mrb[0].mxu0
      %v4659 = vpop.f32.mrb[0].mxu0
      %v4660 = vadd.f32 0.0, %v4659
      %v4661 = vpop.f32.mrb[0].mxu0
      %4662 = vmatprep.mubr.bf16.mxu0 0
      %4663 = vmatmul.mubr.bf16.gmra.mrb[0].mxu0 %v4487
      %v4664 = vpop.f32.mrb[0].mxu0
      %v4665 = vadd.f32 0.0, %v4664
      %v4666 = vpop.f32.mrb[0].mxu0
      %v4667 = vpop.f32.mrb[0].mxu0
      %v4668 = vadd.f32 0.0, %v4667
      %v4669 = vpop.f32.mrb[0].mxu0
      %4670 = vmatprep.mubr.bf16.mxu0 0
      %4671 = vmatmul.mubr.bf16.gmra.mrb[0].mxu0 %v4488
      %v4672 = vpop.f32.mrb[0].mxu0
      %v4673 = vadd.f32 0.0, %v4672
      %v4674 = vpop.f32.mrb[0].mxu0
      %v4675 = vpop.f32.mrb[0].mxu0
      %v4676 = vadd.f32 0.0, %v4675
      %v4677 = vpop.f32.mrb[0].mxu0
      %4678 = vmatprep.mubr.bf16.mxu0 0
      %4679 = vmatmul.mubr.bf16.gmra.mrb[0].mxu0 %v4489
      %v4680 = vpop.f32.mrb[0].mxu0
      %v4681 = vadd.f32 0.0, %v4680
      %v4682 = vpop.f32.mrb[0].mxu0
      %v4683 = vpop.f32.mrb[0].mxu0
      %v4684 = vadd.f32 0.0, %v4683
      %v4685 = vpop.f32.mrb[0].mxu0
      %4686 = vmatprep.mubr.bf16.mxu0 0
      %4687 = vmatmul.mubr.bf16.gmra.mrb[0].mxu0 %v4490
      %v4688 = vpop.f32.mrb[0].mxu0
      %v4689 = vadd.f32 0.0, %v4688
      %v4690 = vpop.f32.mrb[0].mxu0
      %v4691 = vpop.f32.mrb[0].mxu0
      %v4692 = vadd.f32 0.0, %v4691
      %v4693 = vpop.f32.mrb[0].mxu0
      %4694 = vmatprep.mubr.bf16.mxu0 0
      %4695 = vmatmul.mubr.bf16.gmra.mrb[0].mxu0 %v4491
      %v4696 = vpop.f32.mrb[0].mxu0
      %v4697 = vadd.f32 0.0, %v4696
      %v4698 = vpop.f32.mrb[0].mxu0
      %v4699 = vpop.f32.mrb[0].mxu0
      %v4700 = vadd.f32 0.0, %v4699
      %v4701 = vpop.f32.mrb[0].mxu0
      %4702 = vmatprep.mubr.bf16.mxu0 0
      %4703 = vmatmul.mubr.bf16.gmra.mrb[0].mxu0 %v4492
      %v4704 = vpop.f32.mrb[0].mxu0
      %v4705 = vadd.f32 0.0, %v4704
      %v4706 = vpop.f32.mrb[0].mxu0
      %v4707 = vpop.f32.mrb[0].mxu0
      %v4708 = vadd.f32 0.0, %v4707
      %v4709 = vpop.f32.mrb[0].mxu0
      %4710 = vmatprep.mubr.bf16.mxu0 0
      %4711 = vmatmul.mubr.bf16.gmra.mrb[0].mxu0 %v4493
      %v4712 = vpop.f32.mrb[0].mxu0
      %v4713 = vadd.f32 0.0, %v4712
      %v4714 = vpop.f32.mrb[0].mxu0
      %v4715 = vpop.f32.mrb[0].mxu0
      %v4716 = vadd.f32 0.0, %v4715
      %v4717 = vpop.f32.mrb[0].mxu0
      %4718 = vdwg.mxu0
      %v4719 = vadd.f32 %v3966, %v4593
      %v4720 = vadd.f32 %v3967, %v4596
      %v4721 = vadd.f32 %v3968, %v4601
      %v4722 = vadd.f32 %v3969, %v4604
      %v4723 = vadd.f32 %v3970, %v4609
      %v4724 = vadd.f32 %v3971, %v4612
      %v4725 = vadd.f32 %v3972, %v4617
      %v4726 = vadd.f32 %v3973, %v4620
      %v4727 = vadd.f32 %v3974, %v4625
      %v4728 = vadd.f32 %v3975, %v4628
      %v4729 = vadd.f32 %v3976, %v4633
      %v4730 = vadd.f32 %v3977, %v4636
      %v4731 = vadd.f32 %v3978, %v4641
      %v4732 = vadd.f32 %v3979, %v4644
      %v4733 = vadd.f32 %v3980, %v4649
      %v4734 = vadd.f32 %v3981, %v4652
      %v4735 = vadd.f32 %v3982, %v4657
      %v4736 = vadd.f32 %v3983, %v4660
      %v4737 = vadd.f32 %v3984, %v4665
      %v4738 = vadd.f32 %v3985, %v4668
      %v4739 = vadd.f32 %v3986, %v4673
      %v4740 = vadd.f32 %v3987, %v4676
      %v4741 = vadd.f32 %v3988, %v4681
      %v4742 = vadd.f32 %v3989, %v4684
      %v4743 = vadd.f32 %v3990, %v4689
      %v4744 = vadd.f32 %v3991, %v4692
      %v4745 = vadd.f32 %v3992, %v4697
      %v4746 = vadd.f32 %v3993, %v4700
      %v4747 = vadd.f32 %v3994, %v4705
      %v4748 = vadd.f32 %v3995, %v4708
      %v4749 = vadd.f32 %v3996, %v4713
      %v4750 = vadd.f32 %v3997, %v4716
      %v4751 = vld [vmem:[%s3612] sm:$0xe]
      %v4752 = vld [vmem:[%s3612 + $0xc] sm:$0xe]
      %v4753 = vld [vmem:[%s3612 + $0x18] sm:$0xe]
      %v4754 = vld [vmem:[%s3612 + $0x24] sm:$0xe]
      %v4755 = vld [vmem:[%s3612 + $0x30] sm:$0xe]
      %v4756 = vld [vmem:[%s3612 + $0x3c] sm:$0xe]
      %v4757 = vld [vmem:[%s3612 + $0x48] sm:$0xe]
      %v4758 = vld [vmem:[%s3612 + $0x54] sm:$0xe]
      %v4759 = vld [vmem:[%s3612 + $0x60] sm:$0xe]
      %v4760 = vld [vmem:[%s3612 + $0x6c] sm:$0xe]
      %v4761 = vld [vmem:[%s3612 + $0x78] sm:$0xe]
      %v4762 = vld [vmem:[%s3612 + $0x84] sm:$0xe]
      %v4763 = vld [vmem:[%s3612 + $0x90] sm:$0xe]
      %v4764 = vld [vmem:[%s3612 + $0x9c] sm:$0xe]
      %v4765 = vld [vmem:[%s3612 + $0xa8] sm:$0xe]
      %v4766 = vld [vmem:[%s3612 + $0xb4] sm:$0xe]
      %v4815 = vrot.slane %v4751, 5
      %v4816 = vrot.slane %v4815, 4
      %v4817 = vrot.slane %v3999, 5
      %v4818 = vsel %vm1536, %v4816, %v4817
      %v4819 = vrot.slane %v4817, 4
      %v4820 = vrot.slane %v4000, 5
      %v4821 = vsel %vm1536, %v4819, %v4820
      %v4822 = vrot.slane %v4752, 5
      %v4823 = vrot.slane %v4822, 4
      %v4824 = vrot.slane %v4002, 5
      %v4825 = vsel %vm1536, %v4823, %v4824
      %v4826 = vrot.slane %v4824, 4
      %v4827 = vrot.slane %v4003, 5
      %v4828 = vsel %vm1536, %v4826, %v4827
      %v4829 = vrot.slane %v4753, 5
      %v4830 = vrot.slane %v4829, 4
      %v4831 = vrot.slane %v4005, 5
      %v4832 = vsel %vm1536, %v4830, %v4831
      %v4833 = vrot.slane %v4831, 4
      %v4834 = vrot.slane %v4006, 5
      %v4835 = vsel %vm1536, %v4833, %v4834
      %v4836 = vrot.slane %v4754, 5
      %v4837 = vrot.slane %v4836, 4
      %v4838 = vrot.slane %v4008, 5
      %v4839 = vsel %vm1536, %v4837, %v4838
      %v4840 = vrot.slane %v4838, 4
      %v4841 = vrot.slane %v4009, 5
      %v4842 = vsel %vm1536, %v4840, %v4841
      %v4843 = vrot.slane %v4755, 5
      %v4844 = vrot.slane %v4843, 4
      %v4845 = vrot.slane %v4011, 5
      %v4846 = vsel %vm1536, %v4844, %v4845
      %v4847 = vrot.slane %v4845, 4
      %v4848 = vrot.slane %v4012, 5
      %v4849 = vsel %vm1536, %v4847, %v4848
      %v4850 = vrot.slane %v4756, 5
      %v4851 = vrot.slane %v4850, 4
      %v4852 = vrot.slane %v4014, 5
      %v4853 = vsel %vm1536, %v4851, %v4852
      %v4854 = vrot.slane %v4852, 4
      %v4855 = vrot.slane %v4015, 5
      %v4856 = vsel %vm1536, %v4854, %v4855
      %v4857 = vrot.slane %v4757, 5
      %v4858 = vrot.slane %v4857, 4
      %v4859 = vrot.slane %v4017, 5
      %v4860 = vsel %vm1536, %v4858, %v4859
      %v4861 = vrot.slane %v4859, 4
      %v4862 = vrot.slane %v4018, 5
      %v4863 = vsel %vm1536, %v4861, %v4862
      %v4864 = vrot.slane %v4758, 5
      %v4865 = vrot.slane %v4864, 4
      %v4866 = vrot.slane %v4020, 5
      %v4867 = vsel %vm1536, %v4865, %v4866
      %v4868 = vrot.slane %v4866, 4
      %v4869 = vrot.slane %v4021, 5
      %v4870 = vsel %vm1536, %v4868, %v4869
      %v4871 = vrot.slane %v4759, 5
      %v4872 = vrot.slane %v4871, 4
      %v4873 = vrot.slane %v4023, 5
      %v4874 = vsel %vm1536, %v4872, %v4873
      %v4875 = vrot.slane %v4873, 4
      %v4876 = vrot.slane %v4024, 5
      %v4877 = vsel %vm1536, %v4875, %v4876
      %v4878 = vrot.slane %v4760, 5
      %v4879 = vrot.slane %v4878, 4
      %v4880 = vrot.slane %v4026, 5
      %v4881 = vsel %vm1536, %v4879, %v4880
      %v4882 = vrot.slane %v4880, 4
      %v4883 = vrot.slane %v4027, 5
      %v4884 = vsel %vm1536, %v4882, %v4883
      %v4885 = vrot.slane %v4761, 5
      %v4886 = vrot.slane %v4885, 4
      %v4887 = vrot.slane %v4029, 5
      %v4888 = vsel %vm1536, %v4886, %v4887
      %v4889 = vrot.slane %v4887, 4
      %v4890 = vrot.slane %v4030, 5
      %v4891 = vsel %vm1536, %v4889, %v4890
      %v4892 = vrot.slane %v4762, 5
      %v4893 = vrot.slane %v4892, 4
      %v4894 = vrot.slane %v4032, 5
      %v4895 = vsel %vm1536, %v4893, %v4894
      %v4896 = vrot.slane %v4894, 4
      %v4897 = vrot.slane %v4033, 5
      %v4898 = vsel %vm1536, %v4896, %v4897
      %v4899 = vrot.slane %v4763, 5
      %v4900 = vrot.slane %v4899, 4
      %v4901 = vrot.slane %v4035, 5
      %v4902 = vsel %vm1536, %v4900, %v4901
      %v4903 = vrot.slane %v4901, 4
      %v4904 = vrot.slane %v4036, 5
      %v4905 = vsel %vm1536, %v4903, %v4904
      %v4906 = vrot.slane %v4764, 5
      %v4907 = vrot.slane %v4906, 4
      %v4908 = vrot.slane %v4038, 5
      %v4909 = vsel %vm1536, %v4907, %v4908
      %v4910 = vrot.slane %v4908, 4
      %v4911 = vrot.slane %v4039, 5
      %v4912 = vsel %vm1536, %v4910, %v4911
      %v4913 = vrot.slane %v4765, 5
      %v4914 = vrot.slane %v4913, 4
      %v4915 = vrot.slane %v4041, 5
      %v4916 = vsel %vm1536, %v4914, %v4915
      %v4917 = vrot.slane %v4915, 4
      %v4918 = vrot.slane %v4042, 5
      %v4919 = vsel %vm1536, %v4917, %v4918
      %v4920 = vrot.slane %v4766, 5
      %v4921 = vrot.slane %v4920, 4
      %v4922 = vrot.slane %v4044, 5
      %v4923 = vsel %vm1536, %v4921, %v4922
      %v4924 = vrot.slane %v4922, 4
      %v4925 = vrot.slane %v4045, 5
      %v4926 = vsel %vm1536, %v4924, %v4925
      %v4927 = vld [vmem:[%s1 + $0x200] sm:$0xf]
      %v4928 = vld [vmem:[%s1 + $0x204] sm:$0xf]
      %v4929 = vld [vmem:[%s1 + $0x208] sm:$0xf]
      %v4930 = vld [vmem:[%s1 + $0x20c] sm:$0xf]
      %v4931 = vld [vmem:[%s1 + $0x210] sm:$0xf]
      %v4932 = vld [vmem:[%s1 + $0x214] sm:$0xf]
      %v4933 = vld [vmem:[%s1 + $0x218] sm:$0xf]
      %v4934 = vld [vmem:[%s1 + $0x21c] sm:$0xf]
      %v4935 = vld [vmem:[%s1 + $0x220] sm:$0xf]
      %v4936 = vld [vmem:[%s1 + $0x224] sm:$0xf]
      %v4937 = vld [vmem:[%s1 + $0x228] sm:$0xf]
      %v4938 = vld [vmem:[%s1 + $0x22c] sm:$0xf]
      %v4939 = vld [vmem:[%s1 + $0x230] sm:$0xf]
      %v4940 = vld [vmem:[%s1 + $0x234] sm:$0xf]
      %v4941 = vld [vmem:[%s1 + $0x238] sm:$0xf]
      %v4942 = vld [vmem:[%s1 + $0x23c] sm:$0xf]
      %v4943 = vunpack.c.l.b16 %v4818
      %v4944 = vunpack.c.l.b16 %v4821
      %v4945 = vunpack.c.l.b16 %v4825
      %v4946 = vunpack.c.l.b16 %v4828
      %v4947 = vunpack.c.l.b16 %v4832
      %v4948 = vunpack.c.l.b16 %v4835
      %v4949 = vunpack.c.l.b16 %v4839
      %v4950 = vunpack.c.l.b16 %v4842
      %v4951 = vunpack.c.l.b16 %v4846
      %v4952 = vunpack.c.l.b16 %v4849
      %v4953 = vunpack.c.l.b16 %v4853
      %v4954 = vunpack.c.l.b16 %v4856
      %v4955 = vunpack.c.l.b16 %v4860
      %v4956 = vunpack.c.l.b16 %v4863
      %v4957 = vunpack.c.l.b16 %v4867
      %v4958 = vunpack.c.l.b16 %v4870
      %v4959 = vunpack.c.l.b16 %v4874
      %v4960 = vunpack.c.l.b16 %v4877
      %v4961 = vunpack.c.l.b16 %v4881
      %v4962 = vunpack.c.l.b16 %v4884
      %v4963 = vunpack.c.l.b16 %v4888
      %v4964 = vunpack.c.l.b16 %v4891
      %v4965 = vunpack.c.l.b16 %v4895
      %v4966 = vunpack.c.l.b16 %v4898
      %v4967 = vunpack.c.l.b16 %v4902
      %v4968 = vunpack.c.l.b16 %v4905
      %v4969 = vunpack.c.l.b16 %v4909
      %v4970 = vunpack.c.l.b16 %v4912
      %v4971 = vunpack.c.l.b16 %v4916
      %v4972 = vunpack.c.l.b16 %v4919
      %v4973 = vunpack.c.l.b16 %v4923
      %v4974 = vunpack.c.l.b16 %v4926
      %v4975 = vpack.c.b16 %v4944, %v4943
      %v4976 = vpack.c.b16 %v4946, %v4945
      %v4977 = vpack.c.b16 %v4948, %v4947
      %v4978 = vpack.c.b16 %v4950, %v4949
      %v4979 = vpack.c.b16 %v4952, %v4951
      %v4980 = vpack.c.b16 %v4954, %v4953
      %v4981 = vpack.c.b16 %v4956, %v4955
      %v4982 = vpack.c.b16 %v4958, %v4957
      %v4983 = vpack.c.b16 %v4960, %v4959
      %v4984 = vpack.c.b16 %v4962, %v4961
      %v4985 = vpack.c.b16 %v4964, %v4963
      %v4986 = vpack.c.b16 %v4966, %v4965
      %v4987 = vpack.c.b16 %v4968, %v4967
      %v4988 = vpack.c.b16 %v4970, %v4969
      %v4989 = vpack.c.b16 %v4972, %v4971
      %v4990 = vpack.c.b16 %v4974, %v4973
      %v5023 = vunpack.c.l.b16 %v4927
      %v5024 = vunpack.c.l.b16 %v4928
      %v5025 = vunpack.c.l.b16 %v4929
      %v5026 = vunpack.c.l.b16 %v4930
      %v5027 = vunpack.c.l.b16 %v4931
      %v5028 = vunpack.c.l.b16 %v4932
      %v5029 = vunpack.c.l.b16 %v4933
      %v5030 = vunpack.c.l.b16 %v4934
      %v5031 = vunpack.c.l.b16 %v4935
      %v5032 = vunpack.c.l.b16 %v4936
      %v5033 = vunpack.c.l.b16 %v4937
      %v5034 = vunpack.c.l.b16 %v4938
      %v5035 = vunpack.c.l.b16 %v4939
      %v5036 = vunpack.c.l.b16 %v4940
      %v5037 = vunpack.c.l.b16 %v4941
      %v5038 = vunpack.c.l.b16 %v4942
      %v5039 = vpack.c.b16 %v5024, %v5023
      %v5040 = vpack.c.b16 %v5026, %v5025
      %v5041 = vpack.c.b16 %v5028, %v5027
      %v5042 = vpack.c.b16 %v5030, %v5029
      %v5043 = vpack.c.b16 %v5032, %v5031
      %v5044 = vpack.c.b16 %v5034, %v5033
      %v5045 = vpack.c.b16 %v5036, %v5035
      %v5046 = vpack.c.b16 %v5038, %v5037
      %5055 = vmatprep.subr.bf16.mxu0 0
      %5056 = vmatpush1.bf16.msra.mxu0 %v5039
      %5057 = vmatprep.subr.bf16.mxu0 0
      %5058 = vmatpush1.bf16.msra.mxu0 %v5040
      %5059 = vmatprep.subr.bf16.mxu0 0
      %5060 = vmatpush1.bf16.msra.mxu0 %v5041
      %5061 = vmatprep.subr.bf16.mxu0 0
      %5062 = vmatpush1.bf16.msra.mxu0 %v5042
      %5063 = vmatprep.subr.bf16.mxu0 0
      %5064 = vmatpush1.bf16.msra.mxu0 %v5043
      %5065 = vmatprep.subr.bf16.mxu0 0
      %5066 = vmatpush1.bf16.msra.mxu0 %v5044
      %5067 = vmatprep.subr.bf16.mxu0 0
      %5068 = vmatpush1.bf16.msra.mxu0 %v5045
      %5069 = vmatprep.subr.bf16.mxu0 0
      %5070 = vmatpush1.bf16.msra.mxu0 %v5046
      %5071 = vmatprep.subr.bf16.mxu0 0
      %5072 = vmatpush1.bf16.msra.mxu0 0
      %5073 = vmatprep.subr.bf16.mxu0 0
      %5074 = vmatpush1.bf16.msra.mxu0 0
      %5075 = vmatprep.subr.bf16.mxu0 0
      %5076 = vmatpush1.bf16.msra.mxu0 0
      %5077 = vmatprep.subr.bf16.mxu0 0
      %5078 = vmatpush1.bf16.msra.mxu0 0
      %5079 = vmatprep.subr.bf16.mxu0 0
      %5080 = vmatpush1.bf16.msra.mxu0 0
      %5081 = vmatprep.subr.bf16.mxu0 0
      %5082 = vmatpush1.bf16.msra.mxu0 0
      %5083 = vmatprep.subr.bf16.mxu0 0
      %5084 = vmatpush1.bf16.msra.mxu0 0
      %5085 = vmatprep.subr.bf16.mxu0 0
      %5086 = vmatpush1.bf16.msra.mxu0 0
      %5087 = vmatprep.mubr.bf16.mxu0 0
      %5088 = vmatmul.mubr.bf16.gmra.mrb[0].mxu0 %v4975
      %v5089 = vpop.f32.mrb[0].mxu0
      %v5090 = vadd.f32 0.0, %v5089
      %v5091 = vpop.f32.mrb[0].mxu0
      %v5092 = vpop.f32.mrb[0].mxu0
      %v5093 = vadd.f32 0.0, %v5092
      %v5094 = vpop.f32.mrb[0].mxu0
      %5095 = vmatprep.mubr.bf16.mxu0 0
      %5096 = vmatmul.mubr.bf16.gmra.mrb[0].mxu0 %v4976
      %v5097 = vpop.f32.mrb[0].mxu0
      %v5098 = vadd.f32 0.0, %v5097
      %v5099 = vpop.f32.mrb[0].mxu0
      %v5100 = vpop.f32.mrb[0].mxu0
      %v5101 = vadd.f32 0.0, %v5100
      %v5102 = vpop.f32.mrb[0].mxu0
      %5103 = vmatprep.mubr.bf16.mxu0 0
      %5104 = vmatmul.mubr.bf16.gmra.mrb[0].mxu0 %v4977
      %v5105 = vpop.f32.mrb[0].mxu0
      %v5106 = vadd.f32 0.0, %v5105
      %v5107 = vpop.f32.mrb[0].mxu0
      %v5108 = vpop.f32.mrb[0].mxu0
      %v5109 = vadd.f32 0.0, %v5108
      %v5110 = vpop.f32.mrb[0].mxu0
      %5111 = vmatprep.mubr.bf16.mxu0 0
      %5112 = vmatmul.mubr.bf16.gmra.mrb[0].mxu0 %v4978
      %v5113 = vpop.f32.mrb[0].mxu0
      %v5114 = vadd.f32 0.0, %v5113
      %v5115 = vpop.f32.mrb[0].mxu0
      %v5116 = vpop.f32.mrb[0].mxu0
      %v5117 = vadd.f32 0.0, %v5116
      %v5118 = vpop.f32.mrb[0].mxu0
      %5119 = vmatprep.mubr.bf16.mxu0 0
      %5120 = vmatmul.mubr.bf16.gmra.mrb[0].mxu0 %v4979
      %v5121 = vpop.f32.mrb[0].mxu0
      %v5122 = vadd.f32 0.0, %v5121
      %v5123 = vpop.f32.mrb[0].mxu0
      %v5124 = vpop.f32.mrb[0].mxu0
      %v5125 = vadd.f32 0.0, %v5124
      %v5126 = vpop.f32.mrb[0].mxu0
      %5127 = vmatprep.mubr.bf16.mxu0 0
      %5128 = vmatmul.mubr.bf16.gmra.mrb[0].mxu0 %v4980
      %v5129 = vpop.f32.mrb[0].mxu0
      %v5130 = vadd.f32 0.0, %v5129
      %v5131 = vpop.f32.mrb[0].mxu0
      %v5132 = vpop.f32.mrb[0].mxu0
      %v5133 = vadd.f32 0.0, %v5132
      %v5134 = vpop.f32.mrb[0].mxu0
      %5135 = vmatprep.mubr.bf16.mxu0 0
      %5136 = vmatmul.mubr.bf16.gmra.mrb[0].mxu0 %v4981
      %v5137 = vpop.f32.mrb[0].mxu0
      %v5138 = vadd.f32 0.0, %v5137
      %v5139 = vpop.f32.mrb[0].mxu0
      %v5140 = vpop.f32.mrb[0].mxu0
      %v5141 = vadd.f32 0.0, %v5140
      %v5142 = vpop.f32.mrb[0].mxu0
      %5143 = vmatprep.mubr.bf16.mxu0 0
      %5144 = vmatmul.mubr.bf16.gmra.mrb[0].mxu0 %v4982
      %v5145 = vpop.f32.mrb[0].mxu0
      %v5146 = vadd.f32 0.0, %v5145
      %v5147 = vpop.f32.mrb[0].mxu0
      %v5148 = vpop.f32.mrb[0].mxu0
      %v5149 = vadd.f32 0.0, %v5148
      %v5150 = vpop.f32.mrb[0].mxu0
      %5151 = vmatprep.mubr.bf16.mxu0 0
      %5152 = vmatmul.mubr.bf16.gmra.mrb[0].mxu0 %v4983
      %v5153 = vpop.f32.mrb[0].mxu0
      %v5154 = vadd.f32 0.0, %v5153
      %v5155 = vpop.f32.mrb[0].mxu0
      %v5156 = vpop.f32.mrb[0].mxu0
      %v5157 = vadd.f32 0.0, %v5156
      %v5158 = vpop.f32.mrb[0].mxu0
      %5159 = vmatprep.mubr.bf16.mxu0 0
      %5160 = vmatmul.mubr.bf16.gmra.mrb[0].mxu0 %v4984
      %v5161 = vpop.f32.mrb[0].mxu0
      %v5162 = vadd.f32 0.0, %v5161
      %v5163 = vpop.f32.mrb[0].mxu0
      %v5164 = vpop.f32.mrb[0].mxu0
      %v5165 = vadd.f32 0.0, %v5164
      %v5166 = vpop.f32.mrb[0].mxu0
      %5167 = vmatprep.mubr.bf16.mxu0 0
      %5168 = vmatmul.mubr.bf16.gmra.mrb[0].mxu0 %v4985
      %v5169 = vpop.f32.mrb[0].mxu0
      %v5170 = vadd.f32 0.0, %v5169
      %v5171 = vpop.f32.mrb[0].mxu0
      %v5172 = vpop.f32.mrb[0].mxu0
      %v5173 = vadd.f32 0.0, %v5172
      %v5174 = vpop.f32.mrb[0].mxu0
      %5175 = vmatprep.mubr.bf16.mxu0 0
      %5176 = vmatmul.mubr.bf16.gmra.mrb[0].mxu0 %v4986
      %v5177 = vpop.f32.mrb[0].mxu0
      %v5178 = vadd.f32 0.0, %v5177
      %v5179 = vpop.f32.mrb[0].mxu0
      %v5180 = vpop.f32.mrb[0].mxu0
      %v5181 = vadd.f32 0.0, %v5180
      %v5182 = vpop.f32.mrb[0].mxu0
      %5183 = vmatprep.mubr.bf16.mxu0 0
      %5184 = vmatmul.mubr.bf16.gmra.mrb[0].mxu0 %v4987
      %v5185 = vpop.f32.mrb[0].mxu0
      %v5186 = vadd.f32 0.0, %v5185
      %v5187 = vpop.f32.mrb[0].mxu0
      %v5188 = vpop.f32.mrb[0].mxu0
      %v5189 = vadd.f32 0.0, %v5188
      %v5190 = vpop.f32.mrb[0].mxu0
      %5191 = vmatprep.mubr.bf16.mxu0 0
      %5192 = vmatmul.mubr.bf16.gmra.mrb[0].mxu0 %v4988
      %v5193 = vpop.f32.mrb[0].mxu0
      %v5194 = vadd.f32 0.0, %v5193
      %v5195 = vpop.f32.mrb[0].mxu0
      %v5196 = vpop.f32.mrb[0].mxu0
      %v5197 = vadd.f32 0.0, %v5196
      %v5198 = vpop.f32.mrb[0].mxu0
      %5199 = vmatprep.mubr.bf16.mxu0 0
      %5200 = vmatmul.mubr.bf16.gmra.mrb[0].mxu0 %v4989
      %v5201 = vpop.f32.mrb[0].mxu0
      %v5202 = vadd.f32 0.0, %v5201
      %v5203 = vpop.f32.mrb[0].mxu0
      %v5204 = vpop.f32.mrb[0].mxu0
      %v5205 = vadd.f32 0.0, %v5204
      %v5206 = vpop.f32.mrb[0].mxu0
      %5207 = vmatprep.mubr.bf16.mxu0 0
      %5208 = vmatmul.mubr.bf16.gmra.mrb[0].mxu0 %v4990
      %v5209 = vpop.f32.mrb[0].mxu0
      %v5210 = vadd.f32 0.0, %v5209
      %v5211 = vpop.f32.mrb[0].mxu0
      %v5212 = vpop.f32.mrb[0].mxu0
      %v5213 = vadd.f32 0.0, %v5212
      %v5214 = vpop.f32.mrb[0].mxu0
      %5215 = vdwg.mxu0
      %v5216 = vadd.f32 %v4719, %v5090
      %v5217 = vadd.f32 %v4720, %v5093
      %v5218 = vadd.f32 %v4721, %v5098
      %v5219 = vadd.f32 %v4722, %v5101
      %v5220 = vadd.f32 %v4723, %v5106
      %v5221 = vadd.f32 %v4724, %v5109
      %v5222 = vadd.f32 %v4725, %v5114
      %v5223 = vadd.f32 %v4726, %v5117
      %v5224 = vadd.f32 %v4727, %v5122
      %v5225 = vadd.f32 %v4728, %v5125
      %v5226 = vadd.f32 %v4729, %v5130
      %v5227 = vadd.f32 %v4730, %v5133
      %v5228 = vadd.f32 %v4731, %v5138
      %v5229 = vadd.f32 %v4732, %v5141
      %v5230 = vadd.f32 %v4733, %v5146
      %v5231 = vadd.f32 %v4734, %v5149
      %v5232 = vadd.f32 %v4735, %v5154
      %v5233 = vadd.f32 %v4736, %v5157
      %v5234 = vadd.f32 %v4737, %v5162
      %v5235 = vadd.f32 %v4738, %v5165
      %v5236 = vadd.f32 %v4739, %v5170
      %v5237 = vadd.f32 %v4740, %v5173
      %v5238 = vadd.f32 %v4741, %v5178
      %v5239 = vadd.f32 %v4742, %v5181
      %v5240 = vadd.f32 %v4743, %v5186
      %v5241 = vadd.f32 %v4744, %v5189
      %v5242 = vadd.f32 %v4745, %v5194
      %v5243 = vadd.f32 %v4746, %v5197
      %v5244 = vadd.f32 %v4747, %v5202
      %v5245 = vadd.f32 %v4748, %v5205
      %v5246 = vadd.f32 %v4749, %v5210
      %v5247 = vadd.f32 %v4750, %v5213
      %v5248 = vld [vmem:[%s2] sm:$0x1]
      %v5250 = vlaneseq
      %v5251 = vshrl.u32 %v5250, 7
      %v5252 = vsub.s32 0, %v5251
      %v5253 = vrot.slane %v5248, %v5252
      %v5255 = vmul.f32 %v5216, %v5253
      %v5256 = vmul.f32 %v5217, %v5253
      %v5257 = vmul.f32 %v5218, %v5253
      %v5258 = vmul.f32 %v5219, %v5253
      %v5259 = vmul.f32 %v5220, %v5253
      %v5260 = vmul.f32 %v5221, %v5253
      %v5261 = vmul.f32 %v5222, %v5253
      %v5262 = vmul.f32 %v5223, %v5253
      %v5263 = vmul.f32 %v5224, %v5253
      %v5264 = vmul.f32 %v5225, %v5253
      %v5265 = vmul.f32 %v5226, %v5253
      %v5266 = vmul.f32 %v5227, %v5253
      %v5267 = vmul.f32 %v5228, %v5253
      %v5268 = vmul.f32 %v5229, %v5253
      %v5269 = vmul.f32 %v5230, %v5253
      %v5270 = vmul.f32 %v5231, %v5253
      %v5271 = vmul.f32 %v5232, %v5253
      %v5272 = vmul.f32 %v5233, %v5253
      %v5273 = vmul.f32 %v5234, %v5253
      %v5274 = vmul.f32 %v5235, %v5253
      %v5275 = vmul.f32 %v5236, %v5253
      %v5276 = vmul.f32 %v5237, %v5253
      %v5277 = vmul.f32 %v5238, %v5253
      %v5278 = vmul.f32 %v5239, %v5253
      %v5279 = vmul.f32 %v5240, %v5253
      %v5280 = vmul.f32 %v5241, %v5253
      %v5281 = vmul.f32 %v5242, %v5253
      %v5282 = vmul.f32 %v5243, %v5253
      %v5283 = vmul.f32 %v5244, %v5253
      %v5284 = vmul.f32 %v5245, %v5253
      %v5285 = vmul.f32 %v5246, %v5253
      %v5286 = vmul.f32 %v5247, %v5253
      %v5287 = vld [vmem:[%s3] sm:$0x1]
      %v5289 = vlaneseq
      %v5290 = vshrl.u32 %v5289, 7
      %v5291 = vsub.s32 0, %v5290
      %v5292 = vrot.slane %v5287, %v5291
      %v5294 = vadd.f32 %v5255, %v5292
      %v5295 = vadd.f32 %v5256, %v5292
      %v5296 = vadd.f32 %v5257, %v5292
      %v5297 = vadd.f32 %v5258, %v5292
      %v5298 = vadd.f32 %v5259, %v5292
      %v5299 = vadd.f32 %v5260, %v5292
      %v5300 = vadd.f32 %v5261, %v5292
      %v5301 = vadd.f32 %v5262, %v5292
      %v5302 = vadd.f32 %v5263, %v5292
      %v5303 = vadd.f32 %v5264, %v5292
      %v5304 = vadd.f32 %v5265, %v5292
      %v5305 = vadd.f32 %v5266, %v5292
      %v5306 = vadd.f32 %v5267, %v5292
      %v5307 = vadd.f32 %v5268, %v5292
      %v5308 = vadd.f32 %v5269, %v5292
      %v5309 = vadd.f32 %v5270, %v5292
      %v5310 = vadd.f32 %v5271, %v5292
      %v5311 = vadd.f32 %v5272, %v5292
      %v5312 = vadd.f32 %v5273, %v5292
      %v5313 = vadd.f32 %v5274, %v5292
      %v5314 = vadd.f32 %v5275, %v5292
      %v5315 = vadd.f32 %v5276, %v5292
      %v5316 = vadd.f32 %v5277, %v5292
      %v5317 = vadd.f32 %v5278, %v5292
      %v5318 = vadd.f32 %v5279, %v5292
      %v5319 = vadd.f32 %v5280, %v5292
      %v5320 = vadd.f32 %v5281, %v5292
      %v5321 = vadd.f32 %v5282, %v5292
      %v5322 = vadd.f32 %v5283, %v5292
      %v5323 = vadd.f32 %v5284, %v5292
      %v5324 = vadd.f32 %v5285, %v5292
      %v5325 = vadd.f32 %v5286, %v5292
      %v5326 = vmul.f32 %v5294, 0.1
      %v5327 = vmul.f32 %v5295, 0.1
      %v5328 = vmul.f32 %v5296, 0.1
      %v5329 = vmul.f32 %v5297, 0.1
      %v5330 = vmul.f32 %v5298, 0.1
      %v5331 = vmul.f32 %v5299, 0.1
      %v5332 = vmul.f32 %v5300, 0.1
      %v5333 = vmul.f32 %v5301, 0.1
      %v5334 = vmul.f32 %v5302, 0.1
      %v5335 = vmul.f32 %v5303, 0.1
      %v5336 = vmul.f32 %v5304, 0.1
      %v5337 = vmul.f32 %v5305, 0.1
      %v5338 = vmul.f32 %v5306, 0.1
      %v5339 = vmul.f32 %v5307, 0.1
      %v5340 = vmul.f32 %v5308, 0.1
      %v5341 = vmul.f32 %v5309, 0.1
      %v5342 = vmul.f32 %v5310, 0.1
      %v5343 = vmul.f32 %v5311, 0.1
      %v5344 = vmul.f32 %v5312, 0.1
      %v5345 = vmul.f32 %v5313, 0.1
      %v5346 = vmul.f32 %v5314, 0.1
      %v5347 = vmul.f32 %v5315, 0.1
      %v5348 = vmul.f32 %v5316, 0.1
      %v5349 = vmul.f32 %v5317, 0.1
      %v5350 = vmul.f32 %v5318, 0.1
      %v5351 = vmul.f32 %v5319, 0.1
      %v5352 = vmul.f32 %v5320, 0.1
      %v5353 = vmul.f32 %v5321, 0.1
      %v5354 = vmul.f32 %v5322, 0.1
      %v5355 = vmul.f32 %v5323, 0.1
      %v5356 = vmul.f32 %v5324, 0.1
      %v5357 = vmul.f32 %v5325, 0.1
      %v5358 = vmax.f32 %v5294, %v5326
      %v5359 = vmax.f32 %v5295, %v5327
      %v5360 = vmax.f32 %v5296, %v5328
      %v5361 = vmax.f32 %v5297, %v5329
      %v5362 = vmax.f32 %v5298, %v5330
      %v5363 = vmax.f32 %v5299, %v5331
      %v5364 = vmax.f32 %v5300, %v5332
      %v5365 = vmax.f32 %v5301, %v5333
      %v5366 = vmax.f32 %v5302, %v5334
      %v5367 = vmax.f32 %v5303, %v5335
      %v5368 = vmax.f32 %v5304, %v5336
      %v5369 = vmax.f32 %v5305, %v5337
      %v5370 = vmax.f32 %v5306, %v5338
      %v5371 = vmax.f32 %v5307, %v5339
      %v5372 = vmax.f32 %v5308, %v5340
      %v5373 = vmax.f32 %v5309, %v5341
      %v5374 = vmax.f32 %v5310, %v5342
      %v5375 = vmax.f32 %v5311, %v5343
      %v5376 = vmax.f32 %v5312, %v5344
      %v5377 = vmax.f32 %v5313, %v5345
      %v5378 = vmax.f32 %v5314, %v5346
      %v5379 = vmax.f32 %v5315, %v5347
      %v5380 = vmax.f32 %v5316, %v5348
      %v5381 = vmax.f32 %v5317, %v5349
      %v5382 = vmax.f32 %v5318, %v5350
      %v5383 = vmax.f32 %v5319, %v5351
      %v5384 = vmax.f32 %v5320, %v5352
      %v5385 = vmax.f32 %v5321, %v5353
      %v5386 = vmax.f32 %v5322, %v5354
      %v5387 = vmax.f32 %v5323, %v5355
      %v5388 = vmax.f32 %v5324, %v5356
      %v5389 = vmax.f32 %v5325, %v5357
      %v5390 = vld [vmem:[%s417] sm:$0xf]
      %v5391 = vld [vmem:[%s417 + $0x4] sm:$0xf]
      %v5392 = vld [vmem:[%s417 + $0x8] sm:$0xf]
      %v5393 = vld [vmem:[%s417 + $0xc] sm:$0xf]
      %v5394 = vld [vmem:[%s417 + $0x10] sm:$0xf]
      %v5395 = vld [vmem:[%s417 + $0x14] sm:$0xf]
      %v5396 = vld [vmem:[%s417 + $0x18] sm:$0xf]
      %v5397 = vld [vmem:[%s417 + $0x1c] sm:$0xf]
      %v5398 = vld [vmem:[%s417 + $0x20] sm:$0xf]
      %v5399 = vld [vmem:[%s417 + $0x24] sm:$0xf]
      %v5400 = vld [vmem:[%s417 + $0x28] sm:$0xf]
      %v5401 = vld [vmem:[%s417 + $0x2c] sm:$0xf]
      %v5402 = vld [vmem:[%s417 + $0x30] sm:$0xf]
      %v5403 = vld [vmem:[%s417 + $0x34] sm:$0xf]
      %v5404 = vld [vmem:[%s417 + $0x38] sm:$0xf]
      %v5405 = vld [vmem:[%s417 + $0x3c] sm:$0xf]
      %v5406 = vld [vmem:[%s417 + $0x40] sm:$0xf]
      %v5407 = vld [vmem:[%s417 + $0x44] sm:$0xf]
      %v5408 = vld [vmem:[%s417 + $0x48] sm:$0xf]
      %v5409 = vld [vmem:[%s417 + $0x4c] sm:$0xf]
      %v5410 = vld [vmem:[%s417 + $0x50] sm:$0xf]
      %v5411 = vld [vmem:[%s417 + $0x54] sm:$0xf]
      %v5412 = vld [vmem:[%s417 + $0x58] sm:$0xf]
      %v5413 = vld [vmem:[%s417 + $0x5c] sm:$0xf]
      %v5414 = vld [vmem:[%s417 + $0x60] sm:$0xf]
      %v5415 = vld [vmem:[%s417 + $0x64] sm:$0xf]
      %v5416 = vld [vmem:[%s417 + $0x68] sm:$0xf]
      %v5417 = vld [vmem:[%s417 + $0x6c] sm:$0xf]
      %v5418 = vld [vmem:[%s417 + $0x70] sm:$0xf]
      %v5419 = vld [vmem:[%s417 + $0x74] sm:$0xf]
      %v5420 = vld [vmem:[%s417 + $0x78] sm:$0xf]
      %v5421 = vld [vmem:[%s417 + $0x7c] sm:$0xf]
      %v5422 = vunpack.c.l.bf16 %v5390
      %v5423 = vunpack.c.l.bf16 %v5391
      %v5424 = vunpack.c.l.bf16 %v5392
      %v5425 = vunpack.c.l.bf16 %v5393
      %v5426 = vunpack.c.l.bf16 %v5394
      %v5427 = vunpack.c.l.bf16 %v5395
      %v5428 = vunpack.c.l.bf16 %v5396
      %v5429 = vunpack.c.l.bf16 %v5397
      %v5430 = vunpack.c.l.bf16 %v5398
      %v5431 = vunpack.c.l.bf16 %v5399
      %v5432 = vunpack.c.l.bf16 %v5400
      %v5433 = vunpack.c.l.bf16 %v5401
      %v5434 = vunpack.c.l.bf16 %v5402
      %v5435 = vunpack.c.l.bf16 %v5403
      %v5436 = vunpack.c.l.bf16 %v5404
      %v5437 = vunpack.c.l.bf16 %v5405
      %v5438 = vunpack.c.l.bf16 %v5406
      %v5439 = vunpack.c.l.bf16 %v5407
      %v5440 = vunpack.c.l.bf16 %v5408
      %v5441 = vunpack.c.l.bf16 %v5409
      %v5442 = vunpack.c.l.bf16 %v5410
      %v5443 = vunpack.c.l.bf16 %v5411
      %v5444 = vunpack.c.l.bf16 %v5412
      %v5445 = vunpack.c.l.bf16 %v5413
      %v5446 = vunpack.c.l.bf16 %v5414
      %v5447 = vunpack.c.l.bf16 %v5415
      %v5448 = vunpack.c.l.bf16 %v5416
      %v5449 = vunpack.c.l.bf16 %v5417
      %v5450 = vunpack.c.l.bf16 %v5418
      %v5451 = vunpack.c.l.bf16 %v5419
      %v5452 = vunpack.c.l.bf16 %v5420
      %v5453 = vunpack.c.l.bf16 %v5421
      %v5454 = vadd.f32 %v5358, %v5422
      %v5455 = vadd.f32 %v5359, %v5423
      %v5456 = vadd.f32 %v5360, %v5424
      %v5457 = vadd.f32 %v5361, %v5425
      %v5458 = vadd.f32 %v5362, %v5426
      %v5459 = vadd.f32 %v5363, %v5427
      %v5460 = vadd.f32 %v5364, %v5428
      %v5461 = vadd.f32 %v5365, %v5429
      %v5462 = vadd.f32 %v5366, %v5430
      %v5463 = vadd.f32 %v5367, %v5431
      %v5464 = vadd.f32 %v5368, %v5432
      %v5465 = vadd.f32 %v5369, %v5433
      %v5466 = vadd.f32 %v5370, %v5434
      %v5467 = vadd.f32 %v5371, %v5435
      %v5468 = vadd.f32 %v5372, %v5436
      %v5469 = vadd.f32 %v5373, %v5437
      %v5470 = vadd.f32 %v5374, %v5438
      %v5471 = vadd.f32 %v5375, %v5439
      %v5472 = vadd.f32 %v5376, %v5440
      %v5473 = vadd.f32 %v5377, %v5441
      %v5474 = vadd.f32 %v5378, %v5442
      %v5475 = vadd.f32 %v5379, %v5443
      %v5476 = vadd.f32 %v5380, %v5444
      %v5477 = vadd.f32 %v5381, %v5445
      %v5478 = vadd.f32 %v5382, %v5446
      %v5479 = vadd.f32 %v5383, %v5447
      %v5480 = vadd.f32 %v5384, %v5448
      %v5481 = vadd.f32 %v5385, %v5449
      %v5482 = vadd.f32 %v5386, %v5450
      %v5483 = vadd.f32 %v5387, %v5451
      %v5484 = vadd.f32 %v5388, %v5452
      %v5485 = vadd.f32 %v5389, %v5453
      %v5486 = vpack.c.bf16 %v5455, %v5454
      %v5487 = vpack.c.bf16 %v5457, %v5456
      %v5488 = vpack.c.bf16 %v5459, %v5458
      %v5489 = vpack.c.bf16 %v5461, %v5460
      %v5490 = vpack.c.bf16 %v5463, %v5462
      %v5491 = vpack.c.bf16 %v5465, %v5464
      %v5492 = vpack.c.bf16 %v5467, %v5466
      %v5493 = vpack.c.bf16 %v5469, %v5468
      %v5494 = vpack.c.bf16 %v5471, %v5470
      %v5495 = vpack.c.bf16 %v5473, %v5472
      %v5496 = vpack.c.bf16 %v5475, %v5474
      %v5497 = vpack.c.bf16 %v5477, %v5476
      %v5498 = vpack.c.bf16 %v5479, %v5478
      %v5499 = vpack.c.bf16 %v5481, %v5480
      %v5500 = vpack.c.bf16 %v5483, %v5482
      %v5501 = vpack.c.bf16 %v5485, %v5484
      %v5502 = vld [vmem:[%s6] sm:$0xf]
      %v5503 = vld [vmem:[%s6 + $0x4] sm:$0xf]
      %v5504 = vld [vmem:[%s6 + $0x8] sm:$0xf]
      %v5505 = vld [vmem:[%s6 + $0xc] sm:$0xf]
      %v5506 = vld [vmem:[%s6 + $0x10] sm:$0xf]
      %v5507 = vld [vmem:[%s6 + $0x14] sm:$0xf]
      %v5508 = vld [vmem:[%s6 + $0x18] sm:$0xf]
      %v5509 = vld [vmem:[%s6 + $0x1c] sm:$0xf]
      %v5510 = vld [vmem:[%s6 + $0x20] sm:$0xf]
      %v5511 = vld [vmem:[%s6 + $0x24] sm:$0xf]
      %v5512 = vld [vmem:[%s6 + $0x28] sm:$0xf]
      %v5513 = vld [vmem:[%s6 + $0x2c] sm:$0xf]
      %v5514 = vld [vmem:[%s6 + $0x30] sm:$0xf]
      %v5515 = vld [vmem:[%s6 + $0x34] sm:$0xf]
      %v5516 = vld [vmem:[%s6 + $0x38] sm:$0xf]
      %v5517 = vld [vmem:[%s6 + $0x3c] sm:$0xf]
      %v5518 = vld [vmem:[%s425] sm:$0xf]
      %v5519 = vld [vmem:[%s425 + $0x4] sm:$0xf]
      %v5520 = vld [vmem:[%s425 + $0x8] sm:$0xf]
      %v5521 = vld [vmem:[%s425 + $0xc] sm:$0xf]
      %v5522 = vld [vmem:[%s425 + $0x10] sm:$0xf]
      %v5523 = vld [vmem:[%s425 + $0x14] sm:$0xf]
      %v5524 = vld [vmem:[%s425 + $0x18] sm:$0xf]
      %v5525 = vld [vmem:[%s425 + $0x1c] sm:$0xf]
      %v5526 = vld [vmem:[%s425 + $0x20] sm:$0xf]
      %v5527 = vld [vmem:[%s425 + $0x24] sm:$0xf]
      %v5528 = vld [vmem:[%s425 + $0x28] sm:$0xf]
      %v5529 = vld [vmem:[%s425 + $0x2c] sm:$0xf]
      %v5530 = vld [vmem:[%s425 + $0x30] sm:$0xf]
      %v5531 = vld [vmem:[%s425 + $0x34] sm:$0xf]
      %v5532 = vld [vmem:[%s425 + $0x38] sm:$0xf]
      %v5533 = vld [vmem:[%s425 + $0x3c] sm:$0xf]
      %v5534 = vld [vmem:[%s425 + $0x40] sm:$0xf]
      %v5535 = vld [vmem:[%s425 + $0x44] sm:$0xf]
      %v5536 = vld [vmem:[%s425 + $0x48] sm:$0xf]
      %v5537 = vld [vmem:[%s425 + $0x4c] sm:$0xf]
      %v5538 = vld [vmem:[%s425 + $0x50] sm:$0xf]
      %v5539 = vld [vmem:[%s425 + $0x54] sm:$0xf]
      %v5540 = vld [vmem:[%s425 + $0x58] sm:$0xf]
      %v5541 = vld [vmem:[%s425 + $0x5c] sm:$0xf]
      %v5542 = vld [vmem:[%s425 + $0x60] sm:$0xf]
      %v5543 = vld [vmem:[%s425 + $0x64] sm:$0xf]
      %v5544 = vld [vmem:[%s425 + $0x68] sm:$0xf]
      %v5545 = vld [vmem:[%s425 + $0x6c] sm:$0xf]
      %v5546 = vld [vmem:[%s425 + $0x70] sm:$0xf]
      %v5547 = vld [vmem:[%s425 + $0x74] sm:$0xf]
      %v5548 = vld [vmem:[%s425 + $0x78] sm:$0xf]
      %v5549 = vld [vmem:[%s425 + $0x7c] sm:$0xf]
      %v5550 = vld [vmem:[%s7] sm:$0xf]
      %v5551 = vld [vmem:[%s7 + $0x4] sm:$0xf]
      %v5552 = vld [vmem:[%s7 + $0x8] sm:$0xf]
      %v5553 = vld [vmem:[%s7 + $0xc] sm:$0xf]
      %v5554 = vld [vmem:[%s7 + $0x10] sm:$0xf]
      %v5555 = vld [vmem:[%s7 + $0x14] sm:$0xf]
      %v5556 = vld [vmem:[%s7 + $0x18] sm:$0xf]
      %v5557 = vld [vmem:[%s7 + $0x1c] sm:$0xf]
      %v5558 = vld [vmem:[%s7 + $0x20] sm:$0xf]
      %v5559 = vld [vmem:[%s7 + $0x24] sm:$0xf]
      %v5560 = vld [vmem:[%s7 + $0x28] sm:$0xf]
      %v5561 = vld [vmem:[%s7 + $0x2c] sm:$0xf]
      %v5562 = vld [vmem:[%s7 + $0x30] sm:$0xf]
      %v5563 = vld [vmem:[%s7 + $0x34] sm:$0xf]
      %v5564 = vld [vmem:[%s7 + $0x38] sm:$0xf]
      %v5565 = vld [vmem:[%s7 + $0x3c] sm:$0xf]
      %v5598 = vunpack.c.l.b16 %v5518
      %v5599 = vunpack.c.l.b16 %v5519
      %v5600 = vunpack.c.l.b16 %v5520
      %v5601 = vunpack.c.l.b16 %v5521
      %v5602 = vunpack.c.l.b16 %v5522
      %v5603 = vunpack.c.l.b16 %v5523
      %v5604 = vunpack.c.l.b16 %v5524
      %v5605 = vunpack.c.l.b16 %v5525
      %v5606 = vunpack.c.l.b16 %v5526
      %v5607 = vunpack.c.l.b16 %v5527
      %v5608 = vunpack.c.l.b16 %v5528
      %v5609 = vunpack.c.l.b16 %v5529
      %v5610 = vunpack.c.l.b16 %v5530
      %v5611 = vunpack.c.l.b16 %v5531
      %v5612 = vunpack.c.l.b16 %v5532
      %v5613 = vunpack.c.l.b16 %v5533
      %v5614 = vunpack.c.l.b16 %v5534
      %v5615 = vunpack.c.l.b16 %v5535
      %v5616 = vunpack.c.l.b16 %v5536
      %v5617 = vunpack.c.l.b16 %v5537
      %v5618 = vunpack.c.l.b16 %v5538
      %v5619 = vunpack.c.l.b16 %v5539
      %v5620 = vunpack.c.l.b16 %v5540
      %v5621 = vunpack.c.l.b16 %v5541
      %v5622 = vunpack.c.l.b16 %v5542
      %v5623 = vunpack.c.l.b16 %v5543
      %v5624 = vunpack.c.l.b16 %v5544
      %v5625 = vunpack.c.l.b16 %v5545
      %v5626 = vunpack.c.l.b16 %v5546
      %v5627 = vunpack.c.l.b16 %v5547
      %v5628 = vunpack.c.l.b16 %v5548
      %v5629 = vunpack.c.l.b16 %v5549
      %v5630 = vpack.c.b16 %v5599, %v5598
      %v5631 = vpack.c.b16 %v5601, %v5600
      %v5632 = vpack.c.b16 %v5603, %v5602
      %v5633 = vpack.c.b16 %v5605, %v5604
      %v5634 = vpack.c.b16 %v5607, %v5606
      %v5635 = vpack.c.b16 %v5609, %v5608
      %v5636 = vpack.c.b16 %v5611, %v5610
      %v5637 = vpack.c.b16 %v5613, %v5612
      %v5638 = vpack.c.b16 %v5615, %v5614
      %v5639 = vpack.c.b16 %v5617, %v5616
      %v5640 = vpack.c.b16 %v5619, %v5618
      %v5641 = vpack.c.b16 %v5621, %v5620
      %v5642 = vpack.c.b16 %v5623, %v5622
      %v5643 = vpack.c.b16 %v5625, %v5624
      %v5644 = vpack.c.b16 %v5627, %v5626
      %v5645 = vpack.c.b16 %v5629, %v5628
      %v5678 = vunpack.c.l.b16 %v5550
      %v5679 = vunpack.c.l.b16 %v5551
      %v5680 = vunpack.c.l.b16 %v5552
      %v5681 = vunpack.c.l.b16 %v5553
      %v5682 = vunpack.c.l.b16 %v5554
      %v5683 = vunpack.c.l.b16 %v5555
      %v5684 = vunpack.c.l.b16 %v5556
      %v5685 = vunpack.c.l.b16 %v5557
      %v5686 = vunpack.c.l.b16 %v5558
      %v5687 = vunpack.c.l.b16 %v5559
      %v5688 = vunpack.c.l.b16 %v5560
      %v5689 = vunpack.c.l.b16 %v5561
      %v5690 = vunpack.c.l.b16 %v5562
      %v5691 = vunpack.c.l.b16 %v5563
      %v5692 = vunpack.c.l.b16 %v5564
      %v5693 = vunpack.c.l.b16 %v5565
      %v5694 = vpack.c.b16 %v5679, %v5678
      %v5695 = vpack.c.b16 %v5681, %v5680
      %v5696 = vpack.c.b16 %v5683, %v5682
      %v5697 = vpack.c.b16 %v5685, %v5684
      %v5698 = vpack.c.b16 %v5687, %v5686
      %v5699 = vpack.c.b16 %v5689, %v5688
      %v5700 = vpack.c.b16 %v5691, %v5690
      %v5701 = vpack.c.b16 %v5693, %v5692
      %5710 = vmatprep.subr.bf16.mxu0 0
      %5711 = vmatpush1.bf16.msra.mxu0 %v5694
      %5712 = vmatprep.subr.bf16.mxu0 0
      %5713 = vmatpush1.bf16.msra.mxu0 %v5695
      %5714 = vmatprep.subr.bf16.mxu0 0
      %5715 = vmatpush1.bf16.msra.mxu0 %v5696
      %5716 = vmatprep.subr.bf16.mxu0 0
      %5717 = vmatpush1.bf16.msra.mxu0 %v5697
      %5718 = vmatprep.subr.bf16.mxu0 0
      %5719 = vmatpush1.bf16.msra.mxu0 %v5698
      %5720 = vmatprep.subr.bf16.mxu0 0
      %5721 = vmatpush1.bf16.msra.mxu0 %v5699
      %5722 = vmatprep.subr.bf16.mxu0 0
      %5723 = vmatpush1.bf16.msra.mxu0 %v5700
      %5724 = vmatprep.subr.bf16.mxu0 0
      %5725 = vmatpush1.bf16.msra.mxu0 %v5701
      %5726 = vmatprep.subr.bf16.mxu0 0
      %5727 = vmatpush1.bf16.msra.mxu0 0
      %5728 = vmatprep.subr.bf16.mxu0 0
      %5729 = vmatpush1.bf16.msra.mxu0 0
      %5730 = vmatprep.subr.bf16.mxu0 0
      %5731 = vmatpush1.bf16.msra.mxu0 0
      %5732 = vmatprep.subr.bf16.mxu0 0
      %5733 = vmatpush1.bf16.msra.mxu0 0
      %5734 = vmatprep.subr.bf16.mxu0 0
      %5735 = vmatpush1.bf16.msra.mxu0 0
      %5736 = vmatprep.subr.bf16.mxu0 0
      %5737 = vmatpush1.bf16.msra.mxu0 0
      %5738 = vmatprep.subr.bf16.mxu0 0
      %5739 = vmatpush1.bf16.msra.mxu0 0
      %5740 = vmatprep.subr.bf16.mxu0 0
      %5741 = vmatpush1.bf16.msra.mxu0 0
      %5742 = vmatprep.mubr.bf16.mxu0 0
      %5743 = vmatmul.mubr.bf16.gmra.mrb[0].mxu0 %v5630
      %v5744 = vpop.f32.mrb[0].mxu0
      %v5745 = vadd.f32 0.0, %v5744
      %v5746 = vpop.f32.mrb[0].mxu0
      %v5747 = vpop.f32.mrb[0].mxu0
      %v5748 = vadd.f32 0.0, %v5747
      %v5749 = vpop.f32.mrb[0].mxu0
      %5750 = vmatprep.mubr.bf16.mxu0 0
      %5751 = vmatmul.mubr.bf16.gmra.mrb[0].mxu0 %v5631
      %v5752 = vpop.f32.mrb[0].mxu0
      %v5753 = vadd.f32 0.0, %v5752
      %v5754 = vpop.f32.mrb[0].mxu0
      %v5755 = vpop.f32.mrb[0].mxu0
      %v5756 = vadd.f32 0.0, %v5755
      %v5757 = vpop.f32.mrb[0].mxu0
      %5758 = vmatprep.mubr.bf16.mxu0 0
      %5759 = vmatmul.mubr.bf16.gmra.mrb[0].mxu0 %v5632
      %v5760 = vpop.f32.mrb[0].mxu0
      %v5761 = vadd.f32 0.0, %v5760
      %v5762 = vpop.f32.mrb[0].mxu0
      %v5763 = vpop.f32.mrb[0].mxu0
      %v5764 = vadd.f32 0.0, %v5763
      %v5765 = vpop.f32.mrb[0].mxu0
      %5766 = vmatprep.mubr.bf16.mxu0 0
      %5767 = vmatmul.mubr.bf16.gmra.mrb[0].mxu0 %v5633
      %v5768 = vpop.f32.mrb[0].mxu0
      %v5769 = vadd.f32 0.0, %v5768
      %v5770 = vpop.f32.mrb[0].mxu0
      %v5771 = vpop.f32.mrb[0].mxu0
      %v5772 = vadd.f32 0.0, %v5771
      %v5773 = vpop.f32.mrb[0].mxu0
      %5774 = vmatprep.mubr.bf16.mxu0 0
      %5775 = vmatmul.mubr.bf16.gmra.mrb[0].mxu0 %v5634
      %v5776 = vpop.f32.mrb[0].mxu0
      %v5777 = vadd.f32 0.0, %v5776
      %v5778 = vpop.f32.mrb[0].mxu0
      %v5779 = vpop.f32.mrb[0].mxu0
      %v5780 = vadd.f32 0.0, %v5779
      %v5781 = vpop.f32.mrb[0].mxu0
      %5782 = vmatprep.mubr.bf16.mxu0 0
      %5783 = vmatmul.mubr.bf16.gmra.mrb[0].mxu0 %v5635
      %v5784 = vpop.f32.mrb[0].mxu0
      %v5785 = vadd.f32 0.0, %v5784
      %v5786 = vpop.f32.mrb[0].mxu0
      %v5787 = vpop.f32.mrb[0].mxu0
      %v5788 = vadd.f32 0.0, %v5787
      %v5789 = vpop.f32.mrb[0].mxu0
      %5790 = vmatprep.mubr.bf16.mxu0 0
      %5791 = vmatmul.mubr.bf16.gmra.mrb[0].mxu0 %v5636
      %v5792 = vpop.f32.mrb[0].mxu0
      %v5793 = vadd.f32 0.0, %v5792
      %v5794 = vpop.f32.mrb[0].mxu0
      %v5795 = vpop.f32.mrb[0].mxu0
      %v5796 = vadd.f32 0.0, %v5795
      %v5797 = vpop.f32.mrb[0].mxu0
      %5798 = vmatprep.mubr.bf16.mxu0 0
      %5799 = vmatmul.mubr.bf16.gmra.mrb[0].mxu0 %v5637
      %v5800 = vpop.f32.mrb[0].mxu0
      %v5801 = vadd.f32 0.0, %v5800
      %v5802 = vpop.f32.mrb[0].mxu0
      %v5803 = vpop.f32.mrb[0].mxu0
      %v5804 = vadd.f32 0.0, %v5803
      %v5805 = vpop.f32.mrb[0].mxu0
      %5806 = vmatprep.mubr.bf16.mxu0 0
      %5807 = vmatmul.mubr.bf16.gmra.mrb[0].mxu0 %v5638
      %v5808 = vpop.f32.mrb[0].mxu0
      %v5809 = vadd.f32 0.0, %v5808
      %v5810 = vpop.f32.mrb[0].mxu0
      %v5811 = vpop.f32.mrb[0].mxu0
      %v5812 = vadd.f32 0.0, %v5811
      %v5813 = vpop.f32.mrb[0].mxu0
      %5814 = vmatprep.mubr.bf16.mxu0 0
      %5815 = vmatmul.mubr.bf16.gmra.mrb[0].mxu0 %v5639
      %v5816 = vpop.f32.mrb[0].mxu0
      %v5817 = vadd.f32 0.0, %v5816
      %v5818 = vpop.f32.mrb[0].mxu0
      %v5819 = vpop.f32.mrb[0].mxu0
      %v5820 = vadd.f32 0.0, %v5819
      %v5821 = vpop.f32.mrb[0].mxu0
      %5822 = vmatprep.mubr.bf16.mxu0 0
      %5823 = vmatmul.mubr.bf16.gmra.mrb[0].mxu0 %v5640
      %v5824 = vpop.f32.mrb[0].mxu0
      %v5825 = vadd.f32 0.0, %v5824
      %v5826 = vpop.f32.mrb[0].mxu0
      %v5827 = vpop.f32.mrb[0].mxu0
      %v5828 = vadd.f32 0.0, %v5827
      %v5829 = vpop.f32.mrb[0].mxu0
      %5830 = vmatprep.mubr.bf16.mxu0 0
      %5831 = vmatmul.mubr.bf16.gmra.mrb[0].mxu0 %v5641
      %v5832 = vpop.f32.mrb[0].mxu0
      %v5833 = vadd.f32 0.0, %v5832
      %v5834 = vpop.f32.mrb[0].mxu0
      %v5835 = vpop.f32.mrb[0].mxu0
      %v5836 = vadd.f32 0.0, %v5835
      %v5837 = vpop.f32.mrb[0].mxu0
      %5838 = vmatprep.mubr.bf16.mxu0 0
      %5839 = vmatmul.mubr.bf16.gmra.mrb[0].mxu0 %v5642
      %v5840 = vpop.f32.mrb[0].mxu0
      %v5841 = vadd.f32 0.0, %v5840
      %v5842 = vpop.f32.mrb[0].mxu0
      %v5843 = vpop.f32.mrb[0].mxu0
      %v5844 = vadd.f32 0.0, %v5843
      %v5845 = vpop.f32.mrb[0].mxu0
      %5846 = vmatprep.mubr.bf16.mxu0 0
      %5847 = vmatmul.mubr.bf16.gmra.mrb[0].mxu0 %v5643
      %v5848 = vpop.f32.mrb[0].mxu0
      %v5849 = vadd.f32 0.0, %v5848
      %v5850 = vpop.f32.mrb[0].mxu0
      %v5851 = vpop.f32.mrb[0].mxu0
      %v5852 = vadd.f32 0.0, %v5851
      %v5853 = vpop.f32.mrb[0].mxu0
      %5854 = vmatprep.mubr.bf16.mxu0 0
      %5855 = vmatmul.mubr.bf16.gmra.mrb[0].mxu0 %v5644
      %v5856 = vpop.f32.mrb[0].mxu0
      %v5857 = vadd.f32 0.0, %v5856
      %v5858 = vpop.f32.mrb[0].mxu0
      %v5859 = vpop.f32.mrb[0].mxu0
      %v5860 = vadd.f32 0.0, %v5859
      %v5861 = vpop.f32.mrb[0].mxu0
      %5862 = vmatprep.mubr.bf16.mxu0 0
      %5863 = vmatmul.mubr.bf16.gmra.mrb[0].mxu0 %v5645
      %v5864 = vpop.f32.mrb[0].mxu0
      %v5865 = vadd.f32 0.0, %v5864
      %v5866 = vpop.f32.mrb[0].mxu0
      %v5867 = vpop.f32.mrb[0].mxu0
      %v5868 = vadd.f32 0.0, %v5867
      %v5869 = vpop.f32.mrb[0].mxu0
      %5870 = vdwg.mxu0
      %v5887 = vunpack.c.l.b16 %v5502
      %v5888 = vunpack.c.l.b16 %v5503
      %v5889 = vunpack.c.l.b16 %v5504
      %v5890 = vunpack.c.l.b16 %v5505
      %v5891 = vunpack.c.l.b16 %v5506
      %v5892 = vunpack.c.l.b16 %v5507
      %v5893 = vunpack.c.l.b16 %v5508
      %v5894 = vunpack.c.l.b16 %v5509
      %v5895 = vunpack.c.l.b16 %v5510
      %v5896 = vunpack.c.l.b16 %v5511
      %v5897 = vunpack.c.l.b16 %v5512
      %v5898 = vunpack.c.l.b16 %v5513
      %v5899 = vunpack.c.l.b16 %v5514
      %v5900 = vunpack.c.l.b16 %v5515
      %v5901 = vunpack.c.l.b16 %v5516
      %v5902 = vunpack.c.l.b16 %v5517
      %v5903 = vpack.c.b16 %v5888, %v5887
      %v5904 = vpack.c.b16 %v5890, %v5889
      %v5905 = vpack.c.b16 %v5892, %v5891
      %v5906 = vpack.c.b16 %v5894, %v5893
      %v5907 = vpack.c.b16 %v5896, %v5895
      %v5908 = vpack.c.b16 %v5898, %v5897
      %v5909 = vpack.c.b16 %v5900, %v5899
      %v5910 = vpack.c.b16 %v5902, %v5901
      %5919 = vmatprep.subr.bf16.mxu0 0
      %5920 = vmatpush1.bf16.msra.mxu0 %v5903
      %5921 = vmatprep.subr.bf16.mxu0 0
      %5922 = vmatpush1.bf16.msra.mxu0 %v5904
      %5923 = vmatprep.subr.bf16.mxu0 0
      %5924 = vmatpush1.bf16.msra.mxu0 %v5905
      %5925 = vmatprep.subr.bf16.mxu0 0
      %5926 = vmatpush1.bf16.msra.mxu0 %v5906
      %5927 = vmatprep.subr.bf16.mxu0 0
      %5928 = vmatpush1.bf16.msra.mxu0 %v5907
      %5929 = vmatprep.subr.bf16.mxu0 0
      %5930 = vmatpush1.bf16.msra.mxu0 %v5908
      %5931 = vmatprep.subr.bf16.mxu0 0
      %5932 = vmatpush1.bf16.msra.mxu0 %v5909
      %5933 = vmatprep.subr.bf16.mxu0 0
      %5934 = vmatpush1.bf16.msra.mxu0 %v5910
      %5935 = vmatprep.subr.bf16.mxu0 0
      %5936 = vmatpush1.bf16.msra.mxu0 0
      %5937 = vmatprep.subr.bf16.mxu0 0
      %5938 = vmatpush1.bf16.msra.mxu0 0
      %5939 = vmatprep.subr.bf16.mxu0 0
      %5940 = vmatpush1.bf16.msra.mxu0 0
      %5941 = vmatprep.subr.bf16.mxu0 0
      %5942 = vmatpush1.bf16.msra.mxu0 0
      %5943 = vmatprep.subr.bf16.mxu0 0
      %5944 = vmatpush1.bf16.msra.mxu0 0
      %5945 = vmatprep.subr.bf16.mxu0 0
      %5946 = vmatpush1.bf16.msra.mxu0 0
      %5947 = vmatprep.subr.bf16.mxu0 0
      %5948 = vmatpush1.bf16.msra.mxu0 0
      %5949 = vmatprep.subr.bf16.mxu0 0
      %5950 = vmatpush1.bf16.msra.mxu0 0
      %5951 = vmatprep.mubr.bf16.mxu0 0
      %5952 = vmatmul.mubr.bf16.gmra.mrb[0].mxu0 %v5486
      %v5953 = vpop.f32.mrb[0].mxu0
      %v5954 = vadd.f32 %v5745, %v5953
      %v5955 = vpop.f32.mrb[0].mxu0
      %v5956 = vpop.f32.mrb[0].mxu0
      %v5957 = vadd.f32 %v5748, %v5956
      %v5958 = vpop.f32.mrb[0].mxu0
      %5959 = vmatprep.mubr.bf16.mxu0 0
      %5960 = vmatmul.mubr.bf16.gmra.mrb[0].mxu0 %v5487
      %v5961 = vpop.f32.mrb[0].mxu0
      %v5962 = vadd.f32 %v5753, %v5961
      %v5963 = vpop.f32.mrb[0].mxu0
      %v5964 = vpop.f32.mrb[0].mxu0
      %v5965 = vadd.f32 %v5756, %v5964
      %v5966 = vpop.f32.mrb[0].mxu0
      %5967 = vmatprep.mubr.bf16.mxu0 0
      %5968 = vmatmul.mubr.bf16.gmra.mrb[0].mxu0 %v5488
      %v5969 = vpop.f32.mrb[0].mxu0
      %v5970 = vadd.f32 %v5761, %v5969
      %v5971 = vpop.f32.mrb[0].mxu0
      %v5972 = vpop.f32.mrb[0].mxu0
      %v5973 = vadd.f32 %v5764, %v5972
      %v5974 = vpop.f32.mrb[0].mxu0
      %5975 = vmatprep.mubr.bf16.mxu0 0
      %5976 = vmatmul.mubr.bf16.gmra.mrb[0].mxu0 %v5489
      %v5977 = vpop.f32.mrb[0].mxu0
      %v5978 = vadd.f32 %v5769, %v5977
      %v5979 = vpop.f32.mrb[0].mxu0
      %v5980 = vpop.f32.mrb[0].mxu0
      %v5981 = vadd.f32 %v5772, %v5980
      %v5982 = vpop.f32.mrb[0].mxu0
      %5983 = vmatprep.mubr.bf16.mxu0 0
      %5984 = vmatmul.mubr.bf16.gmra.mrb[0].mxu0 %v5490
      %v5985 = vpop.f32.mrb[0].mxu0
      %v5986 = vadd.f32 %v5777, %v5985
      %v5987 = vpop.f32.mrb[0].mxu0
      %v5988 = vpop.f32.mrb[0].mxu0
      %v5989 = vadd.f32 %v5780, %v5988
      %v5990 = vpop.f32.mrb[0].mxu0
      %5991 = vmatprep.mubr.bf16.mxu0 0
      %5992 = vmatmul.mubr.bf16.gmra.mrb[0].mxu0 %v5491
      %v5993 = vpop.f32.mrb[0].mxu0
      %v5994 = vadd.f32 %v5785, %v5993
      %v5995 = vpop.f32.mrb[0].mxu0
      %v5996 = vpop.f32.mrb[0].mxu0
      %v5997 = vadd.f32 %v5788, %v5996
      %v5998 = vpop.f32.mrb[0].mxu0
      %5999 = vmatprep.mubr.bf16.mxu0 0
      %6000 = vmatmul.mubr.bf16.gmra.mrb[0].mxu0 %v5492
      %v6001 = vpop.f32.mrb[0].mxu0
      %v6002 = vadd.f32 %v5793, %v6001
      %v6003 = vpop.f32.mrb[0].mxu0
      %v6004 = vpop.f32.mrb[0].mxu0
      %v6005 = vadd.f32 %v5796, %v6004
      %v6006 = vpop.f32.mrb[0].mxu0
      %6007 = vmatprep.mubr.bf16.mxu0 0
      %6008 = vmatmul.mubr.bf16.gmra.mrb[0].mxu0 %v5493
      %v6009 = vpop.f32.mrb[0].mxu0
      %v6010 = vadd.f32 %v5801, %v6009
      %v6011 = vpop.f32.mrb[0].mxu0
      %v6012 = vpop.f32.mrb[0].mxu0
      %v6013 = vadd.f32 %v5804, %v6012
      %v6014 = vpop.f32.mrb[0].mxu0
      %6015 = vmatprep.mubr.bf16.mxu0 0
      %6016 = vmatmul.mubr.bf16.gmra.mrb[0].mxu0 %v5494
      %v6017 = vpop.f32.mrb[0].mxu0
      %v6018 = vadd.f32 %v5809, %v6017
      %v6019 = vpop.f32.mrb[0].mxu0
      %v6020 = vpop.f32.mrb[0].mxu0
      %v6021 = vadd.f32 %v5812, %v6020
      %v6022 = vpop.f32.mrb[0].mxu0
      %6023 = vmatprep.mubr.bf16.mxu0 0
      %6024 = vmatmul.mubr.bf16.gmra.mrb[0].mxu0 %v5495
      %v6025 = vpop.f32.mrb[0].mxu0
      %v6026 = vadd.f32 %v5817, %v6025
      %v6027 = vpop.f32.mrb[0].mxu0
      %v6028 = vpop.f32.mrb[0].mxu0
      %v6029 = vadd.f32 %v5820, %v6028
      %v6030 = vpop.f32.mrb[0].mxu0
      %6031 = vmatprep.mubr.bf16.mxu0 0
      %6032 = vmatmul.mubr.bf16.gmra.mrb[0].mxu0 %v5496
      %v6033 = vpop.f32.mrb[0].mxu0
      %v6034 = vadd.f32 %v5825, %v6033
      %v6035 = vpop.f32.mrb[0].mxu0
      %v6036 = vpop.f32.mrb[0].mxu0
      %v6037 = vadd.f32 %v5828, %v6036
      %v6038 = vpop.f32.mrb[0].mxu0
      %6039 = vmatprep.mubr.bf16.mxu0 0
      %6040 = vmatmul.mubr.bf16.gmra.mrb[0].mxu0 %v5497
      %v6041 = vpop.f32.mrb[0].mxu0
      %v6042 = vadd.f32 %v5833, %v6041
      %v6043 = vpop.f32.mrb[0].mxu0
      %v6044 = vpop.f32.mrb[0].mxu0
      %v6045 = vadd.f32 %v5836, %v6044
      %v6046 = vpop.f32.mrb[0].mxu0
      %6047 = vmatprep.mubr.bf16.mxu0 0
      %6048 = vmatmul.mubr.bf16.gmra.mrb[0].mxu0 %v5498
      %v6049 = vpop.f32.mrb[0].mxu0
      %v6050 = vadd.f32 %v5841, %v6049
      %v6051 = vpop.f32.mrb[0].mxu0
      %v6052 = vpop.f32.mrb[0].mxu0
      %v6053 = vadd.f32 %v5844, %v6052
      %v6054 = vpop.f32.mrb[0].mxu0
      %6055 = vmatprep.mubr.bf16.mxu0 0
      %6056 = vmatmul.mubr.bf16.gmra.mrb[0].mxu0 %v5499
      %v6057 = vpop.f32.mrb[0].mxu0
      %v6058 = vadd.f32 %v5849, %v6057
      %v6059 = vpop.f32.mrb[0].mxu0
      %v6060 = vpop.f32.mrb[0].mxu0
      %v6061 = vadd.f32 %v5852, %v6060
      %v6062 = vpop.f32.mrb[0].mxu0
      %6063 = vmatprep.mubr.bf16.mxu0 0
      %6064 = vmatmul.mubr.bf16.gmra.mrb[0].mxu0 %v5500
      %v6065 = vpop.f32.mrb[0].mxu0
      %v6066 = vadd.f32 %v5857, %v6065
      %v6067 = vpop.f32.mrb[0].mxu0
      %v6068 = vpop.f32.mrb[0].mxu0
      %v6069 = vadd.f32 %v5860, %v6068
      %v6070 = vpop.f32.mrb[0].mxu0
      %6071 = vmatprep.mubr.bf16.mxu0 0
      %6072 = vmatmul.mubr.bf16.gmra.mrb[0].mxu0 %v5501
      %v6073 = vpop.f32.mrb[0].mxu0
      %v6074 = vadd.f32 %v5865, %v6073
      %v6075 = vpop.f32.mrb[0].mxu0
      %v6076 = vpop.f32.mrb[0].mxu0
      %v6077 = vadd.f32 %v5868, %v6076
      %v6078 = vpop.f32.mrb[0].mxu0
      %6079 = vdwg.mxu0
      %v6080 = vld [vmem:[%s8] sm:$0x1]
      %v6082 = vlaneseq
      %v6083 = vshrl.u32 %v6082, 7
      %v6084 = vsub.s32 0, %v6083
      %v6085 = vrot.slane %v6080, %v6084
      %v6087 = vmul.f32 %v5954, %v6085
      %v6088 = vmul.f32 %v5957, %v6085
      %v6089 = vmul.f32 %v5962, %v6085
      %v6090 = vmul.f32 %v5965, %v6085
      %v6091 = vmul.f32 %v5970, %v6085
      %v6092 = vmul.f32 %v5973, %v6085
      %v6093 = vmul.f32 %v5978, %v6085
      %v6094 = vmul.f32 %v5981, %v6085
      %v6095 = vmul.f32 %v5986, %v6085
      %v6096 = vmul.f32 %v5989, %v6085
      %v6097 = vmul.f32 %v5994, %v6085
      %v6098 = vmul.f32 %v5997, %v6085
      %v6099 = vmul.f32 %v6002, %v6085
      %v6100 = vmul.f32 %v6005, %v6085
      %v6101 = vmul.f32 %v6010, %v6085
      %v6102 = vmul.f32 %v6013, %v6085
      %v6103 = vmul.f32 %v6018, %v6085
      %v6104 = vmul.f32 %v6021, %v6085
      %v6105 = vmul.f32 %v6026, %v6085
      %v6106 = vmul.f32 %v6029, %v6085
      %v6107 = vmul.f32 %v6034, %v6085
      %v6108 = vmul.f32 %v6037, %v6085
      %v6109 = vmul.f32 %v6042, %v6085
      %v6110 = vmul.f32 %v6045, %v6085
      %v6111 = vmul.f32 %v6050, %v6085
      %v6112 = vmul.f32 %v6053, %v6085
      %v6113 = vmul.f32 %v6058, %v6085
      %v6114 = vmul.f32 %v6061, %v6085
      %v6115 = vmul.f32 %v6066, %v6085
      %v6116 = vmul.f32 %v6069, %v6085
      %v6117 = vmul.f32 %v6074, %v6085
      %v6118 = vmul.f32 %v6077, %v6085
      %v6119 = vld [vmem:[%s9] sm:$0x1]
      %v6121 = vlaneseq
      %v6122 = vshrl.u32 %v6121, 7
      %v6123 = vsub.s32 0, %v6122
      %v6124 = vrot.slane %v6119, %v6123
      %v6126 = vadd.f32 %v6087, %v6124
      %v6127 = vadd.f32 %v6088, %v6124
      %v6128 = vadd.f32 %v6089, %v6124
      %v6129 = vadd.f32 %v6090, %v6124
      %v6130 = vadd.f32 %v6091, %v6124
      %v6131 = vadd.f32 %v6092, %v6124
      %v6132 = vadd.f32 %v6093, %v6124
      %v6133 = vadd.f32 %v6094, %v6124
      %v6134 = vadd.f32 %v6095, %v6124
      %v6135 = vadd.f32 %v6096, %v6124
      %v6136 = vadd.f32 %v6097, %v6124
      %v6137 = vadd.f32 %v6098, %v6124
      %v6138 = vadd.f32 %v6099, %v6124
      %v6139 = vadd.f32 %v6100, %v6124
      %v6140 = vadd.f32 %v6101, %v6124
      %v6141 = vadd.f32 %v6102, %v6124
      %v6142 = vadd.f32 %v6103, %v6124
      %v6143 = vadd.f32 %v6104, %v6124
      %v6144 = vadd.f32 %v6105, %v6124
      %v6145 = vadd.f32 %v6106, %v6124
      %v6146 = vadd.f32 %v6107, %v6124
      %v6147 = vadd.f32 %v6108, %v6124
      %v6148 = vadd.f32 %v6109, %v6124
      %v6149 = vadd.f32 %v6110, %v6124
      %v6150 = vadd.f32 %v6111, %v6124
      %v6151 = vadd.f32 %v6112, %v6124
      %v6152 = vadd.f32 %v6113, %v6124
      %v6153 = vadd.f32 %v6114, %v6124
      %v6154 = vadd.f32 %v6115, %v6124
      %v6155 = vadd.f32 %v6116, %v6124
      %v6156 = vadd.f32 %v6117, %v6124
      %v6157 = vadd.f32 %v6118, %v6124
      %v6158 = vmul.f32 %v6126, 0.1
      %v6159 = vmul.f32 %v6127, 0.1
      %v6160 = vmul.f32 %v6128, 0.1
      %v6161 = vmul.f32 %v6129, 0.1
      %v6162 = vmul.f32 %v6130, 0.1
      %v6163 = vmul.f32 %v6131, 0.1
      %v6164 = vmul.f32 %v6132, 0.1
      %v6165 = vmul.f32 %v6133, 0.1
      %v6166 = vmul.f32 %v6134, 0.1
      %v6167 = vmul.f32 %v6135, 0.1
      %v6168 = vmul.f32 %v6136, 0.1
      %v6169 = vmul.f32 %v6137, 0.1
      %v6170 = vmul.f32 %v6138, 0.1
      %v6171 = vmul.f32 %v6139, 0.1
      %v6172 = vmul.f32 %v6140, 0.1
      %v6173 = vmul.f32 %v6141, 0.1
      %v6174 = vmul.f32 %v6142, 0.1
      %v6175 = vmul.f32 %v6143, 0.1
      %v6176 = vmul.f32 %v6144, 0.1
      %v6177 = vmul.f32 %v6145, 0.1
      %v6178 = vmul.f32 %v6146, 0.1
      %v6179 = vmul.f32 %v6147, 0.1
      %v6180 = vmul.f32 %v6148, 0.1
      %v6181 = vmul.f32 %v6149, 0.1
      %v6182 = vmul.f32 %v6150, 0.1
      %v6183 = vmul.f32 %v6151, 0.1
      %v6184 = vmul.f32 %v6152, 0.1
      %v6185 = vmul.f32 %v6153, 0.1
      %v6186 = vmul.f32 %v6154, 0.1
      %v6187 = vmul.f32 %v6155, 0.1
      %v6188 = vmul.f32 %v6156, 0.1
      %v6189 = vmul.f32 %v6157, 0.1
      %v6190 = vmax.f32 %v6126, %v6158
      %v6191 = vmax.f32 %v6127, %v6159
      %v6192 = vmax.f32 %v6128, %v6160
      %v6193 = vmax.f32 %v6129, %v6161
      %v6194 = vmax.f32 %v6130, %v6162
      %v6195 = vmax.f32 %v6131, %v6163
      %v6196 = vmax.f32 %v6132, %v6164
      %v6197 = vmax.f32 %v6133, %v6165
      %v6198 = vmax.f32 %v6134, %v6166
      %v6199 = vmax.f32 %v6135, %v6167
      %v6200 = vmax.f32 %v6136, %v6168
      %v6201 = vmax.f32 %v6137, %v6169
      %v6202 = vmax.f32 %v6138, %v6170
      %v6203 = vmax.f32 %v6139, %v6171
      %v6204 = vmax.f32 %v6140, %v6172
      %v6205 = vmax.f32 %v6141, %v6173
      %v6206 = vmax.f32 %v6142, %v6174
      %v6207 = vmax.f32 %v6143, %v6175
      %v6208 = vmax.f32 %v6144, %v6176
      %v6209 = vmax.f32 %v6145, %v6177
      %v6210 = vmax.f32 %v6146, %v6178
      %v6211 = vmax.f32 %v6147, %v6179
      %v6212 = vmax.f32 %v6148, %v6180
      %v6213 = vmax.f32 %v6149, %v6181
      %v6214 = vmax.f32 %v6150, %v6182
      %v6215 = vmax.f32 %v6151, %v6183
      %v6216 = vmax.f32 %v6152, %v6184
      %v6217 = vmax.f32 %v6153, %v6185
      %v6218 = vmax.f32 %v6154, %v6186
      %v6219 = vmax.f32 %v6155, %v6187
      %v6220 = vmax.f32 %v6156, %v6188
      %v6221 = vmax.f32 %v6157, %v6189
      %6222 = vst [vmem:[%s433] sm:$0xff] %v6190
      %6223 = vst [vmem:[%s433 + $0x8] sm:$0xff] %v6191
      %6224 = vst [vmem:[%s433 + $0x10] sm:$0xff] %v6192
      %6225 = vst [vmem:[%s433 + $0x18] sm:$0xff] %v6193
      %6226 = vst [vmem:[%s433 + $0x20] sm:$0xff] %v6194
      %6227 = vst [vmem:[%s433 + $0x28] sm:$0xff] %v6195
      %6228 = vst [vmem:[%s433 + $0x30] sm:$0xff] %v6196
      %6229 = vst [vmem:[%s433 + $0x38] sm:$0xff] %v6197
      %6230 = vst [vmem:[%s433 + $0x40] sm:$0xff] %v6198
      %6231 = vst [vmem:[%s433 + $0x48] sm:$0xff] %v6199
      %6232 = vst [vmem:[%s433 + $0x50] sm:$0xff] %v6200
      %6233 = vst [vmem:[%s433 + $0x58] sm:$0xff] %v6201
      %6234 = vst [vmem:[%s433 + $0x60] sm:$0xff] %v6202
      %6235 = vst [vmem:[%s433 + $0x68] sm:$0xff] %v6203
      %6236 = vst [vmem:[%s433 + $0x70] sm:$0xff] %v6204
      %6237 = vst [vmem:[%s433 + $0x78] sm:$0xff] %v6205
      %6238 = vst [vmem:[%s433 + $0x80] sm:$0xff] %v6206
      %6239 = vst [vmem:[%s433 + $0x88] sm:$0xff] %v6207
      %6240 = vst [vmem:[%s433 + $0x90] sm:$0xff] %v6208
      %6241 = vst [vmem:[%s433 + $0x98] sm:$0xff] %v6209
      %6242 = vst [vmem:[%s433 + $0xa0] sm:$0xff] %v6210
      %6243 = vst [vmem:[%s433 + $0xa8] sm:$0xff] %v6211
      %6244 = vst [vmem:[%s433 + $0xb0] sm:$0xff] %v6212
      %6245 = vst [vmem:[%s433 + $0xb8] sm:$0xff] %v6213
      %6246 = vst [vmem:[%s433 + $0xc0] sm:$0xff] %v6214
      %6247 = vst [vmem:[%s433 + $0xc8] sm:$0xff] %v6215
      %6248 = vst [vmem:[%s433 + $0xd0] sm:$0xff] %v6216
      %6249 = vst [vmem:[%s433 + $0xd8] sm:$0xff] %v6217
      %6250 = vst [vmem:[%s433 + $0xe0] sm:$0xff] %v6218
      %6251 = vst [vmem:[%s433 + $0xe8] sm:$0xff] %v6219
      %6252 = vst [vmem:[%s433 + $0xf0] sm:$0xff] %v6220
      %6253 = vst [vmem:[%s433 + $0xf8] sm:$0xff] %v6221
      %s6254 = sadd.s32 %s25, %s26
      %s6255 = smul.u32 32, %s6254
      %p6256 = scmp.lt.s32.totalorder %s6255, 63
      %s6257 = scalar_select %p6256, %s6255, 63
      %s6258 = smul.addr %s6257, 8
      %s6259 = scalar_lea.vmem %s10, %s6258
      // Predicated region
      $region61: #{c3_forward_nhwc.3} parent=59 // pred_check
        %p6260 = pneg %p282
      $region62: #{c3_forward_nhwc.3} parent=59 // pred_check_branch
        %6262 = sbr.rel (%p6260) target = $region64
      $region63: #{c3_forward_nhwc.3} parent=59 // pred_region
        %s6263 = sadd.s32 %s25, %s26
        %s6264 = smul.u32 32, %s6263
      $region64: #{c3_forward_nhwc.3} parent=59 // pred_fallthru
        _
    $region60: #{c3_forward_nhwc.3} parent=5 // pred_fallthru
      _
    %p6265 = scmp.le.s32.totalorder 2, %s16
    // Predicated region
    $region65: #{c3_forward_nhwc.3} parent=5 // pred_check
      %p6266 = pneg %p6265
    $region66: #{c3_forward_nhwc.3} parent=5 // pred_check_branch
      %6268 = sbr.rel (%p6266) target = $region68
    $region67: #{c3_forward_nhwc.3} parent=5 // pred_region
      %s6269 = ssub.s32 %s16, 2
      // Predicated region
      $region69: #{c3_forward_nhwc.3} parent=67 // pred_check
        %p6270 = pneg %p288
      $region70: #{c3_forward_nhwc.3} parent=67 // pred_check_branch
        %6272 = sbr.rel (%p6270) target = $region72
      $region71: #{c3_forward_nhwc.3} parent=67 // pred_region
        %s6273 = sadd.s32 %s27, %s28
        %s6274 = smul.u32 32, %s6273
        %p6275 = scmp.lt.s32.totalorder %s6274, 63
        %s6276 = scalar_select %p6275, %s6274, 63
        %s6277 = smul.addr %s6276, 8
        %s6278 = scalar_lea.vmem %s10, %s6277
      $region72: #{c3_forward_nhwc.3} parent=67 // pred_fallthru
        _
    $region68: #{c3_forward_nhwc.3} parent=5 // pred_fallthru
      _
  $region6: #{c3_forward_nhwc.3} parent=0 // loop_footer
    %s20 = sadd.s32 1, %s16
  $region7: #{c3_forward_nhwc.3} parent=0 // loop_footer_branch
    %15 = sbr.rel target = $region3
  $region8: #{c3_forward_nhwc.3} parent=0 // loop_exit
    _

</llo_original>
